<compile_context>
chip_gen: v7x
topology: tpu7x:2x2x1
jax: 0.10.0
libtpu: 0.0.40
codegen_flags: <defaults>
</compile_context>

<pallas_src>
import jax
import jax.numpy as jnp
from jax.experimental import pallas as pl
from jax.experimental.pallas import tpu as pltpu

EPS = 1e-5          # nn.BatchNorm2d default eps
LANE = 128          # keep the channel (last) dim a multiple of the lane width


def _round_up(x, m):
    return (x + m - 1) // m * m


def _pick_row_tile(m):
    # Prefer large tiles (256 rows reach ~63% of HBM roofline, 512-1024 ~85%);
    # cap at 1024 so (TM x C) double-buffered blocks fit v7x's smaller VMEM.
    for t in (1024, 512, 256, 128, 64, 32, 16, 8):
        if m % t == 0:
            return t
    return m


@jax.jit
def bottleneck_forward(x_nchw, params):
    """Bottleneck forward (stride=1, downsample=None -> identity shortcut).

    Expected parameter layouts (transpose real PyTorch weights before calling):
      w1: (Cin, P)     == conv1.weight[:, :, 0, 0].transpose(1, 0)
      w2: (3, 3, P, P) == conv2.weight.permute(2, 3, 1, 0)   (HWIO)
      w3: (P, 4P)      == conv3.weight[:, :, 0, 0].transpose(1, 0)
      g*/b*: (1, C)    == bn*.weight / bn*.bias
    """
    N, Cin, H, W = x_nchw.shape
    P = params["w1"].shape[1]
    Cout = params["w3"].shape[1]
    assert Cin == Cout, "downsample is None -> residual requires Cin == planes*4"
    # TODO(synk): stride>1 and the downsample branch are not implemented
    # (module defaults: stride=1, downsample=None); the shortcut is identity.
    # TODO(synk): BatchNorm running_mean/var (momentum) buffer updates are
    # omitted; they do not affect this forward output.

    Cinp = _round_up(Cin, LANE)
    Pp = _round_up(P, LANE)
    Cp = _round_up(Cout, LANE)
    HW = H * W
    M = N * HW
    TM = _pick_row_tile(M)
    T = M // TM
    inv_m = 1.0 / float(M)
    f32, bf16 = jnp.float32, jnp.bfloat16

    # ---- wrapper-side layout plumbing (lane-dense padded NHWC) --------------
    # TODO(synk): when chaining Bottleneck blocks, keep activations in padded
    # NHWC between blocks and only transpose/pad at the network boundary.
    x_nhwc = jnp.transpose(x_nchw, (0, 2, 3, 1)).astype(f32)
    x2d = jnp.pad(x_nhwc.reshape(M, Cin), ((0, 0), (0, Cinp - Cin))).astype(bf16)
    w1 = jnp.pad(params["w1"], ((0, Cinp - Cin), (0, Pp - P))).astype(bf16)
    w2 = jnp.pad(params["w2"], ((0, 0), (0, 0), (0, Pp - P), (0, Pp - P)))
    w2r = w2.reshape(9 * Pp, Pp).astype(bf16)       # rows ordered (ky, kx, cin)
    w3 = jnp.pad(params["w3"], ((0, Pp - P), (0, Cp - Cout))).astype(bf16)

    def padc(v, c):
        return jnp.pad(v.astype(f32), ((0, 0), (0, c - v.shape[1])))

    g1, b1 = padc(params["g1"], Pp), padc(params["b1"], Pp)
    g2, b2 = padc(params["g2"], Pp), padc(params["b2"], Pp)
    g3, b3 = padc(params["g3"], Cp), padc(params["b3"], Cp)

    # ---- shared in-kernel helpers -------------------------------------------
    def bn_affine(s_ref, g_ref, b_ref):
        # single-pass batch stats: var = E[x^2] - E[x]^2, gamma folded in.
        mean = s_ref[0:1, :] * inv_m
        var = jnp.maximum(s_ref[1:2, :] * inv_m - mean * mean, 0.0)
        scale = g_ref[...] * jax.lax.rsqrt(var + EPS)
        shift = b_ref[...] - mean * scale
        return scale, shift

    def write_stats(s_ref, t):
        # Per-tile partial (sum, sum_sq), two separate row stores; reduced in
        # the wrapper so every grid stays fully "parallel".
        s_ref[0, 0:1, :] = jnp.sum(t, axis=0, keepdims=True)
        s_ref[0, 1:2, :] = jnp.sum(t * t, axis=0, keepdims=True)

    # ---- K1: conv1 (1x1) + BN1 partial stats ---------------------------------
    def k1(x_ref, w_ref, t1_ref, s1_ref):
        t = jnp.dot(x_ref[...], w_ref[...], preferred_element_type=f32)
        t1_ref[...] = t.astype(bf16)
        write_stats(s1_ref, t)

    t1, s1p = pl.pallas_call(
        k1,
        out_shape=(jax.ShapeDtypeStruct((M, Pp), bf16),
                   jax.ShapeDtypeStruct((T, 2, Pp), f32)),
        grid=(T,),
        in_specs=[pl.BlockSpec((TM, Cinp), lambda i: (i, 0)),
                  pl.BlockSpec((Cinp, Pp), lambda i: (0, 0))],
        out_specs=(pl.BlockSpec((TM, Pp), lambda i: (i, 0)),
                   pl.BlockSpec((1, 2, Pp), lambda i: (i, 0, 0))),
        compiler_params=pltpu.CompilerParams(
            dimension_semantics=("parallel",)),
    )(x2d, w1)
    s1 = jnp.sum(s1p, axis=0)                      # tiny (2, Pp) XLA reduction

    # ---- K2: BN1+ReLU, 3x3 conv as 9 accumulated MXU matmuls ----------------
    def k2(t1_ref, s1_ref, g_ref, b_ref, w_ref, t2_ref, s2_ref):
        scale, shift = bn_affine(s1_ref, g_ref, b_ref)
        # f32 activation (padded channels stay exactly zero: g/b pads are 0).
        h = jnp.maximum(t1_ref[0].astype(f32) * scale + shift, 0.0)  # (HW, Pp)
        zrow = jnp.zeros((W, Pp), f32)
        hp = jnp.concatenate([zrow, h, zrow], axis=0)        # ((H+2)*W, Pp)
        col = jax.lax.broadcasted_iota(jnp.int32, (H, W, Pp), 1).reshape(HW, Pp)
        keep_l = col >= 1          # valid output positions for the x-1 tap
        keep_r = col <= W - 2      # valid output positions for the x+1 tap

        acc = jnp.zeros((HW, Pp), f32)
        for ky in range(3):                 # row shift: sublane-aligned slice
            base = hp[ky * W:ky * W + HW]
            for kx in range(3):             # col shift: XLU roll + f32 mask
                if kx == 0:
                    a = jnp.where(keep_l, pltpu.roll(base, 1, axis=0), 0.0)
                elif kx == 2:
                    a = jnp.where(keep_r, pltpu.roll(base, HW - 1, axis=0), 0.0)
                else:
                    a = base
                k = ky * 3 + kx
                acc = acc + jnp.dot(a.astype(bf16),
                                    w_ref[k * Pp:(k + 1) * Pp, :],
                                    preferred_element_type=f32)
        t2_ref[0] = acc.astype(bf16)
        write_stats(s2_ref, acc)

    t2, s2p = pl.pallas_call(
        k2,
        out_shape=(jax.ShapeDtypeStruct((N, HW, Pp), bf16),
                   jax.ShapeDtypeStruct((N, 2, Pp), f32)),
        grid=(N,),
        in_specs=[pl.BlockSpec((1, HW, Pp), lambda n: (n, 0, 0)),
                  pl.BlockSpec((2, Pp), lambda n: (0, 0)),
                  pl.BlockSpec((1, Pp), lambda n: (0, 0)),
                  pl.BlockSpec((1, Pp), lambda n: (0, 0)),
                  pl.BlockSpec((9 * Pp, Pp), lambda n: (0, 0))],
        out_specs=(pl.BlockSpec((1, HW, Pp), lambda n: (n, 0, 0)),
                   pl.BlockSpec((1, 2, Pp), lambda n: (n, 0, 0))),
        compiler_params=pltpu.CompilerParams(
            dimension_semantics=("parallel",)),
    )(t1.reshape(N, HW, Pp), s1, g1, b1, w2r)
    s2 = jnp.sum(s2p, axis=0)
    # TODO(synk): for very large H*W, additionally tile K2 over spatial row
    # bands (with halo rows) to bound VMEM; unnecessary at ResNet bottleneck
    # sizes now that the im2col patch is gone.

    # ---- K3: BN2+ReLU, conv3 (1x1) + BN3 partial stats ------------------------
    def k3(t2_ref, s2_ref, g_ref, b_ref, w_ref, t3_ref, s3_ref):
        scale, shift = bn_affine(s2_ref, g_ref, b_ref)
        h = jnp.maximum(t2_ref[...].astype(f32) * scale + shift, 0.0)
        t = jnp.dot(h.astype(bf16), w_ref[...], preferred_element_type=f32)
        t3_ref[...] = t.astype(bf16)
        write_stats(s3_ref, t)

    t3, s3p = pl.pallas_call(
        k3,
        out_shape=(jax.ShapeDtypeStruct((M, Cp), bf16),
                   jax.ShapeDtypeStruct((T, 2, Cp), f32)),
        grid=(T,),
        in_specs=[pl.BlockSpec((TM, Pp), lambda i: (i, 0)),
                  pl.BlockSpec((2, Pp), lambda i: (0, 0)),
                  pl.BlockSpec((1, Pp), lambda i: (0, 0)),
                  pl.BlockSpec((1, Pp), lambda i: (0, 0)),
                  pl.BlockSpec((Pp, Cp), lambda i: (0, 0))],
        out_specs=(pl.BlockSpec((TM, Cp), lambda i: (i, 0)),
                   pl.BlockSpec((1, 2, Cp), lambda i: (i, 0, 0))),
        compiler_params=pltpu.CompilerParams(
            dimension_semantics=("parallel",)),
    )(t2.reshape(M, Pp), s2, g2, b2, w3)
    s3 = jnp.sum(s3p, axis=0)

    # ---- K4: BN3 + residual + ReLU -------------------------------------------
    def k4(t3_ref, s3_ref, g_ref, b_ref, x_ref, o_ref):
        scale, shift = bn_affine(s3_ref, g_ref, b_ref)
        o_ref[...] = jnp.maximum(
            t3_ref[...].astype(f32) * scale + shift + x_ref[...].astype(f32),
            0.0)

    out2d = pl.pallas_call(
        k4,
        out_shape=jax.ShapeDtypeStruct((M, Cp), f32),
        grid=(T,),
        in_specs=[pl.BlockSpec((TM, Cp), lambda i: (i, 0)),
                  pl.BlockSpec((2, Cp), lambda i: (0, 0)),
                  pl.BlockSpec((1, Cp), lambda i: (0, 0)),
                  pl.BlockSpec((1, Cp), lambda i: (0, 0)),
                  pl.BlockSpec((TM, Cinp), lambda i: (i, 0))],
        out_specs=pl.BlockSpec((TM, Cp), lambda i: (i, 0)),
        compiler_params=pltpu.CompilerParams(
            dimension_semantics=("parallel",)),
    )(t3, s3, g3, b3, x2d)

    out = out2d.reshape(N, H, W, Cp)[..., :Cout]
    return jnp.transpose(out, (0, 3, 1, 2))   # back to NCHW


def _reference_forward(x_nchw, params):
    """Pure-JAX f32 reference (training-mode BN with biased batch variance)."""
    x = jnp.transpose(x_nchw, (0, 2, 3, 1)).astype(jnp.float32)

    def bn(t, g, b):
        m = jnp.mean(t, axis=(0, 1, 2), keepdims=True)
        v = jnp.mean(jnp.square(t - m), axis=(0, 1, 2), keepdims=True)
        return ((t - m) * jax.lax.rsqrt(v + EPS) * g.reshape(1, 1, 1, -1)
                + b.reshape(1, 1, 1, -1))

    h = jnp.einsum("nhwc,cd->nhwd", x, params["w1"])
    h = jnp.maximum(bn(h, params["g1"], params["b1"]), 0.0)
    h = jax.lax.conv_general_dilated(
        h, params["w2"], window_strides=(1, 1), padding="SAME",
        dimension_numbers=("NHWC", "HWIO", "NHWC"))
    h = jnp.maximum(bn(h, params["g2"], params["b2"]), 0.0)
    h = jnp.einsum("nhwc,cd->nhwd", h, params["w3"])
    h = bn(h, params["g3"], params["b3"])
    return jnp.transpose(jnp.maximum(h + x, 0.0), (0, 3, 1, 2))


if __name__ == "__main__":
    key = jax.random.PRNGKey(0)
    N, H, W = 2, 16, 16
    planes = 8
    inplanes = planes * 4          # identity shortcut (downsample=None)

    ks = jax.random.split(key, 10)
    s = 0.1
    params = {
        "w1": jax.random.normal(ks[0], (inplanes, planes), jnp.float32) * s,
        "g1": 1.0 + 0.1 * jax.random.normal(ks[1], (1, planes), jnp.float32),
        "b1": 0.1 * jax.random.normal(ks[2], (1, planes), jnp.float32),
        "w2": jax.random.normal(ks[3], (3, 3, planes, planes), jnp.float32) * s,
        "g2": 1.0 + 0.1 * jax.random.normal(ks[4], (1, planes), jnp.float32),
        "b2": 0.1 * jax.random.normal(ks[5], (1, planes), jnp.float32),
        "w3": jax.random.normal(ks[6], (planes, planes * 4), jnp.float32) * s,
        "g3": 1.0 + 0.1 * jax.random.normal(ks[7], (1, planes * 4), jnp.float32),
        "b3": 0.1 * jax.random.normal(ks[8], (1, planes * 4), jnp.float32),
    }
    x = jax.random.normal(ks[9], (N, inplanes, H, W), jnp.float32)

    y = bottleneck_forward(x, params)
    jax.block_until_ready(y)

    assert y.shape == (N, planes * 4, H, W)
    assert bool(jnp.all(jnp.isfinite(y)))
    assert bool(jnp.all(y >= 0.0))                     # final ReLU

    y_ref = _reference_forward(x, params)
    max_err = float(jnp.max(jnp.abs(y - y_ref)))
    mean_err = float(jnp.mean(jnp.abs(y - y_ref)))
    # bf16 MXU operands + bf16 intermediates vs f32 reference -> loose but
    # bug-catching tolerances (a wrong tap/shift would be O(1) off).
    assert max_err < 0.30 and mean_err < 0.06, (max_err, mean_err)
    print("KERNEL_OK")
</pallas_src>

<mosaic_0001>
module attributes {stable_mosaic.version = 11 : i64} {
  func.func @k1(%arg0: i32, %arg1: memref<512x128xbf16, #tpu.memory_space<vmem>>, %arg2: memref<128x128xbf16, #tpu.memory_space<vmem>>, %arg3: memref<512x128xbf16, #tpu.memory_space<vmem>>, %arg4: memref<1x2x128xf32, #tpu.memory_space<vmem>>) attributes {dimension_semantics = [#tpu.dimension_semantics<parallel>], iteration_bounds = array<i64: 1>, scalar_prefetch = 0 : i64, scratch_operands = 0 : i64, tpu.core_type = #tpu.core_type<tc>, window_params = [{transform_indices = @transform_0, window_bounds = array<i64: 512, 128>}, {pipeline_mode = #tpu.pipeline_mode<synchronous>, transform_indices = @transform_1, window_bounds = array<i64: 128, 128>}, {transform_indices = @transform_2, window_bounds = array<i64: 512, 128>}, {transform_indices = @transform_3, window_bounds = array<i64: 1, 2, 128>}]} {
    %c0 = arith.constant 0 : index
    %c0_0 = arith.constant 0 : index
    %0 = vector.load %arg1[%c0, %c0_0] : memref<512x128xbf16, #tpu.memory_space<vmem>>, vector<512x128xbf16>
    %c0_1 = arith.constant 0 : index
    %c0_2 = arith.constant 0 : index
    %1 = vector.load %arg2[%c0_1, %c0_2] : memref<128x128xbf16, #tpu.memory_space<vmem>>, vector<128x128xbf16>
    %cst = arith.constant dense<0.000000e+00> : vector<512x128xf32>
    %2 = tpu.matmul %0, %1, %cst {dimension_numbers = #tpu.dot_dimension_numbers<[1], [0], [0], [1], [0, 0, 1, 1], [], []>} : vector<512x128xbf16>, vector<128x128xbf16>, vector<512x128xf32> -> vector<512x128xf32>
    %3 = arith.truncf %2 : vector<512x128xf32> to vector<512x128xbf16>
    %c0_3 = arith.constant 0 : index
    %c0_4 = arith.constant 0 : index
    %4 = vector.load %arg3[%c0_3, %c0_4] : memref<512x128xbf16, #tpu.memory_space<vmem>>, vector<512x128xbf16>
    tpu.vector_store %arg3[%c0_3, %c0_4], %3 {strides = array<i32>} : memref<512x128xbf16, #tpu.memory_space<vmem>>, vector<512x128xbf16>,
    %cst_5 = arith.constant dense<0.000000e+00> : vector<128xf32>
    %5 = vector.multi_reduction <add>, %2, %cst_5 [0] : vector<512x128xf32> to vector<128xf32>
    %6 = vector.shape_cast %5 : vector<128xf32> to vector<1x128xf32>
    %c0_6 = arith.constant 0 : index
    %c0_7 = arith.constant 0 : index
    %c0_8 = arith.constant 0 : index
    %7 = vector.load %arg4[%c0_6, %c0_7, %c0_8] : memref<1x2x128xf32, #tpu.memory_space<vmem>>, vector<1x1x128xf32>
    %8 = vector.shape_cast %7 : vector<1x1x128xf32> to vector<1x128xf32>
    %9 = vector.shape_cast %6 : vector<1x128xf32> to vector<1x1x128xf32>
    tpu.vector_store %arg4[%c0_6, %c0_7, %c0_8], %9 {strides = array<i32>} : memref<1x2x128xf32, #tpu.memory_space<vmem>>, vector<1x1x128xf32>,
    %10 = arith.mulf %2, %2 : vector<512x128xf32>
    %cst_9 = arith.constant dense<0.000000e+00> : vector<128xf32>
    %11 = vector.multi_reduction <add>, %10, %cst_9 [0] : vector<512x128xf32> to vector<128xf32>
    %12 = vector.shape_cast %11 : vector<128xf32> to vector<1x128xf32>
    %c0_10 = arith.constant 0 : index
    %c1 = arith.constant 1 : index
    %c0_11 = arith.constant 0 : index
    %13 = vector.load %arg4[%c0_10, %c1, %c0_11] : memref<1x2x128xf32, #tpu.memory_space<vmem>>, vector<1x1x128xf32>
    %14 = vector.shape_cast %13 : vector<1x1x128xf32> to vector<1x128xf32>
    %15 = vector.shape_cast %12 : vector<1x128xf32> to vector<1x1x128xf32>
    tpu.vector_store %arg4[%c0_10, %c1, %c0_11], %15 {strides = array<i32>} : memref<1x2x128xf32, #tpu.memory_space<vmem>>, vector<1x1x128xf32>,
    return
  }
  func.func @transform_0(%arg0: i32) -> (i32, i32) {
    %c0_i32 = arith.constant 0 : i32
    %c0_i32_0 = arith.constant 0 : i32
    return %arg0, %c0_i32 : i32, i32
  }
  func.func @transform_1(%arg0: i32) -> (i32, i32) {
    %c0_i32 = arith.constant 0 : i32
    %c0_i32_0 = arith.constant 0 : i32
    %c0_i32_1 = arith.constant 0 : i32
    return %c0_i32, %c0_i32_0 : i32, i32
  }
  func.func @transform_2(%arg0: i32) -> (i32, i32) {
    %c0_i32 = arith.constant 0 : i32
    %c0_i32_0 = arith.constant 0 : i32
    return %arg0, %c0_i32 : i32, i32
  }
  func.func @transform_3(%arg0: i32) -> (i32, i32, i32) {
    %c0_i32 = arith.constant 0 : i32
    %c0_i32_0 = arith.constant 0 : i32
    %c0_i32_1 = arith.constant 0 : i32
    return %arg0, %c0_i32, %c0_i32_0 : i32, i32, i32
  }
}

module attributes {stable_mosaic.version = 11 : i64} {
  func.func @k2(%arg0: i32, %arg1: memref<1x256x128xbf16, #tpu.memory_space<vmem>>, %arg2: memref<2x128xf32, #tpu.memory_space<vmem>>, %arg3: memref<1x128xf32, #tpu.memory_space<vmem>>, %arg4: memref<1x128xf32, #tpu.memory_space<vmem>>, %arg5: memref<1152x128xbf16, #tpu.memory_space<vmem>>, %arg6: memref<1x256x128xbf16, #tpu.memory_space<vmem>>, %arg7: memref<1x2x128xf32, #tpu.memory_space<vmem>>) attributes {dimension_semantics = [#tpu.dimension_semantics<parallel>], iteration_bounds = array<i64: 2>, scalar_prefetch = 0 : i64, scratch_operands = 0 : i64, tpu.core_type = #tpu.core_type<tc>, window_params = [{transform_indices = @transform_0, window_bounds = array<i64: 1, 256, 128>}, {pipeline_mode = #tpu.pipeline_mode<synchronous>, transform_indices = @transform_1, window_bounds = array<i64: 2, 128>}, {pipeline_mode = #tpu.pipeline_mode<synchronous>, transform_indices = @transform_2, window_bounds = array<i64: 1, 128>}, {pipeline_mode = #tpu.pipeline_mode<synchronous>, transform_indices = @transform_3, window_bounds = array<i64: 1, 128>}, {pipeline_mode = #tpu.pipeline_mode<synchronous>, transform_indices = @transform_4, window_bounds = array<i64: 1152, 128>}, {transform_indices = @transform_5, window_bounds = array<i64: 1, 256, 128>}, {transform_indices = @transform_6, window_bounds = array<i64: 1, 2, 128>}]} {
    %c0 = arith.constant 0 : index
    %c0_0 = arith.constant 0 : index
    %0 = vector.load %arg2[%c0, %c0_0] : memref<2x128xf32, #tpu.memory_space<vmem>>, vector<1x128xf32>
    %cst = arith.constant 0.001953125 : f32
    %1 = vector.broadcast %cst : f32 to vector<1x128xf32>
    %2 = arith.mulf %0, %1 : vector<1x128xf32>
    %c1 = arith.constant 1 : index
    %c0_1 = arith.constant 0 : index
    %3 = vector.load %arg2[%c1, %c0_1] : memref<2x128xf32, #tpu.memory_space<vmem>>, vector<1x128xf32>
    %cst_2 = arith.constant 0.001953125 : f32
    %4 = vector.broadcast %cst_2 : f32 to vector<1x128xf32>
    %5 = arith.mulf %3, %4 : vector<1x128xf32>
    %6 = arith.mulf %2, %2 : vector<1x128xf32>
    %7 = arith.subf %5, %6 : vector<1x128xf32>
    %cst_3 = arith.constant 0.000000e+00 : f32
    %8 = vector.broadcast %cst_3 : f32 to vector<1x128xf32>
    %9 = arith.maximumf %7, %8 : vector<1x128xf32>
    %c0_4 = arith.constant 0 : index
    %c0_5 = arith.constant 0 : index
    %10 = vector.load %arg3[%c0_4, %c0_5] : memref<1x128xf32, #tpu.memory_space<vmem>>, vector<1x128xf32>
    %cst_6 = arith.constant 9.99999974E-6 : f32
    %11 = vector.broadcast %cst_6 : f32 to vector<1x128xf32>
    %12 = arith.addf %9, %11 : vector<1x128xf32>
    %13 = math.rsqrt %12 : vector<1x128xf32>
    %14 = arith.mulf %10, %13 : vector<1x128xf32>
    %c0_7 = arith.constant 0 : index
    %c0_8 = arith.constant 0 : index
    %15 = vector.load %arg4[%c0_7, %c0_8] : memref<1x128xf32, #tpu.memory_space<vmem>>, vector<1x128xf32>
    %16 = arith.mulf %2, %14 : vector<1x128xf32>
    %17 = arith.subf %15, %16 : vector<1x128xf32>
    %c0_9 = arith.constant 0 : index
    %c0_10 = arith.constant 0 : index
    %c0_11 = arith.constant 0 : index
    %18 = vector.load %arg1[%c0_9, %c0_10, %c0_11] : memref<1x256x128xbf16, #tpu.memory_space<vmem>>, vector<1x256x128xbf16>
    %19 = vector.shape_cast %18 : vector<1x256x128xbf16> to vector<256x128xbf16>
    %20 = arith.extf %19 : vector<256x128xbf16> to vector<256x128xf32>
    %21 = vector.broadcast %14 : vector<1x128xf32> to vector<256x128xf32>
    %22 = arith.mulf %20, %21 : vector<256x128xf32>
    %23 = vector.broadcast %17 : vector<1x128xf32> to vector<256x128xf32>
    %24 = arith.addf %22, %23 : vector<256x128xf32>
    %cst_12 = arith.constant 0.000000e+00 : f32
    %25 = vector.broadcast %cst_12 : f32 to vector<256x128xf32>
    %26 = arith.maximumf %24, %25 : vector<256x128xf32>
    %cst_13 = arith.constant 0.000000e+00 : f32
    %27 = vector.broadcast %cst_13 : f32 to vector<16x128xf32>
    %28 = tpu.concatenate %27, %26, %27 in 0 : vector<16x128xf32>, vector<256x128xf32>, vector<16x128xf32> -> vector<288x128xf32>
    %29 = tpu.iota {dimensions = array<i32: 1>} : vector<16x16x128xi32>
    %30 = vector.shape_cast %29 : vector<16x16x128xi32> to vector<256x128xi32>
    %c1_i32 = arith.constant 1 : i32
    %31 = vector.broadcast %c1_i32 : i32 to vector<256x128xi32>
    %32 = arith.cmpi sge, %30, %31 : vector<256x128xi32>
    %c14_i32 = arith.constant 14 : i32
    %33 = vector.broadcast %c14_i32 : i32 to vector<256x128xi32>
    %34 = arith.cmpi sle, %30, %33 : vector<256x128xi32>
    %cst_14 = arith.constant 0.000000e+00 : f32
    %35 = vector.broadcast %cst_14 : f32 to vector<256x128xf32>
    %36 = vector.extract_strided_slice %28 {offsets = [0, 0], sizes = [256, 128], strides = [1, 1]} : vector<288x128xf32> to vector<256x128xf32>
    %c1_i32_15 = arith.constant 1 : i32
    %37 = tpu.dynamic_rotate %36 by %c1_i32_15 dim 0 : vector<256x128xf32>, i32 -> vector<256x128xf32>
    %cst_16 = arith.constant 0.000000e+00 : f32
    %38 = vector.broadcast %cst_16 : f32 to vector<256x128xf32>
    %39 = arith.select %32, %37, %38 : vector<256x128xi1>, vector<256x128xf32>
    %40 = arith.truncf %39 : vector<256x128xf32> to vector<256x128xbf16>
    %c0_17 = arith.constant 0 : index
    %c0_18 = arith.constant 0 : index
    %41 = vector.load %arg5[%c0_17, %c0_18] : memref<1152x128xbf16, #tpu.memory_space<vmem>>, vector<128x128xbf16>
    %cst_19 = arith.constant dense<0.000000e+00> : vector<256x128xf32>
    %42 = tpu.matmul %40, %41, %cst_19 {dimension_numbers = #tpu.dot_dimension_numbers<[1], [0], [0], [1], [0, 0, 1, 1], [], []>} : vector<256x128xbf16>, vector<128x128xbf16>, vector<256x128xf32> -> vector<256x128xf32>
    %43 = arith.addf %35, %42 : vector<256x128xf32>
    %44 = arith.truncf %36 : vector<256x128xf32> to vector<256x128xbf16>
    %c128 = arith.constant 128 : index
    %c0_20 = arith.constant 0 : index
    %45 = vector.load %arg5[%c128, %c0_20] : memref<1152x128xbf16, #tpu.memory_space<vmem>>, vector<128x128xbf16>
    %cst_21 = arith.constant dense<0.000000e+00> : vector<256x128xf32>
    %46 = tpu.matmul %44, %45, %cst_21 {dimension_numbers = #tpu.dot_dimension_numbers<[1], [0], [0], [1], [0, 0, 1, 1], [], []>} : vector<256x128xbf16>, vector<128x128xbf16>, vector<256x128xf32> -> vector<256x128xf32>
    %47 = arith.addf %43, %46 : vector<256x128xf32>
    %c255_i32 = arith.constant 255 : i32
    %48 = tpu.dynamic_rotate %36 by %c255_i32 dim 0 : vector<256x128xf32>, i32 -> vector<256x128xf32>
    %cst_22 = arith.constant 0.000000e+00 : f32
    %49 = vector.broadcast %cst_22 : f32 to vector<256x128xf32>
    %50 = arith.select %34, %48, %49 : vector<256x128xi1>, vector<256x128xf32>
    %51 = arith.truncf %50 : vector<256x128xf32> to vector<256x128xbf16>
    %c256 = arith.constant 256 : index
    %c0_23 = arith.constant 0 : index
    %52 = vector.load %arg5[%c256, %c0_23] : memref<1152x128xbf16, #tpu.memory_space<vmem>>, vector<128x128xbf16>
    %cst_24 = arith.constant dense<0.000000e+00> : vector<256x128xf32>
    %53 = tpu.matmul %51, %52, %cst_24 {dimension_numbers = #tpu.dot_dimension_numbers<[1], [0], [0], [1], [0, 0, 1, 1], [], []>} : vector<256x128xbf16>, vector<128x128xbf16>, vector<256x128xf32> -> vector<256x128xf32>
    %54 = arith.addf %47, %53 : vector<256x128xf32>
    %55 = vector.extract_strided_slice %28 {offsets = [16, 0], sizes = [256, 128], strides = [1, 1]} : vector<288x128xf32> to vector<256x128xf32>
    %c1_i32_25 = arith.constant 1 : i32
    %56 = tpu.dynamic_rotate %55 by %c1_i32_25 dim 0 : vector<256x128xf32>, i32 -> vector<256x128xf32>
    %cst_26 = arith.constant 0.000000e+00 : f32
    %57 = vector.broadcast %cst_26 : f32 to vector<256x128xf32>
    %58 = arith.select %32, %56, %57 : vector<256x128xi1>, vector<256x128xf32>
    %59 = arith.truncf %58 : vector<256x128xf32> to vector<256x128xbf16>
    %c384 = arith.constant 384 : index
    %c0_27 = arith.constant 0 : index
    %60 = vector.load %arg5[%c384, %c0_27] : memref<1152x128xbf16, #tpu.memory_space<vmem>>, vector<128x128xbf16>
    %cst_28 = arith.constant dense<0.000000e+00> : vector<256x128xf32>
    %61 = tpu.matmul %59, %60, %cst_28 {dimension_numbers = #tpu.dot_dimension_numbers<[1], [0], [0], [1], [0, 0, 1, 1], [], []>} : vector<256x128xbf16>, vector<128x128xbf16>, vector<256x128xf32> -> vector<256x128xf32>
    %62 = arith.addf %54, %61 : vector<256x128xf32>
    %63 = arith.truncf %55 : vector<256x128xf32> to vector<256x128xbf16>
    %c512 = arith.constant 512 : index
    %c0_29 = arith.constant 0 : index
    %64 = vector.load %arg5[%c512, %c0_29] : memref<1152x128xbf16, #tpu.memory_space<vmem>>, vector<128x128xbf16>
    %cst_30 = arith.constant dense<0.000000e+00> : vector<256x128xf32>
    %65 = tpu.matmul %63, %64, %cst_30 {dimension_numbers = #tpu.dot_dimension_numbers<[1], [0], [0], [1], [0, 0, 1, 1], [], []>} : vector<256x128xbf16>, vector<128x128xbf16>, vector<256x128xf32> -> vector<256x128xf32>
    %66 = arith.addf %62, %65 : vector<256x128xf32>
    %c255_i32_31 = arith.constant 255 : i32
    %67 = tpu.dynamic_rotate %55 by %c255_i32_31 dim 0 : vector<256x128xf32>, i32 -> vector<256x128xf32>
    %cst_32 = arith.constant 0.000000e+00 : f32
    %68 = vector.broadcast %cst_32 : f32 to vector<256x128xf32>
    %69 = arith.select %34, %67, %68 : vector<256x128xi1>, vector<256x128xf32>
    %70 = arith.truncf %69 : vector<256x128xf32> to vector<256x128xbf16>
    %c640 = arith.constant 640 : index
    %c0_33 = arith.constant 0 : index
    %71 = vector.load %arg5[%c640, %c0_33] : memref<1152x128xbf16, #tpu.memory_space<vmem>>, vector<128x128xbf16>
    %cst_34 = arith.constant dense<0.000000e+00> : vector<256x128xf32>
    %72 = tpu.matmul %70, %71, %cst_34 {dimension_numbers = #tpu.dot_dimension_numbers<[1], [0], [0], [1], [0, 0, 1, 1], [], []>} : vector<256x128xbf16>, vector<128x128xbf16>, vector<256x128xf32> -> vector<256x128xf32>
    %73 = arith.addf %66, %72 : vector<256x128xf32>
    %74 = vector.extract_strided_slice %28 {offsets = [32, 0], sizes = [256, 128], strides = [1, 1]} : vector<288x128xf32> to vector<256x128xf32>
    %c1_i32_35 = arith.constant 1 : i32
    %75 = tpu.dynamic_rotate %74 by %c1_i32_35 dim 0 : vector<256x128xf32>, i32 -> vector<256x128xf32>
    %cst_36 = arith.constant 0.000000e+00 : f32
    %76 = vector.broadcast %cst_36 : f32 to vector<256x128xf32>
    %77 = arith.select %32, %75, %76 : vector<256x128xi1>, vector<256x128xf32>
    %78 = arith.truncf %77 : vector<256x128xf32> to vector<256x128xbf16>
    %c768 = arith.constant 768 : index
    %c0_37 = arith.constant 0 : index
    %79 = vector.load %arg5[%c768, %c0_37] : memref<1152x128xbf16, #tpu.memory_space<vmem>>, vector<128x128xbf16>
    %cst_38 = arith.constant dense<0.000000e+00> : vector<256x128xf32>
    %80 = tpu.matmul %78, %79, %cst_38 {dimension_numbers = #tpu.dot_dimension_numbers<[1], [0], [0], [1], [0, 0, 1, 1], [], []>} : vector<256x128xbf16>, vector<128x128xbf16>, vector<256x128xf32> -> vector<256x128xf32>
    %81 = arith.addf %73, %80 : vector<256x128xf32>
    %82 = arith.truncf %74 : vector<256x128xf32> to vector<256x128xbf16>
    %c896 = arith.constant 896 : index
    %c0_39 = arith.constant 0 : index
    %83 = vector.load %arg5[%c896, %c0_39] : memref<1152x128xbf16, #tpu.memory_space<vmem>>, vector<128x128xbf16>
    %cst_40 = arith.constant dense<0.000000e+00> : vector<256x128xf32>
    %84 = tpu.matmul %82, %83, %cst_40 {dimension_numbers = #tpu.dot_dimension_numbers<[1], [0], [0], [1], [0, 0, 1, 1], [], []>} : vector<256x128xbf16>, vector<128x128xbf16>, vector<256x128xf32> -> vector<256x128xf32>
    %85 = arith.addf %81, %84 : vector<256x128xf32>
    %c255_i32_41 = arith.constant 255 : i32
    %86 = tpu.dynamic_rotate %74 by %c255_i32_41 dim 0 : vector<256x128xf32>, i32 -> vector<256x128xf32>
    %cst_42 = arith.constant 0.000000e+00 : f32
    %87 = vector.broadcast %cst_42 : f32 to vector<256x128xf32>
    %88 = arith.select %34, %86, %87 : vector<256x128xi1>, vector<256x128xf32>
    %89 = arith.truncf %88 : vector<256x128xf32> to vector<256x128xbf16>
    %c1024 = arith.constant 1024 : index
    %c0_43 = arith.constant 0 : index
    %90 = vector.load %arg5[%c1024, %c0_43] : memref<1152x128xbf16, #tpu.memory_space<vmem>>, vector<128x128xbf16>
    %cst_44 = arith.constant dense<0.000000e+00> : vector<256x128xf32>
    %91 = tpu.matmul %89, %90, %cst_44 {dimension_numbers = #tpu.dot_dimension_numbers<[1], [0], [0], [1], [0, 0, 1, 1], [], []>} : vector<256x128xbf16>, vector<128x128xbf16>, vector<256x128xf32> -> vector<256x128xf32>
    %92 = arith.addf %85, %91 : vector<256x128xf32>
    %93 = arith.truncf %92 : vector<256x128xf32> to vector<256x128xbf16>
    %c0_45 = arith.constant 0 : index
    %c0_46 = arith.constant 0 : index
    %c0_47 = arith.constant 0 : index
    %94 = vector.load %arg6[%c0_45, %c0_46, %c0_47] : memref<1x256x128xbf16, #tpu.memory_space<vmem>>, vector<1x256x128xbf16>
    %95 = vector.shape_cast %94 : vector<1x256x128xbf16> to vector<256x128xbf16>
    %96 = vector.shape_cast %93 : vector<256x128xbf16> to vector<1x256x128xbf16>
    tpu.vector_store %arg6[%c0_45, %c0_46, %c0_47], %96 {strides = array<i32>} : memref<1x256x128xbf16, #tpu.memory_space<vmem>>, vector<1x256x128xbf16>,
    %cst_48 = arith.constant dense<0.000000e+00> : vector<128xf32>
    %97 = vector.multi_reduction <add>, %92, %cst_48 [0] : vector<256x128xf32> to vector<128xf32>
    %98 = vector.shape_cast %97 : vector<128xf32> to vector<1x128xf32>
    %c0_49 = arith.constant 0 : index
    %c0_50 = arith.constant 0 : index
    %c0_51 = arith.constant 0 : index
    %99 = vector.load %arg7[%c0_49, %c0_50, %c0_51] : memref<1x2x128xf32, #tpu.memory_space<vmem>>, vector<1x1x128xf32>
    %100 = vector.shape_cast %99 : vector<1x1x128xf32> to vector<1x128xf32>
    %101 = vector.shape_cast %98 : vector<1x128xf32> to vector<1x1x128xf32>
    tpu.vector_store %arg7[%c0_49, %c0_50, %c0_51], %101 {strides = array<i32>} : memref<1x2x128xf32, #tpu.memory_space<vmem>>, vector<1x1x128xf32>,
    %102 = arith.mulf %92, %92 : vector<256x128xf32>
    %cst_52 = arith.constant dense<0.000000e+00> : vector<128xf32>
    %103 = vector.multi_reduction <add>, %102, %cst_52 [0] : vector<256x128xf32> to vector<128xf32>
    %104 = vector.shape_cast %103 : vector<128xf32> to vector<1x128xf32>
    %c0_53 = arith.constant 0 : index
    %c1_54 = arith.constant 1 : index
    %c0_55 = arith.constant 0 : index
    %105 = vector.load %arg7[%c0_53, %c1_54, %c0_55] : memref<1x2x128xf32, #tpu.memory_space<vmem>>, vector<1x1x128xf32>
    %106 = vector.shape_cast %105 : vector<1x1x128xf32> to vector<1x128xf32>
    %107 = vector.shape_cast %104 : vector<1x128xf32> to vector<1x1x128xf32>
    tpu.vector_store %arg7[%c0_53, %c1_54, %c0_55], %107 {strides = array<i32>} : memref<1x2x128xf32, #tpu.memory_space<vmem>>, vector<1x1x128xf32>,
    return
  }
  func.func @transform_0(%arg0: i32) -> (i32, i32, i32) {
    %c0_i32 = arith.constant 0 : i32
    %c0_i32_0 = arith.constant 0 : i32
    %c0_i32_1 = arith.constant 0 : i32
    return %arg0, %c0_i32, %c0_i32_0 : i32, i32, i32
  }
  func.func @transform_1(%arg0: i32) -> (i32, i32) {
    %c0_i32 = arith.constant 0 : i32
    %c0_i32_0 = arith.constant 0 : i32
    %c0_i32_1 = arith.constant 0 : i32
    return %c0_i32, %c0_i32_0 : i32, i32
  }
  func.func @transform_2(%arg0: i32) -> (i32, i32) {
    %c0_i32 = arith.constant 0 : i32
    %c0_i32_0 = arith.constant 0 : i32
    %c0_i32_1 = arith.constant 0 : i32
    return %c0_i32, %c0_i32_0 : i32, i32
  }
  func.func @transform_3(%arg0: i32) -> (i32, i32) {
    %c0_i32 = arith.constant 0 : i32
    %c0_i32_0 = arith.constant 0 : i32
    %c0_i32_1 = arith.constant 0 : i32
    return %c0_i32, %c0_i32_0 : i32, i32
  }
  func.func @transform_4(%arg0: i32) -> (i32, i32) {
    %c0_i32 = arith.constant 0 : i32
    %c0_i32_0 = arith.constant 0 : i32
    %c0_i32_1 = arith.constant 0 : i32
    return %c0_i32, %c0_i32_0 : i32, i32
  }
  func.func @transform_5(%arg0: i32) -> (i32, i32, i32) {
    %c0_i32 = arith.constant 0 : i32
    %c0_i32_0 = arith.constant 0 : i32
    %c0_i32_1 = arith.constant 0 : i32
    return %arg0, %c0_i32, %c0_i32_0 : i32, i32, i32
  }
  func.func @transform_6(%arg0: i32) -> (i32, i32, i32) {
    %c0_i32 = arith.constant 0 : i32
    %c0_i32_0 = arith.constant 0 : i32
    %c0_i32_1 = arith.constant 0 : i32
    return %arg0, %c0_i32, %c0_i32_0 : i32, i32, i32
  }
}

module attributes {stable_mosaic.version = 11 : i64} {
  func.func @k3(%arg0: i32, %arg1: memref<512x128xbf16, #tpu.memory_space<vmem>>, %arg2: memref<2x128xf32, #tpu.memory_space<vmem>>, %arg3: memref<1x128xf32, #tpu.memory_space<vmem>>, %arg4: memref<1x128xf32, #tpu.memory_space<vmem>>, %arg5: memref<128x128xbf16, #tpu.memory_space<vmem>>, %arg6: memref<512x128xbf16, #tpu.memory_space<vmem>>, %arg7: memref<1x2x128xf32, #tpu.memory_space<vmem>>) attributes {dimension_semantics = [#tpu.dimension_semantics<parallel>], iteration_bounds = array<i64: 1>, scalar_prefetch = 0 : i64, scratch_operands = 0 : i64, tpu.core_type = #tpu.core_type<tc>, window_params = [{transform_indices = @transform_0, window_bounds = array<i64: 512, 128>}, {pipeline_mode = #tpu.pipeline_mode<synchronous>, transform_indices = @transform_1, window_bounds = array<i64: 2, 128>}, {pipeline_mode = #tpu.pipeline_mode<synchronous>, transform_indices = @transform_2, window_bounds = array<i64: 1, 128>}, {pipeline_mode = #tpu.pipeline_mode<synchronous>, transform_indices = @transform_3, window_bounds = array<i64: 1, 128>}, {pipeline_mode = #tpu.pipeline_mode<synchronous>, transform_indices = @transform_4, window_bounds = array<i64: 128, 128>}, {transform_indices = @transform_5, window_bounds = array<i64: 512, 128>}, {transform_indices = @transform_6, window_bounds = array<i64: 1, 2, 128>}]} {
    %c0 = arith.constant 0 : index
    %c0_0 = arith.constant 0 : index
    %0 = vector.load %arg2[%c0, %c0_0] : memref<2x128xf32, #tpu.memory_space<vmem>>, vector<1x128xf32>
    %cst = arith.constant 0.001953125 : f32
    %1 = vector.broadcast %cst : f32 to vector<1x128xf32>
    %2 = arith.mulf %0, %1 : vector<1x128xf32>
    %c1 = arith.constant 1 : index
    %c0_1 = arith.constant 0 : index
    %3 = vector.load %arg2[%c1, %c0_1] : memref<2x128xf32, #tpu.memory_space<vmem>>, vector<1x128xf32>
    %cst_2 = arith.constant 0.001953125 : f32
    %4 = vector.broadcast %cst_2 : f32 to vector<1x128xf32>
    %5 = arith.mulf %3, %4 : vector<1x128xf32>
    %6 = arith.mulf %2, %2 : vector<1x128xf32>
    %7 = arith.subf %5, %6 : vector<1x128xf32>
    %cst_3 = arith.constant 0.000000e+00 : f32
    %8 = vector.broadcast %cst_3 : f32 to vector<1x128xf32>
    %9 = arith.maximumf %7, %8 : vector<1x128xf32>
    %c0_4 = arith.constant 0 : index
    %c0_5 = arith.constant 0 : index
    %10 = vector.load %arg3[%c0_4, %c0_5] : memref<1x128xf32, #tpu.memory_space<vmem>>, vector<1x128xf32>
    %cst_6 = arith.constant 9.99999974E-6 : f32
    %11 = vector.broadcast %cst_6 : f32 to vector<1x128xf32>
    %12 = arith.addf %9, %11 : vector<1x128xf32>
    %13 = math.rsqrt %12 : vector<1x128xf32>
    %14 = arith.mulf %10, %13 : vector<1x128xf32>
    %c0_7 = arith.constant 0 : index
    %c0_8 = arith.constant 0 : index
    %15 = vector.load %arg4[%c0_7, %c0_8] : memref<1x128xf32, #tpu.memory_space<vmem>>, vector<1x128xf32>
    %16 = arith.mulf %2, %14 : vector<1x128xf32>
    %17 = arith.subf %15, %16 : vector<1x128xf32>
    %c0_9 = arith.constant 0 : index
    %c0_10 = arith.constant 0 : index
    %18 = vector.load %arg1[%c0_9, %c0_10] : memref<512x128xbf16, #tpu.memory_space<vmem>>, vector<512x128xbf16>
    %19 = arith.extf %18 : vector<512x128xbf16> to vector<512x128xf32>
    %20 = vector.broadcast %14 : vector<1x128xf32> to vector<512x128xf32>
    %21 = arith.mulf %19, %20 : vector<512x128xf32>
    %22 = vector.broadcast %17 : vector<1x128xf32> to vector<512x128xf32>
    %23 = arith.addf %21, %22 : vector<512x128xf32>
    %cst_11 = arith.constant 0.000000e+00 : f32
    %24 = vector.broadcast %cst_11 : f32 to vector<512x128xf32>
    %25 = arith.maximumf %23, %24 : vector<512x128xf32>
    %26 = arith.truncf %25 : vector<512x128xf32> to vector<512x128xbf16>
    %c0_12 = arith.constant 0 : index
    %c0_13 = arith.constant 0 : index
    %27 = vector.load %arg5[%c0_12, %c0_13] : memref<128x128xbf16, #tpu.memory_space<vmem>>, vector<128x128xbf16>
    %cst_14 = arith.constant dense<0.000000e+00> : vector<512x128xf32>
    %28 = tpu.matmul %26, %27, %cst_14 {dimension_numbers = #tpu.dot_dimension_numbers<[1], [0], [0], [1], [0, 0, 1, 1], [], []>} : vector<512x128xbf16>, vector<128x128xbf16>, vector<512x128xf32> -> vector<512x128xf32>
    %29 = arith.truncf %28 : vector<512x128xf32> to vector<512x128xbf16>
    %c0_15 = arith.constant 0 : index
    %c0_16 = arith.constant 0 : index
    %30 = vector.load %arg6[%c0_15, %c0_16] : memref<512x128xbf16, #tpu.memory_space<vmem>>, vector<512x128xbf16>
    tpu.vector_store %arg6[%c0_15, %c0_16], %29 {strides = array<i32>} : memref<512x128xbf16, #tpu.memory_space<vmem>>, vector<512x128xbf16>,
    %cst_17 = arith.constant dense<0.000000e+00> : vector<128xf32>
    %31 = vector.multi_reduction <add>, %28, %cst_17 [0] : vector<512x128xf32> to vector<128xf32>
    %32 = vector.shape_cast %31 : vector<128xf32> to vector<1x128xf32>
    %c0_18 = arith.constant 0 : index
    %c0_19 = arith.constant 0 : index
    %c0_20 = arith.constant 0 : index
    %33 = vector.load %arg7[%c0_18, %c0_19, %c0_20] : memref<1x2x128xf32, #tpu.memory_space<vmem>>, vector<1x1x128xf32>
    %34 = vector.shape_cast %33 : vector<1x1x128xf32> to vector<1x128xf32>
    %35 = vector.shape_cast %32 : vector<1x128xf32> to vector<1x1x128xf32>
    tpu.vector_store %arg7[%c0_18, %c0_19, %c0_20], %35 {strides = array<i32>} : memref<1x2x128xf32, #tpu.memory_space<vmem>>, vector<1x1x128xf32>,
    %36 = arith.mulf %28, %28 : vector<512x128xf32>
    %cst_21 = arith.constant dense<0.000000e+00> : vector<128xf32>
    %37 = vector.multi_reduction <add>, %36, %cst_21 [0] : vector<512x128xf32> to vector<128xf32>
    %38 = vector.shape_cast %37 : vector<128xf32> to vector<1x128xf32>
    %c0_22 = arith.constant 0 : index
    %c1_23 = arith.constant 1 : index
    %c0_24 = arith.constant 0 : index
    %39 = vector.load %arg7[%c0_22, %c1_23, %c0_24] : memref<1x2x128xf32, #tpu.memory_space<vmem>>, vector<1x1x128xf32>
    %40 = vector.shape_cast %39 : vector<1x1x128xf32> to vector<1x128xf32>
    %41 = vector.shape_cast %38 : vector<1x128xf32> to vector<1x1x128xf32>
    tpu.vector_store %arg7[%c0_22, %c1_23, %c0_24], %41 {strides = array<i32>} : memref<1x2x128xf32, #tpu.memory_space<vmem>>, vector<1x1x128xf32>,
    return
  }
  func.func @transform_0(%arg0: i32) -> (i32, i32) {
    %c0_i32 = arith.constant 0 : i32
    %c0_i32_0 = arith.constant 0 : i32
    return %arg0, %c0_i32 : i32, i32
  }
  func.func @transform_1(%arg0: i32) -> (i32, i32) {
    %c0_i32 = arith.constant 0 : i32
    %c0_i32_0 = arith.constant 0 : i32
    %c0_i32_1 = arith.constant 0 : i32
    return %c0_i32, %c0_i32_0 : i32, i32
  }
  func.func @transform_2(%arg0: i32) -> (i32, i32) {
    %c0_i32 = arith.constant 0 : i32
    %c0_i32_0 = arith.constant 0 : i32
    %c0_i32_1 = arith.constant 0 : i32
    return %c0_i32, %c0_i32_0 : i32, i32
  }
  func.func @transform_3(%arg0: i32) -> (i32, i32) {
    %c0_i32 = arith.constant 0 : i32
    %c0_i32_0 = arith.constant 0 : i32
    %c0_i32_1 = arith.constant 0 : i32
    return %c0_i32, %c0_i32_0 : i32, i32
  }
  func.func @transform_4(%arg0: i32) -> (i32, i32) {
    %c0_i32 = arith.constant 0 : i32
    %c0_i32_0 = arith.constant 0 : i32
    %c0_i32_1 = arith.constant 0 : i32
    return %c0_i32, %c0_i32_0 : i32, i32
  }
  func.func @transform_5(%arg0: i32) -> (i32, i32) {
    %c0_i32 = arith.constant 0 : i32
    %c0_i32_0 = arith.constant 0 : i32
    return %arg0, %c0_i32 : i32, i32
  }
  func.func @transform_6(%arg0: i32) -> (i32, i32, i32) {
    %c0_i32 = arith.constant 0 : i32
    %c0_i32_0 = arith.constant 0 : i32
    %c0_i32_1 = arith.constant 0 : i32
    return %arg0, %c0_i32, %c0_i32_0 : i32, i32, i32
  }
}

module attributes {stable_mosaic.version = 11 : i64} {
  func.func @k4(%arg0: i32, %arg1: memref<512x128xbf16, #tpu.memory_space<vmem>>, %arg2: memref<2x128xf32, #tpu.memory_space<vmem>>, %arg3: memref<1x128xf32, #tpu.memory_space<vmem>>, %arg4: memref<1x128xf32, #tpu.memory_space<vmem>>, %arg5: memref<512x128xbf16, #tpu.memory_space<vmem>>, %arg6: memref<512x128xf32, #tpu.memory_space<vmem>>) attributes {dimension_semantics = [#tpu.dimension_semantics<parallel>], iteration_bounds = array<i64: 1>, scalar_prefetch = 0 : i64, scratch_operands = 0 : i64, tpu.core_type = #tpu.core_type<tc>, window_params = [{transform_indices = @transform_0, window_bounds = array<i64: 512, 128>}, {pipeline_mode = #tpu.pipeline_mode<synchronous>, transform_indices = @transform_1, window_bounds = array<i64: 2, 128>}, {pipeline_mode = #tpu.pipeline_mode<synchronous>, transform_indices = @transform_2, window_bounds = array<i64: 1, 128>}, {pipeline_mode = #tpu.pipeline_mode<synchronous>, transform_indices = @transform_3, window_bounds = array<i64: 1, 128>}, {transform_indices = @transform_4, window_bounds = array<i64: 512, 128>}, {transform_indices = @transform_5, window_bounds = array<i64: 512, 128>}]} {
    %c0 = arith.constant 0 : index
    %c0_0 = arith.constant 0 : index
    %0 = vector.load %arg2[%c0, %c0_0] : memref<2x128xf32, #tpu.memory_space<vmem>>, vector<1x128xf32>
    %cst = arith.constant 0.001953125 : f32
    %1 = vector.broadcast %cst : f32 to vector<1x128xf32>
    %2 = arith.mulf %0, %1 : vector<1x128xf32>
    %c1 = arith.constant 1 : index
    %c0_1 = arith.constant 0 : index
    %3 = vector.load %arg2[%c1, %c0_1] : memref<2x128xf32, #tpu.memory_space<vmem>>, vector<1x128xf32>
    %cst_2 = arith.constant 0.001953125 : f32
    %4 = vector.broadcast %cst_2 : f32 to vector<1x128xf32>
    %5 = arith.mulf %3, %4 : vector<1x128xf32>
    %6 = arith.mulf %2, %2 : vector<1x128xf32>
    %7 = arith.subf %5, %6 : vector<1x128xf32>
    %cst_3 = arith.constant 0.000000e+00 : f32
    %8 = vector.broadcast %cst_3 : f32 to vector<1x128xf32>
    %9 = arith.maximumf %7, %8 : vector<1x128xf32>
    %c0_4 = arith.constant 0 : index
    %c0_5 = arith.constant 0 : index
    %10 = vector.load %arg3[%c0_4, %c0_5] : memref<1x128xf32, #tpu.memory_space<vmem>>, vector<1x128xf32>
    %cst_6 = arith.constant 9.99999974E-6 : f32
    %11 = vector.broadcast %cst_6 : f32 to vector<1x128xf32>
    %12 = arith.addf %9, %11 : vector<1x128xf32>
    %13 = math.rsqrt %12 : vector<1x128xf32>
    %14 = arith.mulf %10, %13 : vector<1x128xf32>
    %c0_7 = arith.constant 0 : index
    %c0_8 = arith.constant 0 : index
    %15 = vector.load %arg4[%c0_7, %c0_8] : memref<1x128xf32, #tpu.memory_space<vmem>>, vector<1x128xf32>
    %16 = arith.mulf %2, %14 : vector<1x128xf32>
    %17 = arith.subf %15, %16 : vector<1x128xf32>
    %c0_9 = arith.constant 0 : index
    %c0_10 = arith.constant 0 : index
    %18 = vector.load %arg1[%c0_9, %c0_10] : memref<512x128xbf16, #tpu.memory_space<vmem>>, vector<512x128xbf16>
    %19 = arith.extf %18 : vector<512x128xbf16> to vector<512x128xf32>
    %20 = vector.broadcast %14 : vector<1x128xf32> to vector<512x128xf32>
    %21 = arith.mulf %19, %20 : vector<512x128xf32>
    %22 = vector.broadcast %17 : vector<1x128xf32> to vector<512x128xf32>
    %23 = arith.addf %21, %22 : vector<512x128xf32>
    %c0_11 = arith.constant 0 : index
    %c0_12 = arith.constant 0 : index
    %24 = vector.load %arg5[%c0_11, %c0_12] : memref<512x128xbf16, #tpu.memory_space<vmem>>, vector<512x128xbf16>
    %25 = arith.extf %24 : vector<512x128xbf16> to vector<512x128xf32>
    %26 = arith.addf %23, %25 : vector<512x128xf32>
    %cst_13 = arith.constant 0.000000e+00 : f32
    %27 = vector.broadcast %cst_13 : f32 to vector<512x128xf32>
    %28 = arith.maximumf %26, %27 : vector<512x128xf32>
    %c0_14 = arith.constant 0 : index
    %c0_15 = arith.constant 0 : index
    %29 = vector.load %arg6[%c0_14, %c0_15] : memref<512x128xf32, #tpu.memory_space<vmem>>, vector<512x128xf32>
    tpu.vector_store %arg6[%c0_14, %c0_15], %28 {strides = array<i32>} : memref<512x128xf32, #tpu.memory_space<vmem>>, vector<512x128xf32>,
    return
  }
  func.func @transform_0(%arg0: i32) -> (i32, i32) {
    %c0_i32 = arith.constant 0 : i32
    %c0_i32_0 = arith.constant 0 : i32
    return %arg0, %c0_i32 : i32, i32
  }
  func.func @transform_1(%arg0: i32) -> (i32, i32) {
    %c0_i32 = arith.constant 0 : i32
    %c0_i32_0 = arith.constant 0 : i32
    %c0_i32_1 = arith.constant 0 : i32
    return %c0_i32, %c0_i32_0 : i32, i32
  }
  func.func @transform_2(%arg0: i32) -> (i32, i32) {
    %c0_i32 = arith.constant 0 : i32
    %c0_i32_0 = arith.constant 0 : i32
    %c0_i32_1 = arith.constant 0 : i32
    return %c0_i32, %c0_i32_0 : i32, i32
  }
  func.func @transform_3(%arg0: i32) -> (i32, i32) {
    %c0_i32 = arith.constant 0 : i32
    %c0_i32_0 = arith.constant 0 : i32
    %c0_i32_1 = arith.constant 0 : i32
    return %c0_i32, %c0_i32_0 : i32, i32
  }
  func.func @transform_4(%arg0: i32) -> (i32, i32) {
    %c0_i32 = arith.constant 0 : i32
    %c0_i32_0 = arith.constant 0 : i32
    return %arg0, %c0_i32 : i32, i32
  }
  func.func @transform_5(%arg0: i32) -> (i32, i32) {
    %c0_i32 = arith.constant 0 : i32
    %c0_i32_0 = arith.constant 0 : i32
    return %arg0, %c0_i32 : i32, i32
  }
}

</mosaic_0001>

<llo_original>
// kernel: bottleneck_forward.7
$region0: #{bottleneck_forward.7}
  #allocation0 [shape = 'u32[]', space=smem, size = 0x4, offset = 0x4, fixed_abs, tag = 'smem constant byte address 0x4 - core index']
  #allocation1 [shape = 'u32[144,128]{1,0:T(1,128)}', space=vmem, size = 0x12000, scoped, tag = 'internal scratch']
  %s0 = inlined_call_operand.vmem [shape: bf16[512,128], index: 0, kind: input, shape index: {}]
  %s1 = inlined_call_operand.vmem [shape: f32[2,128], index: 1, kind: input, shape index: {}]
  %s2 = inlined_call_operand.vmem [shape: f32[1,128], index: 2, kind: input, shape index: {}]
  %s3 = inlined_call_operand.vmem [shape: f32[1,128], index: 3, kind: input, shape index: {}]
  %s4 = inlined_call_operand.vmem [shape: bf16[512,128], index: 4, kind: input, shape index: {}]
  %s5 = inlined_call_operand.vmem [shape: f32[512,128], index: 5, kind: output, shape index: {}]
  %s6 = sld [smem:[#allocation0]]
  $region30: #{bottleneck_forward.7} parent=0
    _
  %s8 = ssub.s32 1, %s6
  %s9 = scalar_select 0, %s8, %s6
  // Predicated region
  $region2: #{bottleneck_forward.7} parent=0 // pred_check
    _
  $region3: #{bottleneck_forward.7} parent=0 // pred_check_branch
    %11 = sbr.rel (0) target = $region5
  $region4: #{bottleneck_forward.7} parent=0 // pred_region
    _
  $region5: #{bottleneck_forward.7} parent=0 // pred_fallthru
    _
  // Predicated region
  $region6: #{bottleneck_forward.7} parent=0 // pred_check
    _
  $region7: #{bottleneck_forward.7} parent=0 // pred_check_branch
    %13 = sbr.rel (0) target = $region9
  $region8: #{bottleneck_forward.7} parent=0 // pred_region
    _
  $region9: #{bottleneck_forward.7} parent=0 // pred_fallthru
    _
  // Predicated region
  $region10: #{bottleneck_forward.7} parent=0 // pred_check
    _
  $region11: #{bottleneck_forward.7} parent=0 // pred_check_branch
    %15 = sbr.rel (0) target = $region13
  $region12: #{bottleneck_forward.7} parent=0 // pred_region
    _
  $region13: #{bottleneck_forward.7} parent=0 // pred_fallthru
    _
  // Predicated region
  $region14: #{bottleneck_forward.7} parent=0 // pred_check
    _
  $region15: #{bottleneck_forward.7} parent=0 // pred_check_branch
    %17 = sbr.rel (0) target = $region17
  $region16: #{bottleneck_forward.7} parent=0 // pred_region
    _
  $region17: #{bottleneck_forward.7} parent=0 // pred_fallthru
    _
  // Predicated region
  $region18: #{bottleneck_forward.7} parent=0 // pred_check
    _
  $region19: #{bottleneck_forward.7} parent=0 // pred_check_branch
    %19 = sbr.rel (0) target = $region21
  $region20: #{bottleneck_forward.7} parent=0 // pred_region
    _
  $region21: #{bottleneck_forward.7} parent=0 // pred_fallthru
    _
  %v20 = vld [vmem:[%s1] sm:$0x1]
  %v21 = vmul.f32 %v20, 0.001953125
  %v22 = vld [vmem:[%s1 + $0x1] sm:$0x1]
  %v23 = vmul.f32 %v22, 0.001953125
  %v24 = vmul.f32 %v21, %v21
  %v25 = vsub.f32 %v23, %v24
  %v26 = vmax.f32 %v25, 0.0
  %v27 = vld [vmem:[%s2] sm:$0x1]
  %v28 = vadd.f32 %v26, 1e-05
  %v29 = vrsqrt.pop %v28
  %v30 = vmul.f32 %v27, %v29
  %v31 = vld [vmem:[%s3] sm:$0x1]
  %v32 = vmul.f32 %v21, %v30
  %v33 = vsub.f32 %v31, %v32
  %v34 = vld [vmem:[%s0] sm:$0xf]
  %v35 = vld [vmem:[%s0 + $0x4] sm:$0xf]
  %v36 = vld [vmem:[%s0 + $0x8] sm:$0xf]
  %v37 = vld [vmem:[%s0 + $0xc] sm:$0xf]
  %v38 = vld [vmem:[%s0 + $0x10] sm:$0xf]
  %v39 = vld [vmem:[%s0 + $0x14] sm:$0xf]
  %v40 = vld [vmem:[%s0 + $0x18] sm:$0xf]
  %v41 = vld [vmem:[%s0 + $0x1c] sm:$0xf]
  %v42 = vld [vmem:[%s0 + $0x20] sm:$0xf]
  %v43 = vld [vmem:[%s0 + $0x24] sm:$0xf]
  %v44 = vld [vmem:[%s0 + $0x28] sm:$0xf]
  %v45 = vld [vmem:[%s0 + $0x2c] sm:$0xf]
  %v46 = vld [vmem:[%s0 + $0x30] sm:$0xf]
  %v47 = vld [vmem:[%s0 + $0x34] sm:$0xf]
  %v48 = vld [vmem:[%s0 + $0x38] sm:$0xf]
  %v49 = vld [vmem:[%s0 + $0x3c] sm:$0xf]
  %v50 = vld [vmem:[%s0 + $0x40] sm:$0xf]
  %v51 = vld [vmem:[%s0 + $0x44] sm:$0xf]
  %v52 = vld [vmem:[%s0 + $0x48] sm:$0xf]
  %v53 = vld [vmem:[%s0 + $0x4c] sm:$0xf]
  %v54 = vld [vmem:[%s0 + $0x50] sm:$0xf]
  %v55 = vld [vmem:[%s0 + $0x54] sm:$0xf]
  %v56 = vld [vmem:[%s0 + $0x58] sm:$0xf]
  %v57 = vld [vmem:[%s0 + $0x5c] sm:$0xf]
  %v58 = vld [vmem:[%s0 + $0x60] sm:$0xf]
  %v59 = vld [vmem:[%s0 + $0x64] sm:$0xf]
  %v60 = vld [vmem:[%s0 + $0x68] sm:$0xf]
  %v61 = vld [vmem:[%s0 + $0x6c] sm:$0xf]
  %v62 = vld [vmem:[%s0 + $0x70] sm:$0xf]
  %v63 = vld [vmem:[%s0 + $0x74] sm:$0xf]
  %v64 = vld [vmem:[%s0 + $0x78] sm:$0xf]
  %v65 = vld [vmem:[%s0 + $0x7c] sm:$0xf]
  %v66 = vld [vmem:[%s0 + $0x80] sm:$0xf]
  %v67 = vld [vmem:[%s0 + $0x84] sm:$0xf]
  %v68 = vld [vmem:[%s0 + $0x88] sm:$0xf]
  %v69 = vld [vmem:[%s0 + $0x8c] sm:$0xf]
  %v70 = vld [vmem:[%s0 + $0x90] sm:$0xf]
  %v71 = vld [vmem:[%s0 + $0x94] sm:$0xf]
  %v72 = vld [vmem:[%s0 + $0x98] sm:$0xf]
  %v73 = vld [vmem:[%s0 + $0x9c] sm:$0xf]
  %v74 = vld [vmem:[%s0 + $0xa0] sm:$0xf]
  %v75 = vld [vmem:[%s0 + $0xa4] sm:$0xf]
  %v76 = vld [vmem:[%s0 + $0xa8] sm:$0xf]
  %v77 = vld [vmem:[%s0 + $0xac] sm:$0xf]
  %v78 = vld [vmem:[%s0 + $0xb0] sm:$0xf]
  %v79 = vld [vmem:[%s0 + $0xb4] sm:$0xf]
  %v80 = vld [vmem:[%s0 + $0xb8] sm:$0xf]
  %v81 = vld [vmem:[%s0 + $0xbc] sm:$0xf]
  %v82 = vld [vmem:[%s0 + $0xc0] sm:$0xf]
  %v83 = vld [vmem:[%s0 + $0xc4] sm:$0xf]
  %v84 = vld [vmem:[%s0 + $0xc8] sm:$0xf]
  %v85 = vld [vmem:[%s0 + $0xcc] sm:$0xf]
  %v86 = vld [vmem:[%s0 + $0xd0] sm:$0xf]
  %v87 = vld [vmem:[%s0 + $0xd4] sm:$0xf]
  %v88 = vld [vmem:[%s0 + $0xd8] sm:$0xf]
  %v89 = vld [vmem:[%s0 + $0xdc] sm:$0xf]
  %v90 = vld [vmem:[%s0 + $0xe0] sm:$0xf]
  %v91 = vld [vmem:[%s0 + $0xe4] sm:$0xf]
  %v92 = vld [vmem:[%s0 + $0xe8] sm:$0xf]
  %v93 = vld [vmem:[%s0 + $0xec] sm:$0xf]
  %v94 = vld [vmem:[%s0 + $0xf0] sm:$0xf]
  %v95 = vld [vmem:[%s0 + $0xf4] sm:$0xf]
  %v96 = vld [vmem:[%s0 + $0xf8] sm:$0xf]
  %v97 = vld [vmem:[%s0 + $0xfc] sm:$0xf]
  %v98 = vunpack.c.l.bf16 %v34
  %v99 = vunpack.c.l.bf16 %v35
  %v100 = vunpack.c.l.bf16 %v36
  %v101 = vunpack.c.l.bf16 %v37
  %v102 = vunpack.c.l.bf16 %v38
  %v103 = vunpack.c.l.bf16 %v39
  %v104 = vunpack.c.l.bf16 %v40
  %v105 = vunpack.c.l.bf16 %v41
  %v106 = vunpack.c.l.bf16 %v42
  %v107 = vunpack.c.l.bf16 %v43
  %v108 = vunpack.c.l.bf16 %v44
  %v109 = vunpack.c.l.bf16 %v45
  %v110 = vunpack.c.l.bf16 %v46
  %v111 = vunpack.c.l.bf16 %v47
  %v112 = vunpack.c.l.bf16 %v48
  %v113 = vunpack.c.l.bf16 %v49
  %v114 = vunpack.c.l.bf16 %v50
  %v115 = vunpack.c.l.bf16 %v51
  %v116 = vunpack.c.l.bf16 %v52
  %v117 = vunpack.c.l.bf16 %v53
  %v118 = vunpack.c.l.bf16 %v54
  %v119 = vunpack.c.l.bf16 %v55
  %v120 = vunpack.c.l.bf16 %v56
  %v121 = vunpack.c.l.bf16 %v57
  %v122 = vunpack.c.l.bf16 %v58
  %v123 = vunpack.c.l.bf16 %v59
  %v124 = vunpack.c.l.bf16 %v60
  %v125 = vunpack.c.l.bf16 %v61
  %v126 = vunpack.c.l.bf16 %v62
  %v127 = vunpack.c.l.bf16 %v63
  %v128 = vunpack.c.l.bf16 %v64
  %v129 = vunpack.c.l.bf16 %v65
  %v130 = vunpack.c.l.bf16 %v66
  %v131 = vunpack.c.l.bf16 %v67
  %v132 = vunpack.c.l.bf16 %v68
  %v133 = vunpack.c.l.bf16 %v69
  %v134 = vunpack.c.l.bf16 %v70
  %v135 = vunpack.c.l.bf16 %v71
  %v136 = vunpack.c.l.bf16 %v72
  %v137 = vunpack.c.l.bf16 %v73
  %v138 = vunpack.c.l.bf16 %v74
  %v139 = vunpack.c.l.bf16 %v75
  %v140 = vunpack.c.l.bf16 %v76
  %v141 = vunpack.c.l.bf16 %v77
  %v142 = vunpack.c.l.bf16 %v78
  %v143 = vunpack.c.l.bf16 %v79
  %v144 = vunpack.c.l.bf16 %v80
  %v145 = vunpack.c.l.bf16 %v81
  %v146 = vunpack.c.l.bf16 %v82
  %v147 = vunpack.c.l.bf16 %v83
  %v148 = vunpack.c.l.bf16 %v84
  %v149 = vunpack.c.l.bf16 %v85
  %v150 = vunpack.c.l.bf16 %v86
  %v151 = vunpack.c.l.bf16 %v87
  %v152 = vunpack.c.l.bf16 %v88
  %v153 = vunpack.c.l.bf16 %v89
  %v154 = vunpack.c.l.bf16 %v90
  %v155 = vunpack.c.l.bf16 %v91
  %v156 = vunpack.c.l.bf16 %v92
  %v157 = vunpack.c.l.bf16 %v93
  %v158 = vunpack.c.l.bf16 %v94
  %v159 = vunpack.c.l.bf16 %v95
  %v160 = vunpack.c.l.bf16 %v96
  %v161 = vunpack.c.l.bf16 %v97
  %v163 = vlaneseq
  %v164 = vshrl.u32 %v163, 7
  %v165 = vsub.s32 0, %v164
  %v166 = vrot.slane %v30, %v165
  %v168 = vmul.f32 %v98, %v166
  %v169 = vmul.f32 %v99, %v166
  %v170 = vmul.f32 %v100, %v166
  %v171 = vmul.f32 %v101, %v166
  %v172 = vmul.f32 %v102, %v166
  %v173 = vmul.f32 %v103, %v166
  %v174 = vmul.f32 %v104, %v166
  %v175 = vmul.f32 %v105, %v166
  %v176 = vmul.f32 %v106, %v166
  %v177 = vmul.f32 %v107, %v166
  %v178 = vmul.f32 %v108, %v166
  %v179 = vmul.f32 %v109, %v166
  %v180 = vmul.f32 %v110, %v166
  %v181 = vmul.f32 %v111, %v166
  %v182 = vmul.f32 %v112, %v166
  %v183 = vmul.f32 %v113, %v166
  %v184 = vmul.f32 %v114, %v166
  %v185 = vmul.f32 %v115, %v166
  %v186 = vmul.f32 %v116, %v166
  %v187 = vmul.f32 %v117, %v166
  %v188 = vmul.f32 %v118, %v166
  %v189 = vmul.f32 %v119, %v166
  %v190 = vmul.f32 %v120, %v166
  %v191 = vmul.f32 %v121, %v166
  %v192 = vmul.f32 %v122, %v166
  %v193 = vmul.f32 %v123, %v166
  %v194 = vmul.f32 %v124, %v166
  %v195 = vmul.f32 %v125, %v166
  %v196 = vmul.f32 %v126, %v166
  %v197 = vmul.f32 %v127, %v166
  %v198 = vmul.f32 %v128, %v166
  %v199 = vmul.f32 %v129, %v166
  %v200 = vmul.f32 %v130, %v166
  %v201 = vmul.f32 %v131, %v166
  %v202 = vmul.f32 %v132, %v166
  %v203 = vmul.f32 %v133, %v166
  %v204 = vmul.f32 %v134, %v166
  %v205 = vmul.f32 %v135, %v166
  %v206 = vmul.f32 %v136, %v166
  %v207 = vmul.f32 %v137, %v166
  %v208 = vmul.f32 %v138, %v166
  %v209 = vmul.f32 %v139, %v166
  %v210 = vmul.f32 %v140, %v166
  %v211 = vmul.f32 %v141, %v166
  %v212 = vmul.f32 %v142, %v166
  %v213 = vmul.f32 %v143, %v166
  %v214 = vmul.f32 %v144, %v166
  %v215 = vmul.f32 %v145, %v166
  %v216 = vmul.f32 %v146, %v166
  %v217 = vmul.f32 %v147, %v166
  %v218 = vmul.f32 %v148, %v166
  %v219 = vmul.f32 %v149, %v166
  %v220 = vmul.f32 %v150, %v166
  %v221 = vmul.f32 %v151, %v166
  %v222 = vmul.f32 %v152, %v166
  %v223 = vmul.f32 %v153, %v166
  %v224 = vmul.f32 %v154, %v166
  %v225 = vmul.f32 %v155, %v166
  %v226 = vmul.f32 %v156, %v166
  %v227 = vmul.f32 %v157, %v166
  %v228 = vmul.f32 %v158, %v166
  %v229 = vmul.f32 %v159, %v166
  %v230 = vmul.f32 %v160, %v166
  %v231 = vmul.f32 %v161, %v166
  %v233 = vlaneseq
  %v234 = vshrl.u32 %v233, 7
  %v235 = vsub.s32 0, %v234
  %v236 = vrot.slane %v33, %v235
  %v238 = vadd.f32 %v168, %v236
  %v239 = vadd.f32 %v169, %v236
  %v240 = vadd.f32 %v170, %v236
  %v241 = vadd.f32 %v171, %v236
  %v242 = vadd.f32 %v172, %v236
  %v243 = vadd.f32 %v173, %v236
  %v244 = vadd.f32 %v174, %v236
  %v245 = vadd.f32 %v175, %v236
  %v246 = vadd.f32 %v176, %v236
  %v247 = vadd.f32 %v177, %v236
  %v248 = vadd.f32 %v178, %v236
  %v249 = vadd.f32 %v179, %v236
  %v250 = vadd.f32 %v180, %v236
  %v251 = vadd.f32 %v181, %v236
  %v252 = vadd.f32 %v182, %v236
  %v253 = vadd.f32 %v183, %v236
  %v254 = vadd.f32 %v184, %v236
  %v255 = vadd.f32 %v185, %v236
  %v256 = vadd.f32 %v186, %v236
  %v257 = vadd.f32 %v187, %v236
  %v258 = vadd.f32 %v188, %v236
  %v259 = vadd.f32 %v189, %v236
  %v260 = vadd.f32 %v190, %v236
  %v261 = vadd.f32 %v191, %v236
  %v262 = vadd.f32 %v192, %v236
  %v263 = vadd.f32 %v193, %v236
  %v264 = vadd.f32 %v194, %v236
  %v265 = vadd.f32 %v195, %v236
  %v266 = vadd.f32 %v196, %v236
  %v267 = vadd.f32 %v197, %v236
  %v268 = vadd.f32 %v198, %v236
  %v269 = vadd.f32 %v199, %v236
  %v270 = vadd.f32 %v200, %v236
  %v271 = vadd.f32 %v201, %v236
  %v272 = vadd.f32 %v202, %v236
  %v273 = vadd.f32 %v203, %v236
  %v274 = vadd.f32 %v204, %v236
  %v275 = vadd.f32 %v205, %v236
  %v276 = vadd.f32 %v206, %v236
  %v277 = vadd.f32 %v207, %v236
  %v278 = vadd.f32 %v208, %v236
  %v279 = vadd.f32 %v209, %v236
  %v280 = vadd.f32 %v210, %v236
  %v281 = vadd.f32 %v211, %v236
  %v282 = vadd.f32 %v212, %v236
  %v283 = vadd.f32 %v213, %v236
  %v284 = vadd.f32 %v214, %v236
  %v285 = vadd.f32 %v215, %v236
  %v286 = vadd.f32 %v216, %v236
  %v287 = vadd.f32 %v217, %v236
  %v288 = vadd.f32 %v218, %v236
  %v289 = vadd.f32 %v219, %v236
  %v290 = vadd.f32 %v220, %v236
  %v291 = vadd.f32 %v221, %v236
  %v292 = vadd.f32 %v222, %v236
  %v293 = vadd.f32 %v223, %v236
  %v294 = vadd.f32 %v224, %v236
  %v295 = vadd.f32 %v225, %v236
  %v296 = vadd.f32 %v226, %v236
  %v297 = vadd.f32 %v227, %v236
  %v298 = vadd.f32 %v228, %v236
  %v299 = vadd.f32 %v229, %v236
  %v300 = vadd.f32 %v230, %v236
  %v301 = vadd.f32 %v231, %v236
  %v302 = vld [vmem:[%s4] sm:$0xf]
  %v303 = vld [vmem:[%s4 + $0x4] sm:$0xf]
  %v304 = vld [vmem:[%s4 + $0x8] sm:$0xf]
  %v305 = vld [vmem:[%s4 + $0xc] sm:$0xf]
  %v306 = vld [vmem:[%s4 + $0x10] sm:$0xf]
  %v307 = vld [vmem:[%s4 + $0x14] sm:$0xf]
  %v308 = vld [vmem:[%s4 + $0x18] sm:$0xf]
  %v309 = vld [vmem:[%s4 + $0x1c] sm:$0xf]
  %v310 = vld [vmem:[%s4 + $0x20] sm:$0xf]
  %v311 = vld [vmem:[%s4 + $0x24] sm:$0xf]
  %v312 = vld [vmem:[%s4 + $0x28] sm:$0xf]
  %v313 = vld [vmem:[%s4 + $0x2c] sm:$0xf]
  %v314 = vld [vmem:[%s4 + $0x30] sm:$0xf]
  %v315 = vld [vmem:[%s4 + $0x34] sm:$0xf]
  %v316 = vld [vmem:[%s4 + $0x38] sm:$0xf]
  %v317 = vld [vmem:[%s4 + $0x3c] sm:$0xf]
  %v318 = vld [vmem:[%s4 + $0x40] sm:$0xf]
  %v319 = vld [vmem:[%s4 + $0x44] sm:$0xf]
  %v320 = vld [vmem:[%s4 + $0x48] sm:$0xf]
  %v321 = vld [vmem:[%s4 + $0x4c] sm:$0xf]
  %v322 = vld [vmem:[%s4 + $0x50] sm:$0xf]
  %v323 = vld [vmem:[%s4 + $0x54] sm:$0xf]
  %v324 = vld [vmem:[%s4 + $0x58] sm:$0xf]
  %v325 = vld [vmem:[%s4 + $0x5c] sm:$0xf]
  %v326 = vld [vmem:[%s4 + $0x60] sm:$0xf]
  %v327 = vld [vmem:[%s4 + $0x64] sm:$0xf]
  %v328 = vld [vmem:[%s4 + $0x68] sm:$0xf]
  %v329 = vld [vmem:[%s4 + $0x6c] sm:$0xf]
  %v330 = vld [vmem:[%s4 + $0x70] sm:$0xf]
  %v331 = vld [vmem:[%s4 + $0x74] sm:$0xf]
  %v332 = vld [vmem:[%s4 + $0x78] sm:$0xf]
  %v333 = vld [vmem:[%s4 + $0x7c] sm:$0xf]
  %v334 = vld [vmem:[%s4 + $0x80] sm:$0xf]
  %v335 = vld [vmem:[%s4 + $0x84] sm:$0xf]
  %v336 = vld [vmem:[%s4 + $0x88] sm:$0xf]
  %v337 = vld [vmem:[%s4 + $0x8c] sm:$0xf]
  %v338 = vld [vmem:[%s4 + $0x90] sm:$0xf]
  %v339 = vld [vmem:[%s4 + $0x94] sm:$0xf]
  %v340 = vld [vmem:[%s4 + $0x98] sm:$0xf]
  %v341 = vld [vmem:[%s4 + $0x9c] sm:$0xf]
  %v342 = vld [vmem:[%s4 + $0xa0] sm:$0xf]
  %v343 = vld [vmem:[%s4 + $0xa4] sm:$0xf]
  %v344 = vld [vmem:[%s4 + $0xa8] sm:$0xf]
  %v345 = vld [vmem:[%s4 + $0xac] sm:$0xf]
  %v346 = vld [vmem:[%s4 + $0xb0] sm:$0xf]
  %v347 = vld [vmem:[%s4 + $0xb4] sm:$0xf]
  %v348 = vld [vmem:[%s4 + $0xb8] sm:$0xf]
  %v349 = vld [vmem:[%s4 + $0xbc] sm:$0xf]
  %v350 = vld [vmem:[%s4 + $0xc0] sm:$0xf]
  %v351 = vld [vmem:[%s4 + $0xc4] sm:$0xf]
  %v352 = vld [vmem:[%s4 + $0xc8] sm:$0xf]
  %v353 = vld [vmem:[%s4 + $0xcc] sm:$0xf]
  %v354 = vld [vmem:[%s4 + $0xd0] sm:$0xf]
  %v355 = vld [vmem:[%s4 + $0xd4] sm:$0xf]
  %v356 = vld [vmem:[%s4 + $0xd8] sm:$0xf]
  %v357 = vld [vmem:[%s4 + $0xdc] sm:$0xf]
  %v358 = vld [vmem:[%s4 + $0xe0] sm:$0xf]
  %v359 = vld [vmem:[%s4 + $0xe4] sm:$0xf]
  %v360 = vld [vmem:[%s4 + $0xe8] sm:$0xf]
  %v361 = vld [vmem:[%s4 + $0xec] sm:$0xf]
  %v362 = vld [vmem:[%s4 + $0xf0] sm:$0xf]
  %v363 = vld [vmem:[%s4 + $0xf4] sm:$0xf]
  %v364 = vld [vmem:[%s4 + $0xf8] sm:$0xf]
  %v365 = vld [vmem:[%s4 + $0xfc] sm:$0xf]
  %v366 = vunpack.c.l.bf16 %v302
  %v367 = vunpack.c.l.bf16 %v303
  %v368 = vunpack.c.l.bf16 %v304
  %v369 = vunpack.c.l.bf16 %v305
  %v370 = vunpack.c.l.bf16 %v306
  %v371 = vunpack.c.l.bf16 %v307
  %v372 = vunpack.c.l.bf16 %v308
  %v373 = vunpack.c.l.bf16 %v309
  %v374 = vunpack.c.l.bf16 %v310
  %v375 = vunpack.c.l.bf16 %v311
  %v376 = vunpack.c.l.bf16 %v312
  %v377 = vunpack.c.l.bf16 %v313
  %v378 = vunpack.c.l.bf16 %v314
  %v379 = vunpack.c.l.bf16 %v315
  %v380 = vunpack.c.l.bf16 %v316
  %v381 = vunpack.c.l.bf16 %v317
  %v382 = vunpack.c.l.bf16 %v318
  %v383 = vunpack.c.l.bf16 %v319
  %v384 = vunpack.c.l.bf16 %v320
  %v385 = vunpack.c.l.bf16 %v321
  %v386 = vunpack.c.l.bf16 %v322
  %v387 = vunpack.c.l.bf16 %v323
  %v388 = vunpack.c.l.bf16 %v324
  %v389 = vunpack.c.l.bf16 %v325
  %v390 = vunpack.c.l.bf16 %v326
  %v391 = vunpack.c.l.bf16 %v327
  %v392 = vunpack.c.l.bf16 %v328
  %v393 = vunpack.c.l.bf16 %v329
  %v394 = vunpack.c.l.bf16 %v330
  %v395 = vunpack.c.l.bf16 %v331
  %v396 = vunpack.c.l.bf16 %v332
  %v397 = vunpack.c.l.bf16 %v333
  %v398 = vunpack.c.l.bf16 %v334
  %v399 = vunpack.c.l.bf16 %v335
  %v400 = vunpack.c.l.bf16 %v336
  %v401 = vunpack.c.l.bf16 %v337
  %v402 = vunpack.c.l.bf16 %v338
  %v403 = vunpack.c.l.bf16 %v339
  %v404 = vunpack.c.l.bf16 %v340
  %v405 = vunpack.c.l.bf16 %v341
  %v406 = vunpack.c.l.bf16 %v342
  %v407 = vunpack.c.l.bf16 %v343
  %v408 = vunpack.c.l.bf16 %v344
  %v409 = vunpack.c.l.bf16 %v345
  %v410 = vunpack.c.l.bf16 %v346
  %v411 = vunpack.c.l.bf16 %v347
  %v412 = vunpack.c.l.bf16 %v348
  %v413 = vunpack.c.l.bf16 %v349
  %v414 = vunpack.c.l.bf16 %v350
  %v415 = vunpack.c.l.bf16 %v351
  %v416 = vunpack.c.l.bf16 %v352
  %v417 = vunpack.c.l.bf16 %v353
  %v418 = vunpack.c.l.bf16 %v354
  %v419 = vunpack.c.l.bf16 %v355
  %v420 = vunpack.c.l.bf16 %v356
  %v421 = vunpack.c.l.bf16 %v357
  %v422 = vunpack.c.l.bf16 %v358
  %v423 = vunpack.c.l.bf16 %v359
  %v424 = vunpack.c.l.bf16 %v360
  %v425 = vunpack.c.l.bf16 %v361
  %v426 = vunpack.c.l.bf16 %v362
  %v427 = vunpack.c.l.bf16 %v363
  %v428 = vunpack.c.l.bf16 %v364
  %v429 = vunpack.c.l.bf16 %v365
  %v430 = vadd.f32 %v238, %v366
  %v431 = vadd.f32 %v239, %v367
  %v432 = vadd.f32 %v240, %v368
  %v433 = vadd.f32 %v241, %v369
  %v434 = vadd.f32 %v242, %v370
  %v435 = vadd.f32 %v243, %v371
  %v436 = vadd.f32 %v244, %v372
  %v437 = vadd.f32 %v245, %v373
  %v438 = vadd.f32 %v246, %v374
  %v439 = vadd.f32 %v247, %v375
  %v440 = vadd.f32 %v248, %v376
  %v441 = vadd.f32 %v249, %v377
  %v442 = vadd.f32 %v250, %v378
  %v443 = vadd.f32 %v251, %v379
  %v444 = vadd.f32 %v252, %v380
  %v445 = vadd.f32 %v253, %v381
  %v446 = vadd.f32 %v254, %v382
  %v447 = vadd.f32 %v255, %v383
  %v448 = vadd.f32 %v256, %v384
  %v449 = vadd.f32 %v257, %v385
  %v450 = vadd.f32 %v258, %v386
  %v451 = vadd.f32 %v259, %v387
  %v452 = vadd.f32 %v260, %v388
  %v453 = vadd.f32 %v261, %v389
  %v454 = vadd.f32 %v262, %v390
  %v455 = vadd.f32 %v263, %v391
  %v456 = vadd.f32 %v264, %v392
  %v457 = vadd.f32 %v265, %v393
  %v458 = vadd.f32 %v266, %v394
  %v459 = vadd.f32 %v267, %v395
  %v460 = vadd.f32 %v268, %v396
  %v461 = vadd.f32 %v269, %v397
  %v462 = vadd.f32 %v270, %v398
  %v463 = vadd.f32 %v271, %v399
  %v464 = vadd.f32 %v272, %v400
  %v465 = vadd.f32 %v273, %v401
  %v466 = vadd.f32 %v274, %v402
  %v467 = vadd.f32 %v275, %v403
  %v468 = vadd.f32 %v276, %v404
  %v469 = vadd.f32 %v277, %v405
  %v470 = vadd.f32 %v278, %v406
  %v471 = vadd.f32 %v279, %v407
  %v472 = vadd.f32 %v280, %v408
  %v473 = vadd.f32 %v281, %v409
  %v474 = vadd.f32 %v282, %v410
  %v475 = vadd.f32 %v283, %v411
  %v476 = vadd.f32 %v284, %v412
  %v477 = vadd.f32 %v285, %v413
  %v478 = vadd.f32 %v286, %v414
  %v479 = vadd.f32 %v287, %v415
  %v480 = vadd.f32 %v288, %v416
  %v481 = vadd.f32 %v289, %v417
  %v482 = vadd.f32 %v290, %v418
  %v483 = vadd.f32 %v291, %v419
  %v484 = vadd.f32 %v292, %v420
  %v485 = vadd.f32 %v293, %v421
  %v486 = vadd.f32 %v294, %v422
  %v487 = vadd.f32 %v295, %v423
  %v488 = vadd.f32 %v296, %v424
  %v489 = vadd.f32 %v297, %v425
  %v490 = vadd.f32 %v298, %v426
  %v491 = vadd.f32 %v299, %v427
  %v492 = vadd.f32 %v300, %v428
  %v493 = vadd.f32 %v301, %v429
  %v494 = vmax.f32 %v430, 0.0
  %v495 = vmax.f32 %v431, 0.0
  %v496 = vmax.f32 %v432, 0.0
  %v497 = vmax.f32 %v433, 0.0
  %v498 = vmax.f32 %v434, 0.0
  %v499 = vmax.f32 %v435, 0.0
  %v500 = vmax.f32 %v436, 0.0
  %v501 = vmax.f32 %v437, 0.0
  %v502 = vmax.f32 %v438, 0.0
  %v503 = vmax.f32 %v439, 0.0
  %v504 = vmax.f32 %v440, 0.0
  %v505 = vmax.f32 %v441, 0.0
  %v506 = vmax.f32 %v442, 0.0
  %v507 = vmax.f32 %v443, 0.0
  %v508 = vmax.f32 %v444, 0.0
  %v509 = vmax.f32 %v445, 0.0
  %v510 = vmax.f32 %v446, 0.0
  %v511 = vmax.f32 %v447, 0.0
  %v512 = vmax.f32 %v448, 0.0
  %v513 = vmax.f32 %v449, 0.0
  %v514 = vmax.f32 %v450, 0.0
  %v515 = vmax.f32 %v451, 0.0
  %v516 = vmax.f32 %v452, 0.0
  %v517 = vmax.f32 %v453, 0.0
  %v518 = vmax.f32 %v454, 0.0
  %v519 = vmax.f32 %v455, 0.0
  %v520 = vmax.f32 %v456, 0.0
  %v521 = vmax.f32 %v457, 0.0
  %v522 = vmax.f32 %v458, 0.0
  %v523 = vmax.f32 %v459, 0.0
  %v524 = vmax.f32 %v460, 0.0
  %v525 = vmax.f32 %v461, 0.0
  %v526 = vmax.f32 %v462, 0.0
  %v527 = vmax.f32 %v463, 0.0
  %v528 = vmax.f32 %v464, 0.0
  %v529 = vmax.f32 %v465, 0.0
  %v530 = vmax.f32 %v466, 0.0
  %v531 = vmax.f32 %v467, 0.0
  %v532 = vmax.f32 %v468, 0.0
  %v533 = vmax.f32 %v469, 0.0
  %v534 = vmax.f32 %v470, 0.0
  %v535 = vmax.f32 %v471, 0.0
  %v536 = vmax.f32 %v472, 0.0
  %v537 = vmax.f32 %v473, 0.0
  %v538 = vmax.f32 %v474, 0.0
  %v539 = vmax.f32 %v475, 0.0
  %v540 = vmax.f32 %v476, 0.0
  %v541 = vmax.f32 %v477, 0.0
  %v542 = vmax.f32 %v478, 0.0
  %v543 = vmax.f32 %v479, 0.0
  %v544 = vmax.f32 %v480, 0.0
  %v545 = vmax.f32 %v481, 0.0
  %v546 = vmax.f32 %v482, 0.0
  %v547 = vmax.f32 %v483, 0.0
  %v548 = vmax.f32 %v484, 0.0
  %v549 = vmax.f32 %v485, 0.0
  %v550 = vmax.f32 %v486, 0.0
  %v551 = vmax.f32 %v487, 0.0
  %v552 = vmax.f32 %v488, 0.0
  %v553 = vmax.f32 %v489, 0.0
  %v554 = vmax.f32 %v490, 0.0
  %v555 = vmax.f32 %v491, 0.0
  %v556 = vmax.f32 %v492, 0.0
  %v557 = vmax.f32 %v493, 0.0
  %558 = vst [vmem:[%s5] sm:$0xff] %v494
  %559 = vst [vmem:[%s5 + $0x8] sm:$0xff] %v495
  %560 = vst [vmem:[%s5 + $0x10] sm:$0xff] %v496
  %561 = vst [vmem:[%s5 + $0x18] sm:$0xff] %v497
  %562 = vst [vmem:[%s5 + $0x20] sm:$0xff] %v498
  %563 = vst [vmem:[%s5 + $0x28] sm:$0xff] %v499
  %564 = vst [vmem:[%s5 + $0x30] sm:$0xff] %v500
  %565 = vst [vmem:[%s5 + $0x38] sm:$0xff] %v501
  %566 = vst [vmem:[%s5 + $0x40] sm:$0xff] %v502
  %567 = vst [vmem:[%s5 + $0x48] sm:$0xff] %v503
  %568 = vst [vmem:[%s5 + $0x50] sm:$0xff] %v504
  %569 = vst [vmem:[%s5 + $0x58] sm:$0xff] %v505
  %570 = vst [vmem:[%s5 + $0x60] sm:$0xff] %v506
  %571 = vst [vmem:[%s5 + $0x68] sm:$0xff] %v507
  %572 = vst [vmem:[%s5 + $0x70] sm:$0xff] %v508
  %573 = vst [vmem:[%s5 + $0x78] sm:$0xff] %v509
  %574 = vst [vmem:[%s5 + $0x80] sm:$0xff] %v510
  %575 = vst [vmem:[%s5 + $0x88] sm:$0xff] %v511
  %576 = vst [vmem:[%s5 + $0x90] sm:$0xff] %v512
  %577 = vst [vmem:[%s5 + $0x98] sm:$0xff] %v513
  %578 = vst [vmem:[%s5 + $0xa0] sm:$0xff] %v514
  %579 = vst [vmem:[%s5 + $0xa8] sm:$0xff] %v515
  %580 = vst [vmem:[%s5 + $0xb0] sm:$0xff] %v516
  %581 = vst [vmem:[%s5 + $0xb8] sm:$0xff] %v517
  %582 = vst [vmem:[%s5 + $0xc0] sm:$0xff] %v518
  %583 = vst [vmem:[%s5 + $0xc8] sm:$0xff] %v519
  %584 = vst [vmem:[%s5 + $0xd0] sm:$0xff] %v520
  %585 = vst [vmem:[%s5 + $0xd8] sm:$0xff] %v521
  %586 = vst [vmem:[%s5 + $0xe0] sm:$0xff] %v522
  %587 = vst [vmem:[%s5 + $0xe8] sm:$0xff] %v523
  %588 = vst [vmem:[%s5 + $0xf0] sm:$0xff] %v524
  %589 = vst [vmem:[%s5 + $0xf8] sm:$0xff] %v525
  %590 = vst [vmem:[%s5 + $0x100] sm:$0xff] %v526
  %591 = vst [vmem:[%s5 + $0x108] sm:$0xff] %v527
  %592 = vst [vmem:[%s5 + $0x110] sm:$0xff] %v528
  %593 = vst [vmem:[%s5 + $0x118] sm:$0xff] %v529
  %594 = vst [vmem:[%s5 + $0x120] sm:$0xff] %v530
  %595 = vst [vmem:[%s5 + $0x128] sm:$0xff] %v531
  %596 = vst [vmem:[%s5 + $0x130] sm:$0xff] %v532
  %597 = vst [vmem:[%s5 + $0x138] sm:$0xff] %v533
  %598 = vst [vmem:[%s5 + $0x140] sm:$0xff] %v534
  %599 = vst [vmem:[%s5 + $0x148] sm:$0xff] %v535
  %600 = vst [vmem:[%s5 + $0x150] sm:$0xff] %v536
  %601 = vst [vmem:[%s5 + $0x158] sm:$0xff] %v537
  %602 = vst [vmem:[%s5 + $0x160] sm:$0xff] %v538
  %603 = vst [vmem:[%s5 + $0x168] sm:$0xff] %v539
  %604 = vst [vmem:[%s5 + $0x170] sm:$0xff] %v540
  %605 = vst [vmem:[%s5 + $0x178] sm:$0xff] %v541
  %606 = vst [vmem:[%s5 + $0x180] sm:$0xff] %v542
  %607 = vst [vmem:[%s5 + $0x188] sm:$0xff] %v543
  %608 = vst [vmem:[%s5 + $0x190] sm:$0xff] %v544
  %609 = vst [vmem:[%s5 + $0x198] sm:$0xff] %v545
  %610 = vst [vmem:[%s5 + $0x1a0] sm:$0xff] %v546
  %611 = vst [vmem:[%s5 + $0x1a8] sm:$0xff] %v547
  %612 = vst [vmem:[%s5 + $0x1b0] sm:$0xff] %v548
  %613 = vst [vmem:[%s5 + $0x1b8] sm:$0xff] %v549
  %614 = vst [vmem:[%s5 + $0x1c0] sm:$0xff] %v550
  %615 = vst [vmem:[%s5 + $0x1c8] sm:$0xff] %v551
  %616 = vst [vmem:[%s5 + $0x1d0] sm:$0xff] %v552
  %617 = vst [vmem:[%s5 + $0x1d8] sm:$0xff] %v553
  %618 = vst [vmem:[%s5 + $0x1e0] sm:$0xff] %v554
  %619 = vst [vmem:[%s5 + $0x1e8] sm:$0xff] %v555
  %620 = vst [vmem:[%s5 + $0x1f0] sm:$0xff] %v556
  %621 = vst [vmem:[%s5 + $0x1f8] sm:$0xff] %v557
  // Predicated region
  $region22: #{bottleneck_forward.7} parent=0 // pred_check
    _
  $region23: #{bottleneck_forward.7} parent=0 // pred_check_branch
    %623 = sbr.rel (0) target = $region25
  $region24: #{bottleneck_forward.7} parent=0 // pred_region
    _
  $region25: #{bottleneck_forward.7} parent=0 // pred_fallthru
    _
  // Predicated region
  $region26: #{bottleneck_forward.7} parent=0 // pred_check
    _
  $region27: #{bottleneck_forward.7} parent=0 // pred_check_branch
    %625 = sbr.rel (0) target = $region29
  $region28: #{bottleneck_forward.7} parent=0 // pred_region
    _
  $region29: #{bottleneck_forward.7} parent=0 // pred_fallthru
    _

// kernel: bottleneck_forward.4
$region0: #{bottleneck_forward.4}
  #allocation0 [shape = 'u32[]', space=smem, size = 0x4, offset = 0x4, fixed_abs, tag = 'smem constant byte address 0x4 - core index']
  #allocation1 [shape = 'u32[144,128]{1,0:T(1,128)}', space=vmem, size = 0x12000, scoped, tag = 'internal scratch']
  %s0 = inlined_call_operand.vmem [shape: bf16[512,128], index: 0, kind: input, shape index: {}]
  %s1 = inlined_call_operand.vmem [shape: bf16[128,128], index: 1, kind: input, shape index: {}]
  %s2 = inlined_call_operand.vmem [shape: bf16[512,128], index: 2, kind: output, shape index: {0}]
  %s3 = inlined_call_operand.vmem [shape: f32[1,2,128], index: 3, kind: output, shape index: {1}]
  %4 = xla_tuple %s2, %s3
  %s5 = sld [smem:[#allocation0]]
  $region26: #{bottleneck_forward.4} parent=0
    _
  %s7 = ssub.s32 1, %s5
  %s8 = scalar_select 0, %s7, %s5
  // Predicated region
  $region2: #{bottleneck_forward.4} parent=0 // pred_check
    _
  $region3: #{bottleneck_forward.4} parent=0 // pred_check_branch
    %10 = sbr.rel (0) target = $region5
  $region4: #{bottleneck_forward.4} parent=0 // pred_region
    _
  $region5: #{bottleneck_forward.4} parent=0 // pred_fallthru
    _
  // Predicated region
  $region6: #{bottleneck_forward.4} parent=0 // pred_check
    _
  $region7: #{bottleneck_forward.4} parent=0 // pred_check_branch
    %12 = sbr.rel (0) target = $region9
  $region8: #{bottleneck_forward.4} parent=0 // pred_region
    _
  $region9: #{bottleneck_forward.4} parent=0 // pred_fallthru
    _
  %v14 = vld [vmem:[%s0] sm:$0xf]
  %v15 = vld [vmem:[%s0 + $0x4] sm:$0xf]
  %v16 = vld [vmem:[%s0 + $0x8] sm:$0xf]
  %v17 = vld [vmem:[%s0 + $0xc] sm:$0xf]
  %v18 = vld [vmem:[%s0 + $0x10] sm:$0xf]
  %v19 = vld [vmem:[%s0 + $0x14] sm:$0xf]
  %v20 = vld [vmem:[%s0 + $0x18] sm:$0xf]
  %v21 = vld [vmem:[%s0 + $0x1c] sm:$0xf]
  %v22 = vld [vmem:[%s0 + $0x20] sm:$0xf]
  %v23 = vld [vmem:[%s0 + $0x24] sm:$0xf]
  %v24 = vld [vmem:[%s0 + $0x28] sm:$0xf]
  %v25 = vld [vmem:[%s0 + $0x2c] sm:$0xf]
  %v26 = vld [vmem:[%s0 + $0x30] sm:$0xf]
  %v27 = vld [vmem:[%s0 + $0x34] sm:$0xf]
  %v28 = vld [vmem:[%s0 + $0x38] sm:$0xf]
  %v29 = vld [vmem:[%s0 + $0x3c] sm:$0xf]
  %v30 = vld [vmem:[%s0 + $0x40] sm:$0xf]
  %v31 = vld [vmem:[%s0 + $0x44] sm:$0xf]
  %v32 = vld [vmem:[%s0 + $0x48] sm:$0xf]
  %v33 = vld [vmem:[%s0 + $0x4c] sm:$0xf]
  %v34 = vld [vmem:[%s0 + $0x50] sm:$0xf]
  %v35 = vld [vmem:[%s0 + $0x54] sm:$0xf]
  %v36 = vld [vmem:[%s0 + $0x58] sm:$0xf]
  %v37 = vld [vmem:[%s0 + $0x5c] sm:$0xf]
  %v38 = vld [vmem:[%s0 + $0x60] sm:$0xf]
  %v39 = vld [vmem:[%s0 + $0x64] sm:$0xf]
  %v40 = vld [vmem:[%s0 + $0x68] sm:$0xf]
  %v41 = vld [vmem:[%s0 + $0x6c] sm:$0xf]
  %v42 = vld [vmem:[%s0 + $0x70] sm:$0xf]
  %v43 = vld [vmem:[%s0 + $0x74] sm:$0xf]
  %v44 = vld [vmem:[%s0 + $0x78] sm:$0xf]
  %v45 = vld [vmem:[%s0 + $0x7c] sm:$0xf]
  %v46 = vld [vmem:[%s0 + $0x80] sm:$0xf]
  %v47 = vld [vmem:[%s0 + $0x84] sm:$0xf]
  %v48 = vld [vmem:[%s0 + $0x88] sm:$0xf]
  %v49 = vld [vmem:[%s0 + $0x8c] sm:$0xf]
  %v50 = vld [vmem:[%s0 + $0x90] sm:$0xf]
  %v51 = vld [vmem:[%s0 + $0x94] sm:$0xf]
  %v52 = vld [vmem:[%s0 + $0x98] sm:$0xf]
  %v53 = vld [vmem:[%s0 + $0x9c] sm:$0xf]
  %v54 = vld [vmem:[%s0 + $0xa0] sm:$0xf]
  %v55 = vld [vmem:[%s0 + $0xa4] sm:$0xf]
  %v56 = vld [vmem:[%s0 + $0xa8] sm:$0xf]
  %v57 = vld [vmem:[%s0 + $0xac] sm:$0xf]
  %v58 = vld [vmem:[%s0 + $0xb0] sm:$0xf]
  %v59 = vld [vmem:[%s0 + $0xb4] sm:$0xf]
  %v60 = vld [vmem:[%s0 + $0xb8] sm:$0xf]
  %v61 = vld [vmem:[%s0 + $0xbc] sm:$0xf]
  %v62 = vld [vmem:[%s0 + $0xc0] sm:$0xf]
  %v63 = vld [vmem:[%s0 + $0xc4] sm:$0xf]
  %v64 = vld [vmem:[%s0 + $0xc8] sm:$0xf]
  %v65 = vld [vmem:[%s0 + $0xcc] sm:$0xf]
  %v66 = vld [vmem:[%s0 + $0xd0] sm:$0xf]
  %v67 = vld [vmem:[%s0 + $0xd4] sm:$0xf]
  %v68 = vld [vmem:[%s0 + $0xd8] sm:$0xf]
  %v69 = vld [vmem:[%s0 + $0xdc] sm:$0xf]
  %v70 = vld [vmem:[%s0 + $0xe0] sm:$0xf]
  %v71 = vld [vmem:[%s0 + $0xe4] sm:$0xf]
  %v72 = vld [vmem:[%s0 + $0xe8] sm:$0xf]
  %v73 = vld [vmem:[%s0 + $0xec] sm:$0xf]
  %v74 = vld [vmem:[%s0 + $0xf0] sm:$0xf]
  %v75 = vld [vmem:[%s0 + $0xf4] sm:$0xf]
  %v76 = vld [vmem:[%s0 + $0xf8] sm:$0xf]
  %v77 = vld [vmem:[%s0 + $0xfc] sm:$0xf]
  %v78 = vld [vmem:[%s1] sm:$0xf]
  %v79 = vld [vmem:[%s1 + $0x4] sm:$0xf]
  %v80 = vld [vmem:[%s1 + $0x8] sm:$0xf]
  %v81 = vld [vmem:[%s1 + $0xc] sm:$0xf]
  %v82 = vld [vmem:[%s1 + $0x10] sm:$0xf]
  %v83 = vld [vmem:[%s1 + $0x14] sm:$0xf]
  %v84 = vld [vmem:[%s1 + $0x18] sm:$0xf]
  %v85 = vld [vmem:[%s1 + $0x1c] sm:$0xf]
  %v86 = vld [vmem:[%s1 + $0x20] sm:$0xf]
  %v87 = vld [vmem:[%s1 + $0x24] sm:$0xf]
  %v88 = vld [vmem:[%s1 + $0x28] sm:$0xf]
  %v89 = vld [vmem:[%s1 + $0x2c] sm:$0xf]
  %v90 = vld [vmem:[%s1 + $0x30] sm:$0xf]
  %v91 = vld [vmem:[%s1 + $0x34] sm:$0xf]
  %v92 = vld [vmem:[%s1 + $0x38] sm:$0xf]
  %v93 = vld [vmem:[%s1 + $0x3c] sm:$0xf]
  %v158 = vunpack.c.l.b16 %v14
  %v159 = vunpack.c.l.b16 %v15
  %v160 = vunpack.c.l.b16 %v16
  %v161 = vunpack.c.l.b16 %v17
  %v162 = vunpack.c.l.b16 %v18
  %v163 = vunpack.c.l.b16 %v19
  %v164 = vunpack.c.l.b16 %v20
  %v165 = vunpack.c.l.b16 %v21
  %v166 = vunpack.c.l.b16 %v22
  %v167 = vunpack.c.l.b16 %v23
  %v168 = vunpack.c.l.b16 %v24
  %v169 = vunpack.c.l.b16 %v25
  %v170 = vunpack.c.l.b16 %v26
  %v171 = vunpack.c.l.b16 %v27
  %v172 = vunpack.c.l.b16 %v28
  %v173 = vunpack.c.l.b16 %v29
  %v174 = vunpack.c.l.b16 %v30
  %v175 = vunpack.c.l.b16 %v31
  %v176 = vunpack.c.l.b16 %v32
  %v177 = vunpack.c.l.b16 %v33
  %v178 = vunpack.c.l.b16 %v34
  %v179 = vunpack.c.l.b16 %v35
  %v180 = vunpack.c.l.b16 %v36
  %v181 = vunpack.c.l.b16 %v37
  %v182 = vunpack.c.l.b16 %v38
  %v183 = vunpack.c.l.b16 %v39
  %v184 = vunpack.c.l.b16 %v40
  %v185 = vunpack.c.l.b16 %v41
  %v186 = vunpack.c.l.b16 %v42
  %v187 = vunpack.c.l.b16 %v43
  %v188 = vunpack.c.l.b16 %v44
  %v189 = vunpack.c.l.b16 %v45
  %v190 = vunpack.c.l.b16 %v46
  %v191 = vunpack.c.l.b16 %v47
  %v192 = vunpack.c.l.b16 %v48
  %v193 = vunpack.c.l.b16 %v49
  %v194 = vunpack.c.l.b16 %v50
  %v195 = vunpack.c.l.b16 %v51
  %v196 = vunpack.c.l.b16 %v52
  %v197 = vunpack.c.l.b16 %v53
  %v198 = vunpack.c.l.b16 %v54
  %v199 = vunpack.c.l.b16 %v55
  %v200 = vunpack.c.l.b16 %v56
  %v201 = vunpack.c.l.b16 %v57
  %v202 = vunpack.c.l.b16 %v58
  %v203 = vunpack.c.l.b16 %v59
  %v204 = vunpack.c.l.b16 %v60
  %v205 = vunpack.c.l.b16 %v61
  %v206 = vunpack.c.l.b16 %v62
  %v207 = vunpack.c.l.b16 %v63
  %v208 = vunpack.c.l.b16 %v64
  %v209 = vunpack.c.l.b16 %v65
  %v210 = vunpack.c.l.b16 %v66
  %v211 = vunpack.c.l.b16 %v67
  %v212 = vunpack.c.l.b16 %v68
  %v213 = vunpack.c.l.b16 %v69
  %v214 = vunpack.c.l.b16 %v70
  %v215 = vunpack.c.l.b16 %v71
  %v216 = vunpack.c.l.b16 %v72
  %v217 = vunpack.c.l.b16 %v73
  %v218 = vunpack.c.l.b16 %v74
  %v219 = vunpack.c.l.b16 %v75
  %v220 = vunpack.c.l.b16 %v76
  %v221 = vunpack.c.l.b16 %v77
  %v222 = vpack.c.b16 %v159, %v158
  %v223 = vpack.c.b16 %v161, %v160
  %v224 = vpack.c.b16 %v163, %v162
  %v225 = vpack.c.b16 %v165, %v164
  %v226 = vpack.c.b16 %v167, %v166
  %v227 = vpack.c.b16 %v169, %v168
  %v228 = vpack.c.b16 %v171, %v170
  %v229 = vpack.c.b16 %v173, %v172
  %v230 = vpack.c.b16 %v175, %v174
  %v231 = vpack.c.b16 %v177, %v176
  %v232 = vpack.c.b16 %v179, %v178
  %v233 = vpack.c.b16 %v181, %v180
  %v234 = vpack.c.b16 %v183, %v182
  %v235 = vpack.c.b16 %v185, %v184
  %v236 = vpack.c.b16 %v187, %v186
  %v237 = vpack.c.b16 %v189, %v188
  %v238 = vpack.c.b16 %v191, %v190
  %v239 = vpack.c.b16 %v193, %v192
  %v240 = vpack.c.b16 %v195, %v194
  %v241 = vpack.c.b16 %v197, %v196
  %v242 = vpack.c.b16 %v199, %v198
  %v243 = vpack.c.b16 %v201, %v200
  %v244 = vpack.c.b16 %v203, %v202
  %v245 = vpack.c.b16 %v205, %v204
  %v246 = vpack.c.b16 %v207, %v206
  %v247 = vpack.c.b16 %v209, %v208
  %v248 = vpack.c.b16 %v211, %v210
  %v249 = vpack.c.b16 %v213, %v212
  %v250 = vpack.c.b16 %v215, %v214
  %v251 = vpack.c.b16 %v217, %v216
  %v252 = vpack.c.b16 %v219, %v218
  %v253 = vpack.c.b16 %v221, %v220
  %v302 = vunpack.c.l.b16 %v78
  %v303 = vunpack.c.l.b16 %v79
  %v304 = vunpack.c.l.b16 %v80
  %v305 = vunpack.c.l.b16 %v81
  %v306 = vunpack.c.l.b16 %v82
  %v307 = vunpack.c.l.b16 %v83
  %v308 = vunpack.c.l.b16 %v84
  %v309 = vunpack.c.l.b16 %v85
  %v310 = vunpack.c.l.b16 %v86
  %v311 = vunpack.c.l.b16 %v87
  %v312 = vunpack.c.l.b16 %v88
  %v313 = vunpack.c.l.b16 %v89
  %v314 = vunpack.c.l.b16 %v90
  %v315 = vunpack.c.l.b16 %v91
  %v316 = vunpack.c.l.b16 %v92
  %v317 = vunpack.c.l.b16 %v93
  %v318 = vpack.c.b16 %v303, %v302
  %v319 = vpack.c.b16 %v305, %v304
  %v320 = vpack.c.b16 %v307, %v306
  %v321 = vpack.c.b16 %v309, %v308
  %v322 = vpack.c.b16 %v311, %v310
  %v323 = vpack.c.b16 %v313, %v312
  %v324 = vpack.c.b16 %v315, %v314
  %v325 = vpack.c.b16 %v317, %v316
  %334 = vmatprep.subr.bf16.mxu0 0
  %335 = vmatpush1.bf16.msra.mxu0 %v318
  %336 = vmatprep.subr.bf16.mxu0 0
  %337 = vmatpush1.bf16.msra.mxu0 %v319
  %338 = vmatprep.subr.bf16.mxu0 0
  %339 = vmatpush1.bf16.msra.mxu0 %v320
  %340 = vmatprep.subr.bf16.mxu0 0
  %341 = vmatpush1.bf16.msra.mxu0 %v321
  %342 = vmatprep.subr.bf16.mxu0 0
  %343 = vmatpush1.bf16.msra.mxu0 %v322
  %344 = vmatprep.subr.bf16.mxu0 0
  %345 = vmatpush1.bf16.msra.mxu0 %v323
  %346 = vmatprep.subr.bf16.mxu0 0
  %347 = vmatpush1.bf16.msra.mxu0 %v324
  %348 = vmatprep.subr.bf16.mxu0 0
  %349 = vmatpush1.bf16.msra.mxu0 %v325
  %350 = vmatprep.subr.bf16.mxu0 0
  %351 = vmatpush1.bf16.msra.mxu0 0
  %352 = vmatprep.subr.bf16.mxu0 0
  %353 = vmatpush1.bf16.msra.mxu0 0
  %354 = vmatprep.subr.bf16.mxu0 0
  %355 = vmatpush1.bf16.msra.mxu0 0
  %356 = vmatprep.subr.bf16.mxu0 0
  %357 = vmatpush1.bf16.msra.mxu0 0
  %358 = vmatprep.subr.bf16.mxu0 0
  %359 = vmatpush1.bf16.msra.mxu0 0
  %360 = vmatprep.subr.bf16.mxu0 0
  %361 = vmatpush1.bf16.msra.mxu0 0
  %362 = vmatprep.subr.bf16.mxu0 0
  %363 = vmatpush1.bf16.msra.mxu0 0
  %364 = vmatprep.subr.bf16.mxu0 0
  %365 = vmatpush1.bf16.msra.mxu0 0
  %366 = vmatprep.mubr.bf16.mxu0 0
  %367 = vmatmul.mubr.bf16.gmra.mrb[0].mxu0 %v222
  %v368 = vpop.f32.mrb[0].mxu0
  %v369 = vadd.f32 0.0, %v368
  %v370 = vpop.f32.mrb[0].mxu0
  %v371 = vpop.f32.mrb[0].mxu0
  %v372 = vadd.f32 0.0, %v371
  %v373 = vpop.f32.mrb[0].mxu0
  %374 = vmatprep.mubr.bf16.mxu0 0
  %375 = vmatmul.mubr.bf16.gmra.mrb[0].mxu0 %v223
  %v376 = vpop.f32.mrb[0].mxu0
  %v377 = vadd.f32 0.0, %v376
  %v378 = vpop.f32.mrb[0].mxu0
  %v379 = vpop.f32.mrb[0].mxu0
  %v380 = vadd.f32 0.0, %v379
  %v381 = vpop.f32.mrb[0].mxu0
  %382 = vmatprep.mubr.bf16.mxu0 0
  %383 = vmatmul.mubr.bf16.gmra.mrb[0].mxu0 %v224
  %v384 = vpop.f32.mrb[0].mxu0
  %v385 = vadd.f32 0.0, %v384
  %v386 = vpop.f32.mrb[0].mxu0
  %v387 = vpop.f32.mrb[0].mxu0
  %v388 = vadd.f32 0.0, %v387
  %v389 = vpop.f32.mrb[0].mxu0
  %390 = vmatprep.mubr.bf16.mxu0 0
  %391 = vmatmul.mubr.bf16.gmra.mrb[0].mxu0 %v225
  %v392 = vpop.f32.mrb[0].mxu0
  %v393 = vadd.f32 0.0, %v392
  %v394 = vpop.f32.mrb[0].mxu0
  %v395 = vpop.f32.mrb[0].mxu0
  %v396 = vadd.f32 0.0, %v395
  %v397 = vpop.f32.mrb[0].mxu0
  %398 = vmatprep.mubr.bf16.mxu0 0
  %399 = vmatmul.mubr.bf16.gmra.mrb[0].mxu0 %v226
  %v400 = vpop.f32.mrb[0].mxu0
  %v401 = vadd.f32 0.0, %v400
  %v402 = vpop.f32.mrb[0].mxu0
  %v403 = vpop.f32.mrb[0].mxu0
  %v404 = vadd.f32 0.0, %v403
  %v405 = vpop.f32.mrb[0].mxu0
  %406 = vmatprep.mubr.bf16.mxu0 0
  %407 = vmatmul.mubr.bf16.gmra.mrb[0].mxu0 %v227
  %v408 = vpop.f32.mrb[0].mxu0
  %v409 = vadd.f32 0.0, %v408
  %v410 = vpop.f32.mrb[0].mxu0
  %v411 = vpop.f32.mrb[0].mxu0
  %v412 = vadd.f32 0.0, %v411
  %v413 = vpop.f32.mrb[0].mxu0
  %414 = vmatprep.mubr.bf16.mxu0 0
  %415 = vmatmul.mubr.bf16.gmra.mrb[0].mxu0 %v228
  %v416 = vpop.f32.mrb[0].mxu0
  %v417 = vadd.f32 0.0, %v416
  %v418 = vpop.f32.mrb[0].mxu0
  %v419 = vpop.f32.mrb[0].mxu0
  %v420 = vadd.f32 0.0, %v419
  %v421 = vpop.f32.mrb[0].mxu0
  %422 = vmatprep.mubr.bf16.mxu0 0
  %423 = vmatmul.mubr.bf16.gmra.mrb[0].mxu0 %v229
  %v424 = vpop.f32.mrb[0].mxu0
  %v425 = vadd.f32 0.0, %v424
  %v426 = vpop.f32.mrb[0].mxu0
  %v427 = vpop.f32.mrb[0].mxu0
  %v428 = vadd.f32 0.0, %v427
  %v429 = vpop.f32.mrb[0].mxu0
  %430 = vmatprep.mubr.bf16.mxu0 0
  %431 = vmatmul.mubr.bf16.gmra.mrb[0].mxu0 %v230
  %v432 = vpop.f32.mrb[0].mxu0
  %v433 = vadd.f32 0.0, %v432
  %v434 = vpop.f32.mrb[0].mxu0
  %v435 = vpop.f32.mrb[0].mxu0
  %v436 = vadd.f32 0.0, %v435
  %v437 = vpop.f32.mrb[0].mxu0
  %438 = vmatprep.mubr.bf16.mxu0 0
  %439 = vmatmul.mubr.bf16.gmra.mrb[0].mxu0 %v231
  %v440 = vpop.f32.mrb[0].mxu0
  %v441 = vadd.f32 0.0, %v440
  %v442 = vpop.f32.mrb[0].mxu0
  %v443 = vpop.f32.mrb[0].mxu0
  %v444 = vadd.f32 0.0, %v443
  %v445 = vpop.f32.mrb[0].mxu0
  %446 = vmatprep.mubr.bf16.mxu0 0
  %447 = vmatmul.mubr.bf16.gmra.mrb[0].mxu0 %v232
  %v448 = vpop.f32.mrb[0].mxu0
  %v449 = vadd.f32 0.0, %v448
  %v450 = vpop.f32.mrb[0].mxu0
  %v451 = vpop.f32.mrb[0].mxu0
  %v452 = vadd.f32 0.0, %v451
  %v453 = vpop.f32.mrb[0].mxu0
  %454 = vmatprep.mubr.bf16.mxu0 0
  %455 = vmatmul.mubr.bf16.gmra.mrb[0].mxu0 %v233
  %v456 = vpop.f32.mrb[0].mxu0
  %v457 = vadd.f32 0.0, %v456
  %v458 = vpop.f32.mrb[0].mxu0
  %v459 = vpop.f32.mrb[0].mxu0
  %v460 = vadd.f32 0.0, %v459
  %v461 = vpop.f32.mrb[0].mxu0
  %462 = vmatprep.mubr.bf16.mxu0 0
  %463 = vmatmul.mubr.bf16.gmra.mrb[0].mxu0 %v234
  %v464 = vpop.f32.mrb[0].mxu0
  %v465 = vadd.f32 0.0, %v464
  %v466 = vpop.f32.mrb[0].mxu0
  %v467 = vpop.f32.mrb[0].mxu0
  %v468 = vadd.f32 0.0, %v467
  %v469 = vpop.f32.mrb[0].mxu0
  %470 = vmatprep.mubr.bf16.mxu0 0
  %471 = vmatmul.mubr.bf16.gmra.mrb[0].mxu0 %v235
  %v472 = vpop.f32.mrb[0].mxu0
  %v473 = vadd.f32 0.0, %v472
  %v474 = vpop.f32.mrb[0].mxu0
  %v475 = vpop.f32.mrb[0].mxu0
  %v476 = vadd.f32 0.0, %v475
  %v477 = vpop.f32.mrb[0].mxu0
  %478 = vmatprep.mubr.bf16.mxu0 0
  %479 = vmatmul.mubr.bf16.gmra.mrb[0].mxu0 %v236
  %v480 = vpop.f32.mrb[0].mxu0
  %v481 = vadd.f32 0.0, %v480
  %v482 = vpop.f32.mrb[0].mxu0
  %v483 = vpop.f32.mrb[0].mxu0
  %v484 = vadd.f32 0.0, %v483
  %v485 = vpop.f32.mrb[0].mxu0
  %486 = vmatprep.mubr.bf16.mxu0 0
  %487 = vmatmul.mubr.bf16.gmra.mrb[0].mxu0 %v237
  %v488 = vpop.f32.mrb[0].mxu0
  %v489 = vadd.f32 0.0, %v488
  %v490 = vpop.f32.mrb[0].mxu0
  %v491 = vpop.f32.mrb[0].mxu0
  %v492 = vadd.f32 0.0, %v491
  %v493 = vpop.f32.mrb[0].mxu0
  %494 = vmatprep.mubr.bf16.mxu0 0
  %495 = vmatmul.mubr.bf16.gmra.mrb[0].mxu0 %v238
  %v496 = vpop.f32.mrb[0].mxu0
  %v497 = vadd.f32 0.0, %v496
  %v498 = vpop.f32.mrb[0].mxu0
  %v499 = vpop.f32.mrb[0].mxu0
  %v500 = vadd.f32 0.0, %v499
  %v501 = vpop.f32.mrb[0].mxu0
  %502 = vmatprep.mubr.bf16.mxu0 0
  %503 = vmatmul.mubr.bf16.gmra.mrb[0].mxu0 %v239
  %v504 = vpop.f32.mrb[0].mxu0
  %v505 = vadd.f32 0.0, %v504
  %v506 = vpop.f32.mrb[0].mxu0
  %v507 = vpop.f32.mrb[0].mxu0
  %v508 = vadd.f32 0.0, %v507
  %v509 = vpop.f32.mrb[0].mxu0
  %510 = vmatprep.mubr.bf16.mxu0 0
  %511 = vmatmul.mubr.bf16.gmra.mrb[0].mxu0 %v240
  %v512 = vpop.f32.mrb[0].mxu0
  %v513 = vadd.f32 0.0, %v512
  %v514 = vpop.f32.mrb[0].mxu0
  %v515 = vpop.f32.mrb[0].mxu0
  %v516 = vadd.f32 0.0, %v515
  %v517 = vpop.f32.mrb[0].mxu0
  %518 = vmatprep.mubr.bf16.mxu0 0
  %519 = vmatmul.mubr.bf16.gmra.mrb[0].mxu0 %v241
  %v520 = vpop.f32.mrb[0].mxu0
  %v521 = vadd.f32 0.0, %v520
  %v522 = vpop.f32.mrb[0].mxu0
  %v523 = vpop.f32.mrb[0].mxu0
  %v524 = vadd.f32 0.0, %v523
  %v525 = vpop.f32.mrb[0].mxu0
  %526 = vmatprep.mubr.bf16.mxu0 0
  %527 = vmatmul.mubr.bf16.gmra.mrb[0].mxu0 %v242
  %v528 = vpop.f32.mrb[0].mxu0
  %v529 = vadd.f32 0.0, %v528
  %v530 = vpop.f32.mrb[0].mxu0
  %v531 = vpop.f32.mrb[0].mxu0
  %v532 = vadd.f32 0.0, %v531
  %v533 = vpop.f32.mrb[0].mxu0
  %534 = vmatprep.mubr.bf16.mxu0 0
  %535 = vmatmul.mubr.bf16.gmra.mrb[0].mxu0 %v243
  %v536 = vpop.f32.mrb[0].mxu0
  %v537 = vadd.f32 0.0, %v536
  %v538 = vpop.f32.mrb[0].mxu0
  %v539 = vpop.f32.mrb[0].mxu0
  %v540 = vadd.f32 0.0, %v539
  %v541 = vpop.f32.mrb[0].mxu0
  %542 = vmatprep.mubr.bf16.mxu0 0
  %543 = vmatmul.mubr.bf16.gmra.mrb[0].mxu0 %v244
  %v544 = vpop.f32.mrb[0].mxu0
  %v545 = vadd.f32 0.0, %v544
  %v546 = vpop.f32.mrb[0].mxu0
  %v547 = vpop.f32.mrb[0].mxu0
  %v548 = vadd.f32 0.0, %v547
  %v549 = vpop.f32.mrb[0].mxu0
  %550 = vmatprep.mubr.bf16.mxu0 0
  %551 = vmatmul.mubr.bf16.gmra.mrb[0].mxu0 %v245
  %v552 = vpop.f32.mrb[0].mxu0
  %v553 = vadd.f32 0.0, %v552
  %v554 = vpop.f32.mrb[0].mxu0
  %v555 = vpop.f32.mrb[0].mxu0
  %v556 = vadd.f32 0.0, %v555
  %v557 = vpop.f32.mrb[0].mxu0
  %558 = vmatprep.mubr.bf16.mxu0 0
  %559 = vmatmul.mubr.bf16.gmra.mrb[0].mxu0 %v246
  %v560 = vpop.f32.mrb[0].mxu0
  %v561 = vadd.f32 0.0, %v560
  %v562 = vpop.f32.mrb[0].mxu0
  %v563 = vpop.f32.mrb[0].mxu0
  %v564 = vadd.f32 0.0, %v563
  %v565 = vpop.f32.mrb[0].mxu0
  %566 = vmatprep.mubr.bf16.mxu0 0
  %567 = vmatmul.mubr.bf16.gmra.mrb[0].mxu0 %v247
  %v568 = vpop.f32.mrb[0].mxu0
  %v569 = vadd.f32 0.0, %v568
  %v570 = vpop.f32.mrb[0].mxu0
  %v571 = vpop.f32.mrb[0].mxu0
  %v572 = vadd.f32 0.0, %v571
  %v573 = vpop.f32.mrb[0].mxu0
  %574 = vmatprep.mubr.bf16.mxu0 0
  %575 = vmatmul.mubr.bf16.gmra.mrb[0].mxu0 %v248
  %v576 = vpop.f32.mrb[0].mxu0
  %v577 = vadd.f32 0.0, %v576
  %v578 = vpop.f32.mrb[0].mxu0
  %v579 = vpop.f32.mrb[0].mxu0
  %v580 = vadd.f32 0.0, %v579
  %v581 = vpop.f32.mrb[0].mxu0
  %582 = vmatprep.mubr.bf16.mxu0 0
  %583 = vmatmul.mubr.bf16.gmra.mrb[0].mxu0 %v249
  %v584 = vpop.f32.mrb[0].mxu0
  %v585 = vadd.f32 0.0, %v584
  %v586 = vpop.f32.mrb[0].mxu0
  %v587 = vpop.f32.mrb[0].mxu0
  %v588 = vadd.f32 0.0, %v587
  %v589 = vpop.f32.mrb[0].mxu0
  %590 = vmatprep.mubr.bf16.mxu0 0
  %591 = vmatmul.mubr.bf16.gmra.mrb[0].mxu0 %v250
  %v592 = vpop.f32.mrb[0].mxu0
  %v593 = vadd.f32 0.0, %v592
  %v594 = vpop.f32.mrb[0].mxu0
  %v595 = vpop.f32.mrb[0].mxu0
  %v596 = vadd.f32 0.0, %v595
  %v597 = vpop.f32.mrb[0].mxu0
  %598 = vmatprep.mubr.bf16.mxu0 0
  %599 = vmatmul.mubr.bf16.gmra.mrb[0].mxu0 %v251
  %v600 = vpop.f32.mrb[0].mxu0
  %v601 = vadd.f32 0.0, %v600
  %v602 = vpop.f32.mrb[0].mxu0
  %v603 = vpop.f32.mrb[0].mxu0
  %v604 = vadd.f32 0.0, %v603
  %v605 = vpop.f32.mrb[0].mxu0
  %606 = vmatprep.mubr.bf16.mxu0 0
  %607 = vmatmul.mubr.bf16.gmra.mrb[0].mxu0 %v252
  %v608 = vpop.f32.mrb[0].mxu0
  %v609 = vadd.f32 0.0, %v608
  %v610 = vpop.f32.mrb[0].mxu0
  %v611 = vpop.f32.mrb[0].mxu0
  %v612 = vadd.f32 0.0, %v611
  %v613 = vpop.f32.mrb[0].mxu0
  %614 = vmatprep.mubr.bf16.mxu0 0
  %615 = vmatmul.mubr.bf16.gmra.mrb[0].mxu0 %v253
  %v616 = vpop.f32.mrb[0].mxu0
  %v617 = vadd.f32 0.0, %v616
  %v618 = vpop.f32.mrb[0].mxu0
  %v619 = vpop.f32.mrb[0].mxu0
  %v620 = vadd.f32 0.0, %v619
  %v621 = vpop.f32.mrb[0].mxu0
  %622 = vdwg.mxu0
  %v623 = vpack.c.bf16 %v372, %v369
  %v624 = vpack.c.bf16 %v380, %v377
  %v625 = vpack.c.bf16 %v388, %v385
  %v626 = vpack.c.bf16 %v396, %v393
  %v627 = vpack.c.bf16 %v404, %v401
  %v628 = vpack.c.bf16 %v412, %v409
  %v629 = vpack.c.bf16 %v420, %v417
  %v630 = vpack.c.bf16 %v428, %v425
  %v631 = vpack.c.bf16 %v436, %v433
  %v632 = vpack.c.bf16 %v444, %v441
  %v633 = vpack.c.bf16 %v452, %v449
  %v634 = vpack.c.bf16 %v460, %v457
  %v635 = vpack.c.bf16 %v468, %v465
  %v636 = vpack.c.bf16 %v476, %v473
  %v637 = vpack.c.bf16 %v484, %v481
  %v638 = vpack.c.bf16 %v492, %v489
  %v639 = vpack.c.bf16 %v500, %v497
  %v640 = vpack.c.bf16 %v508, %v505
  %v641 = vpack.c.bf16 %v516, %v513
  %v642 = vpack.c.bf16 %v524, %v521
  %v643 = vpack.c.bf16 %v532, %v529
  %v644 = vpack.c.bf16 %v540, %v537
  %v645 = vpack.c.bf16 %v548, %v545
  %v646 = vpack.c.bf16 %v556, %v553
  %v647 = vpack.c.bf16 %v564, %v561
  %v648 = vpack.c.bf16 %v572, %v569
  %v649 = vpack.c.bf16 %v580, %v577
  %v650 = vpack.c.bf16 %v588, %v585
  %v651 = vpack.c.bf16 %v596, %v593
  %v652 = vpack.c.bf16 %v604, %v601
  %v653 = vpack.c.bf16 %v612, %v609
  %v654 = vpack.c.bf16 %v620, %v617
  %v687 = vunpack.c.l.b16 %v623
  %v688 = vunpack.c.h.b16 %v623
  %v689 = vunpack.c.l.b16 %v624
  %v690 = vunpack.c.h.b16 %v624
  %v691 = vunpack.c.l.b16 %v625
  %v692 = vunpack.c.h.b16 %v625
  %v693 = vunpack.c.l.b16 %v626
  %v694 = vunpack.c.h.b16 %v626
  %v695 = vunpack.c.l.b16 %v627
  %v696 = vunpack.c.h.b16 %v627
  %v697 = vunpack.c.l.b16 %v628
  %v698 = vunpack.c.h.b16 %v628
  %v699 = vunpack.c.l.b16 %v629
  %v700 = vunpack.c.h.b16 %v629
  %v701 = vunpack.c.l.b16 %v630
  %v702 = vunpack.c.h.b16 %v630
  %v703 = vunpack.c.l.b16 %v631
  %v704 = vunpack.c.h.b16 %v631
  %v705 = vunpack.c.l.b16 %v632
  %v706 = vunpack.c.h.b16 %v632
  %v707 = vunpack.c.l.b16 %v633
  %v708 = vunpack.c.h.b16 %v633
  %v709 = vunpack.c.l.b16 %v634
  %v710 = vunpack.c.h.b16 %v634
  %v711 = vunpack.c.l.b16 %v635
  %v712 = vunpack.c.h.b16 %v635
  %v713 = vunpack.c.l.b16 %v636
  %v714 = vunpack.c.h.b16 %v636
  %v715 = vunpack.c.l.b16 %v637
  %v716 = vunpack.c.h.b16 %v637
  %v717 = vunpack.c.l.b16 %v638
  %v718 = vunpack.c.h.b16 %v638
  %v719 = vunpack.c.l.b16 %v639
  %v720 = vunpack.c.h.b16 %v639
  %v721 = vunpack.c.l.b16 %v640
  %v722 = vunpack.c.h.b16 %v640
  %v723 = vunpack.c.l.b16 %v641
  %v724 = vunpack.c.h.b16 %v641
  %v725 = vunpack.c.l.b16 %v642
  %v726 = vunpack.c.h.b16 %v642
  %v727 = vunpack.c.l.b16 %v643
  %v728 = vunpack.c.h.b16 %v643
  %v729 = vunpack.c.l.b16 %v644
  %v730 = vunpack.c.h.b16 %v644
  %v731 = vunpack.c.l.b16 %v645
  %v732 = vunpack.c.h.b16 %v645
  %v733 = vunpack.c.l.b16 %v646
  %v734 = vunpack.c.h.b16 %v646
  %v735 = vunpack.c.l.b16 %v647
  %v736 = vunpack.c.h.b16 %v647
  %v737 = vunpack.c.l.b16 %v648
  %v738 = vunpack.c.h.b16 %v648
  %v739 = vunpack.c.l.b16 %v649
  %v740 = vunpack.c.h.b16 %v649
  %v741 = vunpack.c.l.b16 %v650
  %v742 = vunpack.c.h.b16 %v650
  %v743 = vunpack.c.l.b16 %v651
  %v744 = vunpack.c.h.b16 %v651
  %v745 = vunpack.c.l.b16 %v652
  %v746 = vunpack.c.h.b16 %v652
  %v747 = vunpack.c.l.b16 %v653
  %v748 = vunpack.c.h.b16 %v653
  %v749 = vunpack.c.l.b16 %v654
  %v750 = vunpack.c.h.b16 %v654
  %v751 = vpack.c.b16 %v687, %v687
  %v752 = vpack.c.b16 %v688, %v688
  %v753 = vpack.c.b16 %v689, %v689
  %v754 = vpack.c.b16 %v690, %v690
  %v755 = vpack.c.b16 %v691, %v691
  %v756 = vpack.c.b16 %v692, %v692
  %v757 = vpack.c.b16 %v693, %v693
  %v758 = vpack.c.b16 %v694, %v694
  %v759 = vpack.c.b16 %v695, %v695
  %v760 = vpack.c.b16 %v696, %v696
  %v761 = vpack.c.b16 %v697, %v697
  %v762 = vpack.c.b16 %v698, %v698
  %v763 = vpack.c.b16 %v699, %v699
  %v764 = vpack.c.b16 %v700, %v700
  %v765 = vpack.c.b16 %v701, %v701
  %v766 = vpack.c.b16 %v702, %v702
  %v767 = vpack.c.b16 %v703, %v703
  %v768 = vpack.c.b16 %v704, %v704
  %v769 = vpack.c.b16 %v705, %v705
  %v770 = vpack.c.b16 %v706, %v706
  %v771 = vpack.c.b16 %v707, %v707
  %v772 = vpack.c.b16 %v708, %v708
  %v773 = vpack.c.b16 %v709, %v709
  %v774 = vpack.c.b16 %v710, %v710
  %v775 = vpack.c.b16 %v711, %v711
  %v776 = vpack.c.b16 %v712, %v712
  %v777 = vpack.c.b16 %v713, %v713
  %v778 = vpack.c.b16 %v714, %v714
  %v779 = vpack.c.b16 %v715, %v715
  %v780 = vpack.c.b16 %v716, %v716
  %v781 = vpack.c.b16 %v717, %v717
  %v782 = vpack.c.b16 %v718, %v718
  %v783 = vpack.c.b16 %v719, %v719
  %v784 = vpack.c.b16 %v720, %v720
  %v785 = vpack.c.b16 %v721, %v721
  %v786 = vpack.c.b16 %v722, %v722
  %v787 = vpack.c.b16 %v723, %v723
  %v788 = vpack.c.b16 %v724, %v724
  %v789 = vpack.c.b16 %v725, %v725
  %v790 = vpack.c.b16 %v726, %v726
  %v791 = vpack.c.b16 %v727, %v727
  %v792 = vpack.c.b16 %v728, %v728
  %v793 = vpack.c.b16 %v729, %v729
  %v794 = vpack.c.b16 %v730, %v730
  %v795 = vpack.c.b16 %v731, %v731
  %v796 = vpack.c.b16 %v732, %v732
  %v797 = vpack.c.b16 %v733, %v733
  %v798 = vpack.c.b16 %v734, %v734
  %v799 = vpack.c.b16 %v735, %v735
  %v800 = vpack.c.b16 %v736, %v736
  %v801 = vpack.c.b16 %v737, %v737
  %v802 = vpack.c.b16 %v738, %v738
  %v803 = vpack.c.b16 %v739, %v739
  %v804 = vpack.c.b16 %v740, %v740
  %v805 = vpack.c.b16 %v741, %v741
  %v806 = vpack.c.b16 %v742, %v742
  %v807 = vpack.c.b16 %v743, %v743
  %v808 = vpack.c.b16 %v744, %v744
  %v809 = vpack.c.b16 %v745, %v745
  %v810 = vpack.c.b16 %v746, %v746
  %v811 = vpack.c.b16 %v747, %v747
  %v812 = vpack.c.b16 %v748, %v748
  %v813 = vpack.c.b16 %v749, %v749
  %v814 = vpack.c.b16 %v750, %v750
  %879 = vst [vmem:[%s2] sm:$0xf] %v751
  %880 = vst [vmem:[%s2 + $0x4] sm:$0xf] %v752
  %881 = vst [vmem:[%s2 + $0x8] sm:$0xf] %v753
  %882 = vst [vmem:[%s2 + $0xc] sm:$0xf] %v754
  %883 = vst [vmem:[%s2 + $0x10] sm:$0xf] %v755
  %884 = vst [vmem:[%s2 + $0x14] sm:$0xf] %v756
  %885 = vst [vmem:[%s2 + $0x18] sm:$0xf] %v757
  %886 = vst [vmem:[%s2 + $0x1c] sm:$0xf] %v758
  %887 = vst [vmem:[%s2 + $0x20] sm:$0xf] %v759
  %888 = vst [vmem:[%s2 + $0x24] sm:$0xf] %v760
  %889 = vst [vmem:[%s2 + $0x28] sm:$0xf] %v761
  %890 = vst [vmem:[%s2 + $0x2c] sm:$0xf] %v762
  %891 = vst [vmem:[%s2 + $0x30] sm:$0xf] %v763
  %892 = vst [vmem:[%s2 + $0x34] sm:$0xf] %v764
  %893 = vst [vmem:[%s2 + $0x38] sm:$0xf] %v765
  %894 = vst [vmem:[%s2 + $0x3c] sm:$0xf] %v766
  %895 = vst [vmem:[%s2 + $0x40] sm:$0xf] %v767
  %896 = vst [vmem:[%s2 + $0x44] sm:$0xf] %v768
  %897 = vst [vmem:[%s2 + $0x48] sm:$0xf] %v769
  %898 = vst [vmem:[%s2 + $0x4c] sm:$0xf] %v770
  %899 = vst [vmem:[%s2 + $0x50] sm:$0xf] %v771
  %900 = vst [vmem:[%s2 + $0x54] sm:$0xf] %v772
  %901 = vst [vmem:[%s2 + $0x58] sm:$0xf] %v773
  %902 = vst [vmem:[%s2 + $0x5c] sm:$0xf] %v774
  %903 = vst [vmem:[%s2 + $0x60] sm:$0xf] %v775
  %904 = vst [vmem:[%s2 + $0x64] sm:$0xf] %v776
  %905 = vst [vmem:[%s2 + $0x68] sm:$0xf] %v777
  %906 = vst [vmem:[%s2 + $0x6c] sm:$0xf] %v778
  %907 = vst [vmem:[%s2 + $0x70] sm:$0xf] %v779
  %908 = vst [vmem:[%s2 + $0x74] sm:$0xf] %v780
  %909 = vst [vmem:[%s2 + $0x78] sm:$0xf] %v781
  %910 = vst [vmem:[%s2 + $0x7c] sm:$0xf] %v782
  %911 = vst [vmem:[%s2 + $0x80] sm:$0xf] %v783
  %912 = vst [vmem:[%s2 + $0x84] sm:$0xf] %v784
  %913 = vst [vmem:[%s2 + $0x88] sm:$0xf] %v785
  %914 = vst [vmem:[%s2 + $0x8c] sm:$0xf] %v786
  %915 = vst [vmem:[%s2 + $0x90] sm:$0xf] %v787
  %916 = vst [vmem:[%s2 + $0x94] sm:$0xf] %v788
  %917 = vst [vmem:[%s2 + $0x98] sm:$0xf] %v789
  %918 = vst [vmem:[%s2 + $0x9c] sm:$0xf] %v790
  %919 = vst [vmem:[%s2 + $0xa0] sm:$0xf] %v791
  %920 = vst [vmem:[%s2 + $0xa4] sm:$0xf] %v792
  %921 = vst [vmem:[%s2 + $0xa8] sm:$0xf] %v793
  %922 = vst [vmem:[%s2 + $0xac] sm:$0xf] %v794
  %923 = vst [vmem:[%s2 + $0xb0] sm:$0xf] %v795
  %924 = vst [vmem:[%s2 + $0xb4] sm:$0xf] %v796
  %925 = vst [vmem:[%s2 + $0xb8] sm:$0xf] %v797
  %926 = vst [vmem:[%s2 + $0xbc] sm:$0xf] %v798
  %927 = vst [vmem:[%s2 + $0xc0] sm:$0xf] %v799
  %928 = vst [vmem:[%s2 + $0xc4] sm:$0xf] %v800
  %929 = vst [vmem:[%s2 + $0xc8] sm:$0xf] %v801
  %930 = vst [vmem:[%s2 + $0xcc] sm:$0xf] %v802
  %931 = vst [vmem:[%s2 + $0xd0] sm:$0xf] %v803
  %932 = vst [vmem:[%s2 + $0xd4] sm:$0xf] %v804
  %933 = vst [vmem:[%s2 + $0xd8] sm:$0xf] %v805
  %934 = vst [vmem:[%s2 + $0xdc] sm:$0xf] %v806
  %935 = vst [vmem:[%s2 + $0xe0] sm:$0xf] %v807
  %936 = vst [vmem:[%s2 + $0xe4] sm:$0xf] %v808
  %937 = vst [vmem:[%s2 + $0xe8] sm:$0xf] %v809
  %938 = vst [vmem:[%s2 + $0xec] sm:$0xf] %v810
  %939 = vst [vmem:[%s2 + $0xf0] sm:$0xf] %v811
  %940 = vst [vmem:[%s2 + $0xf4] sm:$0xf] %v812
  %941 = vst [vmem:[%s2 + $0xf8] sm:$0xf] %v813
  %942 = vst [vmem:[%s2 + $0xfc] sm:$0xf] %v814
  %v943 = vadd.f32 %v369, %v372
  %v944 = vadd.f32 %v943, %v377
  %v945 = vadd.f32 %v944, %v380
  %v946 = vadd.f32 %v945, %v385
  %v947 = vadd.f32 %v946, %v388
  %v948 = vadd.f32 %v947, %v393
  %v949 = vadd.f32 %v948, %v396
  %v950 = vadd.f32 %v949, %v401
  %v951 = vadd.f32 %v950, %v404
  %v952 = vadd.f32 %v951, %v409
  %v953 = vadd.f32 %v952, %v412
  %v954 = vadd.f32 %v953, %v417
  %v955 = vadd.f32 %v954, %v420
  %v956 = vadd.f32 %v955, %v425
  %v957 = vadd.f32 %v956, %v428
  %v958 = vadd.f32 %v957, %v433
  %v959 = vadd.f32 %v958, %v436
  %v960 = vadd.f32 %v959, %v441
  %v961 = vadd.f32 %v960, %v444
  %v962 = vadd.f32 %v961, %v449
  %v963 = vadd.f32 %v962, %v452
  %v964 = vadd.f32 %v963, %v457
  %v965 = vadd.f32 %v964, %v460
  %v966 = vadd.f32 %v965, %v465
  %v967 = vadd.f32 %v966, %v468
  %v968 = vadd.f32 %v967, %v473
  %v969 = vadd.f32 %v968, %v476
  %v970 = vadd.f32 %v969, %v481
  %v971 = vadd.f32 %v970, %v484
  %v972 = vadd.f32 %v971, %v489
  %v973 = vadd.f32 %v972, %v492
  %v974 = vadd.f32 %v973, %v497
  %v975 = vadd.f32 %v974, %v500
  %v976 = vadd.f32 %v975, %v505
  %v977 = vadd.f32 %v976, %v508
  %v978 = vadd.f32 %v977, %v513
  %v979 = vadd.f32 %v978, %v516
  %v980 = vadd.f32 %v979, %v521
  %v981 = vadd.f32 %v980, %v524
  %v982 = vadd.f32 %v981, %v529
  %v983 = vadd.f32 %v982, %v532
  %v984 = vadd.f32 %v983, %v537
  %v985 = vadd.f32 %v984, %v540
  %v986 = vadd.f32 %v985, %v545
  %v987 = vadd.f32 %v986, %v548
  %v988 = vadd.f32 %v987, %v553
  %v989 = vadd.f32 %v988, %v556
  %v990 = vadd.f32 %v989, %v561
  %v991 = vadd.f32 %v990, %v564
  %v992 = vadd.f32 %v991, %v569
  %v993 = vadd.f32 %v992, %v572
  %v994 = vadd.f32 %v993, %v577
  %v995 = vadd.f32 %v994, %v580
  %v996 = vadd.f32 %v995, %v585
  %v997 = vadd.f32 %v996, %v588
  %v998 = vadd.f32 %v997, %v593
  %v999 = vadd.f32 %v998, %v596
  %v1000 = vadd.f32 %v999, %v601
  %v1001 = vadd.f32 %v1000, %v604
  %v1002 = vadd.f32 %v1001, %v609
  %v1003 = vadd.f32 %v1002, %v612
  %v1004 = vadd.f32 %v1003, %v617
  %v1005 = vadd.f32 %v1004, %v620
  %v1006 = vrot.slane %v1005, 4
  %v1007 = vadd.f32 %v1005, %v1006
  %v1008 = vrot.slane %v1007, 2
  %v1009 = vadd.f32 %v1007, %v1008
  %v1010 = vrot.slane %v1009, 1
  %v1011 = vadd.f32 %v1009, %v1010
  %1012 = vst [vmem:[%s3] sm:$0x1] %v1011
  %v1013 = vmul.f32 %v369, %v369
  %v1014 = vmul.f32 %v372, %v372
  %v1015 = vmul.f32 %v377, %v377
  %v1016 = vmul.f32 %v380, %v380
  %v1017 = vmul.f32 %v385, %v385
  %v1018 = vmul.f32 %v388, %v388
  %v1019 = vmul.f32 %v393, %v393
  %v1020 = vmul.f32 %v396, %v396
  %v1021 = vmul.f32 %v401, %v401
  %v1022 = vmul.f32 %v404, %v404
  %v1023 = vmul.f32 %v409, %v409
  %v1024 = vmul.f32 %v412, %v412
  %v1025 = vmul.f32 %v417, %v417
  %v1026 = vmul.f32 %v420, %v420
  %v1027 = vmul.f32 %v425, %v425
  %v1028 = vmul.f32 %v428, %v428
  %v1029 = vmul.f32 %v433, %v433
  %v1030 = vmul.f32 %v436, %v436
  %v1031 = vmul.f32 %v441, %v441
  %v1032 = vmul.f32 %v444, %v444
  %v1033 = vmul.f32 %v449, %v449
  %v1034 = vmul.f32 %v452, %v452
  %v1035 = vmul.f32 %v457, %v457
  %v1036 = vmul.f32 %v460, %v460
  %v1037 = vmul.f32 %v465, %v465
  %v1038 = vmul.f32 %v468, %v468
  %v1039 = vmul.f32 %v473, %v473
  %v1040 = vmul.f32 %v476, %v476
  %v1041 = vmul.f32 %v481, %v481
  %v1042 = vmul.f32 %v484, %v484
  %v1043 = vmul.f32 %v489, %v489
  %v1044 = vmul.f32 %v492, %v492
  %v1045 = vmul.f32 %v497, %v497
  %v1046 = vmul.f32 %v500, %v500
  %v1047 = vmul.f32 %v505, %v505
  %v1048 = vmul.f32 %v508, %v508
  %v1049 = vmul.f32 %v513, %v513
  %v1050 = vmul.f32 %v516, %v516
  %v1051 = vmul.f32 %v521, %v521
  %v1052 = vmul.f32 %v524, %v524
  %v1053 = vmul.f32 %v529, %v529
  %v1054 = vmul.f32 %v532, %v532
  %v1055 = vmul.f32 %v537, %v537
  %v1056 = vmul.f32 %v540, %v540
  %v1057 = vmul.f32 %v545, %v545
  %v1058 = vmul.f32 %v548, %v548
  %v1059 = vmul.f32 %v553, %v553
  %v1060 = vmul.f32 %v556, %v556
  %v1061 = vmul.f32 %v561, %v561
  %v1062 = vmul.f32 %v564, %v564
  %v1063 = vmul.f32 %v569, %v569
  %v1064 = vmul.f32 %v572, %v572
  %v1065 = vmul.f32 %v577, %v577
  %v1066 = vmul.f32 %v580, %v580
  %v1067 = vmul.f32 %v585, %v585
  %v1068 = vmul.f32 %v588, %v588
  %v1069 = vmul.f32 %v593, %v593
  %v1070 = vmul.f32 %v596, %v596
  %v1071 = vmul.f32 %v601, %v601
  %v1072 = vmul.f32 %v604, %v604
  %v1073 = vmul.f32 %v609, %v609
  %v1074 = vmul.f32 %v612, %v612
  %v1075 = vmul.f32 %v617, %v617
  %v1076 = vmul.f32 %v620, %v620
  %v1077 = vadd.f32 %v1013, %v1014
  %v1078 = vadd.f32 %v1077, %v1015
  %v1079 = vadd.f32 %v1078, %v1016
  %v1080 = vadd.f32 %v1079, %v1017
  %v1081 = vadd.f32 %v1080, %v1018
  %v1082 = vadd.f32 %v1081, %v1019
  %v1083 = vadd.f32 %v1082, %v1020
  %v1084 = vadd.f32 %v1083, %v1021
  %v1085 = vadd.f32 %v1084, %v1022
  %v1086 = vadd.f32 %v1085, %v1023
  %v1087 = vadd.f32 %v1086, %v1024
  %v1088 = vadd.f32 %v1087, %v1025
  %v1089 = vadd.f32 %v1088, %v1026
  %v1090 = vadd.f32 %v1089, %v1027
  %v1091 = vadd.f32 %v1090, %v1028
  %v1092 = vadd.f32 %v1091, %v1029
  %v1093 = vadd.f32 %v1092, %v1030
  %v1094 = vadd.f32 %v1093, %v1031
  %v1095 = vadd.f32 %v1094, %v1032
  %v1096 = vadd.f32 %v1095, %v1033
  %v1097 = vadd.f32 %v1096, %v1034
  %v1098 = vadd.f32 %v1097, %v1035
  %v1099 = vadd.f32 %v1098, %v1036
  %v1100 = vadd.f32 %v1099, %v1037
  %v1101 = vadd.f32 %v1100, %v1038
  %v1102 = vadd.f32 %v1101, %v1039
  %v1103 = vadd.f32 %v1102, %v1040
  %v1104 = vadd.f32 %v1103, %v1041
  %v1105 = vadd.f32 %v1104, %v1042
  %v1106 = vadd.f32 %v1105, %v1043
  %v1107 = vadd.f32 %v1106, %v1044
  %v1108 = vadd.f32 %v1107, %v1045
  %v1109 = vadd.f32 %v1108, %v1046
  %v1110 = vadd.f32 %v1109, %v1047
  %v1111 = vadd.f32 %v1110, %v1048
  %v1112 = vadd.f32 %v1111, %v1049
  %v1113 = vadd.f32 %v1112, %v1050
  %v1114 = vadd.f32 %v1113, %v1051
  %v1115 = vadd.f32 %v1114, %v1052
  %v1116 = vadd.f32 %v1115, %v1053
  %v1117 = vadd.f32 %v1116, %v1054
  %v1118 = vadd.f32 %v1117, %v1055
  %v1119 = vadd.f32 %v1118, %v1056
  %v1120 = vadd.f32 %v1119, %v1057
  %v1121 = vadd.f32 %v1120, %v1058
  %v1122 = vadd.f32 %v1121, %v1059
  %v1123 = vadd.f32 %v1122, %v1060
  %v1124 = vadd.f32 %v1123, %v1061
  %v1125 = vadd.f32 %v1124, %v1062
  %v1126 = vadd.f32 %v1125, %v1063
  %v1127 = vadd.f32 %v1126, %v1064
  %v1128 = vadd.f32 %v1127, %v1065
  %v1129 = vadd.f32 %v1128, %v1066
  %v1130 = vadd.f32 %v1129, %v1067
  %v1131 = vadd.f32 %v1130, %v1068
  %v1132 = vadd.f32 %v1131, %v1069
  %v1133 = vadd.f32 %v1132, %v1070
  %v1134 = vadd.f32 %v1133, %v1071
  %v1135 = vadd.f32 %v1134, %v1072
  %v1136 = vadd.f32 %v1135, %v1073
  %v1137 = vadd.f32 %v1136, %v1074
  %v1138 = vadd.f32 %v1137, %v1075
  %v1139 = vadd.f32 %v1138, %v1076
  %v1140 = vrot.slane %v1139, 4
  %v1141 = vadd.f32 %v1139, %v1140
  %v1142 = vrot.slane %v1141, 2
  %v1143 = vadd.f32 %v1141, %v1142
  %v1144 = vrot.slane %v1143, 1
  %v1145 = vadd.f32 %v1143, %v1144
  %1146 = vst [vmem:[%s3 + $0x1] sm:$0x1] %v1145
  // Predicated region
  $region10: #{bottleneck_forward.4} parent=0 // pred_check
    _
  $region11: #{bottleneck_forward.4} parent=0 // pred_check_branch
    %1148 = sbr.rel (0) target = $region13
  $region12: #{bottleneck_forward.4} parent=0 // pred_region
    _
  $region13: #{bottleneck_forward.4} parent=0 // pred_fallthru
    _
  // Predicated region
  $region14: #{bottleneck_forward.4} parent=0 // pred_check
    _
  $region15: #{bottleneck_forward.4} parent=0 // pred_check_branch
    %1150 = sbr.rel (0) target = $region17
  $region16: #{bottleneck_forward.4} parent=0 // pred_region
    _
  $region17: #{bottleneck_forward.4} parent=0 // pred_fallthru
    _
  // Predicated region
  $region18: #{bottleneck_forward.4} parent=0 // pred_check
    _
  $region19: #{bottleneck_forward.4} parent=0 // pred_check_branch
    %1152 = sbr.rel (0) target = $region21
  $region20: #{bottleneck_forward.4} parent=0 // pred_region
    _
  $region21: #{bottleneck_forward.4} parent=0 // pred_fallthru
    _
  // Predicated region
  $region22: #{bottleneck_forward.4} parent=0 // pred_check
    _
  $region23: #{bottleneck_forward.4} parent=0 // pred_check_branch
    %1154 = sbr.rel (0) target = $region25
  $region24: #{bottleneck_forward.4} parent=0 // pred_region
    _
  $region25: #{bottleneck_forward.4} parent=0 // pred_fallthru
    _

// kernel: bottleneck_forward.6
$region0: #{bottleneck_forward.6}
  #allocation0 [shape = 'u32[]', space=smem, size = 0x4, offset = 0x4, fixed_abs, tag = 'smem constant byte address 0x4 - core index']
  #allocation1 [shape = 'u32[144,128]{1,0:T(1,128)}', space=vmem, size = 0x12000, scoped, tag = 'internal scratch']
  %s0 = inlined_call_operand.vmem [shape: bf16[512,128], index: 0, kind: input, shape index: {}]
  %s1 = inlined_call_operand.vmem [shape: f32[2,128], index: 1, kind: input, shape index: {}]
  %s2 = inlined_call_operand.vmem [shape: f32[1,128], index: 2, kind: input, shape index: {}]
  %s3 = inlined_call_operand.vmem [shape: f32[1,128], index: 3, kind: input, shape index: {}]
  %s4 = inlined_call_operand.vmem [shape: bf16[128,128], index: 4, kind: input, shape index: {}]
  %s5 = inlined_call_operand.vmem [shape: bf16[512,128], index: 5, kind: output, shape index: {0}]
  %s6 = inlined_call_operand.vmem [shape: f32[1,2,128], index: 6, kind: output, shape index: {1}]
  %7 = xla_tuple %s5, %s6
  %s8 = sld [smem:[#allocation0]]
  $region38: #{bottleneck_forward.6} parent=0
    _
  %s10 = ssub.s32 1, %s8
  %s11 = scalar_select 0, %s10, %s8
  // Predicated region
  $region2: #{bottleneck_forward.6} parent=0 // pred_check
    _
  $region3: #{bottleneck_forward.6} parent=0 // pred_check_branch
    %13 = sbr.rel (0) target = $region5
  $region4: #{bottleneck_forward.6} parent=0 // pred_region
    _
  $region5: #{bottleneck_forward.6} parent=0 // pred_fallthru
    _
  // Predicated region
  $region6: #{bottleneck_forward.6} parent=0 // pred_check
    _
  $region7: #{bottleneck_forward.6} parent=0 // pred_check_branch
    %15 = sbr.rel (0) target = $region9
  $region8: #{bottleneck_forward.6} parent=0 // pred_region
    _
  $region9: #{bottleneck_forward.6} parent=0 // pred_fallthru
    _
  // Predicated region
  $region10: #{bottleneck_forward.6} parent=0 // pred_check
    _
  $region11: #{bottleneck_forward.6} parent=0 // pred_check_branch
    %17 = sbr.rel (0) target = $region13
  $region12: #{bottleneck_forward.6} parent=0 // pred_region
    _
  $region13: #{bottleneck_forward.6} parent=0 // pred_fallthru
    _
  // Predicated region
  $region14: #{bottleneck_forward.6} parent=0 // pred_check
    _
  $region15: #{bottleneck_forward.6} parent=0 // pred_check_branch
    %19 = sbr.rel (0) target = $region17
  $region16: #{bottleneck_forward.6} parent=0 // pred_region
    _
  $region17: #{bottleneck_forward.6} parent=0 // pred_fallthru
    _
  // Predicated region
  $region18: #{bottleneck_forward.6} parent=0 // pred_check
    _
  $region19: #{bottleneck_forward.6} parent=0 // pred_check_branch
    %21 = sbr.rel (0) target = $region21
  $region20: #{bottleneck_forward.6} parent=0 // pred_region
    _
  $region21: #{bottleneck_forward.6} parent=0 // pred_fallthru
    _
  %v23 = vld [vmem:[%s1] sm:$0x1]
  %v24 = vmul.f32 %v23, 0.001953125
  %v25 = vld [vmem:[%s1 + $0x1] sm:$0x1]
  %v26 = vmul.f32 %v25, 0.001953125
  %v27 = vmul.f32 %v24, %v24
  %v28 = vsub.f32 %v26, %v27
  %v29 = vmax.f32 %v28, 0.0
  %v30 = vld [vmem:[%s2] sm:$0x1]
  %v31 = vadd.f32 %v29, 1e-05
  %v32 = vrsqrt.pop %v31
  %v33 = vmul.f32 %v30, %v32
  %v34 = vld [vmem:[%s3] sm:$0x1]
  %v35 = vmul.f32 %v24, %v33
  %v36 = vsub.f32 %v34, %v35
  %v37 = vld [vmem:[%s0] sm:$0xf]
  %v38 = vld [vmem:[%s0 + $0x4] sm:$0xf]
  %v39 = vld [vmem:[%s0 + $0x8] sm:$0xf]
  %v40 = vld [vmem:[%s0 + $0xc] sm:$0xf]
  %v41 = vld [vmem:[%s0 + $0x10] sm:$0xf]
  %v42 = vld [vmem:[%s0 + $0x14] sm:$0xf]
  %v43 = vld [vmem:[%s0 + $0x18] sm:$0xf]
  %v44 = vld [vmem:[%s0 + $0x1c] sm:$0xf]
  %v45 = vld [vmem:[%s0 + $0x20] sm:$0xf]
  %v46 = vld [vmem:[%s0 + $0x24] sm:$0xf]
  %v47 = vld [vmem:[%s0 + $0x28] sm:$0xf]
  %v48 = vld [vmem:[%s0 + $0x2c] sm:$0xf]
  %v49 = vld [vmem:[%s0 + $0x30] sm:$0xf]
  %v50 = vld [vmem:[%s0 + $0x34] sm:$0xf]
  %v51 = vld [vmem:[%s0 + $0x38] sm:$0xf]
  %v52 = vld [vmem:[%s0 + $0x3c] sm:$0xf]
  %v53 = vld [vmem:[%s0 + $0x40] sm:$0xf]
  %v54 = vld [vmem:[%s0 + $0x44] sm:$0xf]
  %v55 = vld [vmem:[%s0 + $0x48] sm:$0xf]
  %v56 = vld [vmem:[%s0 + $0x4c] sm:$0xf]
  %v57 = vld [vmem:[%s0 + $0x50] sm:$0xf]
  %v58 = vld [vmem:[%s0 + $0x54] sm:$0xf]
  %v59 = vld [vmem:[%s0 + $0x58] sm:$0xf]
  %v60 = vld [vmem:[%s0 + $0x5c] sm:$0xf]
  %v61 = vld [vmem:[%s0 + $0x60] sm:$0xf]
  %v62 = vld [vmem:[%s0 + $0x64] sm:$0xf]
  %v63 = vld [vmem:[%s0 + $0x68] sm:$0xf]
  %v64 = vld [vmem:[%s0 + $0x6c] sm:$0xf]
  %v65 = vld [vmem:[%s0 + $0x70] sm:$0xf]
  %v66 = vld [vmem:[%s0 + $0x74] sm:$0xf]
  %v67 = vld [vmem:[%s0 + $0x78] sm:$0xf]
  %v68 = vld [vmem:[%s0 + $0x7c] sm:$0xf]
  %v69 = vld [vmem:[%s0 + $0x80] sm:$0xf]
  %v70 = vld [vmem:[%s0 + $0x84] sm:$0xf]
  %v71 = vld [vmem:[%s0 + $0x88] sm:$0xf]
  %v72 = vld [vmem:[%s0 + $0x8c] sm:$0xf]
  %v73 = vld [vmem:[%s0 + $0x90] sm:$0xf]
  %v74 = vld [vmem:[%s0 + $0x94] sm:$0xf]
  %v75 = vld [vmem:[%s0 + $0x98] sm:$0xf]
  %v76 = vld [vmem:[%s0 + $0x9c] sm:$0xf]
  %v77 = vld [vmem:[%s0 + $0xa0] sm:$0xf]
  %v78 = vld [vmem:[%s0 + $0xa4] sm:$0xf]
  %v79 = vld [vmem:[%s0 + $0xa8] sm:$0xf]
  %v80 = vld [vmem:[%s0 + $0xac] sm:$0xf]
  %v81 = vld [vmem:[%s0 + $0xb0] sm:$0xf]
  %v82 = vld [vmem:[%s0 + $0xb4] sm:$0xf]
  %v83 = vld [vmem:[%s0 + $0xb8] sm:$0xf]
  %v84 = vld [vmem:[%s0 + $0xbc] sm:$0xf]
  %v85 = vld [vmem:[%s0 + $0xc0] sm:$0xf]
  %v86 = vld [vmem:[%s0 + $0xc4] sm:$0xf]
  %v87 = vld [vmem:[%s0 + $0xc8] sm:$0xf]
  %v88 = vld [vmem:[%s0 + $0xcc] sm:$0xf]
  %v89 = vld [vmem:[%s0 + $0xd0] sm:$0xf]
  %v90 = vld [vmem:[%s0 + $0xd4] sm:$0xf]
  %v91 = vld [vmem:[%s0 + $0xd8] sm:$0xf]
  %v92 = vld [vmem:[%s0 + $0xdc] sm:$0xf]
  %v93 = vld [vmem:[%s0 + $0xe0] sm:$0xf]
  %v94 = vld [vmem:[%s0 + $0xe4] sm:$0xf]
  %v95 = vld [vmem:[%s0 + $0xe8] sm:$0xf]
  %v96 = vld [vmem:[%s0 + $0xec] sm:$0xf]
  %v97 = vld [vmem:[%s0 + $0xf0] sm:$0xf]
  %v98 = vld [vmem:[%s0 + $0xf4] sm:$0xf]
  %v99 = vld [vmem:[%s0 + $0xf8] sm:$0xf]
  %v100 = vld [vmem:[%s0 + $0xfc] sm:$0xf]
  %v101 = vunpack.c.l.bf16 %v37
  %v102 = vunpack.c.l.bf16 %v38
  %v103 = vunpack.c.l.bf16 %v39
  %v104 = vunpack.c.l.bf16 %v40
  %v105 = vunpack.c.l.bf16 %v41
  %v106 = vunpack.c.l.bf16 %v42
  %v107 = vunpack.c.l.bf16 %v43
  %v108 = vunpack.c.l.bf16 %v44
  %v109 = vunpack.c.l.bf16 %v45
  %v110 = vunpack.c.l.bf16 %v46
  %v111 = vunpack.c.l.bf16 %v47
  %v112 = vunpack.c.l.bf16 %v48
  %v113 = vunpack.c.l.bf16 %v49
  %v114 = vunpack.c.l.bf16 %v50
  %v115 = vunpack.c.l.bf16 %v51
  %v116 = vunpack.c.l.bf16 %v52
  %v117 = vunpack.c.l.bf16 %v53
  %v118 = vunpack.c.l.bf16 %v54
  %v119 = vunpack.c.l.bf16 %v55
  %v120 = vunpack.c.l.bf16 %v56
  %v121 = vunpack.c.l.bf16 %v57
  %v122 = vunpack.c.l.bf16 %v58
  %v123 = vunpack.c.l.bf16 %v59
  %v124 = vunpack.c.l.bf16 %v60
  %v125 = vunpack.c.l.bf16 %v61
  %v126 = vunpack.c.l.bf16 %v62
  %v127 = vunpack.c.l.bf16 %v63
  %v128 = vunpack.c.l.bf16 %v64
  %v129 = vunpack.c.l.bf16 %v65
  %v130 = vunpack.c.l.bf16 %v66
  %v131 = vunpack.c.l.bf16 %v67
  %v132 = vunpack.c.l.bf16 %v68
  %v133 = vunpack.c.l.bf16 %v69
  %v134 = vunpack.c.l.bf16 %v70
  %v135 = vunpack.c.l.bf16 %v71
  %v136 = vunpack.c.l.bf16 %v72
  %v137 = vunpack.c.l.bf16 %v73
  %v138 = vunpack.c.l.bf16 %v74
  %v139 = vunpack.c.l.bf16 %v75
  %v140 = vunpack.c.l.bf16 %v76
  %v141 = vunpack.c.l.bf16 %v77
  %v142 = vunpack.c.l.bf16 %v78
  %v143 = vunpack.c.l.bf16 %v79
  %v144 = vunpack.c.l.bf16 %v80
  %v145 = vunpack.c.l.bf16 %v81
  %v146 = vunpack.c.l.bf16 %v82
  %v147 = vunpack.c.l.bf16 %v83
  %v148 = vunpack.c.l.bf16 %v84
  %v149 = vunpack.c.l.bf16 %v85
  %v150 = vunpack.c.l.bf16 %v86
  %v151 = vunpack.c.l.bf16 %v87
  %v152 = vunpack.c.l.bf16 %v88
  %v153 = vunpack.c.l.bf16 %v89
  %v154 = vunpack.c.l.bf16 %v90
  %v155 = vunpack.c.l.bf16 %v91
  %v156 = vunpack.c.l.bf16 %v92
  %v157 = vunpack.c.l.bf16 %v93
  %v158 = vunpack.c.l.bf16 %v94
  %v159 = vunpack.c.l.bf16 %v95
  %v160 = vunpack.c.l.bf16 %v96
  %v161 = vunpack.c.l.bf16 %v97
  %v162 = vunpack.c.l.bf16 %v98
  %v163 = vunpack.c.l.bf16 %v99
  %v164 = vunpack.c.l.bf16 %v100
  %v166 = vlaneseq
  %v167 = vshrl.u32 %v166, 7
  %v168 = vsub.s32 0, %v167
  %v169 = vrot.slane %v33, %v168
  %v171 = vmul.f32 %v101, %v169
  %v172 = vmul.f32 %v102, %v169
  %v173 = vmul.f32 %v103, %v169
  %v174 = vmul.f32 %v104, %v169
  %v175 = vmul.f32 %v105, %v169
  %v176 = vmul.f32 %v106, %v169
  %v177 = vmul.f32 %v107, %v169
  %v178 = vmul.f32 %v108, %v169
  %v179 = vmul.f32 %v109, %v169
  %v180 = vmul.f32 %v110, %v169
  %v181 = vmul.f32 %v111, %v169
  %v182 = vmul.f32 %v112, %v169
  %v183 = vmul.f32 %v113, %v169
  %v184 = vmul.f32 %v114, %v169
  %v185 = vmul.f32 %v115, %v169
  %v186 = vmul.f32 %v116, %v169
  %v187 = vmul.f32 %v117, %v169
  %v188 = vmul.f32 %v118, %v169
  %v189 = vmul.f32 %v119, %v169
  %v190 = vmul.f32 %v120, %v169
  %v191 = vmul.f32 %v121, %v169
  %v192 = vmul.f32 %v122, %v169
  %v193 = vmul.f32 %v123, %v169
  %v194 = vmul.f32 %v124, %v169
  %v195 = vmul.f32 %v125, %v169
  %v196 = vmul.f32 %v126, %v169
  %v197 = vmul.f32 %v127, %v169
  %v198 = vmul.f32 %v128, %v169
  %v199 = vmul.f32 %v129, %v169
  %v200 = vmul.f32 %v130, %v169
  %v201 = vmul.f32 %v131, %v169
  %v202 = vmul.f32 %v132, %v169
  %v203 = vmul.f32 %v133, %v169
  %v204 = vmul.f32 %v134, %v169
  %v205 = vmul.f32 %v135, %v169
  %v206 = vmul.f32 %v136, %v169
  %v207 = vmul.f32 %v137, %v169
  %v208 = vmul.f32 %v138, %v169
  %v209 = vmul.f32 %v139, %v169
  %v210 = vmul.f32 %v140, %v169
  %v211 = vmul.f32 %v141, %v169
  %v212 = vmul.f32 %v142, %v169
  %v213 = vmul.f32 %v143, %v169
  %v214 = vmul.f32 %v144, %v169
  %v215 = vmul.f32 %v145, %v169
  %v216 = vmul.f32 %v146, %v169
  %v217 = vmul.f32 %v147, %v169
  %v218 = vmul.f32 %v148, %v169
  %v219 = vmul.f32 %v149, %v169
  %v220 = vmul.f32 %v150, %v169
  %v221 = vmul.f32 %v151, %v169
  %v222 = vmul.f32 %v152, %v169
  %v223 = vmul.f32 %v153, %v169
  %v224 = vmul.f32 %v154, %v169
  %v225 = vmul.f32 %v155, %v169
  %v226 = vmul.f32 %v156, %v169
  %v227 = vmul.f32 %v157, %v169
  %v228 = vmul.f32 %v158, %v169
  %v229 = vmul.f32 %v159, %v169
  %v230 = vmul.f32 %v160, %v169
  %v231 = vmul.f32 %v161, %v169
  %v232 = vmul.f32 %v162, %v169
  %v233 = vmul.f32 %v163, %v169
  %v234 = vmul.f32 %v164, %v169
  %v236 = vlaneseq
  %v237 = vshrl.u32 %v236, 7
  %v238 = vsub.s32 0, %v237
  %v239 = vrot.slane %v36, %v238
  %v241 = vadd.f32 %v171, %v239
  %v242 = vadd.f32 %v172, %v239
  %v243 = vadd.f32 %v173, %v239
  %v244 = vadd.f32 %v174, %v239
  %v245 = vadd.f32 %v175, %v239
  %v246 = vadd.f32 %v176, %v239
  %v247 = vadd.f32 %v177, %v239
  %v248 = vadd.f32 %v178, %v239
  %v249 = vadd.f32 %v179, %v239
  %v250 = vadd.f32 %v180, %v239
  %v251 = vadd.f32 %v181, %v239
  %v252 = vadd.f32 %v182, %v239
  %v253 = vadd.f32 %v183, %v239
  %v254 = vadd.f32 %v184, %v239
  %v255 = vadd.f32 %v185, %v239
  %v256 = vadd.f32 %v186, %v239
  %v257 = vadd.f32 %v187, %v239
  %v258 = vadd.f32 %v188, %v239
  %v259 = vadd.f32 %v189, %v239
  %v260 = vadd.f32 %v190, %v239
  %v261 = vadd.f32 %v191, %v239
  %v262 = vadd.f32 %v192, %v239
  %v263 = vadd.f32 %v193, %v239
  %v264 = vadd.f32 %v194, %v239
  %v265 = vadd.f32 %v195, %v239
  %v266 = vadd.f32 %v196, %v239
  %v267 = vadd.f32 %v197, %v239
  %v268 = vadd.f32 %v198, %v239
  %v269 = vadd.f32 %v199, %v239
  %v270 = vadd.f32 %v200, %v239
  %v271 = vadd.f32 %v201, %v239
  %v272 = vadd.f32 %v202, %v239
  %v273 = vadd.f32 %v203, %v239
  %v274 = vadd.f32 %v204, %v239
  %v275 = vadd.f32 %v205, %v239
  %v276 = vadd.f32 %v206, %v239
  %v277 = vadd.f32 %v207, %v239
  %v278 = vadd.f32 %v208, %v239
  %v279 = vadd.f32 %v209, %v239
  %v280 = vadd.f32 %v210, %v239
  %v281 = vadd.f32 %v211, %v239
  %v282 = vadd.f32 %v212, %v239
  %v283 = vadd.f32 %v213, %v239
  %v284 = vadd.f32 %v214, %v239
  %v285 = vadd.f32 %v215, %v239
  %v286 = vadd.f32 %v216, %v239
  %v287 = vadd.f32 %v217, %v239
  %v288 = vadd.f32 %v218, %v239
  %v289 = vadd.f32 %v219, %v239
  %v290 = vadd.f32 %v220, %v239
  %v291 = vadd.f32 %v221, %v239
  %v292 = vadd.f32 %v222, %v239
  %v293 = vadd.f32 %v223, %v239
  %v294 = vadd.f32 %v224, %v239
  %v295 = vadd.f32 %v225, %v239
  %v296 = vadd.f32 %v226, %v239
  %v297 = vadd.f32 %v227, %v239
  %v298 = vadd.f32 %v228, %v239
  %v299 = vadd.f32 %v229, %v239
  %v300 = vadd.f32 %v230, %v239
  %v301 = vadd.f32 %v231, %v239
  %v302 = vadd.f32 %v232, %v239
  %v303 = vadd.f32 %v233, %v239
  %v304 = vadd.f32 %v234, %v239
  %v305 = vmax.f32 %v241, 0.0
  %v306 = vmax.f32 %v242, 0.0
  %v307 = vmax.f32 %v243, 0.0
  %v308 = vmax.f32 %v244, 0.0
  %v309 = vmax.f32 %v245, 0.0
  %v310 = vmax.f32 %v246, 0.0
  %v311 = vmax.f32 %v247, 0.0
  %v312 = vmax.f32 %v248, 0.0
  %v313 = vmax.f32 %v249, 0.0
  %v314 = vmax.f32 %v250, 0.0
  %v315 = vmax.f32 %v251, 0.0
  %v316 = vmax.f32 %v252, 0.0
  %v317 = vmax.f32 %v253, 0.0
  %v318 = vmax.f32 %v254, 0.0
  %v319 = vmax.f32 %v255, 0.0
  %v320 = vmax.f32 %v256, 0.0
  %v321 = vmax.f32 %v257, 0.0
  %v322 = vmax.f32 %v258, 0.0
  %v323 = vmax.f32 %v259, 0.0
  %v324 = vmax.f32 %v260, 0.0
  %v325 = vmax.f32 %v261, 0.0
  %v326 = vmax.f32 %v262, 0.0
  %v327 = vmax.f32 %v263, 0.0
  %v328 = vmax.f32 %v264, 0.0
  %v329 = vmax.f32 %v265, 0.0
  %v330 = vmax.f32 %v266, 0.0
  %v331 = vmax.f32 %v267, 0.0
  %v332 = vmax.f32 %v268, 0.0
  %v333 = vmax.f32 %v269, 0.0
  %v334 = vmax.f32 %v270, 0.0
  %v335 = vmax.f32 %v271, 0.0
  %v336 = vmax.f32 %v272, 0.0
  %v337 = vmax.f32 %v273, 0.0
  %v338 = vmax.f32 %v274, 0.0
  %v339 = vmax.f32 %v275, 0.0
  %v340 = vmax.f32 %v276, 0.0
  %v341 = vmax.f32 %v277, 0.0
  %v342 = vmax.f32 %v278, 0.0
  %v343 = vmax.f32 %v279, 0.0
  %v344 = vmax.f32 %v280, 0.0
  %v345 = vmax.f32 %v281, 0.0
  %v346 = vmax.f32 %v282, 0.0
  %v347 = vmax.f32 %v283, 0.0
  %v348 = vmax.f32 %v284, 0.0
  %v349 = vmax.f32 %v285, 0.0
  %v350 = vmax.f32 %v286, 0.0
  %v351 = vmax.f32 %v287, 0.0
  %v352 = vmax.f32 %v288, 0.0
  %v353 = vmax.f32 %v289, 0.0
  %v354 = vmax.f32 %v290, 0.0
  %v355 = vmax.f32 %v291, 0.0
  %v356 = vmax.f32 %v292, 0.0
  %v357 = vmax.f32 %v293, 0.0
  %v358 = vmax.f32 %v294, 0.0
  %v359 = vmax.f32 %v295, 0.0
  %v360 = vmax.f32 %v296, 0.0
  %v361 = vmax.f32 %v297, 0.0
  %v362 = vmax.f32 %v298, 0.0
  %v363 = vmax.f32 %v299, 0.0
  %v364 = vmax.f32 %v300, 0.0
  %v365 = vmax.f32 %v301, 0.0
  %v366 = vmax.f32 %v302, 0.0
  %v367 = vmax.f32 %v303, 0.0
  %v368 = vmax.f32 %v304, 0.0
  %v369 = vpack.c.bf16 %v306, %v305
  %v370 = vpack.c.bf16 %v308, %v307
  %v371 = vpack.c.bf16 %v310, %v309
  %v372 = vpack.c.bf16 %v312, %v311
  %v373 = vpack.c.bf16 %v314, %v313
  %v374 = vpack.c.bf16 %v316, %v315
  %v375 = vpack.c.bf16 %v318, %v317
  %v376 = vpack.c.bf16 %v320, %v319
  %v377 = vpack.c.bf16 %v322, %v321
  %v378 = vpack.c.bf16 %v324, %v323
  %v379 = vpack.c.bf16 %v326, %v325
  %v380 = vpack.c.bf16 %v328, %v327
  %v381 = vpack.c.bf16 %v330, %v329
  %v382 = vpack.c.bf16 %v332, %v331
  %v383 = vpack.c.bf16 %v334, %v333
  %v384 = vpack.c.bf16 %v336, %v335
  %v385 = vpack.c.bf16 %v338, %v337
  %v386 = vpack.c.bf16 %v340, %v339
  %v387 = vpack.c.bf16 %v342, %v341
  %v388 = vpack.c.bf16 %v344, %v343
  %v389 = vpack.c.bf16 %v346, %v345
  %v390 = vpack.c.bf16 %v348, %v347
  %v391 = vpack.c.bf16 %v350, %v349
  %v392 = vpack.c.bf16 %v352, %v351
  %v393 = vpack.c.bf16 %v354, %v353
  %v394 = vpack.c.bf16 %v356, %v355
  %v395 = vpack.c.bf16 %v358, %v357
  %v396 = vpack.c.bf16 %v360, %v359
  %v397 = vpack.c.bf16 %v362, %v361
  %v398 = vpack.c.bf16 %v364, %v363
  %v399 = vpack.c.bf16 %v366, %v365
  %v400 = vpack.c.bf16 %v368, %v367
  %v401 = vld [vmem:[%s4] sm:$0xf]
  %v402 = vld [vmem:[%s4 + $0x4] sm:$0xf]
  %v403 = vld [vmem:[%s4 + $0x8] sm:$0xf]
  %v404 = vld [vmem:[%s4 + $0xc] sm:$0xf]
  %v405 = vld [vmem:[%s4 + $0x10] sm:$0xf]
  %v406 = vld [vmem:[%s4 + $0x14] sm:$0xf]
  %v407 = vld [vmem:[%s4 + $0x18] sm:$0xf]
  %v408 = vld [vmem:[%s4 + $0x1c] sm:$0xf]
  %v409 = vld [vmem:[%s4 + $0x20] sm:$0xf]
  %v410 = vld [vmem:[%s4 + $0x24] sm:$0xf]
  %v411 = vld [vmem:[%s4 + $0x28] sm:$0xf]
  %v412 = vld [vmem:[%s4 + $0x2c] sm:$0xf]
  %v413 = vld [vmem:[%s4 + $0x30] sm:$0xf]
  %v414 = vld [vmem:[%s4 + $0x34] sm:$0xf]
  %v415 = vld [vmem:[%s4 + $0x38] sm:$0xf]
  %v416 = vld [vmem:[%s4 + $0x3c] sm:$0xf]
  %v433 = vunpack.c.l.b16 %v401
  %v434 = vunpack.c.l.b16 %v402
  %v435 = vunpack.c.l.b16 %v403
  %v436 = vunpack.c.l.b16 %v404
  %v437 = vunpack.c.l.b16 %v405
  %v438 = vunpack.c.l.b16 %v406
  %v439 = vunpack.c.l.b16 %v407
  %v440 = vunpack.c.l.b16 %v408
  %v441 = vunpack.c.l.b16 %v409
  %v442 = vunpack.c.l.b16 %v410
  %v443 = vunpack.c.l.b16 %v411
  %v444 = vunpack.c.l.b16 %v412
  %v445 = vunpack.c.l.b16 %v413
  %v446 = vunpack.c.l.b16 %v414
  %v447 = vunpack.c.l.b16 %v415
  %v448 = vunpack.c.l.b16 %v416
  %v449 = vpack.c.b16 %v434, %v433
  %v450 = vpack.c.b16 %v436, %v435
  %v451 = vpack.c.b16 %v438, %v437
  %v452 = vpack.c.b16 %v440, %v439
  %v453 = vpack.c.b16 %v442, %v441
  %v454 = vpack.c.b16 %v444, %v443
  %v455 = vpack.c.b16 %v446, %v445
  %v456 = vpack.c.b16 %v448, %v447
  %465 = vmatprep.subr.bf16.mxu0 0
  %466 = vmatpush1.bf16.msra.mxu0 %v449
  %467 = vmatprep.subr.bf16.mxu0 0
  %468 = vmatpush1.bf16.msra.mxu0 %v450
  %469 = vmatprep.subr.bf16.mxu0 0
  %470 = vmatpush1.bf16.msra.mxu0 %v451
  %471 = vmatprep.subr.bf16.mxu0 0
  %472 = vmatpush1.bf16.msra.mxu0 %v452
  %473 = vmatprep.subr.bf16.mxu0 0
  %474 = vmatpush1.bf16.msra.mxu0 %v453
  %475 = vmatprep.subr.bf16.mxu0 0
  %476 = vmatpush1.bf16.msra.mxu0 %v454
  %477 = vmatprep.subr.bf16.mxu0 0
  %478 = vmatpush1.bf16.msra.mxu0 %v455
  %479 = vmatprep.subr.bf16.mxu0 0
  %480 = vmatpush1.bf16.msra.mxu0 %v456
  %481 = vmatprep.subr.bf16.mxu0 0
  %482 = vmatpush1.bf16.msra.mxu0 0
  %483 = vmatprep.subr.bf16.mxu0 0
  %484 = vmatpush1.bf16.msra.mxu0 0
  %485 = vmatprep.subr.bf16.mxu0 0
  %486 = vmatpush1.bf16.msra.mxu0 0
  %487 = vmatprep.subr.bf16.mxu0 0
  %488 = vmatpush1.bf16.msra.mxu0 0
  %489 = vmatprep.subr.bf16.mxu0 0
  %490 = vmatpush1.bf16.msra.mxu0 0
  %491 = vmatprep.subr.bf16.mxu0 0
  %492 = vmatpush1.bf16.msra.mxu0 0
  %493 = vmatprep.subr.bf16.mxu0 0
  %494 = vmatpush1.bf16.msra.mxu0 0
  %495 = vmatprep.subr.bf16.mxu0 0
  %496 = vmatpush1.bf16.msra.mxu0 0
  %497 = vmatprep.mubr.bf16.mxu0 0
  %498 = vmatmul.mubr.bf16.gmra.mrb[0].mxu0 %v369
  %v499 = vpop.f32.mrb[0].mxu0
  %v500 = vadd.f32 0.0, %v499
  %v501 = vpop.f32.mrb[0].mxu0
  %v502 = vpop.f32.mrb[0].mxu0
  %v503 = vadd.f32 0.0, %v502
  %v504 = vpop.f32.mrb[0].mxu0
  %505 = vmatprep.mubr.bf16.mxu0 0
  %506 = vmatmul.mubr.bf16.gmra.mrb[0].mxu0 %v370
  %v507 = vpop.f32.mrb[0].mxu0
  %v508 = vadd.f32 0.0, %v507
  %v509 = vpop.f32.mrb[0].mxu0
  %v510 = vpop.f32.mrb[0].mxu0
  %v511 = vadd.f32 0.0, %v510
  %v512 = vpop.f32.mrb[0].mxu0
  %513 = vmatprep.mubr.bf16.mxu0 0
  %514 = vmatmul.mubr.bf16.gmra.mrb[0].mxu0 %v371
  %v515 = vpop.f32.mrb[0].mxu0
  %v516 = vadd.f32 0.0, %v515
  %v517 = vpop.f32.mrb[0].mxu0
  %v518 = vpop.f32.mrb[0].mxu0
  %v519 = vadd.f32 0.0, %v518
  %v520 = vpop.f32.mrb[0].mxu0
  %521 = vmatprep.mubr.bf16.mxu0 0
  %522 = vmatmul.mubr.bf16.gmra.mrb[0].mxu0 %v372
  %v523 = vpop.f32.mrb[0].mxu0
  %v524 = vadd.f32 0.0, %v523
  %v525 = vpop.f32.mrb[0].mxu0
  %v526 = vpop.f32.mrb[0].mxu0
  %v527 = vadd.f32 0.0, %v526
  %v528 = vpop.f32.mrb[0].mxu0
  %529 = vmatprep.mubr.bf16.mxu0 0
  %530 = vmatmul.mubr.bf16.gmra.mrb[0].mxu0 %v373
  %v531 = vpop.f32.mrb[0].mxu0
  %v532 = vadd.f32 0.0, %v531
  %v533 = vpop.f32.mrb[0].mxu0
  %v534 = vpop.f32.mrb[0].mxu0
  %v535 = vadd.f32 0.0, %v534
  %v536 = vpop.f32.mrb[0].mxu0
  %537 = vmatprep.mubr.bf16.mxu0 0
  %538 = vmatmul.mubr.bf16.gmra.mrb[0].mxu0 %v374
  %v539 = vpop.f32.mrb[0].mxu0
  %v540 = vadd.f32 0.0, %v539
  %v541 = vpop.f32.mrb[0].mxu0
  %v542 = vpop.f32.mrb[0].mxu0
  %v543 = vadd.f32 0.0, %v542
  %v544 = vpop.f32.mrb[0].mxu0
  %545 = vmatprep.mubr.bf16.mxu0 0
  %546 = vmatmul.mubr.bf16.gmra.mrb[0].mxu0 %v375
  %v547 = vpop.f32.mrb[0].mxu0
  %v548 = vadd.f32 0.0, %v547
  %v549 = vpop.f32.mrb[0].mxu0
  %v550 = vpop.f32.mrb[0].mxu0
  %v551 = vadd.f32 0.0, %v550
  %v552 = vpop.f32.mrb[0].mxu0
  %553 = vmatprep.mubr.bf16.mxu0 0
  %554 = vmatmul.mubr.bf16.gmra.mrb[0].mxu0 %v376
  %v555 = vpop.f32.mrb[0].mxu0
  %v556 = vadd.f32 0.0, %v555
  %v557 = vpop.f32.mrb[0].mxu0
  %v558 = vpop.f32.mrb[0].mxu0
  %v559 = vadd.f32 0.0, %v558
  %v560 = vpop.f32.mrb[0].mxu0
  %561 = vmatprep.mubr.bf16.mxu0 0
  %562 = vmatmul.mubr.bf16.gmra.mrb[0].mxu0 %v377
  %v563 = vpop.f32.mrb[0].mxu0
  %v564 = vadd.f32 0.0, %v563
  %v565 = vpop.f32.mrb[0].mxu0
  %v566 = vpop.f32.mrb[0].mxu0
  %v567 = vadd.f32 0.0, %v566
  %v568 = vpop.f32.mrb[0].mxu0
  %569 = vmatprep.mubr.bf16.mxu0 0
  %570 = vmatmul.mubr.bf16.gmra.mrb[0].mxu0 %v378
  %v571 = vpop.f32.mrb[0].mxu0
  %v572 = vadd.f32 0.0, %v571
  %v573 = vpop.f32.mrb[0].mxu0
  %v574 = vpop.f32.mrb[0].mxu0
  %v575 = vadd.f32 0.0, %v574
  %v576 = vpop.f32.mrb[0].mxu0
  %577 = vmatprep.mubr.bf16.mxu0 0
  %578 = vmatmul.mubr.bf16.gmra.mrb[0].mxu0 %v379
  %v579 = vpop.f32.mrb[0].mxu0
  %v580 = vadd.f32 0.0, %v579
  %v581 = vpop.f32.mrb[0].mxu0
  %v582 = vpop.f32.mrb[0].mxu0
  %v583 = vadd.f32 0.0, %v582
  %v584 = vpop.f32.mrb[0].mxu0
  %585 = vmatprep.mubr.bf16.mxu0 0
  %586 = vmatmul.mubr.bf16.gmra.mrb[0].mxu0 %v380
  %v587 = vpop.f32.mrb[0].mxu0
  %v588 = vadd.f32 0.0, %v587
  %v589 = vpop.f32.mrb[0].mxu0
  %v590 = vpop.f32.mrb[0].mxu0
  %v591 = vadd.f32 0.0, %v590
  %v592 = vpop.f32.mrb[0].mxu0
  %593 = vmatprep.mubr.bf16.mxu0 0
  %594 = vmatmul.mubr.bf16.gmra.mrb[0].mxu0 %v381
  %v595 = vpop.f32.mrb[0].mxu0
  %v596 = vadd.f32 0.0, %v595
  %v597 = vpop.f32.mrb[0].mxu0
  %v598 = vpop.f32.mrb[0].mxu0
  %v599 = vadd.f32 0.0, %v598
  %v600 = vpop.f32.mrb[0].mxu0
  %601 = vmatprep.mubr.bf16.mxu0 0
  %602 = vmatmul.mubr.bf16.gmra.mrb[0].mxu0 %v382
  %v603 = vpop.f32.mrb[0].mxu0
  %v604 = vadd.f32 0.0, %v603
  %v605 = vpop.f32.mrb[0].mxu0
  %v606 = vpop.f32.mrb[0].mxu0
  %v607 = vadd.f32 0.0, %v606
  %v608 = vpop.f32.mrb[0].mxu0
  %609 = vmatprep.mubr.bf16.mxu0 0
  %610 = vmatmul.mubr.bf16.gmra.mrb[0].mxu0 %v383
  %v611 = vpop.f32.mrb[0].mxu0
  %v612 = vadd.f32 0.0, %v611
  %v613 = vpop.f32.mrb[0].mxu0
  %v614 = vpop.f32.mrb[0].mxu0
  %v615 = vadd.f32 0.0, %v614
  %v616 = vpop.f32.mrb[0].mxu0
  %617 = vmatprep.mubr.bf16.mxu0 0
  %618 = vmatmul.mubr.bf16.gmra.mrb[0].mxu0 %v384
  %v619 = vpop.f32.mrb[0].mxu0
  %v620 = vadd.f32 0.0, %v619
  %v621 = vpop.f32.mrb[0].mxu0
  %v622 = vpop.f32.mrb[0].mxu0
  %v623 = vadd.f32 0.0, %v622
  %v624 = vpop.f32.mrb[0].mxu0
  %625 = vmatprep.mubr.bf16.mxu0 0
  %626 = vmatmul.mubr.bf16.gmra.mrb[0].mxu0 %v385
  %v627 = vpop.f32.mrb[0].mxu0
  %v628 = vadd.f32 0.0, %v627
  %v629 = vpop.f32.mrb[0].mxu0
  %v630 = vpop.f32.mrb[0].mxu0
  %v631 = vadd.f32 0.0, %v630
  %v632 = vpop.f32.mrb[0].mxu0
  %633 = vmatprep.mubr.bf16.mxu0 0
  %634 = vmatmul.mubr.bf16.gmra.mrb[0].mxu0 %v386
  %v635 = vpop.f32.mrb[0].mxu0
  %v636 = vadd.f32 0.0, %v635
  %v637 = vpop.f32.mrb[0].mxu0
  %v638 = vpop.f32.mrb[0].mxu0
  %v639 = vadd.f32 0.0, %v638
  %v640 = vpop.f32.mrb[0].mxu0
  %641 = vmatprep.mubr.bf16.mxu0 0
  %642 = vmatmul.mubr.bf16.gmra.mrb[0].mxu0 %v387
  %v643 = vpop.f32.mrb[0].mxu0
  %v644 = vadd.f32 0.0, %v643
  %v645 = vpop.f32.mrb[0].mxu0
  %v646 = vpop.f32.mrb[0].mxu0
  %v647 = vadd.f32 0.0, %v646
  %v648 = vpop.f32.mrb[0].mxu0
  %649 = vmatprep.mubr.bf16.mxu0 0
  %650 = vmatmul.mubr.bf16.gmra.mrb[0].mxu0 %v388
  %v651 = vpop.f32.mrb[0].mxu0
  %v652 = vadd.f32 0.0, %v651
  %v653 = vpop.f32.mrb[0].mxu0
  %v654 = vpop.f32.mrb[0].mxu0
  %v655 = vadd.f32 0.0, %v654
  %v656 = vpop.f32.mrb[0].mxu0
  %657 = vmatprep.mubr.bf16.mxu0 0
  %658 = vmatmul.mubr.bf16.gmra.mrb[0].mxu0 %v389
  %v659 = vpop.f32.mrb[0].mxu0
  %v660 = vadd.f32 0.0, %v659
  %v661 = vpop.f32.mrb[0].mxu0
  %v662 = vpop.f32.mrb[0].mxu0
  %v663 = vadd.f32 0.0, %v662
  %v664 = vpop.f32.mrb[0].mxu0
  %665 = vmatprep.mubr.bf16.mxu0 0
  %666 = vmatmul.mubr.bf16.gmra.mrb[0].mxu0 %v390
  %v667 = vpop.f32.mrb[0].mxu0
  %v668 = vadd.f32 0.0, %v667
  %v669 = vpop.f32.mrb[0].mxu0
  %v670 = vpop.f32.mrb[0].mxu0
  %v671 = vadd.f32 0.0, %v670
  %v672 = vpop.f32.mrb[0].mxu0
  %673 = vmatprep.mubr.bf16.mxu0 0
  %674 = vmatmul.mubr.bf16.gmra.mrb[0].mxu0 %v391
  %v675 = vpop.f32.mrb[0].mxu0
  %v676 = vadd.f32 0.0, %v675
  %v677 = vpop.f32.mrb[0].mxu0
  %v678 = vpop.f32.mrb[0].mxu0
  %v679 = vadd.f32 0.0, %v678
  %v680 = vpop.f32.mrb[0].mxu0
  %681 = vmatprep.mubr.bf16.mxu0 0
  %682 = vmatmul.mubr.bf16.gmra.mrb[0].mxu0 %v392
  %v683 = vpop.f32.mrb[0].mxu0
  %v684 = vadd.f32 0.0, %v683
  %v685 = vpop.f32.mrb[0].mxu0
  %v686 = vpop.f32.mrb[0].mxu0
  %v687 = vadd.f32 0.0, %v686
  %v688 = vpop.f32.mrb[0].mxu0
  %689 = vmatprep.mubr.bf16.mxu0 0
  %690 = vmatmul.mubr.bf16.gmra.mrb[0].mxu0 %v393
  %v691 = vpop.f32.mrb[0].mxu0
  %v692 = vadd.f32 0.0, %v691
  %v693 = vpop.f32.mrb[0].mxu0
  %v694 = vpop.f32.mrb[0].mxu0
  %v695 = vadd.f32 0.0, %v694
  %v696 = vpop.f32.mrb[0].mxu0
  %697 = vmatprep.mubr.bf16.mxu0 0
  %698 = vmatmul.mubr.bf16.gmra.mrb[0].mxu0 %v394
  %v699 = vpop.f32.mrb[0].mxu0
  %v700 = vadd.f32 0.0, %v699
  %v701 = vpop.f32.mrb[0].mxu0
  %v702 = vpop.f32.mrb[0].mxu0
  %v703 = vadd.f32 0.0, %v702
  %v704 = vpop.f32.mrb[0].mxu0
  %705 = vmatprep.mubr.bf16.mxu0 0
  %706 = vmatmul.mubr.bf16.gmra.mrb[0].mxu0 %v395
  %v707 = vpop.f32.mrb[0].mxu0
  %v708 = vadd.f32 0.0, %v707
  %v709 = vpop.f32.mrb[0].mxu0
  %v710 = vpop.f32.mrb[0].mxu0
  %v711 = vadd.f32 0.0, %v710
  %v712 = vpop.f32.mrb[0].mxu0
  %713 = vmatprep.mubr.bf16.mxu0 0
  %714 = vmatmul.mubr.bf16.gmra.mrb[0].mxu0 %v396
  %v715 = vpop.f32.mrb[0].mxu0
  %v716 = vadd.f32 0.0, %v715
  %v717 = vpop.f32.mrb[0].mxu0
  %v718 = vpop.f32.mrb[0].mxu0
  %v719 = vadd.f32 0.0, %v718
  %v720 = vpop.f32.mrb[0].mxu0
  %721 = vmatprep.mubr.bf16.mxu0 0
  %722 = vmatmul.mubr.bf16.gmra.mrb[0].mxu0 %v397
  %v723 = vpop.f32.mrb[0].mxu0
  %v724 = vadd.f32 0.0, %v723
  %v725 = vpop.f32.mrb[0].mxu0
  %v726 = vpop.f32.mrb[0].mxu0
  %v727 = vadd.f32 0.0, %v726
  %v728 = vpop.f32.mrb[0].mxu0
  %729 = vmatprep.mubr.bf16.mxu0 0
  %730 = vmatmul.mubr.bf16.gmra.mrb[0].mxu0 %v398
  %v731 = vpop.f32.mrb[0].mxu0
  %v732 = vadd.f32 0.0, %v731
  %v733 = vpop.f32.mrb[0].mxu0
  %v734 = vpop.f32.mrb[0].mxu0
  %v735 = vadd.f32 0.0, %v734
  %v736 = vpop.f32.mrb[0].mxu0
  %737 = vmatprep.mubr.bf16.mxu0 0
  %738 = vmatmul.mubr.bf16.gmra.mrb[0].mxu0 %v399
  %v739 = vpop.f32.mrb[0].mxu0
  %v740 = vadd.f32 0.0, %v739
  %v741 = vpop.f32.mrb[0].mxu0
  %v742 = vpop.f32.mrb[0].mxu0
  %v743 = vadd.f32 0.0, %v742
  %v744 = vpop.f32.mrb[0].mxu0
  %745 = vmatprep.mubr.bf16.mxu0 0
  %746 = vmatmul.mubr.bf16.gmra.mrb[0].mxu0 %v400
  %v747 = vpop.f32.mrb[0].mxu0
  %v748 = vadd.f32 0.0, %v747
  %v749 = vpop.f32.mrb[0].mxu0
  %v750 = vpop.f32.mrb[0].mxu0
  %v751 = vadd.f32 0.0, %v750
  %v752 = vpop.f32.mrb[0].mxu0
  %753 = vdwg.mxu0
  %v754 = vpack.c.bf16 %v503, %v500
  %v755 = vpack.c.bf16 %v511, %v508
  %v756 = vpack.c.bf16 %v519, %v516
  %v757 = vpack.c.bf16 %v527, %v524
  %v758 = vpack.c.bf16 %v535, %v532
  %v759 = vpack.c.bf16 %v543, %v540
  %v760 = vpack.c.bf16 %v551, %v548
  %v761 = vpack.c.bf16 %v559, %v556
  %v762 = vpack.c.bf16 %v567, %v564
  %v763 = vpack.c.bf16 %v575, %v572
  %v764 = vpack.c.bf16 %v583, %v580
  %v765 = vpack.c.bf16 %v591, %v588
  %v766 = vpack.c.bf16 %v599, %v596
  %v767 = vpack.c.bf16 %v607, %v604
  %v768 = vpack.c.bf16 %v615, %v612
  %v769 = vpack.c.bf16 %v623, %v620
  %v770 = vpack.c.bf16 %v631, %v628
  %v771 = vpack.c.bf16 %v639, %v636
  %v772 = vpack.c.bf16 %v647, %v644
  %v773 = vpack.c.bf16 %v655, %v652
  %v774 = vpack.c.bf16 %v663, %v660
  %v775 = vpack.c.bf16 %v671, %v668
  %v776 = vpack.c.bf16 %v679, %v676
  %v777 = vpack.c.bf16 %v687, %v684
  %v778 = vpack.c.bf16 %v695, %v692
  %v779 = vpack.c.bf16 %v703, %v700
  %v780 = vpack.c.bf16 %v711, %v708
  %v781 = vpack.c.bf16 %v719, %v716
  %v782 = vpack.c.bf16 %v727, %v724
  %v783 = vpack.c.bf16 %v735, %v732
  %v784 = vpack.c.bf16 %v743, %v740
  %v785 = vpack.c.bf16 %v751, %v748
  %v818 = vunpack.c.l.b16 %v754
  %v819 = vunpack.c.h.b16 %v754
  %v820 = vunpack.c.l.b16 %v755
  %v821 = vunpack.c.h.b16 %v755
  %v822 = vunpack.c.l.b16 %v756
  %v823 = vunpack.c.h.b16 %v756
  %v824 = vunpack.c.l.b16 %v757
  %v825 = vunpack.c.h.b16 %v757
  %v826 = vunpack.c.l.b16 %v758
  %v827 = vunpack.c.h.b16 %v758
  %v828 = vunpack.c.l.b16 %v759
  %v829 = vunpack.c.h.b16 %v759
  %v830 = vunpack.c.l.b16 %v760
  %v831 = vunpack.c.h.b16 %v760
  %v832 = vunpack.c.l.b16 %v761
  %v833 = vunpack.c.h.b16 %v761
  %v834 = vunpack.c.l.b16 %v762
  %v835 = vunpack.c.h.b16 %v762
  %v836 = vunpack.c.l.b16 %v763
  %v837 = vunpack.c.h.b16 %v763
  %v838 = vunpack.c.l.b16 %v764
  %v839 = vunpack.c.h.b16 %v764
  %v840 = vunpack.c.l.b16 %v765
  %v841 = vunpack.c.h.b16 %v765
  %v842 = vunpack.c.l.b16 %v766
  %v843 = vunpack.c.h.b16 %v766
  %v844 = vunpack.c.l.b16 %v767
  %v845 = vunpack.c.h.b16 %v767
  %v846 = vunpack.c.l.b16 %v768
  %v847 = vunpack.c.h.b16 %v768
  %v848 = vunpack.c.l.b16 %v769
  %v849 = vunpack.c.h.b16 %v769
  %v850 = vunpack.c.l.b16 %v770
  %v851 = vunpack.c.h.b16 %v770
  %v852 = vunpack.c.l.b16 %v771
  %v853 = vunpack.c.h.b16 %v771
  %v854 = vunpack.c.l.b16 %v772
  %v855 = vunpack.c.h.b16 %v772
  %v856 = vunpack.c.l.b16 %v773
  %v857 = vunpack.c.h.b16 %v773
  %v858 = vunpack.c.l.b16 %v774
  %v859 = vunpack.c.h.b16 %v774
  %v860 = vunpack.c.l.b16 %v775
  %v861 = vunpack.c.h.b16 %v775
  %v862 = vunpack.c.l.b16 %v776
  %v863 = vunpack.c.h.b16 %v776
  %v864 = vunpack.c.l.b16 %v777
  %v865 = vunpack.c.h.b16 %v777
  %v866 = vunpack.c.l.b16 %v778
  %v867 = vunpack.c.h.b16 %v778
  %v868 = vunpack.c.l.b16 %v779
  %v869 = vunpack.c.h.b16 %v779
  %v870 = vunpack.c.l.b16 %v780
  %v871 = vunpack.c.h.b16 %v780
  %v872 = vunpack.c.l.b16 %v781
  %v873 = vunpack.c.h.b16 %v781
  %v874 = vunpack.c.l.b16 %v782
  %v875 = vunpack.c.h.b16 %v782
  %v876 = vunpack.c.l.b16 %v783
  %v877 = vunpack.c.h.b16 %v783
  %v878 = vunpack.c.l.b16 %v784
  %v879 = vunpack.c.h.b16 %v784
  %v880 = vunpack.c.l.b16 %v785
  %v881 = vunpack.c.h.b16 %v785
  %v882 = vpack.c.b16 %v818, %v818
  %v883 = vpack.c.b16 %v819, %v819
  %v884 = vpack.c.b16 %v820, %v820
  %v885 = vpack.c.b16 %v821, %v821
  %v886 = vpack.c.b16 %v822, %v822
  %v887 = vpack.c.b16 %v823, %v823
  %v888 = vpack.c.b16 %v824, %v824
  %v889 = vpack.c.b16 %v825, %v825
  %v890 = vpack.c.b16 %v826, %v826
  %v891 = vpack.c.b16 %v827, %v827
  %v892 = vpack.c.b16 %v828, %v828
  %v893 = vpack.c.b16 %v829, %v829
  %v894 = vpack.c.b16 %v830, %v830
  %v895 = vpack.c.b16 %v831, %v831
  %v896 = vpack.c.b16 %v832, %v832
  %v897 = vpack.c.b16 %v833, %v833
  %v898 = vpack.c.b16 %v834, %v834
  %v899 = vpack.c.b16 %v835, %v835
  %v900 = vpack.c.b16 %v836, %v836
  %v901 = vpack.c.b16 %v837, %v837
  %v902 = vpack.c.b16 %v838, %v838
  %v903 = vpack.c.b16 %v839, %v839
  %v904 = vpack.c.b16 %v840, %v840
  %v905 = vpack.c.b16 %v841, %v841
  %v906 = vpack.c.b16 %v842, %v842
  %v907 = vpack.c.b16 %v843, %v843
  %v908 = vpack.c.b16 %v844, %v844
  %v909 = vpack.c.b16 %v845, %v845
  %v910 = vpack.c.b16 %v846, %v846
  %v911 = vpack.c.b16 %v847, %v847
  %v912 = vpack.c.b16 %v848, %v848
  %v913 = vpack.c.b16 %v849, %v849
  %v914 = vpack.c.b16 %v850, %v850
  %v915 = vpack.c.b16 %v851, %v851
  %v916 = vpack.c.b16 %v852, %v852
  %v917 = vpack.c.b16 %v853, %v853
  %v918 = vpack.c.b16 %v854, %v854
  %v919 = vpack.c.b16 %v855, %v855
  %v920 = vpack.c.b16 %v856, %v856
  %v921 = vpack.c.b16 %v857, %v857
  %v922 = vpack.c.b16 %v858, %v858
  %v923 = vpack.c.b16 %v859, %v859
  %v924 = vpack.c.b16 %v860, %v860
  %v925 = vpack.c.b16 %v861, %v861
  %v926 = vpack.c.b16 %v862, %v862
  %v927 = vpack.c.b16 %v863, %v863
  %v928 = vpack.c.b16 %v864, %v864
  %v929 = vpack.c.b16 %v865, %v865
  %v930 = vpack.c.b16 %v866, %v866
  %v931 = vpack.c.b16 %v867, %v867
  %v932 = vpack.c.b16 %v868, %v868
  %v933 = vpack.c.b16 %v869, %v869
  %v934 = vpack.c.b16 %v870, %v870
  %v935 = vpack.c.b16 %v871, %v871
  %v936 = vpack.c.b16 %v872, %v872
  %v937 = vpack.c.b16 %v873, %v873
  %v938 = vpack.c.b16 %v874, %v874
  %v939 = vpack.c.b16 %v875, %v875
  %v940 = vpack.c.b16 %v876, %v876
  %v941 = vpack.c.b16 %v877, %v877
  %v942 = vpack.c.b16 %v878, %v878
  %v943 = vpack.c.b16 %v879, %v879
  %v944 = vpack.c.b16 %v880, %v880
  %v945 = vpack.c.b16 %v881, %v881
  %1010 = vst [vmem:[%s5] sm:$0xf] %v882
  %1011 = vst [vmem:[%s5 + $0x4] sm:$0xf] %v883
  %1012 = vst [vmem:[%s5 + $0x8] sm:$0xf] %v884
  %1013 = vst [vmem:[%s5 + $0xc] sm:$0xf] %v885
  %1014 = vst [vmem:[%s5 + $0x10] sm:$0xf] %v886
  %1015 = vst [vmem:[%s5 + $0x14] sm:$0xf] %v887
  %1016 = vst [vmem:[%s5 + $0x18] sm:$0xf] %v888
  %1017 = vst [vmem:[%s5 + $0x1c] sm:$0xf] %v889
  %1018 = vst [vmem:[%s5 + $0x20] sm:$0xf] %v890
  %1019 = vst [vmem:[%s5 + $0x24] sm:$0xf] %v891
  %1020 = vst [vmem:[%s5 + $0x28] sm:$0xf] %v892
  %1021 = vst [vmem:[%s5 + $0x2c] sm:$0xf] %v893
  %1022 = vst [vmem:[%s5 + $0x30] sm:$0xf] %v894
  %1023 = vst [vmem:[%s5 + $0x34] sm:$0xf] %v895
  %1024 = vst [vmem:[%s5 + $0x38] sm:$0xf] %v896
  %1025 = vst [vmem:[%s5 + $0x3c] sm:$0xf] %v897
  %1026 = vst [vmem:[%s5 + $0x40] sm:$0xf] %v898
  %1027 = vst [vmem:[%s5 + $0x44] sm:$0xf] %v899
  %1028 = vst [vmem:[%s5 + $0x48] sm:$0xf] %v900
  %1029 = vst [vmem:[%s5 + $0x4c] sm:$0xf] %v901
  %1030 = vst [vmem:[%s5 + $0x50] sm:$0xf] %v902
  %1031 = vst [vmem:[%s5 + $0x54] sm:$0xf] %v903
  %1032 = vst [vmem:[%s5 + $0x58] sm:$0xf] %v904
  %1033 = vst [vmem:[%s5 + $0x5c] sm:$0xf] %v905
  %1034 = vst [vmem:[%s5 + $0x60] sm:$0xf] %v906
  %1035 = vst [vmem:[%s5 + $0x64] sm:$0xf] %v907
  %1036 = vst [vmem:[%s5 + $0x68] sm:$0xf] %v908
  %1037 = vst [vmem:[%s5 + $0x6c] sm:$0xf] %v909
  %1038 = vst [vmem:[%s5 + $0x70] sm:$0xf] %v910
  %1039 = vst [vmem:[%s5 + $0x74] sm:$0xf] %v911
  %1040 = vst [vmem:[%s5 + $0x78] sm:$0xf] %v912
  %1041 = vst [vmem:[%s5 + $0x7c] sm:$0xf] %v913
  %1042 = vst [vmem:[%s5 + $0x80] sm:$0xf] %v914
  %1043 = vst [vmem:[%s5 + $0x84] sm:$0xf] %v915
  %1044 = vst [vmem:[%s5 + $0x88] sm:$0xf] %v916
  %1045 = vst [vmem:[%s5 + $0x8c] sm:$0xf] %v917
  %1046 = vst [vmem:[%s5 + $0x90] sm:$0xf] %v918
  %1047 = vst [vmem:[%s5 + $0x94] sm:$0xf] %v919
  %1048 = vst [vmem:[%s5 + $0x98] sm:$0xf] %v920
  %1049 = vst [vmem:[%s5 + $0x9c] sm:$0xf] %v921
  %1050 = vst [vmem:[%s5 + $0xa0] sm:$0xf] %v922
  %1051 = vst [vmem:[%s5 + $0xa4] sm:$0xf] %v923
  %1052 = vst [vmem:[%s5 + $0xa8] sm:$0xf] %v924
  %1053 = vst [vmem:[%s5 + $0xac] sm:$0xf] %v925
  %1054 = vst [vmem:[%s5 + $0xb0] sm:$0xf] %v926
  %1055 = vst [vmem:[%s5 + $0xb4] sm:$0xf] %v927
  %1056 = vst [vmem:[%s5 + $0xb8] sm:$0xf] %v928
  %1057 = vst [vmem:[%s5 + $0xbc] sm:$0xf] %v929
  %1058 = vst [vmem:[%s5 + $0xc0] sm:$0xf] %v930
  %1059 = vst [vmem:[%s5 + $0xc4] sm:$0xf] %v931
  %1060 = vst [vmem:[%s5 + $0xc8] sm:$0xf] %v932
  %1061 = vst [vmem:[%s5 + $0xcc] sm:$0xf] %v933
  %1062 = vst [vmem:[%s5 + $0xd0] sm:$0xf] %v934
  %1063 = vst [vmem:[%s5 + $0xd4] sm:$0xf] %v935
  %1064 = vst [vmem:[%s5 + $0xd8] sm:$0xf] %v936
  %1065 = vst [vmem:[%s5 + $0xdc] sm:$0xf] %v937
  %1066 = vst [vmem:[%s5 + $0xe0] sm:$0xf] %v938
  %1067 = vst [vmem:[%s5 + $0xe4] sm:$0xf] %v939
  %1068 = vst [vmem:[%s5 + $0xe8] sm:$0xf] %v940
  %1069 = vst [vmem:[%s5 + $0xec] sm:$0xf] %v941
  %1070 = vst [vmem:[%s5 + $0xf0] sm:$0xf] %v942
  %1071 = vst [vmem:[%s5 + $0xf4] sm:$0xf] %v943
  %1072 = vst [vmem:[%s5 + $0xf8] sm:$0xf] %v944
  %1073 = vst [vmem:[%s5 + $0xfc] sm:$0xf] %v945
  %v1074 = vadd.f32 %v500, %v503
  %v1075 = vadd.f32 %v1074, %v508
  %v1076 = vadd.f32 %v1075, %v511
  %v1077 = vadd.f32 %v1076, %v516
  %v1078 = vadd.f32 %v1077, %v519
  %v1079 = vadd.f32 %v1078, %v524
  %v1080 = vadd.f32 %v1079, %v527
  %v1081 = vadd.f32 %v1080, %v532
  %v1082 = vadd.f32 %v1081, %v535
  %v1083 = vadd.f32 %v1082, %v540
  %v1084 = vadd.f32 %v1083, %v543
  %v1085 = vadd.f32 %v1084, %v548
  %v1086 = vadd.f32 %v1085, %v551
  %v1087 = vadd.f32 %v1086, %v556
  %v1088 = vadd.f32 %v1087, %v559
  %v1089 = vadd.f32 %v1088, %v564
  %v1090 = vadd.f32 %v1089, %v567
  %v1091 = vadd.f32 %v1090, %v572
  %v1092 = vadd.f32 %v1091, %v575
  %v1093 = vadd.f32 %v1092, %v580
  %v1094 = vadd.f32 %v1093, %v583
  %v1095 = vadd.f32 %v1094, %v588
  %v1096 = vadd.f32 %v1095, %v591
  %v1097 = vadd.f32 %v1096, %v596
  %v1098 = vadd.f32 %v1097, %v599
  %v1099 = vadd.f32 %v1098, %v604
  %v1100 = vadd.f32 %v1099, %v607
  %v1101 = vadd.f32 %v1100, %v612
  %v1102 = vadd.f32 %v1101, %v615
  %v1103 = vadd.f32 %v1102, %v620
  %v1104 = vadd.f32 %v1103, %v623
  %v1105 = vadd.f32 %v1104, %v628
  %v1106 = vadd.f32 %v1105, %v631
  %v1107 = vadd.f32 %v1106, %v636
  %v1108 = vadd.f32 %v1107, %v639
  %v1109 = vadd.f32 %v1108, %v644
  %v1110 = vadd.f32 %v1109, %v647
  %v1111 = vadd.f32 %v1110, %v652
  %v1112 = vadd.f32 %v1111, %v655
  %v1113 = vadd.f32 %v1112, %v660
  %v1114 = vadd.f32 %v1113, %v663
  %v1115 = vadd.f32 %v1114, %v668
  %v1116 = vadd.f32 %v1115, %v671
  %v1117 = vadd.f32 %v1116, %v676
  %v1118 = vadd.f32 %v1117, %v679
  %v1119 = vadd.f32 %v1118, %v684
  %v1120 = vadd.f32 %v1119, %v687
  %v1121 = vadd.f32 %v1120, %v692
  %v1122 = vadd.f32 %v1121, %v695
  %v1123 = vadd.f32 %v1122, %v700
  %v1124 = vadd.f32 %v1123, %v703
  %v1125 = vadd.f32 %v1124, %v708
  %v1126 = vadd.f32 %v1125, %v711
  %v1127 = vadd.f32 %v1126, %v716
  %v1128 = vadd.f32 %v1127, %v719
  %v1129 = vadd.f32 %v1128, %v724
  %v1130 = vadd.f32 %v1129, %v727
  %v1131 = vadd.f32 %v1130, %v732
  %v1132 = vadd.f32 %v1131, %v735
  %v1133 = vadd.f32 %v1132, %v740
  %v1134 = vadd.f32 %v1133, %v743
  %v1135 = vadd.f32 %v1134, %v748
  %v1136 = vadd.f32 %v1135, %v751
  %v1137 = vrot.slane %v1136, 4
  %v1138 = vadd.f32 %v1136, %v1137
  %v1139 = vrot.slane %v1138, 2
  %v1140 = vadd.f32 %v1138, %v1139
  %v1141 = vrot.slane %v1140, 1
  %v1142 = vadd.f32 %v1140, %v1141
  %1143 = vst [vmem:[%s6] sm:$0x1] %v1142
  %v1144 = vmul.f32 %v500, %v500
  %v1145 = vmul.f32 %v503, %v503
  %v1146 = vmul.f32 %v508, %v508
  %v1147 = vmul.f32 %v511, %v511
  %v1148 = vmul.f32 %v516, %v516
  %v1149 = vmul.f32 %v519, %v519
  %v1150 = vmul.f32 %v524, %v524
  %v1151 = vmul.f32 %v527, %v527
  %v1152 = vmul.f32 %v532, %v532
  %v1153 = vmul.f32 %v535, %v535
  %v1154 = vmul.f32 %v540, %v540
  %v1155 = vmul.f32 %v543, %v543
  %v1156 = vmul.f32 %v548, %v548
  %v1157 = vmul.f32 %v551, %v551
  %v1158 = vmul.f32 %v556, %v556
  %v1159 = vmul.f32 %v559, %v559
  %v1160 = vmul.f32 %v564, %v564
  %v1161 = vmul.f32 %v567, %v567
  %v1162 = vmul.f32 %v572, %v572
  %v1163 = vmul.f32 %v575, %v575
  %v1164 = vmul.f32 %v580, %v580
  %v1165 = vmul.f32 %v583, %v583
  %v1166 = vmul.f32 %v588, %v588
  %v1167 = vmul.f32 %v591, %v591
  %v1168 = vmul.f32 %v596, %v596
  %v1169 = vmul.f32 %v599, %v599
  %v1170 = vmul.f32 %v604, %v604
  %v1171 = vmul.f32 %v607, %v607
  %v1172 = vmul.f32 %v612, %v612
  %v1173 = vmul.f32 %v615, %v615
  %v1174 = vmul.f32 %v620, %v620
  %v1175 = vmul.f32 %v623, %v623
  %v1176 = vmul.f32 %v628, %v628
  %v1177 = vmul.f32 %v631, %v631
  %v1178 = vmul.f32 %v636, %v636
  %v1179 = vmul.f32 %v639, %v639
  %v1180 = vmul.f32 %v644, %v644
  %v1181 = vmul.f32 %v647, %v647
  %v1182 = vmul.f32 %v652, %v652
  %v1183 = vmul.f32 %v655, %v655
  %v1184 = vmul.f32 %v660, %v660
  %v1185 = vmul.f32 %v663, %v663
  %v1186 = vmul.f32 %v668, %v668
  %v1187 = vmul.f32 %v671, %v671
  %v1188 = vmul.f32 %v676, %v676
  %v1189 = vmul.f32 %v679, %v679
  %v1190 = vmul.f32 %v684, %v684
  %v1191 = vmul.f32 %v687, %v687
  %v1192 = vmul.f32 %v692, %v692
  %v1193 = vmul.f32 %v695, %v695
  %v1194 = vmul.f32 %v700, %v700
  %v1195 = vmul.f32 %v703, %v703
  %v1196 = vmul.f32 %v708, %v708
  %v1197 = vmul.f32 %v711, %v711
  %v1198 = vmul.f32 %v716, %v716
  %v1199 = vmul.f32 %v719, %v719
  %v1200 = vmul.f32 %v724, %v724
  %v1201 = vmul.f32 %v727, %v727
  %v1202 = vmul.f32 %v732, %v732
  %v1203 = vmul.f32 %v735, %v735
  %v1204 = vmul.f32 %v740, %v740
  %v1205 = vmul.f32 %v743, %v743
  %v1206 = vmul.f32 %v748, %v748
  %v1207 = vmul.f32 %v751, %v751
  %v1208 = vadd.f32 %v1144, %v1145
  %v1209 = vadd.f32 %v1208, %v1146
  %v1210 = vadd.f32 %v1209, %v1147
  %v1211 = vadd.f32 %v1210, %v1148
  %v1212 = vadd.f32 %v1211, %v1149
  %v1213 = vadd.f32 %v1212, %v1150
  %v1214 = vadd.f32 %v1213, %v1151
  %v1215 = vadd.f32 %v1214, %v1152
  %v1216 = vadd.f32 %v1215, %v1153
  %v1217 = vadd.f32 %v1216, %v1154
  %v1218 = vadd.f32 %v1217, %v1155
  %v1219 = vadd.f32 %v1218, %v1156
  %v1220 = vadd.f32 %v1219, %v1157
  %v1221 = vadd.f32 %v1220, %v1158
  %v1222 = vadd.f32 %v1221, %v1159
  %v1223 = vadd.f32 %v1222, %v1160
  %v1224 = vadd.f32 %v1223, %v1161
  %v1225 = vadd.f32 %v1224, %v1162
  %v1226 = vadd.f32 %v1225, %v1163
  %v1227 = vadd.f32 %v1226, %v1164
  %v1228 = vadd.f32 %v1227, %v1165
  %v1229 = vadd.f32 %v1228, %v1166
  %v1230 = vadd.f32 %v1229, %v1167
  %v1231 = vadd.f32 %v1230, %v1168
  %v1232 = vadd.f32 %v1231, %v1169
  %v1233 = vadd.f32 %v1232, %v1170
  %v1234 = vadd.f32 %v1233, %v1171
  %v1235 = vadd.f32 %v1234, %v1172
  %v1236 = vadd.f32 %v1235, %v1173
  %v1237 = vadd.f32 %v1236, %v1174
  %v1238 = vadd.f32 %v1237, %v1175
  %v1239 = vadd.f32 %v1238, %v1176
  %v1240 = vadd.f32 %v1239, %v1177
  %v1241 = vadd.f32 %v1240, %v1178
  %v1242 = vadd.f32 %v1241, %v1179
  %v1243 = vadd.f32 %v1242, %v1180
  %v1244 = vadd.f32 %v1243, %v1181
  %v1245 = vadd.f32 %v1244, %v1182
  %v1246 = vadd.f32 %v1245, %v1183
  %v1247 = vadd.f32 %v1246, %v1184
  %v1248 = vadd.f32 %v1247, %v1185
  %v1249 = vadd.f32 %v1248, %v1186
  %v1250 = vadd.f32 %v1249, %v1187
  %v1251 = vadd.f32 %v1250, %v1188
  %v1252 = vadd.f32 %v1251, %v1189
  %v1253 = vadd.f32 %v1252, %v1190
  %v1254 = vadd.f32 %v1253, %v1191
  %v1255 = vadd.f32 %v1254, %v1192
  %v1256 = vadd.f32 %v1255, %v1193
  %v1257 = vadd.f32 %v1256, %v1194
  %v1258 = vadd.f32 %v1257, %v1195
  %v1259 = vadd.f32 %v1258, %v1196
  %v1260 = vadd.f32 %v1259, %v1197
  %v1261 = vadd.f32 %v1260, %v1198
  %v1262 = vadd.f32 %v1261, %v1199
  %v1263 = vadd.f32 %v1262, %v1200
  %v1264 = vadd.f32 %v1263, %v1201
  %v1265 = vadd.f32 %v1264, %v1202
  %v1266 = vadd.f32 %v1265, %v1203
  %v1267 = vadd.f32 %v1266, %v1204
  %v1268 = vadd.f32 %v1267, %v1205
  %v1269 = vadd.f32 %v1268, %v1206
  %v1270 = vadd.f32 %v1269, %v1207
  %v1271 = vrot.slane %v1270, 4
  %v1272 = vadd.f32 %v1270, %v1271
  %v1273 = vrot.slane %v1272, 2
  %v1274 = vadd.f32 %v1272, %v1273
  %v1275 = vrot.slane %v1274, 1
  %v1276 = vadd.f32 %v1274, %v1275
  %1277 = vst [vmem:[%s6 + $0x1] sm:$0x1] %v1276
  // Predicated region
  $region22: #{bottleneck_forward.6} parent=0 // pred_check
    _
  $region23: #{bottleneck_forward.6} parent=0 // pred_check_branch
    %1279 = sbr.rel (0) target = $region25
  $region24: #{bottleneck_forward.6} parent=0 // pred_region
    _
  $region25: #{bottleneck_forward.6} parent=0 // pred_fallthru
    _
  // Predicated region
  $region26: #{bottleneck_forward.6} parent=0 // pred_check
    _
  $region27: #{bottleneck_forward.6} parent=0 // pred_check_branch
    %1281 = sbr.rel (0) target = $region29
  $region28: #{bottleneck_forward.6} parent=0 // pred_region
    _
  $region29: #{bottleneck_forward.6} parent=0 // pred_fallthru
    _
  // Predicated region
  $region30: #{bottleneck_forward.6} parent=0 // pred_check
    _
  $region31: #{bottleneck_forward.6} parent=0 // pred_check_branch
    %1283 = sbr.rel (0) target = $region33
  $region32: #{bottleneck_forward.6} parent=0 // pred_region
    _
  $region33: #{bottleneck_forward.6} parent=0 // pred_fallthru
    _
  // Predicated region
  $region34: #{bottleneck_forward.6} parent=0 // pred_check
    _
  $region35: #{bottleneck_forward.6} parent=0 // pred_check_branch
    %1285 = sbr.rel (0) target = $region37
  $region36: #{bottleneck_forward.6} parent=0 // pred_region
    _
  $region37: #{bottleneck_forward.6} parent=0 // pred_fallthru
    _

// kernel: bottleneck_forward.5
$region0: #{bottleneck_forward.5}
  #allocation0 [shape = 'u32[]', space=smem, size = 0x4, offset = 0x4, fixed_abs, tag = 'smem constant byte address 0x4 - core index']
  #allocation1 [shape = 'u32[144,128]{1,0:T(1,128)}', space=vmem, size = 0x12000, scoped, tag = 'internal scratch']
  %s0 = inlined_call_operand.vmem [shape: bf16[2,256,128], index: 0, kind: input, shape index: {}]
  %s1 = inlined_call_operand.vmem [shape: f32[2,128], index: 1, kind: input, shape index: {}]
  %s2 = inlined_call_operand.vmem [shape: f32[1,128], index: 2, kind: input, shape index: {}]
  %s3 = inlined_call_operand.vmem [shape: f32[1,128], index: 3, kind: input, shape index: {}]
  %s4 = inlined_call_operand.vmem [shape: bf16[1152,128], index: 4, kind: input, shape index: {}]
  %s5 = inlined_call_operand.vmem [shape: bf16[2,256,128], index: 5, kind: output, shape index: {0}]
  %s6 = inlined_call_operand.vmem [shape: f32[2,2,128], index: 6, kind: output, shape index: {1}]
  %7 = xla_tuple %s5, %s6
  %s8 = sld [smem:[#allocation0]]
  $region61: #{bottleneck_forward.5} parent=0
    _
  %s10 = ssub.s32 1, %s8
  %s11 = scalar_select 0, %s10, %s8
  loop: start=0, step=1, limit=4
  $region2: #{bottleneck_forward.5} parent=0 // loop_pre_header
    _
  $region3: #{bottleneck_forward.5} parent=0 // loop_header
    %s13 = sphi 0, %s17
    %p14 = scmp.ge.s32.totalorder %s13, 4
    %s23 = sphi 0, %s25
    %s26 = sphi 0, %s23
    %s27 = sphi 0, %s26
    %s43 = sphi 0, %s27
    %s47 = sphi 0, %s47
    %s49 = sphi 0, %s47
    %s50 = sphi 0, %s49
    %s64 = sphi 0, %s50
    %s68 = sphi 0, %s68
    %s70 = sphi 0, %s68
    %s71 = sphi 0, %s70
    %s85 = sphi 0, %s71
    %s89 = sphi 0, %s89
    %s91 = sphi 0, %s89
    %s92 = sphi 0, %s91
    %s106 = sphi 0, %s92
    %s110 = sphi 0, %s110
    %s112 = sphi 0, %s110
    %s113 = sphi 0, %s112
    %s127 = sphi 0, %s113
    %s133 = sphi 0, %s135
    %s136 = sphi 0, %s133
    %s137 = sphi 0, %s136
    %s153 = sphi 0, %s137
    %s159 = sphi 0, %s161
    %s162 = sphi 0, %s159
    %s163 = sphi 0, %s162
    %s179 = sphi 0, %s163
  $region4: #{bottleneck_forward.5} parent=0 // loop_header_branch
    %16 = sbr.rel (%p14) target = $region8
  $region5: #{bottleneck_forward.5} parent=0 // loop_body
    %s18 = ssub.s32 %s13, 1
    %s19 = ssub.s32 %s13, 2
    %s20 = sadd.s32 %s13, 1
    %s21 = ssub.s32 %s13, %s20
    %p22 = scmp.eq.s32.totalorder %s21, 0
    %s24 = sadd.s32 %s23, 1
    %s25 = scalar_select %p22, %s23, %s24
    %p28 = pneg %p22
    %p29 = scmp.eq.s32.totalorder %s13, 1
    %p30 = por %p28, %p29
    %p31 = scmp.ne.s32.totalorder %s23, %s26
    %p32 = scmp.eq.s32.totalorder %s13, 0
    %p33 = por %p31, %p32
    %p34 = scmp.ne.s32.totalorder %s23, %s26
    %p35 = scmp.eq.s32.totalorder %s18, 1
    %p36 = por %p34, %p35
    %p37 = scmp.ne.s32.totalorder %s26, %s27
    %p38 = scmp.eq.s32.totalorder %s18, 0
    %p39 = por %p37, %p38
    %p40 = scmp.ne.s32.totalorder %s26, %s27
    %p41 = scmp.eq.s32.totalorder %s19, 1
    %p42 = por %p40, %p41
    %p44 = scmp.ne.s32.totalorder %s27, %s43
    %p45 = scmp.eq.s32.totalorder %s19, 0
    %p46 = por %p44, %p45
    %s48 = sadd.s32 %s47, 1
    %p51 = scmp.eq.s32.totalorder %s13, 1
    %p52 = scmp.ne.s32.totalorder %s47, %s49
    %p53 = scmp.eq.s32.totalorder %s13, 0
    %p54 = por %p52, %p53
    %p55 = scmp.ne.s32.totalorder %s47, %s49
    %p56 = scmp.eq.s32.totalorder %s18, 1
    %p57 = por %p55, %p56
    %p58 = scmp.ne.s32.totalorder %s49, %s50
    %p59 = scmp.eq.s32.totalorder %s18, 0
    %p60 = por %p58, %p59
    %p61 = scmp.ne.s32.totalorder %s49, %s50
    %p62 = scmp.eq.s32.totalorder %s19, 1
    %p63 = por %p61, %p62
    %p65 = scmp.ne.s32.totalorder %s50, %s64
    %p66 = scmp.eq.s32.totalorder %s19, 0
    %p67 = por %p65, %p66
    %s69 = sadd.s32 %s68, 1
    %p72 = scmp.eq.s32.totalorder %s13, 1
    %p73 = scmp.ne.s32.totalorder %s68, %s70
    %p74 = scmp.eq.s32.totalorder %s13, 0
    %p75 = por %p73, %p74
    %p76 = scmp.ne.s32.totalorder %s68, %s70
    %p77 = scmp.eq.s32.totalorder %s18, 1
    %p78 = por %p76, %p77
    %p79 = scmp.ne.s32.totalorder %s70, %s71
    %p80 = scmp.eq.s32.totalorder %s18, 0
    %p81 = por %p79, %p80
    %p82 = scmp.ne.s32.totalorder %s70, %s71
    %p83 = scmp.eq.s32.totalorder %s19, 1
    %p84 = por %p82, %p83
    %p86 = scmp.ne.s32.totalorder %s71, %s85
    %p87 = scmp.eq.s32.totalorder %s19, 0
    %p88 = por %p86, %p87
    %s90 = sadd.s32 %s89, 1
    %p93 = scmp.eq.s32.totalorder %s13, 1
    %p94 = scmp.ne.s32.totalorder %s89, %s91
    %p95 = scmp.eq.s32.totalorder %s13, 0
    %p96 = por %p94, %p95
    %p97 = scmp.ne.s32.totalorder %s89, %s91
    %p98 = scmp.eq.s32.totalorder %s18, 1
    %p99 = por %p97, %p98
    %p100 = scmp.ne.s32.totalorder %s91, %s92
    %p101 = scmp.eq.s32.totalorder %s18, 0
    %p102 = por %p100, %p101
    %p103 = scmp.ne.s32.totalorder %s91, %s92
    %p104 = scmp.eq.s32.totalorder %s19, 1
    %p105 = por %p103, %p104
    %p107 = scmp.ne.s32.totalorder %s92, %s106
    %p108 = scmp.eq.s32.totalorder %s19, 0
    %p109 = por %p107, %p108
    %s111 = sadd.s32 %s110, 1
    %p114 = scmp.eq.s32.totalorder %s13, 1
    %p115 = scmp.ne.s32.totalorder %s110, %s112
    %p116 = scmp.eq.s32.totalorder %s13, 0
    %p117 = por %p115, %p116
    %p118 = scmp.ne.s32.totalorder %s110, %s112
    %p119 = scmp.eq.s32.totalorder %s18, 1
    %p120 = por %p118, %p119
    %p121 = scmp.ne.s32.totalorder %s112, %s113
    %p122 = scmp.eq.s32.totalorder %s18, 0
    %p123 = por %p121, %p122
    %p124 = scmp.ne.s32.totalorder %s112, %s113
    %p125 = scmp.eq.s32.totalorder %s19, 1
    %p126 = por %p124, %p125
    %p128 = scmp.ne.s32.totalorder %s113, %s127
    %p129 = scmp.eq.s32.totalorder %s19, 0
    %p130 = por %p128, %p129
    %s131 = ssub.s32 %s13, %s20
    %p132 = scmp.eq.s32.totalorder %s131, 0
    %s134 = sadd.s32 %s133, 1
    %s135 = scalar_select %p132, %s133, %s134
    %p138 = pneg %p132
    %p139 = scmp.eq.s32.totalorder %s13, 1
    %p140 = por %p138, %p139
    %p141 = scmp.ne.s32.totalorder %s133, %s136
    %p142 = scmp.eq.s32.totalorder %s13, 0
    %p143 = por %p141, %p142
    %p144 = scmp.ne.s32.totalorder %s133, %s136
    %p145 = scmp.eq.s32.totalorder %s18, 1
    %p146 = por %p144, %p145
    %p147 = scmp.ne.s32.totalorder %s136, %s137
    %p148 = scmp.eq.s32.totalorder %s18, 0
    %p149 = por %p147, %p148
    %p150 = scmp.ne.s32.totalorder %s136, %s137
    %p151 = scmp.eq.s32.totalorder %s19, 1
    %p152 = por %p150, %p151
    %p154 = scmp.ne.s32.totalorder %s137, %s153
    %p155 = scmp.eq.s32.totalorder %s19, 0
    %p156 = por %p154, %p155
    %s157 = ssub.s32 %s13, %s20
    %p158 = scmp.eq.s32.totalorder %s157, 0
    %s160 = sadd.s32 %s159, 1
    %s161 = scalar_select %p158, %s159, %s160
    %p164 = pneg %p158
    %p165 = scmp.eq.s32.totalorder %s13, 1
    %p166 = por %p164, %p165
    %p167 = scmp.ne.s32.totalorder %s159, %s162
    %p168 = scmp.eq.s32.totalorder %s13, 0
    %p169 = por %p167, %p168
    %p170 = scmp.ne.s32.totalorder %s159, %s162
    %p171 = scmp.eq.s32.totalorder %s18, 1
    %p172 = por %p170, %p171
    %p173 = scmp.ne.s32.totalorder %s162, %s163
    %p174 = scmp.eq.s32.totalorder %s18, 0
    %p175 = por %p173, %p174
    %p176 = scmp.ne.s32.totalorder %s162, %s163
    %p177 = scmp.eq.s32.totalorder %s19, 1
    %p178 = por %p176, %p177
    %p180 = scmp.ne.s32.totalorder %s163, %s179
    %p181 = scmp.eq.s32.totalorder %s19, 0
    %p182 = por %p180, %p181
    %p183 = scmp.le.s32.totalorder 1, %s13
    %p184 = scmp.lt.s32.totalorder %s13, 3
    %p185 = pnand %p183, %p184
    %p186 = pneg %p185
    // Predicated region
    $region9: #{bottleneck_forward.5} parent=5 // pred_check
      _
    $region10: #{bottleneck_forward.5} parent=5 // pred_check_branch
      %188 = sbr.rel (%p185) target = $region12
    $region11: #{bottleneck_forward.5} parent=5 // pred_region
      %s189 = ssub.s32 %s13, 1
      // Predicated region
      $region13: #{bottleneck_forward.5} parent=11 // pred_check
        %p190 = pneg %p60
      $region14: #{bottleneck_forward.5} parent=11 // pred_check_branch
        %192 = sbr.rel (%p190) target = $region16
      $region15: #{bottleneck_forward.5} parent=11 // pred_region
        _
      $region16: #{bottleneck_forward.5} parent=11 // pred_fallthru
        _
      // Predicated region
      $region17: #{bottleneck_forward.5} parent=11 // pred_check
        %p193 = pneg %p81
      $region18: #{bottleneck_forward.5} parent=11 // pred_check_branch
        %195 = sbr.rel (%p193) target = $region20
      $region19: #{bottleneck_forward.5} parent=11 // pred_region
        _
      $region20: #{bottleneck_forward.5} parent=11 // pred_fallthru
        _
      // Predicated region
      $region21: #{bottleneck_forward.5} parent=11 // pred_check
        %p196 = pneg %p102
      $region22: #{bottleneck_forward.5} parent=11 // pred_check_branch
        %198 = sbr.rel (%p196) target = $region24
      $region23: #{bottleneck_forward.5} parent=11 // pred_region
        _
      $region24: #{bottleneck_forward.5} parent=11 // pred_fallthru
        _
      // Predicated region
      $region25: #{bottleneck_forward.5} parent=11 // pred_check
        %p199 = pneg %p123
      $region26: #{bottleneck_forward.5} parent=11 // pred_check_branch
        %201 = sbr.rel (%p199) target = $region28
      $region27: #{bottleneck_forward.5} parent=11 // pred_region
        _
      $region28: #{bottleneck_forward.5} parent=11 // pred_fallthru
        _
    $region12: #{bottleneck_forward.5} parent=5 // pred_fallthru
      _
    %p202 = scmp.lt.s32.totalorder %s13, 2
    // Predicated region
    $region29: #{bottleneck_forward.5} parent=5 // pred_check
      %p203 = pneg %p202
    $region30: #{bottleneck_forward.5} parent=5 // pred_check_branch
      %205 = sbr.rel (%p203) target = $region32
    $region31: #{bottleneck_forward.5} parent=5 // pred_region
      // Predicated region
      $region33: #{bottleneck_forward.5} parent=31 // pred_check
        %p206 = pneg %p33
      $region34: #{bottleneck_forward.5} parent=31 // pred_check_branch
        %208 = sbr.rel (%p206) target = $region36
      $region35: #{bottleneck_forward.5} parent=31 // pred_region
        %p209 = scmp.lt.s32.totalorder %s13, 1
        %s210 = scalar_select %p209, %s13, 1
        %s211 = smul.addr %s210, 32
        %s212 = smul.addr %s211, 4
        %s213 = scalar_lea.vmem %s0, %s212
      $region36: #{bottleneck_forward.5} parent=31 // pred_fallthru
        _
    $region32: #{bottleneck_forward.5} parent=5 // pred_fallthru
      _
    %p214 = scmp.le.s32.totalorder 1, %s13
    %p215 = scmp.lt.s32.totalorder %s13, 3
    %p216 = pnand %p214, %p215
    %p217 = pneg %p216
    // Predicated region
    $region37: #{bottleneck_forward.5} parent=5 // pred_check
      _
    $region38: #{bottleneck_forward.5} parent=5 // pred_check_branch
      %219 = sbr.rel (%p216) target = $region40
    $region39: #{bottleneck_forward.5} parent=5 // pred_region
      %s220 = ssub.s32 %s13, 1
      %p221 = scmp.lt.s32.totalorder %s18, 1
      %s222 = scalar_select %p221, %s18, 1
      %s223 = smul.addr %s222, 32
      %s224 = smul.addr %s223, 4
      %s225 = scalar_lea.vmem %s0, %s224
      %p226 = pneg %p39
      %p227 = pneg %p36
      %p228 = pneg %p60
      %p229 = pneg %p57
      %p230 = pneg %p81
      %p231 = pneg %p78
      %p232 = pneg %p102
      %p233 = pneg %p99
      %p234 = pneg %p123
      %p235 = pneg %p120
      %p236 = pneg %p149
      %p237 = pneg %p146
      %p238 = scmp.lt.s32.totalorder %s18, 1
      %s239 = scalar_select %p238, %s18, 1
      %s240 = smul.addr %s239, 32
      %s241 = smul.addr %s240, 4
      %s242 = scalar_lea.vmem %s5, %s241
      %p243 = pneg %p175
      %p244 = pneg %p172
      %p245 = scmp.lt.s32.totalorder %s18, 1
      %s246 = scalar_select %p245, %s18, 1
      %s247 = smul.addr %s246, 2
      %s248 = scalar_lea.vmem %s6, %s247
      %p249 = scmp.lt.s32.totalorder %s18, 1
      %s250 = scalar_select %p249, %s18, 1
      %s251 = smul.addr %s250, 32
      %s252 = smul.addr %s251, 4
      %s253 = scalar_lea.vmem %s0, %s252
      %p254 = scmp.lt.s32.totalorder %s18, 1
      %s255 = scalar_select %p254, %s18, 1
      %s256 = smul.addr %s255, 32
      %s257 = smul.addr %s256, 4
      %s258 = scalar_lea.vmem %s5, %s257
      %p259 = scmp.lt.s32.totalorder %s18, 1
      %s260 = scalar_select %p259, %s18, 1
      %s261 = smul.addr %s260, 2
      %s262 = scalar_lea.vmem %s6, %s261
      %v264 = vld [vmem:[%s1] sm:$0x1]
      %v265 = vmul.f32 %v264, 0.001953125
      %v266 = vld [vmem:[%s1 + $0x1] sm:$0x1]
      %v267 = vmul.f32 %v266, 0.001953125
      %v268 = vmul.f32 %v265, %v265
      %v269 = vsub.f32 %v267, %v268
      %v270 = vmax.f32 %v269, 0.0
      %v271 = vld [vmem:[%s2] sm:$0x1]
      %v272 = vadd.f32 %v270, 1e-05
      %v273 = vrsqrt.pop %v272
      %v274 = vmul.f32 %v271, %v273
      %v275 = vld [vmem:[%s3] sm:$0x1]
      %v276 = vmul.f32 %v265, %v274
      %v277 = vsub.f32 %v275, %v276
      %v278 = vld [vmem:[%s253] sm:$0xf]
      %v279 = vld [vmem:[%s253 + $0x4] sm:$0xf]
      %v280 = vld [vmem:[%s253 + $0x8] sm:$0xf]
      %v281 = vld [vmem:[%s253 + $0xc] sm:$0xf]
      %v282 = vld [vmem:[%s253 + $0x10] sm:$0xf]
      %v283 = vld [vmem:[%s253 + $0x14] sm:$0xf]
      %v284 = vld [vmem:[%s253 + $0x18] sm:$0xf]
      %v285 = vld [vmem:[%s253 + $0x1c] sm:$0xf]
      %v286 = vld [vmem:[%s253 + $0x20] sm:$0xf]
      %v287 = vld [vmem:[%s253 + $0x24] sm:$0xf]
      %v288 = vld [vmem:[%s253 + $0x28] sm:$0xf]
      %v289 = vld [vmem:[%s253 + $0x2c] sm:$0xf]
      %v290 = vld [vmem:[%s253 + $0x30] sm:$0xf]
      %v291 = vld [vmem:[%s253 + $0x34] sm:$0xf]
      %v292 = vld [vmem:[%s253 + $0x38] sm:$0xf]
      %v293 = vld [vmem:[%s253 + $0x3c] sm:$0xf]
      %v294 = vld [vmem:[%s253 + $0x40] sm:$0xf]
      %v295 = vld [vmem:[%s253 + $0x44] sm:$0xf]
      %v296 = vld [vmem:[%s253 + $0x48] sm:$0xf]
      %v297 = vld [vmem:[%s253 + $0x4c] sm:$0xf]
      %v298 = vld [vmem:[%s253 + $0x50] sm:$0xf]
      %v299 = vld [vmem:[%s253 + $0x54] sm:$0xf]
      %v300 = vld [vmem:[%s253 + $0x58] sm:$0xf]
      %v301 = vld [vmem:[%s253 + $0x5c] sm:$0xf]
      %v302 = vld [vmem:[%s253 + $0x60] sm:$0xf]
      %v303 = vld [vmem:[%s253 + $0x64] sm:$0xf]
      %v304 = vld [vmem:[%s253 + $0x68] sm:$0xf]
      %v305 = vld [vmem:[%s253 + $0x6c] sm:$0xf]
      %v306 = vld [vmem:[%s253 + $0x70] sm:$0xf]
      %v307 = vld [vmem:[%s253 + $0x74] sm:$0xf]
      %v308 = vld [vmem:[%s253 + $0x78] sm:$0xf]
      %v309 = vld [vmem:[%s253 + $0x7c] sm:$0xf]
      %v310 = vunpack.c.l.bf16 %v278
      %v311 = vunpack.c.l.bf16 %v279
      %v312 = vunpack.c.l.bf16 %v280
      %v313 = vunpack.c.l.bf16 %v281
      %v314 = vunpack.c.l.bf16 %v282
      %v315 = vunpack.c.l.bf16 %v283
      %v316 = vunpack.c.l.bf16 %v284
      %v317 = vunpack.c.l.bf16 %v285
      %v318 = vunpack.c.l.bf16 %v286
      %v319 = vunpack.c.l.bf16 %v287
      %v320 = vunpack.c.l.bf16 %v288
      %v321 = vunpack.c.l.bf16 %v289
      %v322 = vunpack.c.l.bf16 %v290
      %v323 = vunpack.c.l.bf16 %v291
      %v324 = vunpack.c.l.bf16 %v292
      %v325 = vunpack.c.l.bf16 %v293
      %v326 = vunpack.c.l.bf16 %v294
      %v327 = vunpack.c.l.bf16 %v295
      %v328 = vunpack.c.l.bf16 %v296
      %v329 = vunpack.c.l.bf16 %v297
      %v330 = vunpack.c.l.bf16 %v298
      %v331 = vunpack.c.l.bf16 %v299
      %v332 = vunpack.c.l.bf16 %v300
      %v333 = vunpack.c.l.bf16 %v301
      %v334 = vunpack.c.l.bf16 %v302
      %v335 = vunpack.c.l.bf16 %v303
      %v336 = vunpack.c.l.bf16 %v304
      %v337 = vunpack.c.l.bf16 %v305
      %v338 = vunpack.c.l.bf16 %v306
      %v339 = vunpack.c.l.bf16 %v307
      %v340 = vunpack.c.l.bf16 %v308
      %v341 = vunpack.c.l.bf16 %v309
      %v343 = vlaneseq
      %v344 = vshrl.u32 %v343, 7
      %v345 = vsub.s32 0, %v344
      %v346 = vrot.slane %v274, %v345
      %v348 = vmul.f32 %v310, %v346
      %v349 = vmul.f32 %v311, %v346
      %v350 = vmul.f32 %v312, %v346
      %v351 = vmul.f32 %v313, %v346
      %v352 = vmul.f32 %v314, %v346
      %v353 = vmul.f32 %v315, %v346
      %v354 = vmul.f32 %v316, %v346
      %v355 = vmul.f32 %v317, %v346
      %v356 = vmul.f32 %v318, %v346
      %v357 = vmul.f32 %v319, %v346
      %v358 = vmul.f32 %v320, %v346
      %v359 = vmul.f32 %v321, %v346
      %v360 = vmul.f32 %v322, %v346
      %v361 = vmul.f32 %v323, %v346
      %v362 = vmul.f32 %v324, %v346
      %v363 = vmul.f32 %v325, %v346
      %v364 = vmul.f32 %v326, %v346
      %v365 = vmul.f32 %v327, %v346
      %v366 = vmul.f32 %v328, %v346
      %v367 = vmul.f32 %v329, %v346
      %v368 = vmul.f32 %v330, %v346
      %v369 = vmul.f32 %v331, %v346
      %v370 = vmul.f32 %v332, %v346
      %v371 = vmul.f32 %v333, %v346
      %v372 = vmul.f32 %v334, %v346
      %v373 = vmul.f32 %v335, %v346
      %v374 = vmul.f32 %v336, %v346
      %v375 = vmul.f32 %v337, %v346
      %v376 = vmul.f32 %v338, %v346
      %v377 = vmul.f32 %v339, %v346
      %v378 = vmul.f32 %v340, %v346
      %v379 = vmul.f32 %v341, %v346
      %v381 = vlaneseq
      %v382 = vshrl.u32 %v381, 7
      %v383 = vsub.s32 0, %v382
      %v384 = vrot.slane %v277, %v383
      %v386 = vadd.f32 %v348, %v384
      %v387 = vadd.f32 %v349, %v384
      %v388 = vadd.f32 %v350, %v384
      %v389 = vadd.f32 %v351, %v384
      %v390 = vadd.f32 %v352, %v384
      %v391 = vadd.f32 %v353, %v384
      %v392 = vadd.f32 %v354, %v384
      %v393 = vadd.f32 %v355, %v384
      %v394 = vadd.f32 %v356, %v384
      %v395 = vadd.f32 %v357, %v384
      %v396 = vadd.f32 %v358, %v384
      %v397 = vadd.f32 %v359, %v384
      %v398 = vadd.f32 %v360, %v384
      %v399 = vadd.f32 %v361, %v384
      %v400 = vadd.f32 %v362, %v384
      %v401 = vadd.f32 %v363, %v384
      %v402 = vadd.f32 %v364, %v384
      %v403 = vadd.f32 %v365, %v384
      %v404 = vadd.f32 %v366, %v384
      %v405 = vadd.f32 %v367, %v384
      %v406 = vadd.f32 %v368, %v384
      %v407 = vadd.f32 %v369, %v384
      %v408 = vadd.f32 %v370, %v384
      %v409 = vadd.f32 %v371, %v384
      %v410 = vadd.f32 %v372, %v384
      %v411 = vadd.f32 %v373, %v384
      %v412 = vadd.f32 %v374, %v384
      %v413 = vadd.f32 %v375, %v384
      %v414 = vadd.f32 %v376, %v384
      %v415 = vadd.f32 %v377, %v384
      %v416 = vadd.f32 %v378, %v384
      %v417 = vadd.f32 %v379, %v384
      %v418 = vmax.f32 %v386, 0.0
      %v419 = vmax.f32 %v387, 0.0
      %v420 = vmax.f32 %v388, 0.0
      %v421 = vmax.f32 %v389, 0.0
      %v422 = vmax.f32 %v390, 0.0
      %v423 = vmax.f32 %v391, 0.0
      %v424 = vmax.f32 %v392, 0.0
      %v425 = vmax.f32 %v393, 0.0
      %v426 = vmax.f32 %v394, 0.0
      %v427 = vmax.f32 %v395, 0.0
      %v428 = vmax.f32 %v396, 0.0
      %v429 = vmax.f32 %v397, 0.0
      %v430 = vmax.f32 %v398, 0.0
      %v431 = vmax.f32 %v399, 0.0
      %v432 = vmax.f32 %v400, 0.0
      %v433 = vmax.f32 %v401, 0.0
      %v434 = vmax.f32 %v402, 0.0
      %v435 = vmax.f32 %v403, 0.0
      %v436 = vmax.f32 %v404, 0.0
      %v437 = vmax.f32 %v405, 0.0
      %v438 = vmax.f32 %v406, 0.0
      %v439 = vmax.f32 %v407, 0.0
      %v440 = vmax.f32 %v408, 0.0
      %v441 = vmax.f32 %v409, 0.0
      %v442 = vmax.f32 %v410, 0.0
      %v443 = vmax.f32 %v411, 0.0
      %v444 = vmax.f32 %v412, 0.0
      %v445 = vmax.f32 %v413, 0.0
      %v446 = vmax.f32 %v414, 0.0
      %v447 = vmax.f32 %v415, 0.0
      %v448 = vmax.f32 %v416, 0.0
      %v449 = vmax.f32 %v417, 0.0
      %v450 = vlaneseq
      %v451 = vshrl.u32 %v450, 7
      %v452 = vadd.s32 %v451, 8
      %vm453 = vcmp.ge.s32.totalorder %v451, 1
      %vm454 = vcmp.ge.s32.totalorder %v452, 1
      %vm455 = vcmp.le.s32.totalorder %v451, 14
      %vm456 = vcmp.le.s32.totalorder %v452, 14
      %v457 = vrot.slane %v418, 7
      %v458 = vrot.slane %v419, 7
      %v459 = vrot.slane %v420, 7
      %v460 = vrot.slane %v421, 7
      %v461 = vrot.slane %v422, 7
      %v462 = vrot.slane %v423, 7
      %v463 = vrot.slane %v424, 7
      %v464 = vrot.slane %v425, 7
      %v465 = vrot.slane %v426, 7
      %v466 = vrot.slane %v427, 7
      %v467 = vrot.slane %v428, 7
      %v468 = vrot.slane %v429, 7
      %v469 = vrot.slane %v430, 7
      %v470 = vrot.slane %v431, 7
      %v471 = vrot.slane %v432, 7
      %v472 = vrot.slane %v433, 7
      %v473 = vrot.slane %v434, 7
      %v474 = vrot.slane %v435, 7
      %v475 = vrot.slane %v436, 7
      %v476 = vrot.slane %v437, 7
      %v477 = vrot.slane %v438, 7
      %v478 = vrot.slane %v439, 7
      %v479 = vrot.slane %v440, 7
      %v480 = vrot.slane %v441, 7
      %v481 = vrot.slane %v442, 7
      %v482 = vrot.slane %v443, 7
      %v483 = vrot.slane %v444, 7
      %v484 = vrot.slane %v445, 7
      %v485 = vrot.slane %v446, 7
      %v486 = vrot.slane %v447, 7
      %vm487 = vcmp.lt.s32.totalorder %v451, 1
      %v488 = vsel %vm487, %v485, %v486
      %v489 = vsel %vm487, %v484, %v485
      %v490 = vsel %vm487, %v483, %v484
      %v491 = vsel %vm487, %v482, %v483
      %v492 = vsel %vm487, %v481, %v482
      %v493 = vsel %vm487, %v480, %v481
      %v494 = vsel %vm487, %v479, %v480
      %v495 = vsel %vm487, %v478, %v479
      %v496 = vsel %vm487, %v477, %v478
      %v497 = vsel %vm487, %v476, %v477
      %v498 = vsel %vm487, %v475, %v476
      %v499 = vsel %vm487, %v474, %v475
      %v500 = vsel %vm487, %v473, %v474
      %v501 = vsel %vm487, %v472, %v473
      %v502 = vsel %vm487, %v471, %v472
      %v503 = vsel %vm487, %v470, %v471
      %v504 = vsel %vm487, %v469, %v470
      %v505 = vsel %vm487, %v468, %v469
      %v506 = vsel %vm487, %v467, %v468
      %v507 = vsel %vm487, %v466, %v467
      %v508 = vsel %vm487, %v465, %v466
      %v509 = vsel %vm487, %v464, %v465
      %v510 = vsel %vm487, %v463, %v464
      %v511 = vsel %vm487, %v462, %v463
      %v512 = vsel %vm487, %v461, %v462
      %v513 = vsel %vm487, %v460, %v461
      %v514 = vsel %vm487, %v459, %v460
      %v515 = vsel %vm487, %v458, %v459
      %v516 = vsel %vm487, %v457, %v458
      %v517 = vsel %vm487, 0.0, %v457
      %v518 = vsel %vm487, %v486, 0.0
      %v519 = vsel %vm453, %v518, 0.0
      %v520 = vsel %vm454, 0.0, 0.0
      %v521 = vsel %vm453, %v517, 0.0
      %v522 = vsel %vm454, %v516, 0.0
      %v523 = vsel %vm453, %v515, 0.0
      %v524 = vsel %vm454, %v514, 0.0
      %v525 = vsel %vm453, %v513, 0.0
      %v526 = vsel %vm454, %v512, 0.0
      %v527 = vsel %vm453, %v511, 0.0
      %v528 = vsel %vm454, %v510, 0.0
      %v529 = vsel %vm453, %v509, 0.0
      %v530 = vsel %vm454, %v508, 0.0
      %v531 = vsel %vm453, %v507, 0.0
      %v532 = vsel %vm454, %v506, 0.0
      %v533 = vsel %vm453, %v505, 0.0
      %v534 = vsel %vm454, %v504, 0.0
      %v535 = vsel %vm453, %v503, 0.0
      %v536 = vsel %vm454, %v502, 0.0
      %v537 = vsel %vm453, %v501, 0.0
      %v538 = vsel %vm454, %v500, 0.0
      %v539 = vsel %vm453, %v499, 0.0
      %v540 = vsel %vm454, %v498, 0.0
      %v541 = vsel %vm453, %v497, 0.0
      %v542 = vsel %vm454, %v496, 0.0
      %v543 = vsel %vm453, %v495, 0.0
      %v544 = vsel %vm454, %v494, 0.0
      %v545 = vsel %vm453, %v493, 0.0
      %v546 = vsel %vm454, %v492, 0.0
      %v547 = vsel %vm453, %v491, 0.0
      %v548 = vsel %vm454, %v490, 0.0
      %v549 = vsel %vm453, %v489, 0.0
      %v550 = vsel %vm454, %v488, 0.0
      %v551 = vpack.c.bf16 %v520, %v519
      %v552 = vpack.c.bf16 %v522, %v521
      %v553 = vpack.c.bf16 %v524, %v523
      %v554 = vpack.c.bf16 %v526, %v525
      %v555 = vpack.c.bf16 %v528, %v527
      %v556 = vpack.c.bf16 %v530, %v529
      %v557 = vpack.c.bf16 %v532, %v531
      %v558 = vpack.c.bf16 %v534, %v533
      %v559 = vpack.c.bf16 %v536, %v535
      %v560 = vpack.c.bf16 %v538, %v537
      %v561 = vpack.c.bf16 %v540, %v539
      %v562 = vpack.c.bf16 %v542, %v541
      %v563 = vpack.c.bf16 %v544, %v543
      %v564 = vpack.c.bf16 %v546, %v545
      %v565 = vpack.c.bf16 %v548, %v547
      %v566 = vpack.c.bf16 %v550, %v549
      %v567 = vld [vmem:[%s4] sm:$0xf]
      %v568 = vld [vmem:[%s4 + $0x4] sm:$0xf]
      %v569 = vld [vmem:[%s4 + $0x8] sm:$0xf]
      %v570 = vld [vmem:[%s4 + $0xc] sm:$0xf]
      %v571 = vld [vmem:[%s4 + $0x10] sm:$0xf]
      %v572 = vld [vmem:[%s4 + $0x14] sm:$0xf]
      %v573 = vld [vmem:[%s4 + $0x18] sm:$0xf]
      %v574 = vld [vmem:[%s4 + $0x1c] sm:$0xf]
      %v575 = vld [vmem:[%s4 + $0x20] sm:$0xf]
      %v576 = vld [vmem:[%s4 + $0x24] sm:$0xf]
      %v577 = vld [vmem:[%s4 + $0x28] sm:$0xf]
      %v578 = vld [vmem:[%s4 + $0x2c] sm:$0xf]
      %v579 = vld [vmem:[%s4 + $0x30] sm:$0xf]
      %v580 = vld [vmem:[%s4 + $0x34] sm:$0xf]
      %v581 = vld [vmem:[%s4 + $0x38] sm:$0xf]
      %v582 = vld [vmem:[%s4 + $0x3c] sm:$0xf]
      %v583 = vpack.c.bf16 0.0, 0.0
      %v584 = vpack.c.bf16 %v419, %v418
      %v585 = vpack.c.bf16 %v421, %v420
      %v586 = vpack.c.bf16 %v423, %v422
      %v587 = vpack.c.bf16 %v425, %v424
      %v588 = vpack.c.bf16 %v427, %v426
      %v589 = vpack.c.bf16 %v429, %v428
      %v590 = vpack.c.bf16 %v431, %v430
      %v591 = vpack.c.bf16 %v433, %v432
      %v592 = vpack.c.bf16 %v435, %v434
      %v593 = vpack.c.bf16 %v437, %v436
      %v594 = vpack.c.bf16 %v439, %v438
      %v595 = vpack.c.bf16 %v441, %v440
      %v596 = vpack.c.bf16 %v443, %v442
      %v597 = vpack.c.bf16 %v445, %v444
      %v598 = vpack.c.bf16 %v447, %v446
      %v599 = vld [vmem:[%s4 + $0x40] sm:$0xf]
      %v600 = vld [vmem:[%s4 + $0x44] sm:$0xf]
      %v601 = vld [vmem:[%s4 + $0x48] sm:$0xf]
      %v602 = vld [vmem:[%s4 + $0x4c] sm:$0xf]
      %v603 = vld [vmem:[%s4 + $0x50] sm:$0xf]
      %v604 = vld [vmem:[%s4 + $0x54] sm:$0xf]
      %v605 = vld [vmem:[%s4 + $0x58] sm:$0xf]
      %v606 = vld [vmem:[%s4 + $0x5c] sm:$0xf]
      %v607 = vld [vmem:[%s4 + $0x60] sm:$0xf]
      %v608 = vld [vmem:[%s4 + $0x64] sm:$0xf]
      %v609 = vld [vmem:[%s4 + $0x68] sm:$0xf]
      %v610 = vld [vmem:[%s4 + $0x6c] sm:$0xf]
      %v611 = vld [vmem:[%s4 + $0x70] sm:$0xf]
      %v612 = vld [vmem:[%s4 + $0x74] sm:$0xf]
      %v613 = vld [vmem:[%s4 + $0x78] sm:$0xf]
      %v614 = vld [vmem:[%s4 + $0x7c] sm:$0xf]
      %v631 = vunpack.c.l.b16 %v599
      %v632 = vunpack.c.l.b16 %v600
      %v633 = vunpack.c.l.b16 %v601
      %v634 = vunpack.c.l.b16 %v602
      %v635 = vunpack.c.l.b16 %v603
      %v636 = vunpack.c.l.b16 %v604
      %v637 = vunpack.c.l.b16 %v605
      %v638 = vunpack.c.l.b16 %v606
      %v639 = vunpack.c.l.b16 %v607
      %v640 = vunpack.c.l.b16 %v608
      %v641 = vunpack.c.l.b16 %v609
      %v642 = vunpack.c.l.b16 %v610
      %v643 = vunpack.c.l.b16 %v611
      %v644 = vunpack.c.l.b16 %v612
      %v645 = vunpack.c.l.b16 %v613
      %v646 = vunpack.c.l.b16 %v614
      %v647 = vpack.c.b16 %v632, %v631
      %v648 = vpack.c.b16 %v634, %v633
      %v649 = vpack.c.b16 %v636, %v635
      %v650 = vpack.c.b16 %v638, %v637
      %v651 = vpack.c.b16 %v640, %v639
      %v652 = vpack.c.b16 %v642, %v641
      %v653 = vpack.c.b16 %v644, %v643
      %v654 = vpack.c.b16 %v646, %v645
      %663 = vmatprep.subr.bf16.mxu0 0
      %664 = vmatpush1.bf16.msra.mxu0 %v647
      %665 = vmatprep.subr.bf16.mxu0 0
      %666 = vmatpush1.bf16.msra.mxu0 %v648
      %667 = vmatprep.subr.bf16.mxu0 0
      %668 = vmatpush1.bf16.msra.mxu0 %v649
      %669 = vmatprep.subr.bf16.mxu0 0
      %670 = vmatpush1.bf16.msra.mxu0 %v650
      %671 = vmatprep.subr.bf16.mxu0 0
      %672 = vmatpush1.bf16.msra.mxu0 %v651
      %673 = vmatprep.subr.bf16.mxu0 0
      %674 = vmatpush1.bf16.msra.mxu0 %v652
      %675 = vmatprep.subr.bf16.mxu0 0
      %676 = vmatpush1.bf16.msra.mxu0 %v653
      %677 = vmatprep.subr.bf16.mxu0 0
      %678 = vmatpush1.bf16.msra.mxu0 %v654
      %679 = vmatprep.subr.bf16.mxu0 0
      %680 = vmatpush1.bf16.msra.mxu0 0
      %681 = vmatprep.subr.bf16.mxu0 0
      %682 = vmatpush1.bf16.msra.mxu0 0
      %683 = vmatprep.subr.bf16.mxu0 0
      %684 = vmatpush1.bf16.msra.mxu0 0
      %685 = vmatprep.subr.bf16.mxu0 0
      %686 = vmatpush1.bf16.msra.mxu0 0
      %687 = vmatprep.subr.bf16.mxu0 0
      %688 = vmatpush1.bf16.msra.mxu0 0
      %689 = vmatprep.subr.bf16.mxu0 0
      %690 = vmatpush1.bf16.msra.mxu0 0
      %691 = vmatprep.subr.bf16.mxu0 0
      %692 = vmatpush1.bf16.msra.mxu0 0
      %693 = vmatprep.subr.bf16.mxu0 0
      %694 = vmatpush1.bf16.msra.mxu0 0
      %695 = vmatprep.mubr.bf16.mxu0 0
      %696 = vmatmul.mubr.bf16.gmra.mrb[0].mxu0 %v583
      %v697 = vpop.f32.mrb[0].mxu0
      %v698 = vadd.f32 0.0, %v697
      %v699 = vpop.f32.mrb[0].mxu0
      %v700 = vpop.f32.mrb[0].mxu0
      %v701 = vadd.f32 0.0, %v700
      %v702 = vpop.f32.mrb[0].mxu0
      %703 = vmatprep.mubr.bf16.mxu0 0
      %704 = vmatmul.mubr.bf16.gmra.mrb[0].mxu0 %v584
      %v705 = vpop.f32.mrb[0].mxu0
      %v706 = vadd.f32 0.0, %v705
      %v707 = vpop.f32.mrb[0].mxu0
      %v708 = vpop.f32.mrb[0].mxu0
      %v709 = vadd.f32 0.0, %v708
      %v710 = vpop.f32.mrb[0].mxu0
      %711 = vmatprep.mubr.bf16.mxu0 0
      %712 = vmatmul.mubr.bf16.gmra.mrb[0].mxu0 %v585
      %v713 = vpop.f32.mrb[0].mxu0
      %v714 = vadd.f32 0.0, %v713
      %v715 = vpop.f32.mrb[0].mxu0
      %v716 = vpop.f32.mrb[0].mxu0
      %v717 = vadd.f32 0.0, %v716
      %v718 = vpop.f32.mrb[0].mxu0
      %719 = vmatprep.mubr.bf16.mxu0 0
      %720 = vmatmul.mubr.bf16.gmra.mrb[0].mxu0 %v586
      %v721 = vpop.f32.mrb[0].mxu0
      %v722 = vadd.f32 0.0, %v721
      %v723 = vpop.f32.mrb[0].mxu0
      %v724 = vpop.f32.mrb[0].mxu0
      %v725 = vadd.f32 0.0, %v724
      %v726 = vpop.f32.mrb[0].mxu0
      %727 = vmatprep.mubr.bf16.mxu0 0
      %728 = vmatmul.mubr.bf16.gmra.mrb[0].mxu0 %v587
      %v729 = vpop.f32.mrb[0].mxu0
      %v730 = vadd.f32 0.0, %v729
      %v731 = vpop.f32.mrb[0].mxu0
      %v732 = vpop.f32.mrb[0].mxu0
      %v733 = vadd.f32 0.0, %v732
      %v734 = vpop.f32.mrb[0].mxu0
      %735 = vmatprep.mubr.bf16.mxu0 0
      %736 = vmatmul.mubr.bf16.gmra.mrb[0].mxu0 %v588
      %v737 = vpop.f32.mrb[0].mxu0
      %v738 = vadd.f32 0.0, %v737
      %v739 = vpop.f32.mrb[0].mxu0
      %v740 = vpop.f32.mrb[0].mxu0
      %v741 = vadd.f32 0.0, %v740
      %v742 = vpop.f32.mrb[0].mxu0
      %743 = vmatprep.mubr.bf16.mxu0 0
      %744 = vmatmul.mubr.bf16.gmra.mrb[0].mxu0 %v589
      %v745 = vpop.f32.mrb[0].mxu0
      %v746 = vadd.f32 0.0, %v745
      %v747 = vpop.f32.mrb[0].mxu0
      %v748 = vpop.f32.mrb[0].mxu0
      %v749 = vadd.f32 0.0, %v748
      %v750 = vpop.f32.mrb[0].mxu0
      %751 = vmatprep.mubr.bf16.mxu0 0
      %752 = vmatmul.mubr.bf16.gmra.mrb[0].mxu0 %v590
      %v753 = vpop.f32.mrb[0].mxu0
      %v754 = vadd.f32 0.0, %v753
      %v755 = vpop.f32.mrb[0].mxu0
      %v756 = vpop.f32.mrb[0].mxu0
      %v757 = vadd.f32 0.0, %v756
      %v758 = vpop.f32.mrb[0].mxu0
      %759 = vmatprep.mubr.bf16.mxu0 0
      %760 = vmatmul.mubr.bf16.gmra.mrb[0].mxu0 %v591
      %v761 = vpop.f32.mrb[0].mxu0
      %v762 = vadd.f32 0.0, %v761
      %v763 = vpop.f32.mrb[0].mxu0
      %v764 = vpop.f32.mrb[0].mxu0
      %v765 = vadd.f32 0.0, %v764
      %v766 = vpop.f32.mrb[0].mxu0
      %767 = vmatprep.mubr.bf16.mxu0 0
      %768 = vmatmul.mubr.bf16.gmra.mrb[0].mxu0 %v592
      %v769 = vpop.f32.mrb[0].mxu0
      %v770 = vadd.f32 0.0, %v769
      %v771 = vpop.f32.mrb[0].mxu0
      %v772 = vpop.f32.mrb[0].mxu0
      %v773 = vadd.f32 0.0, %v772
      %v774 = vpop.f32.mrb[0].mxu0
      %775 = vmatprep.mubr.bf16.mxu0 0
      %776 = vmatmul.mubr.bf16.gmra.mrb[0].mxu0 %v593
      %v777 = vpop.f32.mrb[0].mxu0
      %v778 = vadd.f32 0.0, %v777
      %v779 = vpop.f32.mrb[0].mxu0
      %v780 = vpop.f32.mrb[0].mxu0
      %v781 = vadd.f32 0.0, %v780
      %v782 = vpop.f32.mrb[0].mxu0
      %783 = vmatprep.mubr.bf16.mxu0 0
      %784 = vmatmul.mubr.bf16.gmra.mrb[0].mxu0 %v594
      %v785 = vpop.f32.mrb[0].mxu0
      %v786 = vadd.f32 0.0, %v785
      %v787 = vpop.f32.mrb[0].mxu0
      %v788 = vpop.f32.mrb[0].mxu0
      %v789 = vadd.f32 0.0, %v788
      %v790 = vpop.f32.mrb[0].mxu0
      %791 = vmatprep.mubr.bf16.mxu0 0
      %792 = vmatmul.mubr.bf16.gmra.mrb[0].mxu0 %v595
      %v793 = vpop.f32.mrb[0].mxu0
      %v794 = vadd.f32 0.0, %v793
      %v795 = vpop.f32.mrb[0].mxu0
      %v796 = vpop.f32.mrb[0].mxu0
      %v797 = vadd.f32 0.0, %v796
      %v798 = vpop.f32.mrb[0].mxu0
      %799 = vmatprep.mubr.bf16.mxu0 0
      %800 = vmatmul.mubr.bf16.gmra.mrb[0].mxu0 %v596
      %v801 = vpop.f32.mrb[0].mxu0
      %v802 = vadd.f32 0.0, %v801
      %v803 = vpop.f32.mrb[0].mxu0
      %v804 = vpop.f32.mrb[0].mxu0
      %v805 = vadd.f32 0.0, %v804
      %v806 = vpop.f32.mrb[0].mxu0
      %807 = vmatprep.mubr.bf16.mxu0 0
      %808 = vmatmul.mubr.bf16.gmra.mrb[0].mxu0 %v597
      %v809 = vpop.f32.mrb[0].mxu0
      %v810 = vadd.f32 0.0, %v809
      %v811 = vpop.f32.mrb[0].mxu0
      %v812 = vpop.f32.mrb[0].mxu0
      %v813 = vadd.f32 0.0, %v812
      %v814 = vpop.f32.mrb[0].mxu0
      %815 = vmatprep.mubr.bf16.mxu0 0
      %816 = vmatmul.mubr.bf16.gmra.mrb[0].mxu0 %v598
      %v817 = vpop.f32.mrb[0].mxu0
      %v818 = vadd.f32 0.0, %v817
      %v819 = vpop.f32.mrb[0].mxu0
      %v820 = vpop.f32.mrb[0].mxu0
      %v821 = vadd.f32 0.0, %v820
      %v822 = vpop.f32.mrb[0].mxu0
      %823 = vdwg.mxu0
      %v840 = vunpack.c.l.b16 %v567
      %v841 = vunpack.c.l.b16 %v568
      %v842 = vunpack.c.l.b16 %v569
      %v843 = vunpack.c.l.b16 %v570
      %v844 = vunpack.c.l.b16 %v571
      %v845 = vunpack.c.l.b16 %v572
      %v846 = vunpack.c.l.b16 %v573
      %v847 = vunpack.c.l.b16 %v574
      %v848 = vunpack.c.l.b16 %v575
      %v849 = vunpack.c.l.b16 %v576
      %v850 = vunpack.c.l.b16 %v577
      %v851 = vunpack.c.l.b16 %v578
      %v852 = vunpack.c.l.b16 %v579
      %v853 = vunpack.c.l.b16 %v580
      %v854 = vunpack.c.l.b16 %v581
      %v855 = vunpack.c.l.b16 %v582
      %v856 = vpack.c.b16 %v841, %v840
      %v857 = vpack.c.b16 %v843, %v842
      %v858 = vpack.c.b16 %v845, %v844
      %v859 = vpack.c.b16 %v847, %v846
      %v860 = vpack.c.b16 %v849, %v848
      %v861 = vpack.c.b16 %v851, %v850
      %v862 = vpack.c.b16 %v853, %v852
      %v863 = vpack.c.b16 %v855, %v854
      %872 = vmatprep.subr.bf16.mxu0 0
      %873 = vmatpush1.bf16.msra.mxu0 %v856
      %874 = vmatprep.subr.bf16.mxu0 0
      %875 = vmatpush1.bf16.msra.mxu0 %v857
      %876 = vmatprep.subr.bf16.mxu0 0
      %877 = vmatpush1.bf16.msra.mxu0 %v858
      %878 = vmatprep.subr.bf16.mxu0 0
      %879 = vmatpush1.bf16.msra.mxu0 %v859
      %880 = vmatprep.subr.bf16.mxu0 0
      %881 = vmatpush1.bf16.msra.mxu0 %v860
      %882 = vmatprep.subr.bf16.mxu0 0
      %883 = vmatpush1.bf16.msra.mxu0 %v861
      %884 = vmatprep.subr.bf16.mxu0 0
      %885 = vmatpush1.bf16.msra.mxu0 %v862
      %886 = vmatprep.subr.bf16.mxu0 0
      %887 = vmatpush1.bf16.msra.mxu0 %v863
      %888 = vmatprep.subr.bf16.mxu0 0
      %889 = vmatpush1.bf16.msra.mxu0 0
      %890 = vmatprep.subr.bf16.mxu0 0
      %891 = vmatpush1.bf16.msra.mxu0 0
      %892 = vmatprep.subr.bf16.mxu0 0
      %893 = vmatpush1.bf16.msra.mxu0 0
      %894 = vmatprep.subr.bf16.mxu0 0
      %895 = vmatpush1.bf16.msra.mxu0 0
      %896 = vmatprep.subr.bf16.mxu0 0
      %897 = vmatpush1.bf16.msra.mxu0 0
      %898 = vmatprep.subr.bf16.mxu0 0
      %899 = vmatpush1.bf16.msra.mxu0 0
      %900 = vmatprep.subr.bf16.mxu0 0
      %901 = vmatpush1.bf16.msra.mxu0 0
      %902 = vmatprep.subr.bf16.mxu0 0
      %903 = vmatpush1.bf16.msra.mxu0 0
      %904 = vmatprep.mubr.bf16.mxu0 0
      %905 = vmatmul.mubr.bf16.gmra.mrb[0].mxu0 %v551
      %v906 = vpop.f32.mrb[0].mxu0
      %v907 = vadd.f32 %v698, %v906
      %v908 = vpop.f32.mrb[0].mxu0
      %v909 = vpop.f32.mrb[0].mxu0
      %v910 = vadd.f32 %v701, %v909
      %v911 = vpop.f32.mrb[0].mxu0
      %912 = vmatprep.mubr.bf16.mxu0 0
      %913 = vmatmul.mubr.bf16.gmra.mrb[0].mxu0 %v552
      %v914 = vpop.f32.mrb[0].mxu0
      %v915 = vadd.f32 %v706, %v914
      %v916 = vpop.f32.mrb[0].mxu0
      %v917 = vpop.f32.mrb[0].mxu0
      %v918 = vadd.f32 %v709, %v917
      %v919 = vpop.f32.mrb[0].mxu0
      %920 = vmatprep.mubr.bf16.mxu0 0
      %921 = vmatmul.mubr.bf16.gmra.mrb[0].mxu0 %v553
      %v922 = vpop.f32.mrb[0].mxu0
      %v923 = vadd.f32 %v714, %v922
      %v924 = vpop.f32.mrb[0].mxu0
      %v925 = vpop.f32.mrb[0].mxu0
      %v926 = vadd.f32 %v717, %v925
      %v927 = vpop.f32.mrb[0].mxu0
      %928 = vmatprep.mubr.bf16.mxu0 0
      %929 = vmatmul.mubr.bf16.gmra.mrb[0].mxu0 %v554
      %v930 = vpop.f32.mrb[0].mxu0
      %v931 = vadd.f32 %v722, %v930
      %v932 = vpop.f32.mrb[0].mxu0
      %v933 = vpop.f32.mrb[0].mxu0
      %v934 = vadd.f32 %v725, %v933
      %v935 = vpop.f32.mrb[0].mxu0
      %936 = vmatprep.mubr.bf16.mxu0 0
      %937 = vmatmul.mubr.bf16.gmra.mrb[0].mxu0 %v555
      %v938 = vpop.f32.mrb[0].mxu0
      %v939 = vadd.f32 %v730, %v938
      %v940 = vpop.f32.mrb[0].mxu0
      %v941 = vpop.f32.mrb[0].mxu0
      %v942 = vadd.f32 %v733, %v941
      %v943 = vpop.f32.mrb[0].mxu0
      %944 = vmatprep.mubr.bf16.mxu0 0
      %945 = vmatmul.mubr.bf16.gmra.mrb[0].mxu0 %v556
      %v946 = vpop.f32.mrb[0].mxu0
      %v947 = vadd.f32 %v738, %v946
      %v948 = vpop.f32.mrb[0].mxu0
      %v949 = vpop.f32.mrb[0].mxu0
      %v950 = vadd.f32 %v741, %v949
      %v951 = vpop.f32.mrb[0].mxu0
      %952 = vmatprep.mubr.bf16.mxu0 0
      %953 = vmatmul.mubr.bf16.gmra.mrb[0].mxu0 %v557
      %v954 = vpop.f32.mrb[0].mxu0
      %v955 = vadd.f32 %v746, %v954
      %v956 = vpop.f32.mrb[0].mxu0
      %v957 = vpop.f32.mrb[0].mxu0
      %v958 = vadd.f32 %v749, %v957
      %v959 = vpop.f32.mrb[0].mxu0
      %960 = vmatprep.mubr.bf16.mxu0 0
      %961 = vmatmul.mubr.bf16.gmra.mrb[0].mxu0 %v558
      %v962 = vpop.f32.mrb[0].mxu0
      %v963 = vadd.f32 %v754, %v962
      %v964 = vpop.f32.mrb[0].mxu0
      %v965 = vpop.f32.mrb[0].mxu0
      %v966 = vadd.f32 %v757, %v965
      %v967 = vpop.f32.mrb[0].mxu0
      %968 = vmatprep.mubr.bf16.mxu0 0
      %969 = vmatmul.mubr.bf16.gmra.mrb[0].mxu0 %v559
      %v970 = vpop.f32.mrb[0].mxu0
      %v971 = vadd.f32 %v762, %v970
      %v972 = vpop.f32.mrb[0].mxu0
      %v973 = vpop.f32.mrb[0].mxu0
      %v974 = vadd.f32 %v765, %v973
      %v975 = vpop.f32.mrb[0].mxu0
      %976 = vmatprep.mubr.bf16.mxu0 0
      %977 = vmatmul.mubr.bf16.gmra.mrb[0].mxu0 %v560
      %v978 = vpop.f32.mrb[0].mxu0
      %v979 = vadd.f32 %v770, %v978
      %v980 = vpop.f32.mrb[0].mxu0
      %v981 = vpop.f32.mrb[0].mxu0
      %v982 = vadd.f32 %v773, %v981
      %v983 = vpop.f32.mrb[0].mxu0
      %984 = vmatprep.mubr.bf16.mxu0 0
      %985 = vmatmul.mubr.bf16.gmra.mrb[0].mxu0 %v561
      %v986 = vpop.f32.mrb[0].mxu0
      %v987 = vadd.f32 %v778, %v986
      %v988 = vpop.f32.mrb[0].mxu0
      %v989 = vpop.f32.mrb[0].mxu0
      %v990 = vadd.f32 %v781, %v989
      %v991 = vpop.f32.mrb[0].mxu0
      %992 = vmatprep.mubr.bf16.mxu0 0
      %993 = vmatmul.mubr.bf16.gmra.mrb[0].mxu0 %v562
      %v994 = vpop.f32.mrb[0].mxu0
      %v995 = vadd.f32 %v786, %v994
      %v996 = vpop.f32.mrb[0].mxu0
      %v997 = vpop.f32.mrb[0].mxu0
      %v998 = vadd.f32 %v789, %v997
      %v999 = vpop.f32.mrb[0].mxu0
      %1000 = vmatprep.mubr.bf16.mxu0 0
      %1001 = vmatmul.mubr.bf16.gmra.mrb[0].mxu0 %v563
      %v1002 = vpop.f32.mrb[0].mxu0
      %v1003 = vadd.f32 %v794, %v1002
      %v1004 = vpop.f32.mrb[0].mxu0
      %v1005 = vpop.f32.mrb[0].mxu0
      %v1006 = vadd.f32 %v797, %v1005
      %v1007 = vpop.f32.mrb[0].mxu0
      %1008 = vmatprep.mubr.bf16.mxu0 0
      %1009 = vmatmul.mubr.bf16.gmra.mrb[0].mxu0 %v564
      %v1010 = vpop.f32.mrb[0].mxu0
      %v1011 = vadd.f32 %v802, %v1010
      %v1012 = vpop.f32.mrb[0].mxu0
      %v1013 = vpop.f32.mrb[0].mxu0
      %v1014 = vadd.f32 %v805, %v1013
      %v1015 = vpop.f32.mrb[0].mxu0
      %1016 = vmatprep.mubr.bf16.mxu0 0
      %1017 = vmatmul.mubr.bf16.gmra.mrb[0].mxu0 %v565
      %v1018 = vpop.f32.mrb[0].mxu0
      %v1019 = vadd.f32 %v810, %v1018
      %v1020 = vpop.f32.mrb[0].mxu0
      %v1021 = vpop.f32.mrb[0].mxu0
      %v1022 = vadd.f32 %v813, %v1021
      %v1023 = vpop.f32.mrb[0].mxu0
      %1024 = vmatprep.mubr.bf16.mxu0 0
      %1025 = vmatmul.mubr.bf16.gmra.mrb[0].mxu0 %v566
      %v1026 = vpop.f32.mrb[0].mxu0
      %v1027 = vadd.f32 %v818, %v1026
      %v1028 = vpop.f32.mrb[0].mxu0
      %v1029 = vpop.f32.mrb[0].mxu0
      %v1030 = vadd.f32 %v821, %v1029
      %v1031 = vpop.f32.mrb[0].mxu0
      %1032 = vdwg.mxu0
      %v1033 = vrot.slane %v418, 1
      %v1034 = vrot.slane %v419, 1
      %v1035 = vrot.slane %v420, 1
      %v1036 = vrot.slane %v421, 1
      %v1037 = vrot.slane %v422, 1
      %v1038 = vrot.slane %v423, 1
      %v1039 = vrot.slane %v424, 1
      %v1040 = vrot.slane %v425, 1
      %v1041 = vrot.slane %v426, 1
      %v1042 = vrot.slane %v427, 1
      %v1043 = vrot.slane %v428, 1
      %v1044 = vrot.slane %v429, 1
      %v1045 = vrot.slane %v430, 1
      %v1046 = vrot.slane %v431, 1
      %v1047 = vrot.slane %v432, 1
      %v1048 = vrot.slane %v433, 1
      %v1049 = vrot.slane %v434, 1
      %v1050 = vrot.slane %v435, 1
      %v1051 = vrot.slane %v436, 1
      %v1052 = vrot.slane %v437, 1
      %v1053 = vrot.slane %v438, 1
      %v1054 = vrot.slane %v439, 1
      %v1055 = vrot.slane %v440, 1
      %v1056 = vrot.slane %v441, 1
      %v1057 = vrot.slane %v442, 1
      %v1058 = vrot.slane %v443, 1
      %v1059 = vrot.slane %v444, 1
      %v1060 = vrot.slane %v445, 1
      %v1061 = vrot.slane %v446, 1
      %v1062 = vrot.slane %v447, 1
      %vm1063 = vcmp.lt.s32.totalorder %v451, 7
      %v1064 = vsel %vm1063, %v1061, %v1062
      %v1065 = vsel %vm1063, %v1060, %v1061
      %v1066 = vsel %vm1063, %v1059, %v1060
      %v1067 = vsel %vm1063, %v1058, %v1059
      %v1068 = vsel %vm1063, %v1057, %v1058
      %v1069 = vsel %vm1063, %v1056, %v1057
      %v1070 = vsel %vm1063, %v1055, %v1056
      %v1071 = vsel %vm1063, %v1054, %v1055
      %v1072 = vsel %vm1063, %v1053, %v1054
      %v1073 = vsel %vm1063, %v1052, %v1053
      %v1074 = vsel %vm1063, %v1051, %v1052
      %v1075 = vsel %vm1063, %v1050, %v1051
      %v1076 = vsel %vm1063, %v1049, %v1050
      %v1077 = vsel %vm1063, %v1048, %v1049
      %v1078 = vsel %vm1063, %v1047, %v1048
      %v1079 = vsel %vm1063, %v1046, %v1047
      %v1080 = vsel %vm1063, %v1045, %v1046
      %v1081 = vsel %vm1063, %v1044, %v1045
      %v1082 = vsel %vm1063, %v1043, %v1044
      %v1083 = vsel %vm1063, %v1042, %v1043
      %v1084 = vsel %vm1063, %v1041, %v1042
      %v1085 = vsel %vm1063, %v1040, %v1041
      %v1086 = vsel %vm1063, %v1039, %v1040
      %v1087 = vsel %vm1063, %v1038, %v1039
      %v1088 = vsel %vm1063, %v1037, %v1038
      %v1089 = vsel %vm1063, %v1036, %v1037
      %v1090 = vsel %vm1063, %v1035, %v1036
      %v1091 = vsel %vm1063, %v1034, %v1035
      %v1092 = vsel %vm1063, %v1033, %v1034
      %v1093 = vsel %vm1063, 0.0, %v1033
      %v1094 = vsel %vm1063, %v1062, 0.0
      %v1095 = vsel %vm455, 0.0, 0.0
      %v1096 = vsel %vm456, %v1093, 0.0
      %v1097 = vsel %vm455, %v1092, 0.0
      %v1098 = vsel %vm456, %v1091, 0.0
      %v1099 = vsel %vm455, %v1090, 0.0
      %v1100 = vsel %vm456, %v1089, 0.0
      %v1101 = vsel %vm455, %v1088, 0.0
      %v1102 = vsel %vm456, %v1087, 0.0
      %v1103 = vsel %vm455, %v1086, 0.0
      %v1104 = vsel %vm456, %v1085, 0.0
      %v1105 = vsel %vm455, %v1084, 0.0
      %v1106 = vsel %vm456, %v1083, 0.0
      %v1107 = vsel %vm455, %v1082, 0.0
      %v1108 = vsel %vm456, %v1081, 0.0
      %v1109 = vsel %vm455, %v1080, 0.0
      %v1110 = vsel %vm456, %v1079, 0.0
      %v1111 = vsel %vm455, %v1078, 0.0
      %v1112 = vsel %vm456, %v1077, 0.0
      %v1113 = vsel %vm455, %v1076, 0.0
      %v1114 = vsel %vm456, %v1075, 0.0
      %v1115 = vsel %vm455, %v1074, 0.0
      %v1116 = vsel %vm456, %v1073, 0.0
      %v1117 = vsel %vm455, %v1072, 0.0
      %v1118 = vsel %vm456, %v1071, 0.0
      %v1119 = vsel %vm455, %v1070, 0.0
      %v1120 = vsel %vm456, %v1069, 0.0
      %v1121 = vsel %vm455, %v1068, 0.0
      %v1122 = vsel %vm456, %v1067, 0.0
      %v1123 = vsel %vm455, %v1066, 0.0
      %v1124 = vsel %vm456, %v1065, 0.0
      %v1125 = vsel %vm455, %v1064, 0.0
      %v1126 = vsel %vm456, %v1094, 0.0
      %v1127 = vpack.c.bf16 %v1096, %v1095
      %v1128 = vpack.c.bf16 %v1098, %v1097
      %v1129 = vpack.c.bf16 %v1100, %v1099
      %v1130 = vpack.c.bf16 %v1102, %v1101
      %v1131 = vpack.c.bf16 %v1104, %v1103
      %v1132 = vpack.c.bf16 %v1106, %v1105
      %v1133 = vpack.c.bf16 %v1108, %v1107
      %v1134 = vpack.c.bf16 %v1110, %v1109
      %v1135 = vpack.c.bf16 %v1112, %v1111
      %v1136 = vpack.c.bf16 %v1114, %v1113
      %v1137 = vpack.c.bf16 %v1116, %v1115
      %v1138 = vpack.c.bf16 %v1118, %v1117
      %v1139 = vpack.c.bf16 %v1120, %v1119
      %v1140 = vpack.c.bf16 %v1122, %v1121
      %v1141 = vpack.c.bf16 %v1124, %v1123
      %v1142 = vpack.c.bf16 %v1126, %v1125
      %v1143 = vld [vmem:[%s4 + $0x80] sm:$0xf]
      %v1144 = vld [vmem:[%s4 + $0x84] sm:$0xf]
      %v1145 = vld [vmem:[%s4 + $0x88] sm:$0xf]
      %v1146 = vld [vmem:[%s4 + $0x8c] sm:$0xf]
      %v1147 = vld [vmem:[%s4 + $0x90] sm:$0xf]
      %v1148 = vld [vmem:[%s4 + $0x94] sm:$0xf]
      %v1149 = vld [vmem:[%s4 + $0x98] sm:$0xf]
      %v1150 = vld [vmem:[%s4 + $0x9c] sm:$0xf]
      %v1151 = vld [vmem:[%s4 + $0xa0] sm:$0xf]
      %v1152 = vld [vmem:[%s4 + $0xa4] sm:$0xf]
      %v1153 = vld [vmem:[%s4 + $0xa8] sm:$0xf]
      %v1154 = vld [vmem:[%s4 + $0xac] sm:$0xf]
      %v1155 = vld [vmem:[%s4 + $0xb0] sm:$0xf]
      %v1156 = vld [vmem:[%s4 + $0xb4] sm:$0xf]
      %v1157 = vld [vmem:[%s4 + $0xb8] sm:$0xf]
      %v1158 = vld [vmem:[%s4 + $0xbc] sm:$0xf]
      %v1175 = vunpack.c.l.b16 %v1143
      %v1176 = vunpack.c.l.b16 %v1144
      %v1177 = vunpack.c.l.b16 %v1145
      %v1178 = vunpack.c.l.b16 %v1146
      %v1179 = vunpack.c.l.b16 %v1147
      %v1180 = vunpack.c.l.b16 %v1148
      %v1181 = vunpack.c.l.b16 %v1149
      %v1182 = vunpack.c.l.b16 %v1150
      %v1183 = vunpack.c.l.b16 %v1151
      %v1184 = vunpack.c.l.b16 %v1152
      %v1185 = vunpack.c.l.b16 %v1153
      %v1186 = vunpack.c.l.b16 %v1154
      %v1187 = vunpack.c.l.b16 %v1155
      %v1188 = vunpack.c.l.b16 %v1156
      %v1189 = vunpack.c.l.b16 %v1157
      %v1190 = vunpack.c.l.b16 %v1158
      %v1191 = vpack.c.b16 %v1176, %v1175
      %v1192 = vpack.c.b16 %v1178, %v1177
      %v1193 = vpack.c.b16 %v1180, %v1179
      %v1194 = vpack.c.b16 %v1182, %v1181
      %v1195 = vpack.c.b16 %v1184, %v1183
      %v1196 = vpack.c.b16 %v1186, %v1185
      %v1197 = vpack.c.b16 %v1188, %v1187
      %v1198 = vpack.c.b16 %v1190, %v1189
      %1207 = vmatprep.subr.bf16.mxu0 0
      %1208 = vmatpush1.bf16.msra.mxu0 %v1191
      %1209 = vmatprep.subr.bf16.mxu0 0
      %1210 = vmatpush1.bf16.msra.mxu0 %v1192
      %1211 = vmatprep.subr.bf16.mxu0 0
      %1212 = vmatpush1.bf16.msra.mxu0 %v1193
      %1213 = vmatprep.subr.bf16.mxu0 0
      %1214 = vmatpush1.bf16.msra.mxu0 %v1194
      %1215 = vmatprep.subr.bf16.mxu0 0
      %1216 = vmatpush1.bf16.msra.mxu0 %v1195
      %1217 = vmatprep.subr.bf16.mxu0 0
      %1218 = vmatpush1.bf16.msra.mxu0 %v1196
      %1219 = vmatprep.subr.bf16.mxu0 0
      %1220 = vmatpush1.bf16.msra.mxu0 %v1197
      %1221 = vmatprep.subr.bf16.mxu0 0
      %1222 = vmatpush1.bf16.msra.mxu0 %v1198
      %1223 = vmatprep.subr.bf16.mxu0 0
      %1224 = vmatpush1.bf16.msra.mxu0 0
      %1225 = vmatprep.subr.bf16.mxu0 0
      %1226 = vmatpush1.bf16.msra.mxu0 0
      %1227 = vmatprep.subr.bf16.mxu0 0
      %1228 = vmatpush1.bf16.msra.mxu0 0
      %1229 = vmatprep.subr.bf16.mxu0 0
      %1230 = vmatpush1.bf16.msra.mxu0 0
      %1231 = vmatprep.subr.bf16.mxu0 0
      %1232 = vmatpush1.bf16.msra.mxu0 0
      %1233 = vmatprep.subr.bf16.mxu0 0
      %1234 = vmatpush1.bf16.msra.mxu0 0
      %1235 = vmatprep.subr.bf16.mxu0 0
      %1236 = vmatpush1.bf16.msra.mxu0 0
      %1237 = vmatprep.subr.bf16.mxu0 0
      %1238 = vmatpush1.bf16.msra.mxu0 0
      %1239 = vmatprep.mubr.bf16.mxu0 0
      %1240 = vmatmul.mubr.bf16.gmra.mrb[0].mxu0 %v1127
      %v1241 = vpop.f32.mrb[0].mxu0
      %v1242 = vadd.f32 0.0, %v1241
      %v1243 = vpop.f32.mrb[0].mxu0
      %v1244 = vpop.f32.mrb[0].mxu0
      %v1245 = vadd.f32 0.0, %v1244
      %v1246 = vpop.f32.mrb[0].mxu0
      %1247 = vmatprep.mubr.bf16.mxu0 0
      %1248 = vmatmul.mubr.bf16.gmra.mrb[0].mxu0 %v1128
      %v1249 = vpop.f32.mrb[0].mxu0
      %v1250 = vadd.f32 0.0, %v1249
      %v1251 = vpop.f32.mrb[0].mxu0
      %v1252 = vpop.f32.mrb[0].mxu0
      %v1253 = vadd.f32 0.0, %v1252
      %v1254 = vpop.f32.mrb[0].mxu0
      %1255 = vmatprep.mubr.bf16.mxu0 0
      %1256 = vmatmul.mubr.bf16.gmra.mrb[0].mxu0 %v1129
      %v1257 = vpop.f32.mrb[0].mxu0
      %v1258 = vadd.f32 0.0, %v1257
      %v1259 = vpop.f32.mrb[0].mxu0
      %v1260 = vpop.f32.mrb[0].mxu0
      %v1261 = vadd.f32 0.0, %v1260
      %v1262 = vpop.f32.mrb[0].mxu0
      %1263 = vmatprep.mubr.bf16.mxu0 0
      %1264 = vmatmul.mubr.bf16.gmra.mrb[0].mxu0 %v1130
      %v1265 = vpop.f32.mrb[0].mxu0
      %v1266 = vadd.f32 0.0, %v1265
      %v1267 = vpop.f32.mrb[0].mxu0
      %v1268 = vpop.f32.mrb[0].mxu0
      %v1269 = vadd.f32 0.0, %v1268
      %v1270 = vpop.f32.mrb[0].mxu0
      %1271 = vmatprep.mubr.bf16.mxu0 0
      %1272 = vmatmul.mubr.bf16.gmra.mrb[0].mxu0 %v1131
      %v1273 = vpop.f32.mrb[0].mxu0
      %v1274 = vadd.f32 0.0, %v1273
      %v1275 = vpop.f32.mrb[0].mxu0
      %v1276 = vpop.f32.mrb[0].mxu0
      %v1277 = vadd.f32 0.0, %v1276
      %v1278 = vpop.f32.mrb[0].mxu0
      %1279 = vmatprep.mubr.bf16.mxu0 0
      %1280 = vmatmul.mubr.bf16.gmra.mrb[0].mxu0 %v1132
      %v1281 = vpop.f32.mrb[0].mxu0
      %v1282 = vadd.f32 0.0, %v1281
      %v1283 = vpop.f32.mrb[0].mxu0
      %v1284 = vpop.f32.mrb[0].mxu0
      %v1285 = vadd.f32 0.0, %v1284
      %v1286 = vpop.f32.mrb[0].mxu0
      %1287 = vmatprep.mubr.bf16.mxu0 0
      %1288 = vmatmul.mubr.bf16.gmra.mrb[0].mxu0 %v1133
      %v1289 = vpop.f32.mrb[0].mxu0
      %v1290 = vadd.f32 0.0, %v1289
      %v1291 = vpop.f32.mrb[0].mxu0
      %v1292 = vpop.f32.mrb[0].mxu0
      %v1293 = vadd.f32 0.0, %v1292
      %v1294 = vpop.f32.mrb[0].mxu0
      %1295 = vmatprep.mubr.bf16.mxu0 0
      %1296 = vmatmul.mubr.bf16.gmra.mrb[0].mxu0 %v1134
      %v1297 = vpop.f32.mrb[0].mxu0
      %v1298 = vadd.f32 0.0, %v1297
      %v1299 = vpop.f32.mrb[0].mxu0
      %v1300 = vpop.f32.mrb[0].mxu0
      %v1301 = vadd.f32 0.0, %v1300
      %v1302 = vpop.f32.mrb[0].mxu0
      %1303 = vmatprep.mubr.bf16.mxu0 0
      %1304 = vmatmul.mubr.bf16.gmra.mrb[0].mxu0 %v1135
      %v1305 = vpop.f32.mrb[0].mxu0
      %v1306 = vadd.f32 0.0, %v1305
      %v1307 = vpop.f32.mrb[0].mxu0
      %v1308 = vpop.f32.mrb[0].mxu0
      %v1309 = vadd.f32 0.0, %v1308
      %v1310 = vpop.f32.mrb[0].mxu0
      %1311 = vmatprep.mubr.bf16.mxu0 0
      %1312 = vmatmul.mubr.bf16.gmra.mrb[0].mxu0 %v1136
      %v1313 = vpop.f32.mrb[0].mxu0
      %v1314 = vadd.f32 0.0, %v1313
      %v1315 = vpop.f32.mrb[0].mxu0
      %v1316 = vpop.f32.mrb[0].mxu0
      %v1317 = vadd.f32 0.0, %v1316
      %v1318 = vpop.f32.mrb[0].mxu0
      %1319 = vmatprep.mubr.bf16.mxu0 0
      %1320 = vmatmul.mubr.bf16.gmra.mrb[0].mxu0 %v1137
      %v1321 = vpop.f32.mrb[0].mxu0
      %v1322 = vadd.f32 0.0, %v1321
      %v1323 = vpop.f32.mrb[0].mxu0
      %v1324 = vpop.f32.mrb[0].mxu0
      %v1325 = vadd.f32 0.0, %v1324
      %v1326 = vpop.f32.mrb[0].mxu0
      %1327 = vmatprep.mubr.bf16.mxu0 0
      %1328 = vmatmul.mubr.bf16.gmra.mrb[0].mxu0 %v1138
      %v1329 = vpop.f32.mrb[0].mxu0
      %v1330 = vadd.f32 0.0, %v1329
      %v1331 = vpop.f32.mrb[0].mxu0
      %v1332 = vpop.f32.mrb[0].mxu0
      %v1333 = vadd.f32 0.0, %v1332
      %v1334 = vpop.f32.mrb[0].mxu0
      %1335 = vmatprep.mubr.bf16.mxu0 0
      %1336 = vmatmul.mubr.bf16.gmra.mrb[0].mxu0 %v1139
      %v1337 = vpop.f32.mrb[0].mxu0
      %v1338 = vadd.f32 0.0, %v1337
      %v1339 = vpop.f32.mrb[0].mxu0
      %v1340 = vpop.f32.mrb[0].mxu0
      %v1341 = vadd.f32 0.0, %v1340
      %v1342 = vpop.f32.mrb[0].mxu0
      %1343 = vmatprep.mubr.bf16.mxu0 0
      %1344 = vmatmul.mubr.bf16.gmra.mrb[0].mxu0 %v1140
      %v1345 = vpop.f32.mrb[0].mxu0
      %v1346 = vadd.f32 0.0, %v1345
      %v1347 = vpop.f32.mrb[0].mxu0
      %v1348 = vpop.f32.mrb[0].mxu0
      %v1349 = vadd.f32 0.0, %v1348
      %v1350 = vpop.f32.mrb[0].mxu0
      %1351 = vmatprep.mubr.bf16.mxu0 0
      %1352 = vmatmul.mubr.bf16.gmra.mrb[0].mxu0 %v1141
      %v1353 = vpop.f32.mrb[0].mxu0
      %v1354 = vadd.f32 0.0, %v1353
      %v1355 = vpop.f32.mrb[0].mxu0
      %v1356 = vpop.f32.mrb[0].mxu0
      %v1357 = vadd.f32 0.0, %v1356
      %v1358 = vpop.f32.mrb[0].mxu0
      %1359 = vmatprep.mubr.bf16.mxu0 0
      %1360 = vmatmul.mubr.bf16.gmra.mrb[0].mxu0 %v1142
      %v1361 = vpop.f32.mrb[0].mxu0
      %v1362 = vadd.f32 0.0, %v1361
      %v1363 = vpop.f32.mrb[0].mxu0
      %v1364 = vpop.f32.mrb[0].mxu0
      %v1365 = vadd.f32 0.0, %v1364
      %v1366 = vpop.f32.mrb[0].mxu0
      %1367 = vdwg.mxu0
      %v1368 = vadd.f32 %v907, %v1242
      %v1369 = vadd.f32 %v910, %v1245
      %v1370 = vadd.f32 %v915, %v1250
      %v1371 = vadd.f32 %v918, %v1253
      %v1372 = vadd.f32 %v923, %v1258
      %v1373 = vadd.f32 %v926, %v1261
      %v1374 = vadd.f32 %v931, %v1266
      %v1375 = vadd.f32 %v934, %v1269
      %v1376 = vadd.f32 %v939, %v1274
      %v1377 = vadd.f32 %v942, %v1277
      %v1378 = vadd.f32 %v947, %v1282
      %v1379 = vadd.f32 %v950, %v1285
      %v1380 = vadd.f32 %v955, %v1290
      %v1381 = vadd.f32 %v958, %v1293
      %v1382 = vadd.f32 %v963, %v1298
      %v1383 = vadd.f32 %v966, %v1301
      %v1384 = vadd.f32 %v971, %v1306
      %v1385 = vadd.f32 %v974, %v1309
      %v1386 = vadd.f32 %v979, %v1314
      %v1387 = vadd.f32 %v982, %v1317
      %v1388 = vadd.f32 %v987, %v1322
      %v1389 = vadd.f32 %v990, %v1325
      %v1390 = vadd.f32 %v995, %v1330
      %v1391 = vadd.f32 %v998, %v1333
      %v1392 = vadd.f32 %v1003, %v1338
      %v1393 = vadd.f32 %v1006, %v1341
      %v1394 = vadd.f32 %v1011, %v1346
      %v1395 = vadd.f32 %v1014, %v1349
      %v1396 = vadd.f32 %v1019, %v1354
      %v1397 = vadd.f32 %v1022, %v1357
      %v1398 = vadd.f32 %v1027, %v1362
      %v1399 = vadd.f32 %v1030, %v1365
      %v1400 = vrot.slane %v448, 7
      %v1401 = vrot.slane %v449, 7
      %v1402 = vsel %vm487, %v1400, %v1401
      %v1403 = vsel %vm487, %v486, %v1400
      %v1404 = vsel %vm487, %v1401, %v457
      %v1405 = vsel %vm453, %v1404, 0.0
      %v1406 = vsel %vm453, %v1403, 0.0
      %v1407 = vsel %vm454, %v1402, 0.0
      %v1408 = vpack.c.bf16 %v522, %v1405
      %v1409 = vpack.c.bf16 %v1407, %v1406
      %v1410 = vld [vmem:[%s4 + $0xc0] sm:$0xf]
      %v1411 = vld [vmem:[%s4 + $0xc4] sm:$0xf]
      %v1412 = vld [vmem:[%s4 + $0xc8] sm:$0xf]
      %v1413 = vld [vmem:[%s4 + $0xcc] sm:$0xf]
      %v1414 = vld [vmem:[%s4 + $0xd0] sm:$0xf]
      %v1415 = vld [vmem:[%s4 + $0xd4] sm:$0xf]
      %v1416 = vld [vmem:[%s4 + $0xd8] sm:$0xf]
      %v1417 = vld [vmem:[%s4 + $0xdc] sm:$0xf]
      %v1418 = vld [vmem:[%s4 + $0xe0] sm:$0xf]
      %v1419 = vld [vmem:[%s4 + $0xe4] sm:$0xf]
      %v1420 = vld [vmem:[%s4 + $0xe8] sm:$0xf]
      %v1421 = vld [vmem:[%s4 + $0xec] sm:$0xf]
      %v1422 = vld [vmem:[%s4 + $0xf0] sm:$0xf]
      %v1423 = vld [vmem:[%s4 + $0xf4] sm:$0xf]
      %v1424 = vld [vmem:[%s4 + $0xf8] sm:$0xf]
      %v1425 = vld [vmem:[%s4 + $0xfc] sm:$0xf]
      %v1442 = vunpack.c.l.b16 %v1410
      %v1443 = vunpack.c.l.b16 %v1411
      %v1444 = vunpack.c.l.b16 %v1412
      %v1445 = vunpack.c.l.b16 %v1413
      %v1446 = vunpack.c.l.b16 %v1414
      %v1447 = vunpack.c.l.b16 %v1415
      %v1448 = vunpack.c.l.b16 %v1416
      %v1449 = vunpack.c.l.b16 %v1417
      %v1450 = vunpack.c.l.b16 %v1418
      %v1451 = vunpack.c.l.b16 %v1419
      %v1452 = vunpack.c.l.b16 %v1420
      %v1453 = vunpack.c.l.b16 %v1421
      %v1454 = vunpack.c.l.b16 %v1422
      %v1455 = vunpack.c.l.b16 %v1423
      %v1456 = vunpack.c.l.b16 %v1424
      %v1457 = vunpack.c.l.b16 %v1425
      %v1458 = vpack.c.b16 %v1443, %v1442
      %v1459 = vpack.c.b16 %v1445, %v1444
      %v1460 = vpack.c.b16 %v1447, %v1446
      %v1461 = vpack.c.b16 %v1449, %v1448
      %v1462 = vpack.c.b16 %v1451, %v1450
      %v1463 = vpack.c.b16 %v1453, %v1452
      %v1464 = vpack.c.b16 %v1455, %v1454
      %v1465 = vpack.c.b16 %v1457, %v1456
      %1474 = vmatprep.subr.bf16.mxu0 0
      %1475 = vmatpush1.bf16.msra.mxu0 %v1458
      %1476 = vmatprep.subr.bf16.mxu0 0
      %1477 = vmatpush1.bf16.msra.mxu0 %v1459
      %1478 = vmatprep.subr.bf16.mxu0 0
      %1479 = vmatpush1.bf16.msra.mxu0 %v1460
      %1480 = vmatprep.subr.bf16.mxu0 0
      %1481 = vmatpush1.bf16.msra.mxu0 %v1461
      %1482 = vmatprep.subr.bf16.mxu0 0
      %1483 = vmatpush1.bf16.msra.mxu0 %v1462
      %1484 = vmatprep.subr.bf16.mxu0 0
      %1485 = vmatpush1.bf16.msra.mxu0 %v1463
      %1486 = vmatprep.subr.bf16.mxu0 0
      %1487 = vmatpush1.bf16.msra.mxu0 %v1464
      %1488 = vmatprep.subr.bf16.mxu0 0
      %1489 = vmatpush1.bf16.msra.mxu0 %v1465
      %1490 = vmatprep.subr.bf16.mxu0 0
      %1491 = vmatpush1.bf16.msra.mxu0 0
      %1492 = vmatprep.subr.bf16.mxu0 0
      %1493 = vmatpush1.bf16.msra.mxu0 0
      %1494 = vmatprep.subr.bf16.mxu0 0
      %1495 = vmatpush1.bf16.msra.mxu0 0
      %1496 = vmatprep.subr.bf16.mxu0 0
      %1497 = vmatpush1.bf16.msra.mxu0 0
      %1498 = vmatprep.subr.bf16.mxu0 0
      %1499 = vmatpush1.bf16.msra.mxu0 0
      %1500 = vmatprep.subr.bf16.mxu0 0
      %1501 = vmatpush1.bf16.msra.mxu0 0
      %1502 = vmatprep.subr.bf16.mxu0 0
      %1503 = vmatpush1.bf16.msra.mxu0 0
      %1504 = vmatprep.subr.bf16.mxu0 0
      %1505 = vmatpush1.bf16.msra.mxu0 0
      %1506 = vmatprep.mubr.bf16.mxu0 0
      %1507 = vmatmul.mubr.bf16.gmra.mrb[0].mxu0 %v1408
      %v1508 = vpop.f32.mrb[0].mxu0
      %v1509 = vadd.f32 0.0, %v1508
      %v1510 = vpop.f32.mrb[0].mxu0
      %v1511 = vpop.f32.mrb[0].mxu0
      %v1512 = vadd.f32 0.0, %v1511
      %v1513 = vpop.f32.mrb[0].mxu0
      %1514 = vmatprep.mubr.bf16.mxu0 0
      %1515 = vmatmul.mubr.bf16.gmra.mrb[0].mxu0 %v553
      %v1516 = vpop.f32.mrb[0].mxu0
      %v1517 = vadd.f32 0.0, %v1516
      %v1518 = vpop.f32.mrb[0].mxu0
      %v1519 = vpop.f32.mrb[0].mxu0
      %v1520 = vadd.f32 0.0, %v1519
      %v1521 = vpop.f32.mrb[0].mxu0
      %1522 = vmatprep.mubr.bf16.mxu0 0
      %1523 = vmatmul.mubr.bf16.gmra.mrb[0].mxu0 %v554
      %v1524 = vpop.f32.mrb[0].mxu0
      %v1525 = vadd.f32 0.0, %v1524
      %v1526 = vpop.f32.mrb[0].mxu0
      %v1527 = vpop.f32.mrb[0].mxu0
      %v1528 = vadd.f32 0.0, %v1527
      %v1529 = vpop.f32.mrb[0].mxu0
      %1530 = vmatprep.mubr.bf16.mxu0 0
      %1531 = vmatmul.mubr.bf16.gmra.mrb[0].mxu0 %v555
      %v1532 = vpop.f32.mrb[0].mxu0
      %v1533 = vadd.f32 0.0, %v1532
      %v1534 = vpop.f32.mrb[0].mxu0
      %v1535 = vpop.f32.mrb[0].mxu0
      %v1536 = vadd.f32 0.0, %v1535
      %v1537 = vpop.f32.mrb[0].mxu0
      %1538 = vmatprep.mubr.bf16.mxu0 0
      %1539 = vmatmul.mubr.bf16.gmra.mrb[0].mxu0 %v556
      %v1540 = vpop.f32.mrb[0].mxu0
      %v1541 = vadd.f32 0.0, %v1540
      %v1542 = vpop.f32.mrb[0].mxu0
      %v1543 = vpop.f32.mrb[0].mxu0
      %v1544 = vadd.f32 0.0, %v1543
      %v1545 = vpop.f32.mrb[0].mxu0
      %1546 = vmatprep.mubr.bf16.mxu0 0
      %1547 = vmatmul.mubr.bf16.gmra.mrb[0].mxu0 %v557
      %v1548 = vpop.f32.mrb[0].mxu0
      %v1549 = vadd.f32 0.0, %v1548
      %v1550 = vpop.f32.mrb[0].mxu0
      %v1551 = vpop.f32.mrb[0].mxu0
      %v1552 = vadd.f32 0.0, %v1551
      %v1553 = vpop.f32.mrb[0].mxu0
      %1554 = vmatprep.mubr.bf16.mxu0 0
      %1555 = vmatmul.mubr.bf16.gmra.mrb[0].mxu0 %v558
      %v1556 = vpop.f32.mrb[0].mxu0
      %v1557 = vadd.f32 0.0, %v1556
      %v1558 = vpop.f32.mrb[0].mxu0
      %v1559 = vpop.f32.mrb[0].mxu0
      %v1560 = vadd.f32 0.0, %v1559
      %v1561 = vpop.f32.mrb[0].mxu0
      %1562 = vmatprep.mubr.bf16.mxu0 0
      %1563 = vmatmul.mubr.bf16.gmra.mrb[0].mxu0 %v559
      %v1564 = vpop.f32.mrb[0].mxu0
      %v1565 = vadd.f32 0.0, %v1564
      %v1566 = vpop.f32.mrb[0].mxu0
      %v1567 = vpop.f32.mrb[0].mxu0
      %v1568 = vadd.f32 0.0, %v1567
      %v1569 = vpop.f32.mrb[0].mxu0
      %1570 = vmatprep.mubr.bf16.mxu0 0
      %1571 = vmatmul.mubr.bf16.gmra.mrb[0].mxu0 %v560
      %v1572 = vpop.f32.mrb[0].mxu0
      %v1573 = vadd.f32 0.0, %v1572
      %v1574 = vpop.f32.mrb[0].mxu0
      %v1575 = vpop.f32.mrb[0].mxu0
      %v1576 = vadd.f32 0.0, %v1575
      %v1577 = vpop.f32.mrb[0].mxu0
      %1578 = vmatprep.mubr.bf16.mxu0 0
      %1579 = vmatmul.mubr.bf16.gmra.mrb[0].mxu0 %v561
      %v1580 = vpop.f32.mrb[0].mxu0
      %v1581 = vadd.f32 0.0, %v1580
      %v1582 = vpop.f32.mrb[0].mxu0
      %v1583 = vpop.f32.mrb[0].mxu0
      %v1584 = vadd.f32 0.0, %v1583
      %v1585 = vpop.f32.mrb[0].mxu0
      %1586 = vmatprep.mubr.bf16.mxu0 0
      %1587 = vmatmul.mubr.bf16.gmra.mrb[0].mxu0 %v562
      %v1588 = vpop.f32.mrb[0].mxu0
      %v1589 = vadd.f32 0.0, %v1588
      %v1590 = vpop.f32.mrb[0].mxu0
      %v1591 = vpop.f32.mrb[0].mxu0
      %v1592 = vadd.f32 0.0, %v1591
      %v1593 = vpop.f32.mrb[0].mxu0
      %1594 = vmatprep.mubr.bf16.mxu0 0
      %1595 = vmatmul.mubr.bf16.gmra.mrb[0].mxu0 %v563
      %v1596 = vpop.f32.mrb[0].mxu0
      %v1597 = vadd.f32 0.0, %v1596
      %v1598 = vpop.f32.mrb[0].mxu0
      %v1599 = vpop.f32.mrb[0].mxu0
      %v1600 = vadd.f32 0.0, %v1599
      %v1601 = vpop.f32.mrb[0].mxu0
      %1602 = vmatprep.mubr.bf16.mxu0 0
      %1603 = vmatmul.mubr.bf16.gmra.mrb[0].mxu0 %v564
      %v1604 = vpop.f32.mrb[0].mxu0
      %v1605 = vadd.f32 0.0, %v1604
      %v1606 = vpop.f32.mrb[0].mxu0
      %v1607 = vpop.f32.mrb[0].mxu0
      %v1608 = vadd.f32 0.0, %v1607
      %v1609 = vpop.f32.mrb[0].mxu0
      %1610 = vmatprep.mubr.bf16.mxu0 0
      %1611 = vmatmul.mubr.bf16.gmra.mrb[0].mxu0 %v565
      %v1612 = vpop.f32.mrb[0].mxu0
      %v1613 = vadd.f32 0.0, %v1612
      %v1614 = vpop.f32.mrb[0].mxu0
      %v1615 = vpop.f32.mrb[0].mxu0
      %v1616 = vadd.f32 0.0, %v1615
      %v1617 = vpop.f32.mrb[0].mxu0
      %1618 = vmatprep.mubr.bf16.mxu0 0
      %1619 = vmatmul.mubr.bf16.gmra.mrb[0].mxu0 %v566
      %v1620 = vpop.f32.mrb[0].mxu0
      %v1621 = vadd.f32 0.0, %v1620
      %v1622 = vpop.f32.mrb[0].mxu0
      %v1623 = vpop.f32.mrb[0].mxu0
      %v1624 = vadd.f32 0.0, %v1623
      %v1625 = vpop.f32.mrb[0].mxu0
      %1626 = vmatprep.mubr.bf16.mxu0 0
      %1627 = vmatmul.mubr.bf16.gmra.mrb[0].mxu0 %v1409
      %v1628 = vpop.f32.mrb[0].mxu0
      %v1629 = vadd.f32 0.0, %v1628
      %v1630 = vpop.f32.mrb[0].mxu0
      %v1631 = vpop.f32.mrb[0].mxu0
      %v1632 = vadd.f32 0.0, %v1631
      %v1633 = vpop.f32.mrb[0].mxu0
      %1634 = vdwg.mxu0
      %v1635 = vadd.f32 %v1368, %v1509
      %v1636 = vadd.f32 %v1369, %v1512
      %v1637 = vadd.f32 %v1370, %v1517
      %v1638 = vadd.f32 %v1371, %v1520
      %v1639 = vadd.f32 %v1372, %v1525
      %v1640 = vadd.f32 %v1373, %v1528
      %v1641 = vadd.f32 %v1374, %v1533
      %v1642 = vadd.f32 %v1375, %v1536
      %v1643 = vadd.f32 %v1376, %v1541
      %v1644 = vadd.f32 %v1377, %v1544
      %v1645 = vadd.f32 %v1378, %v1549
      %v1646 = vadd.f32 %v1379, %v1552
      %v1647 = vadd.f32 %v1380, %v1557
      %v1648 = vadd.f32 %v1381, %v1560
      %v1649 = vadd.f32 %v1382, %v1565
      %v1650 = vadd.f32 %v1383, %v1568
      %v1651 = vadd.f32 %v1384, %v1573
      %v1652 = vadd.f32 %v1385, %v1576
      %v1653 = vadd.f32 %v1386, %v1581
      %v1654 = vadd.f32 %v1387, %v1584
      %v1655 = vadd.f32 %v1388, %v1589
      %v1656 = vadd.f32 %v1389, %v1592
      %v1657 = vadd.f32 %v1390, %v1597
      %v1658 = vadd.f32 %v1391, %v1600
      %v1659 = vadd.f32 %v1392, %v1605
      %v1660 = vadd.f32 %v1393, %v1608
      %v1661 = vadd.f32 %v1394, %v1613
      %v1662 = vadd.f32 %v1395, %v1616
      %v1663 = vadd.f32 %v1396, %v1621
      %v1664 = vadd.f32 %v1397, %v1624
      %v1665 = vadd.f32 %v1398, %v1629
      %v1666 = vadd.f32 %v1399, %v1632
      %v1667 = vpack.c.bf16 %v449, %v448
      %v1668 = vld [vmem:[%s4 + $0x100] sm:$0xf]
      %v1669 = vld [vmem:[%s4 + $0x104] sm:$0xf]
      %v1670 = vld [vmem:[%s4 + $0x108] sm:$0xf]
      %v1671 = vld [vmem:[%s4 + $0x10c] sm:$0xf]
      %v1672 = vld [vmem:[%s4 + $0x110] sm:$0xf]
      %v1673 = vld [vmem:[%s4 + $0x114] sm:$0xf]
      %v1674 = vld [vmem:[%s4 + $0x118] sm:$0xf]
      %v1675 = vld [vmem:[%s4 + $0x11c] sm:$0xf]
      %v1676 = vld [vmem:[%s4 + $0x120] sm:$0xf]
      %v1677 = vld [vmem:[%s4 + $0x124] sm:$0xf]
      %v1678 = vld [vmem:[%s4 + $0x128] sm:$0xf]
      %v1679 = vld [vmem:[%s4 + $0x12c] sm:$0xf]
      %v1680 = vld [vmem:[%s4 + $0x130] sm:$0xf]
      %v1681 = vld [vmem:[%s4 + $0x134] sm:$0xf]
      %v1682 = vld [vmem:[%s4 + $0x138] sm:$0xf]
      %v1683 = vld [vmem:[%s4 + $0x13c] sm:$0xf]
      %v1700 = vunpack.c.l.b16 %v1668
      %v1701 = vunpack.c.l.b16 %v1669
      %v1702 = vunpack.c.l.b16 %v1670
      %v1703 = vunpack.c.l.b16 %v1671
      %v1704 = vunpack.c.l.b16 %v1672
      %v1705 = vunpack.c.l.b16 %v1673
      %v1706 = vunpack.c.l.b16 %v1674
      %v1707 = vunpack.c.l.b16 %v1675
      %v1708 = vunpack.c.l.b16 %v1676
      %v1709 = vunpack.c.l.b16 %v1677
      %v1710 = vunpack.c.l.b16 %v1678
      %v1711 = vunpack.c.l.b16 %v1679
      %v1712 = vunpack.c.l.b16 %v1680
      %v1713 = vunpack.c.l.b16 %v1681
      %v1714 = vunpack.c.l.b16 %v1682
      %v1715 = vunpack.c.l.b16 %v1683
      %v1716 = vpack.c.b16 %v1701, %v1700
      %v1717 = vpack.c.b16 %v1703, %v1702
      %v1718 = vpack.c.b16 %v1705, %v1704
      %v1719 = vpack.c.b16 %v1707, %v1706
      %v1720 = vpack.c.b16 %v1709, %v1708
      %v1721 = vpack.c.b16 %v1711, %v1710
      %v1722 = vpack.c.b16 %v1713, %v1712
      %v1723 = vpack.c.b16 %v1715, %v1714
      %1732 = vmatprep.subr.bf16.mxu0 0
      %1733 = vmatpush1.bf16.msra.mxu0 %v1716
      %1734 = vmatprep.subr.bf16.mxu0 0
      %1735 = vmatpush1.bf16.msra.mxu0 %v1717
      %1736 = vmatprep.subr.bf16.mxu0 0
      %1737 = vmatpush1.bf16.msra.mxu0 %v1718
      %1738 = vmatprep.subr.bf16.mxu0 0
      %1739 = vmatpush1.bf16.msra.mxu0 %v1719
      %1740 = vmatprep.subr.bf16.mxu0 0
      %1741 = vmatpush1.bf16.msra.mxu0 %v1720
      %1742 = vmatprep.subr.bf16.mxu0 0
      %1743 = vmatpush1.bf16.msra.mxu0 %v1721
      %1744 = vmatprep.subr.bf16.mxu0 0
      %1745 = vmatpush1.bf16.msra.mxu0 %v1722
      %1746 = vmatprep.subr.bf16.mxu0 0
      %1747 = vmatpush1.bf16.msra.mxu0 %v1723
      %1748 = vmatprep.subr.bf16.mxu0 0
      %1749 = vmatpush1.bf16.msra.mxu0 0
      %1750 = vmatprep.subr.bf16.mxu0 0
      %1751 = vmatpush1.bf16.msra.mxu0 0
      %1752 = vmatprep.subr.bf16.mxu0 0
      %1753 = vmatpush1.bf16.msra.mxu0 0
      %1754 = vmatprep.subr.bf16.mxu0 0
      %1755 = vmatpush1.bf16.msra.mxu0 0
      %1756 = vmatprep.subr.bf16.mxu0 0
      %1757 = vmatpush1.bf16.msra.mxu0 0
      %1758 = vmatprep.subr.bf16.mxu0 0
      %1759 = vmatpush1.bf16.msra.mxu0 0
      %1760 = vmatprep.subr.bf16.mxu0 0
      %1761 = vmatpush1.bf16.msra.mxu0 0
      %1762 = vmatprep.subr.bf16.mxu0 0
      %1763 = vmatpush1.bf16.msra.mxu0 0
      %1764 = vmatprep.mubr.bf16.mxu0 0
      %1765 = vmatmul.mubr.bf16.gmra.mrb[0].mxu0 %v584
      %v1766 = vpop.f32.mrb[0].mxu0
      %v1767 = vadd.f32 0.0, %v1766
      %v1768 = vpop.f32.mrb[0].mxu0
      %v1769 = vpop.f32.mrb[0].mxu0
      %v1770 = vadd.f32 0.0, %v1769
      %v1771 = vpop.f32.mrb[0].mxu0
      %1772 = vmatprep.mubr.bf16.mxu0 0
      %1773 = vmatmul.mubr.bf16.gmra.mrb[0].mxu0 %v585
      %v1774 = vpop.f32.mrb[0].mxu0
      %v1775 = vadd.f32 0.0, %v1774
      %v1776 = vpop.f32.mrb[0].mxu0
      %v1777 = vpop.f32.mrb[0].mxu0
      %v1778 = vadd.f32 0.0, %v1777
      %v1779 = vpop.f32.mrb[0].mxu0
      %1780 = vmatprep.mubr.bf16.mxu0 0
      %1781 = vmatmul.mubr.bf16.gmra.mrb[0].mxu0 %v586
      %v1782 = vpop.f32.mrb[0].mxu0
      %v1783 = vadd.f32 0.0, %v1782
      %v1784 = vpop.f32.mrb[0].mxu0
      %v1785 = vpop.f32.mrb[0].mxu0
      %v1786 = vadd.f32 0.0, %v1785
      %v1787 = vpop.f32.mrb[0].mxu0
      %1788 = vmatprep.mubr.bf16.mxu0 0
      %1789 = vmatmul.mubr.bf16.gmra.mrb[0].mxu0 %v587
      %v1790 = vpop.f32.mrb[0].mxu0
      %v1791 = vadd.f32 0.0, %v1790
      %v1792 = vpop.f32.mrb[0].mxu0
      %v1793 = vpop.f32.mrb[0].mxu0
      %v1794 = vadd.f32 0.0, %v1793
      %v1795 = vpop.f32.mrb[0].mxu0
      %1796 = vmatprep.mubr.bf16.mxu0 0
      %1797 = vmatmul.mubr.bf16.gmra.mrb[0].mxu0 %v588
      %v1798 = vpop.f32.mrb[0].mxu0
      %v1799 = vadd.f32 0.0, %v1798
      %v1800 = vpop.f32.mrb[0].mxu0
      %v1801 = vpop.f32.mrb[0].mxu0
      %v1802 = vadd.f32 0.0, %v1801
      %v1803 = vpop.f32.mrb[0].mxu0
      %1804 = vmatprep.mubr.bf16.mxu0 0
      %1805 = vmatmul.mubr.bf16.gmra.mrb[0].mxu0 %v589
      %v1806 = vpop.f32.mrb[0].mxu0
      %v1807 = vadd.f32 0.0, %v1806
      %v1808 = vpop.f32.mrb[0].mxu0
      %v1809 = vpop.f32.mrb[0].mxu0
      %v1810 = vadd.f32 0.0, %v1809
      %v1811 = vpop.f32.mrb[0].mxu0
      %1812 = vmatprep.mubr.bf16.mxu0 0
      %1813 = vmatmul.mubr.bf16.gmra.mrb[0].mxu0 %v590
      %v1814 = vpop.f32.mrb[0].mxu0
      %v1815 = vadd.f32 0.0, %v1814
      %v1816 = vpop.f32.mrb[0].mxu0
      %v1817 = vpop.f32.mrb[0].mxu0
      %v1818 = vadd.f32 0.0, %v1817
      %v1819 = vpop.f32.mrb[0].mxu0
      %1820 = vmatprep.mubr.bf16.mxu0 0
      %1821 = vmatmul.mubr.bf16.gmra.mrb[0].mxu0 %v591
      %v1822 = vpop.f32.mrb[0].mxu0
      %v1823 = vadd.f32 0.0, %v1822
      %v1824 = vpop.f32.mrb[0].mxu0
      %v1825 = vpop.f32.mrb[0].mxu0
      %v1826 = vadd.f32 0.0, %v1825
      %v1827 = vpop.f32.mrb[0].mxu0
      %1828 = vmatprep.mubr.bf16.mxu0 0
      %1829 = vmatmul.mubr.bf16.gmra.mrb[0].mxu0 %v592
      %v1830 = vpop.f32.mrb[0].mxu0
      %v1831 = vadd.f32 0.0, %v1830
      %v1832 = vpop.f32.mrb[0].mxu0
      %v1833 = vpop.f32.mrb[0].mxu0
      %v1834 = vadd.f32 0.0, %v1833
      %v1835 = vpop.f32.mrb[0].mxu0
      %1836 = vmatprep.mubr.bf16.mxu0 0
      %1837 = vmatmul.mubr.bf16.gmra.mrb[0].mxu0 %v593
      %v1838 = vpop.f32.mrb[0].mxu0
      %v1839 = vadd.f32 0.0, %v1838
      %v1840 = vpop.f32.mrb[0].mxu0
      %v1841 = vpop.f32.mrb[0].mxu0
      %v1842 = vadd.f32 0.0, %v1841
      %v1843 = vpop.f32.mrb[0].mxu0
      %1844 = vmatprep.mubr.bf16.mxu0 0
      %1845 = vmatmul.mubr.bf16.gmra.mrb[0].mxu0 %v594
      %v1846 = vpop.f32.mrb[0].mxu0
      %v1847 = vadd.f32 0.0, %v1846
      %v1848 = vpop.f32.mrb[0].mxu0
      %v1849 = vpop.f32.mrb[0].mxu0
      %v1850 = vadd.f32 0.0, %v1849
      %v1851 = vpop.f32.mrb[0].mxu0
      %1852 = vmatprep.mubr.bf16.mxu0 0
      %1853 = vmatmul.mubr.bf16.gmra.mrb[0].mxu0 %v595
      %v1854 = vpop.f32.mrb[0].mxu0
      %v1855 = vadd.f32 0.0, %v1854
      %v1856 = vpop.f32.mrb[0].mxu0
      %v1857 = vpop.f32.mrb[0].mxu0
      %v1858 = vadd.f32 0.0, %v1857
      %v1859 = vpop.f32.mrb[0].mxu0
      %1860 = vmatprep.mubr.bf16.mxu0 0
      %1861 = vmatmul.mubr.bf16.gmra.mrb[0].mxu0 %v596
      %v1862 = vpop.f32.mrb[0].mxu0
      %v1863 = vadd.f32 0.0, %v1862
      %v1864 = vpop.f32.mrb[0].mxu0
      %v1865 = vpop.f32.mrb[0].mxu0
      %v1866 = vadd.f32 0.0, %v1865
      %v1867 = vpop.f32.mrb[0].mxu0
      %1868 = vmatprep.mubr.bf16.mxu0 0
      %1869 = vmatmul.mubr.bf16.gmra.mrb[0].mxu0 %v597
      %v1870 = vpop.f32.mrb[0].mxu0
      %v1871 = vadd.f32 0.0, %v1870
      %v1872 = vpop.f32.mrb[0].mxu0
      %v1873 = vpop.f32.mrb[0].mxu0
      %v1874 = vadd.f32 0.0, %v1873
      %v1875 = vpop.f32.mrb[0].mxu0
      %1876 = vmatprep.mubr.bf16.mxu0 0
      %1877 = vmatmul.mubr.bf16.gmra.mrb[0].mxu0 %v598
      %v1878 = vpop.f32.mrb[0].mxu0
      %v1879 = vadd.f32 0.0, %v1878
      %v1880 = vpop.f32.mrb[0].mxu0
      %v1881 = vpop.f32.mrb[0].mxu0
      %v1882 = vadd.f32 0.0, %v1881
      %v1883 = vpop.f32.mrb[0].mxu0
      %1884 = vmatprep.mubr.bf16.mxu0 0
      %1885 = vmatmul.mubr.bf16.gmra.mrb[0].mxu0 %v1667
      %v1886 = vpop.f32.mrb[0].mxu0
      %v1887 = vadd.f32 0.0, %v1886
      %v1888 = vpop.f32.mrb[0].mxu0
      %v1889 = vpop.f32.mrb[0].mxu0
      %v1890 = vadd.f32 0.0, %v1889
      %v1891 = vpop.f32.mrb[0].mxu0
      %1892 = vdwg.mxu0
      %v1893 = vadd.f32 %v1635, %v1767
      %v1894 = vadd.f32 %v1636, %v1770
      %v1895 = vadd.f32 %v1637, %v1775
      %v1896 = vadd.f32 %v1638, %v1778
      %v1897 = vadd.f32 %v1639, %v1783
      %v1898 = vadd.f32 %v1640, %v1786
      %v1899 = vadd.f32 %v1641, %v1791
      %v1900 = vadd.f32 %v1642, %v1794
      %v1901 = vadd.f32 %v1643, %v1799
      %v1902 = vadd.f32 %v1644, %v1802
      %v1903 = vadd.f32 %v1645, %v1807
      %v1904 = vadd.f32 %v1646, %v1810
      %v1905 = vadd.f32 %v1647, %v1815
      %v1906 = vadd.f32 %v1648, %v1818
      %v1907 = vadd.f32 %v1649, %v1823
      %v1908 = vadd.f32 %v1650, %v1826
      %v1909 = vadd.f32 %v1651, %v1831
      %v1910 = vadd.f32 %v1652, %v1834
      %v1911 = vadd.f32 %v1653, %v1839
      %v1912 = vadd.f32 %v1654, %v1842
      %v1913 = vadd.f32 %v1655, %v1847
      %v1914 = vadd.f32 %v1656, %v1850
      %v1915 = vadd.f32 %v1657, %v1855
      %v1916 = vadd.f32 %v1658, %v1858
      %v1917 = vadd.f32 %v1659, %v1863
      %v1918 = vadd.f32 %v1660, %v1866
      %v1919 = vadd.f32 %v1661, %v1871
      %v1920 = vadd.f32 %v1662, %v1874
      %v1921 = vadd.f32 %v1663, %v1879
      %v1922 = vadd.f32 %v1664, %v1882
      %v1923 = vadd.f32 %v1665, %v1887
      %v1924 = vadd.f32 %v1666, %v1890
      %v1925 = vrot.slane %v448, 1
      %v1926 = vrot.slane %v449, 1
      %v1927 = vsel %vm1063, %v1925, %v1926
      %v1928 = vsel %vm1063, %v1062, %v1925
      %v1929 = vsel %vm1063, %v1926, %v1033
      %v1930 = vsel %vm456, %v1928, 0.0
      %v1931 = vsel %vm455, %v1927, 0.0
      %v1932 = vsel %vm456, %v1929, 0.0
      %v1933 = vpack.c.bf16 %v1930, %v1125
      %v1934 = vpack.c.bf16 %v1932, %v1931
      %v1935 = vld [vmem:[%s4 + $0x140] sm:$0xf]
      %v1936 = vld [vmem:[%s4 + $0x144] sm:$0xf]
      %v1937 = vld [vmem:[%s4 + $0x148] sm:$0xf]
      %v1938 = vld [vmem:[%s4 + $0x14c] sm:$0xf]
      %v1939 = vld [vmem:[%s4 + $0x150] sm:$0xf]
      %v1940 = vld [vmem:[%s4 + $0x154] sm:$0xf]
      %v1941 = vld [vmem:[%s4 + $0x158] sm:$0xf]
      %v1942 = vld [vmem:[%s4 + $0x15c] sm:$0xf]
      %v1943 = vld [vmem:[%s4 + $0x160] sm:$0xf]
      %v1944 = vld [vmem:[%s4 + $0x164] sm:$0xf]
      %v1945 = vld [vmem:[%s4 + $0x168] sm:$0xf]
      %v1946 = vld [vmem:[%s4 + $0x16c] sm:$0xf]
      %v1947 = vld [vmem:[%s4 + $0x170] sm:$0xf]
      %v1948 = vld [vmem:[%s4 + $0x174] sm:$0xf]
      %v1949 = vld [vmem:[%s4 + $0x178] sm:$0xf]
      %v1950 = vld [vmem:[%s4 + $0x17c] sm:$0xf]
      %v1967 = vunpack.c.l.b16 %v1935
      %v1968 = vunpack.c.l.b16 %v1936
      %v1969 = vunpack.c.l.b16 %v1937
      %v1970 = vunpack.c.l.b16 %v1938
      %v1971 = vunpack.c.l.b16 %v1939
      %v1972 = vunpack.c.l.b16 %v1940
      %v1973 = vunpack.c.l.b16 %v1941
      %v1974 = vunpack.c.l.b16 %v1942
      %v1975 = vunpack.c.l.b16 %v1943
      %v1976 = vunpack.c.l.b16 %v1944
      %v1977 = vunpack.c.l.b16 %v1945
      %v1978 = vunpack.c.l.b16 %v1946
      %v1979 = vunpack.c.l.b16 %v1947
      %v1980 = vunpack.c.l.b16 %v1948
      %v1981 = vunpack.c.l.b16 %v1949
      %v1982 = vunpack.c.l.b16 %v1950
      %v1983 = vpack.c.b16 %v1968, %v1967
      %v1984 = vpack.c.b16 %v1970, %v1969
      %v1985 = vpack.c.b16 %v1972, %v1971
      %v1986 = vpack.c.b16 %v1974, %v1973
      %v1987 = vpack.c.b16 %v1976, %v1975
      %v1988 = vpack.c.b16 %v1978, %v1977
      %v1989 = vpack.c.b16 %v1980, %v1979
      %v1990 = vpack.c.b16 %v1982, %v1981
      %1999 = vmatprep.subr.bf16.mxu0 0
      %2000 = vmatpush1.bf16.msra.mxu0 %v1983
      %2001 = vmatprep.subr.bf16.mxu0 0
      %2002 = vmatpush1.bf16.msra.mxu0 %v1984
      %2003 = vmatprep.subr.bf16.mxu0 0
      %2004 = vmatpush1.bf16.msra.mxu0 %v1985
      %2005 = vmatprep.subr.bf16.mxu0 0
      %2006 = vmatpush1.bf16.msra.mxu0 %v1986
      %2007 = vmatprep.subr.bf16.mxu0 0
      %2008 = vmatpush1.bf16.msra.mxu0 %v1987
      %2009 = vmatprep.subr.bf16.mxu0 0
      %2010 = vmatpush1.bf16.msra.mxu0 %v1988
      %2011 = vmatprep.subr.bf16.mxu0 0
      %2012 = vmatpush1.bf16.msra.mxu0 %v1989
      %2013 = vmatprep.subr.bf16.mxu0 0
      %2014 = vmatpush1.bf16.msra.mxu0 %v1990
      %2015 = vmatprep.subr.bf16.mxu0 0
      %2016 = vmatpush1.bf16.msra.mxu0 0
      %2017 = vmatprep.subr.bf16.mxu0 0
      %2018 = vmatpush1.bf16.msra.mxu0 0
      %2019 = vmatprep.subr.bf16.mxu0 0
      %2020 = vmatpush1.bf16.msra.mxu0 0
      %2021 = vmatprep.subr.bf16.mxu0 0
      %2022 = vmatpush1.bf16.msra.mxu0 0
      %2023 = vmatprep.subr.bf16.mxu0 0
      %2024 = vmatpush1.bf16.msra.mxu0 0
      %2025 = vmatprep.subr.bf16.mxu0 0
      %2026 = vmatpush1.bf16.msra.mxu0 0
      %2027 = vmatprep.subr.bf16.mxu0 0
      %2028 = vmatpush1.bf16.msra.mxu0 0
      %2029 = vmatprep.subr.bf16.mxu0 0
      %2030 = vmatpush1.bf16.msra.mxu0 0
      %2031 = vmatprep.mubr.bf16.mxu0 0
      %2032 = vmatmul.mubr.bf16.gmra.mrb[0].mxu0 %v1128
      %v2033 = vpop.f32.mrb[0].mxu0
      %v2034 = vadd.f32 0.0, %v2033
      %v2035 = vpop.f32.mrb[0].mxu0
      %v2036 = vpop.f32.mrb[0].mxu0
      %v2037 = vadd.f32 0.0, %v2036
      %v2038 = vpop.f32.mrb[0].mxu0
      %2039 = vmatprep.mubr.bf16.mxu0 0
      %2040 = vmatmul.mubr.bf16.gmra.mrb[0].mxu0 %v1129
      %v2041 = vpop.f32.mrb[0].mxu0
      %v2042 = vadd.f32 0.0, %v2041
      %v2043 = vpop.f32.mrb[0].mxu0
      %v2044 = vpop.f32.mrb[0].mxu0
      %v2045 = vadd.f32 0.0, %v2044
      %v2046 = vpop.f32.mrb[0].mxu0
      %2047 = vmatprep.mubr.bf16.mxu0 0
      %2048 = vmatmul.mubr.bf16.gmra.mrb[0].mxu0 %v1130
      %v2049 = vpop.f32.mrb[0].mxu0
      %v2050 = vadd.f32 0.0, %v2049
      %v2051 = vpop.f32.mrb[0].mxu0
      %v2052 = vpop.f32.mrb[0].mxu0
      %v2053 = vadd.f32 0.0, %v2052
      %v2054 = vpop.f32.mrb[0].mxu0
      %2055 = vmatprep.mubr.bf16.mxu0 0
      %2056 = vmatmul.mubr.bf16.gmra.mrb[0].mxu0 %v1131
      %v2057 = vpop.f32.mrb[0].mxu0
      %v2058 = vadd.f32 0.0, %v2057
      %v2059 = vpop.f32.mrb[0].mxu0
      %v2060 = vpop.f32.mrb[0].mxu0
      %v2061 = vadd.f32 0.0, %v2060
      %v2062 = vpop.f32.mrb[0].mxu0
      %2063 = vmatprep.mubr.bf16.mxu0 0
      %2064 = vmatmul.mubr.bf16.gmra.mrb[0].mxu0 %v1132
      %v2065 = vpop.f32.mrb[0].mxu0
      %v2066 = vadd.f32 0.0, %v2065
      %v2067 = vpop.f32.mrb[0].mxu0
      %v2068 = vpop.f32.mrb[0].mxu0
      %v2069 = vadd.f32 0.0, %v2068
      %v2070 = vpop.f32.mrb[0].mxu0
      %2071 = vmatprep.mubr.bf16.mxu0 0
      %2072 = vmatmul.mubr.bf16.gmra.mrb[0].mxu0 %v1133
      %v2073 = vpop.f32.mrb[0].mxu0
      %v2074 = vadd.f32 0.0, %v2073
      %v2075 = vpop.f32.mrb[0].mxu0
      %v2076 = vpop.f32.mrb[0].mxu0
      %v2077 = vadd.f32 0.0, %v2076
      %v2078 = vpop.f32.mrb[0].mxu0
      %2079 = vmatprep.mubr.bf16.mxu0 0
      %2080 = vmatmul.mubr.bf16.gmra.mrb[0].mxu0 %v1134
      %v2081 = vpop.f32.mrb[0].mxu0
      %v2082 = vadd.f32 0.0, %v2081
      %v2083 = vpop.f32.mrb[0].mxu0
      %v2084 = vpop.f32.mrb[0].mxu0
      %v2085 = vadd.f32 0.0, %v2084
      %v2086 = vpop.f32.mrb[0].mxu0
      %2087 = vmatprep.mubr.bf16.mxu0 0
      %2088 = vmatmul.mubr.bf16.gmra.mrb[0].mxu0 %v1135
      %v2089 = vpop.f32.mrb[0].mxu0
      %v2090 = vadd.f32 0.0, %v2089
      %v2091 = vpop.f32.mrb[0].mxu0
      %v2092 = vpop.f32.mrb[0].mxu0
      %v2093 = vadd.f32 0.0, %v2092
      %v2094 = vpop.f32.mrb[0].mxu0
      %2095 = vmatprep.mubr.bf16.mxu0 0
      %2096 = vmatmul.mubr.bf16.gmra.mrb[0].mxu0 %v1136
      %v2097 = vpop.f32.mrb[0].mxu0
      %v2098 = vadd.f32 0.0, %v2097
      %v2099 = vpop.f32.mrb[0].mxu0
      %v2100 = vpop.f32.mrb[0].mxu0
      %v2101 = vadd.f32 0.0, %v2100
      %v2102 = vpop.f32.mrb[0].mxu0
      %2103 = vmatprep.mubr.bf16.mxu0 0
      %2104 = vmatmul.mubr.bf16.gmra.mrb[0].mxu0 %v1137
      %v2105 = vpop.f32.mrb[0].mxu0
      %v2106 = vadd.f32 0.0, %v2105
      %v2107 = vpop.f32.mrb[0].mxu0
      %v2108 = vpop.f32.mrb[0].mxu0
      %v2109 = vadd.f32 0.0, %v2108
      %v2110 = vpop.f32.mrb[0].mxu0
      %2111 = vmatprep.mubr.bf16.mxu0 0
      %2112 = vmatmul.mubr.bf16.gmra.mrb[0].mxu0 %v1138
      %v2113 = vpop.f32.mrb[0].mxu0
      %v2114 = vadd.f32 0.0, %v2113
      %v2115 = vpop.f32.mrb[0].mxu0
      %v2116 = vpop.f32.mrb[0].mxu0
      %v2117 = vadd.f32 0.0, %v2116
      %v2118 = vpop.f32.mrb[0].mxu0
      %2119 = vmatprep.mubr.bf16.mxu0 0
      %2120 = vmatmul.mubr.bf16.gmra.mrb[0].mxu0 %v1139
      %v2121 = vpop.f32.mrb[0].mxu0
      %v2122 = vadd.f32 0.0, %v2121
      %v2123 = vpop.f32.mrb[0].mxu0
      %v2124 = vpop.f32.mrb[0].mxu0
      %v2125 = vadd.f32 0.0, %v2124
      %v2126 = vpop.f32.mrb[0].mxu0
      %2127 = vmatprep.mubr.bf16.mxu0 0
      %2128 = vmatmul.mubr.bf16.gmra.mrb[0].mxu0 %v1140
      %v2129 = vpop.f32.mrb[0].mxu0
      %v2130 = vadd.f32 0.0, %v2129
      %v2131 = vpop.f32.mrb[0].mxu0
      %v2132 = vpop.f32.mrb[0].mxu0
      %v2133 = vadd.f32 0.0, %v2132
      %v2134 = vpop.f32.mrb[0].mxu0
      %2135 = vmatprep.mubr.bf16.mxu0 0
      %2136 = vmatmul.mubr.bf16.gmra.mrb[0].mxu0 %v1141
      %v2137 = vpop.f32.mrb[0].mxu0
      %v2138 = vadd.f32 0.0, %v2137
      %v2139 = vpop.f32.mrb[0].mxu0
      %v2140 = vpop.f32.mrb[0].mxu0
      %v2141 = vadd.f32 0.0, %v2140
      %v2142 = vpop.f32.mrb[0].mxu0
      %2143 = vmatprep.mubr.bf16.mxu0 0
      %2144 = vmatmul.mubr.bf16.gmra.mrb[0].mxu0 %v1933
      %v2145 = vpop.f32.mrb[0].mxu0
      %v2146 = vadd.f32 0.0, %v2145
      %v2147 = vpop.f32.mrb[0].mxu0
      %v2148 = vpop.f32.mrb[0].mxu0
      %v2149 = vadd.f32 0.0, %v2148
      %v2150 = vpop.f32.mrb[0].mxu0
      %2151 = vmatprep.mubr.bf16.mxu0 0
      %2152 = vmatmul.mubr.bf16.gmra.mrb[0].mxu0 %v1934
      %v2153 = vpop.f32.mrb[0].mxu0
      %v2154 = vadd.f32 0.0, %v2153
      %v2155 = vpop.f32.mrb[0].mxu0
      %v2156 = vpop.f32.mrb[0].mxu0
      %v2157 = vadd.f32 0.0, %v2156
      %v2158 = vpop.f32.mrb[0].mxu0
      %2159 = vdwg.mxu0
      %v2160 = vadd.f32 %v1893, %v2034
      %v2161 = vadd.f32 %v1894, %v2037
      %v2162 = vadd.f32 %v1895, %v2042
      %v2163 = vadd.f32 %v1896, %v2045
      %v2164 = vadd.f32 %v1897, %v2050
      %v2165 = vadd.f32 %v1898, %v2053
      %v2166 = vadd.f32 %v1899, %v2058
      %v2167 = vadd.f32 %v1900, %v2061
      %v2168 = vadd.f32 %v1901, %v2066
      %v2169 = vadd.f32 %v1902, %v2069
      %v2170 = vadd.f32 %v1903, %v2074
      %v2171 = vadd.f32 %v1904, %v2077
      %v2172 = vadd.f32 %v1905, %v2082
      %v2173 = vadd.f32 %v1906, %v2085
      %v2174 = vadd.f32 %v1907, %v2090
      %v2175 = vadd.f32 %v1908, %v2093
      %v2176 = vadd.f32 %v1909, %v2098
      %v2177 = vadd.f32 %v1910, %v2101
      %v2178 = vadd.f32 %v1911, %v2106
      %v2179 = vadd.f32 %v1912, %v2109
      %v2180 = vadd.f32 %v1913, %v2114
      %v2181 = vadd.f32 %v1914, %v2117
      %v2182 = vadd.f32 %v1915, %v2122
      %v2183 = vadd.f32 %v1916, %v2125
      %v2184 = vadd.f32 %v1917, %v2130
      %v2185 = vadd.f32 %v1918, %v2133
      %v2186 = vadd.f32 %v1919, %v2138
      %v2187 = vadd.f32 %v1920, %v2141
      %v2188 = vadd.f32 %v1921, %v2146
      %v2189 = vadd.f32 %v1922, %v2149
      %v2190 = vadd.f32 %v1923, %v2154
      %v2191 = vadd.f32 %v1924, %v2157
      %v2192 = vsel %vm487, %v1401, 0.0
      %v2193 = vsel %vm487, 0.0, %v459
      %v2194 = vsel %vm453, %v2193, 0.0
      %v2195 = vsel %vm453, %v2192, 0.0
      %v2196 = vpack.c.bf16 %v524, %v2194
      %v2197 = vpack.c.bf16 %v520, %v2195
      %v2198 = vld [vmem:[%s4 + $0x180] sm:$0xf]
      %v2199 = vld [vmem:[%s4 + $0x184] sm:$0xf]
      %v2200 = vld [vmem:[%s4 + $0x188] sm:$0xf]
      %v2201 = vld [vmem:[%s4 + $0x18c] sm:$0xf]
      %v2202 = vld [vmem:[%s4 + $0x190] sm:$0xf]
      %v2203 = vld [vmem:[%s4 + $0x194] sm:$0xf]
      %v2204 = vld [vmem:[%s4 + $0x198] sm:$0xf]
      %v2205 = vld [vmem:[%s4 + $0x19c] sm:$0xf]
      %v2206 = vld [vmem:[%s4 + $0x1a0] sm:$0xf]
      %v2207 = vld [vmem:[%s4 + $0x1a4] sm:$0xf]
      %v2208 = vld [vmem:[%s4 + $0x1a8] sm:$0xf]
      %v2209 = vld [vmem:[%s4 + $0x1ac] sm:$0xf]
      %v2210 = vld [vmem:[%s4 + $0x1b0] sm:$0xf]
      %v2211 = vld [vmem:[%s4 + $0x1b4] sm:$0xf]
      %v2212 = vld [vmem:[%s4 + $0x1b8] sm:$0xf]
      %v2213 = vld [vmem:[%s4 + $0x1bc] sm:$0xf]
      %v2230 = vunpack.c.l.b16 %v2198
      %v2231 = vunpack.c.l.b16 %v2199
      %v2232 = vunpack.c.l.b16 %v2200
      %v2233 = vunpack.c.l.b16 %v2201
      %v2234 = vunpack.c.l.b16 %v2202
      %v2235 = vunpack.c.l.b16 %v2203
      %v2236 = vunpack.c.l.b16 %v2204
      %v2237 = vunpack.c.l.b16 %v2205
      %v2238 = vunpack.c.l.b16 %v2206
      %v2239 = vunpack.c.l.b16 %v2207
      %v2240 = vunpack.c.l.b16 %v2208
      %v2241 = vunpack.c.l.b16 %v2209
      %v2242 = vunpack.c.l.b16 %v2210
      %v2243 = vunpack.c.l.b16 %v2211
      %v2244 = vunpack.c.l.b16 %v2212
      %v2245 = vunpack.c.l.b16 %v2213
      %v2246 = vpack.c.b16 %v2231, %v2230
      %v2247 = vpack.c.b16 %v2233, %v2232
      %v2248 = vpack.c.b16 %v2235, %v2234
      %v2249 = vpack.c.b16 %v2237, %v2236
      %v2250 = vpack.c.b16 %v2239, %v2238
      %v2251 = vpack.c.b16 %v2241, %v2240
      %v2252 = vpack.c.b16 %v2243, %v2242
      %v2253 = vpack.c.b16 %v2245, %v2244
      %2262 = vmatprep.subr.bf16.mxu0 0
      %2263 = vmatpush1.bf16.msra.mxu0 %v2246
      %2264 = vmatprep.subr.bf16.mxu0 0
      %2265 = vmatpush1.bf16.msra.mxu0 %v2247
      %2266 = vmatprep.subr.bf16.mxu0 0
      %2267 = vmatpush1.bf16.msra.mxu0 %v2248
      %2268 = vmatprep.subr.bf16.mxu0 0
      %2269 = vmatpush1.bf16.msra.mxu0 %v2249
      %2270 = vmatprep.subr.bf16.mxu0 0
      %2271 = vmatpush1.bf16.msra.mxu0 %v2250
      %2272 = vmatprep.subr.bf16.mxu0 0
      %2273 = vmatpush1.bf16.msra.mxu0 %v2251
      %2274 = vmatprep.subr.bf16.mxu0 0
      %2275 = vmatpush1.bf16.msra.mxu0 %v2252
      %2276 = vmatprep.subr.bf16.mxu0 0
      %2277 = vmatpush1.bf16.msra.mxu0 %v2253
      %2278 = vmatprep.subr.bf16.mxu0 0
      %2279 = vmatpush1.bf16.msra.mxu0 0
      %2280 = vmatprep.subr.bf16.mxu0 0
      %2281 = vmatpush1.bf16.msra.mxu0 0
      %2282 = vmatprep.subr.bf16.mxu0 0
      %2283 = vmatpush1.bf16.msra.mxu0 0
      %2284 = vmatprep.subr.bf16.mxu0 0
      %2285 = vmatpush1.bf16.msra.mxu0 0
      %2286 = vmatprep.subr.bf16.mxu0 0
      %2287 = vmatpush1.bf16.msra.mxu0 0
      %2288 = vmatprep.subr.bf16.mxu0 0
      %2289 = vmatpush1.bf16.msra.mxu0 0
      %2290 = vmatprep.subr.bf16.mxu0 0
      %2291 = vmatpush1.bf16.msra.mxu0 0
      %2292 = vmatprep.subr.bf16.mxu0 0
      %2293 = vmatpush1.bf16.msra.mxu0 0
      %2294 = vmatprep.mubr.bf16.mxu0 0
      %2295 = vmatmul.mubr.bf16.gmra.mrb[0].mxu0 %v2196
      %v2296 = vpop.f32.mrb[0].mxu0
      %v2297 = vadd.f32 0.0, %v2296
      %v2298 = vpop.f32.mrb[0].mxu0
      %v2299 = vpop.f32.mrb[0].mxu0
      %v2300 = vadd.f32 0.0, %v2299
      %v2301 = vpop.f32.mrb[0].mxu0
      %2302 = vmatprep.mubr.bf16.mxu0 0
      %2303 = vmatmul.mubr.bf16.gmra.mrb[0].mxu0 %v554
      %v2304 = vpop.f32.mrb[0].mxu0
      %v2305 = vadd.f32 0.0, %v2304
      %v2306 = vpop.f32.mrb[0].mxu0
      %v2307 = vpop.f32.mrb[0].mxu0
      %v2308 = vadd.f32 0.0, %v2307
      %v2309 = vpop.f32.mrb[0].mxu0
      %2310 = vmatprep.mubr.bf16.mxu0 0
      %2311 = vmatmul.mubr.bf16.gmra.mrb[0].mxu0 %v555
      %v2312 = vpop.f32.mrb[0].mxu0
      %v2313 = vadd.f32 0.0, %v2312
      %v2314 = vpop.f32.mrb[0].mxu0
      %v2315 = vpop.f32.mrb[0].mxu0
      %v2316 = vadd.f32 0.0, %v2315
      %v2317 = vpop.f32.mrb[0].mxu0
      %2318 = vmatprep.mubr.bf16.mxu0 0
      %2319 = vmatmul.mubr.bf16.gmra.mrb[0].mxu0 %v556
      %v2320 = vpop.f32.mrb[0].mxu0
      %v2321 = vadd.f32 0.0, %v2320
      %v2322 = vpop.f32.mrb[0].mxu0
      %v2323 = vpop.f32.mrb[0].mxu0
      %v2324 = vadd.f32 0.0, %v2323
      %v2325 = vpop.f32.mrb[0].mxu0
      %2326 = vmatprep.mubr.bf16.mxu0 0
      %2327 = vmatmul.mubr.bf16.gmra.mrb[0].mxu0 %v557
      %v2328 = vpop.f32.mrb[0].mxu0
      %v2329 = vadd.f32 0.0, %v2328
      %v2330 = vpop.f32.mrb[0].mxu0
      %v2331 = vpop.f32.mrb[0].mxu0
      %v2332 = vadd.f32 0.0, %v2331
      %v2333 = vpop.f32.mrb[0].mxu0
      %2334 = vmatprep.mubr.bf16.mxu0 0
      %2335 = vmatmul.mubr.bf16.gmra.mrb[0].mxu0 %v558
      %v2336 = vpop.f32.mrb[0].mxu0
      %v2337 = vadd.f32 0.0, %v2336
      %v2338 = vpop.f32.mrb[0].mxu0
      %v2339 = vpop.f32.mrb[0].mxu0
      %v2340 = vadd.f32 0.0, %v2339
      %v2341 = vpop.f32.mrb[0].mxu0
      %2342 = vmatprep.mubr.bf16.mxu0 0
      %2343 = vmatmul.mubr.bf16.gmra.mrb[0].mxu0 %v559
      %v2344 = vpop.f32.mrb[0].mxu0
      %v2345 = vadd.f32 0.0, %v2344
      %v2346 = vpop.f32.mrb[0].mxu0
      %v2347 = vpop.f32.mrb[0].mxu0
      %v2348 = vadd.f32 0.0, %v2347
      %v2349 = vpop.f32.mrb[0].mxu0
      %2350 = vmatprep.mubr.bf16.mxu0 0
      %2351 = vmatmul.mubr.bf16.gmra.mrb[0].mxu0 %v560
      %v2352 = vpop.f32.mrb[0].mxu0
      %v2353 = vadd.f32 0.0, %v2352
      %v2354 = vpop.f32.mrb[0].mxu0
      %v2355 = vpop.f32.mrb[0].mxu0
      %v2356 = vadd.f32 0.0, %v2355
      %v2357 = vpop.f32.mrb[0].mxu0
      %2358 = vmatprep.mubr.bf16.mxu0 0
      %2359 = vmatmul.mubr.bf16.gmra.mrb[0].mxu0 %v561
      %v2360 = vpop.f32.mrb[0].mxu0
      %v2361 = vadd.f32 0.0, %v2360
      %v2362 = vpop.f32.mrb[0].mxu0
      %v2363 = vpop.f32.mrb[0].mxu0
      %v2364 = vadd.f32 0.0, %v2363
      %v2365 = vpop.f32.mrb[0].mxu0
      %2366 = vmatprep.mubr.bf16.mxu0 0
      %2367 = vmatmul.mubr.bf16.gmra.mrb[0].mxu0 %v562
      %v2368 = vpop.f32.mrb[0].mxu0
      %v2369 = vadd.f32 0.0, %v2368
      %v2370 = vpop.f32.mrb[0].mxu0
      %v2371 = vpop.f32.mrb[0].mxu0
      %v2372 = vadd.f32 0.0, %v2371
      %v2373 = vpop.f32.mrb[0].mxu0
      %2374 = vmatprep.mubr.bf16.mxu0 0
      %2375 = vmatmul.mubr.bf16.gmra.mrb[0].mxu0 %v563
      %v2376 = vpop.f32.mrb[0].mxu0
      %v2377 = vadd.f32 0.0, %v2376
      %v2378 = vpop.f32.mrb[0].mxu0
      %v2379 = vpop.f32.mrb[0].mxu0
      %v2380 = vadd.f32 0.0, %v2379
      %v2381 = vpop.f32.mrb[0].mxu0
      %2382 = vmatprep.mubr.bf16.mxu0 0
      %2383 = vmatmul.mubr.bf16.gmra.mrb[0].mxu0 %v564
      %v2384 = vpop.f32.mrb[0].mxu0
      %v2385 = vadd.f32 0.0, %v2384
      %v2386 = vpop.f32.mrb[0].mxu0
      %v2387 = vpop.f32.mrb[0].mxu0
      %v2388 = vadd.f32 0.0, %v2387
      %v2389 = vpop.f32.mrb[0].mxu0
      %2390 = vmatprep.mubr.bf16.mxu0 0
      %2391 = vmatmul.mubr.bf16.gmra.mrb[0].mxu0 %v565
      %v2392 = vpop.f32.mrb[0].mxu0
      %v2393 = vadd.f32 0.0, %v2392
      %v2394 = vpop.f32.mrb[0].mxu0
      %v2395 = vpop.f32.mrb[0].mxu0
      %v2396 = vadd.f32 0.0, %v2395
      %v2397 = vpop.f32.mrb[0].mxu0
      %2398 = vmatprep.mubr.bf16.mxu0 0
      %2399 = vmatmul.mubr.bf16.gmra.mrb[0].mxu0 %v566
      %v2400 = vpop.f32.mrb[0].mxu0
      %v2401 = vadd.f32 0.0, %v2400
      %v2402 = vpop.f32.mrb[0].mxu0
      %v2403 = vpop.f32.mrb[0].mxu0
      %v2404 = vadd.f32 0.0, %v2403
      %v2405 = vpop.f32.mrb[0].mxu0
      %2406 = vmatprep.mubr.bf16.mxu0 0
      %2407 = vmatmul.mubr.bf16.gmra.mrb[0].mxu0 %v1409
      %v2408 = vpop.f32.mrb[0].mxu0
      %v2409 = vadd.f32 0.0, %v2408
      %v2410 = vpop.f32.mrb[0].mxu0
      %v2411 = vpop.f32.mrb[0].mxu0
      %v2412 = vadd.f32 0.0, %v2411
      %v2413 = vpop.f32.mrb[0].mxu0
      %2414 = vmatprep.mubr.bf16.mxu0 0
      %2415 = vmatmul.mubr.bf16.gmra.mrb[0].mxu0 %v2197
      %v2416 = vpop.f32.mrb[0].mxu0
      %v2417 = vadd.f32 0.0, %v2416
      %v2418 = vpop.f32.mrb[0].mxu0
      %v2419 = vpop.f32.mrb[0].mxu0
      %v2420 = vadd.f32 0.0, %v2419
      %v2421 = vpop.f32.mrb[0].mxu0
      %2422 = vdwg.mxu0
      %v2423 = vadd.f32 %v2160, %v2297
      %v2424 = vadd.f32 %v2161, %v2300
      %v2425 = vadd.f32 %v2162, %v2305
      %v2426 = vadd.f32 %v2163, %v2308
      %v2427 = vadd.f32 %v2164, %v2313
      %v2428 = vadd.f32 %v2165, %v2316
      %v2429 = vadd.f32 %v2166, %v2321
      %v2430 = vadd.f32 %v2167, %v2324
      %v2431 = vadd.f32 %v2168, %v2329
      %v2432 = vadd.f32 %v2169, %v2332
      %v2433 = vadd.f32 %v2170, %v2337
      %v2434 = vadd.f32 %v2171, %v2340
      %v2435 = vadd.f32 %v2172, %v2345
      %v2436 = vadd.f32 %v2173, %v2348
      %v2437 = vadd.f32 %v2174, %v2353
      %v2438 = vadd.f32 %v2175, %v2356
      %v2439 = vadd.f32 %v2176, %v2361
      %v2440 = vadd.f32 %v2177, %v2364
      %v2441 = vadd.f32 %v2178, %v2369
      %v2442 = vadd.f32 %v2179, %v2372
      %v2443 = vadd.f32 %v2180, %v2377
      %v2444 = vadd.f32 %v2181, %v2380
      %v2445 = vadd.f32 %v2182, %v2385
      %v2446 = vadd.f32 %v2183, %v2388
      %v2447 = vadd.f32 %v2184, %v2393
      %v2448 = vadd.f32 %v2185, %v2396
      %v2449 = vadd.f32 %v2186, %v2401
      %v2450 = vadd.f32 %v2187, %v2404
      %v2451 = vadd.f32 %v2188, %v2409
      %v2452 = vadd.f32 %v2189, %v2412
      %v2453 = vadd.f32 %v2190, %v2417
      %v2454 = vadd.f32 %v2191, %v2420
      %v2455 = vld [vmem:[%s4 + $0x1c0] sm:$0xf]
      %v2456 = vld [vmem:[%s4 + $0x1c4] sm:$0xf]
      %v2457 = vld [vmem:[%s4 + $0x1c8] sm:$0xf]
      %v2458 = vld [vmem:[%s4 + $0x1cc] sm:$0xf]
      %v2459 = vld [vmem:[%s4 + $0x1d0] sm:$0xf]
      %v2460 = vld [vmem:[%s4 + $0x1d4] sm:$0xf]
      %v2461 = vld [vmem:[%s4 + $0x1d8] sm:$0xf]
      %v2462 = vld [vmem:[%s4 + $0x1dc] sm:$0xf]
      %v2463 = vld [vmem:[%s4 + $0x1e0] sm:$0xf]
      %v2464 = vld [vmem:[%s4 + $0x1e4] sm:$0xf]
      %v2465 = vld [vmem:[%s4 + $0x1e8] sm:$0xf]
      %v2466 = vld [vmem:[%s4 + $0x1ec] sm:$0xf]
      %v2467 = vld [vmem:[%s4 + $0x1f0] sm:$0xf]
      %v2468 = vld [vmem:[%s4 + $0x1f4] sm:$0xf]
      %v2469 = vld [vmem:[%s4 + $0x1f8] sm:$0xf]
      %v2470 = vld [vmem:[%s4 + $0x1fc] sm:$0xf]
      %v2487 = vunpack.c.l.b16 %v2455
      %v2488 = vunpack.c.l.b16 %v2456
      %v2489 = vunpack.c.l.b16 %v2457
      %v2490 = vunpack.c.l.b16 %v2458
      %v2491 = vunpack.c.l.b16 %v2459
      %v2492 = vunpack.c.l.b16 %v2460
      %v2493 = vunpack.c.l.b16 %v2461
      %v2494 = vunpack.c.l.b16 %v2462
      %v2495 = vunpack.c.l.b16 %v2463
      %v2496 = vunpack.c.l.b16 %v2464
      %v2497 = vunpack.c.l.b16 %v2465
      %v2498 = vunpack.c.l.b16 %v2466
      %v2499 = vunpack.c.l.b16 %v2467
      %v2500 = vunpack.c.l.b16 %v2468
      %v2501 = vunpack.c.l.b16 %v2469
      %v2502 = vunpack.c.l.b16 %v2470
      %v2503 = vpack.c.b16 %v2488, %v2487
      %v2504 = vpack.c.b16 %v2490, %v2489
      %v2505 = vpack.c.b16 %v2492, %v2491
      %v2506 = vpack.c.b16 %v2494, %v2493
      %v2507 = vpack.c.b16 %v2496, %v2495
      %v2508 = vpack.c.b16 %v2498, %v2497
      %v2509 = vpack.c.b16 %v2500, %v2499
      %v2510 = vpack.c.b16 %v2502, %v2501
      %2519 = vmatprep.subr.bf16.mxu0 0
      %2520 = vmatpush1.bf16.msra.mxu0 %v2503
      %2521 = vmatprep.subr.bf16.mxu0 0
      %2522 = vmatpush1.bf16.msra.mxu0 %v2504
      %2523 = vmatprep.subr.bf16.mxu0 0
      %2524 = vmatpush1.bf16.msra.mxu0 %v2505
      %2525 = vmatprep.subr.bf16.mxu0 0
      %2526 = vmatpush1.bf16.msra.mxu0 %v2506
      %2527 = vmatprep.subr.bf16.mxu0 0
      %2528 = vmatpush1.bf16.msra.mxu0 %v2507
      %2529 = vmatprep.subr.bf16.mxu0 0
      %2530 = vmatpush1.bf16.msra.mxu0 %v2508
      %2531 = vmatprep.subr.bf16.mxu0 0
      %2532 = vmatpush1.bf16.msra.mxu0 %v2509
      %2533 = vmatprep.subr.bf16.mxu0 0
      %2534 = vmatpush1.bf16.msra.mxu0 %v2510
      %2535 = vmatprep.subr.bf16.mxu0 0
      %2536 = vmatpush1.bf16.msra.mxu0 0
      %2537 = vmatprep.subr.bf16.mxu0 0
      %2538 = vmatpush1.bf16.msra.mxu0 0
      %2539 = vmatprep.subr.bf16.mxu0 0
      %2540 = vmatpush1.bf16.msra.mxu0 0
      %2541 = vmatprep.subr.bf16.mxu0 0
      %2542 = vmatpush1.bf16.msra.mxu0 0
      %2543 = vmatprep.subr.bf16.mxu0 0
      %2544 = vmatpush1.bf16.msra.mxu0 0
      %2545 = vmatprep.subr.bf16.mxu0 0
      %2546 = vmatpush1.bf16.msra.mxu0 0
      %2547 = vmatprep.subr.bf16.mxu0 0
      %2548 = vmatpush1.bf16.msra.mxu0 0
      %2549 = vmatprep.subr.bf16.mxu0 0
      %2550 = vmatpush1.bf16.msra.mxu0 0
      %2551 = vmatprep.mubr.bf16.mxu0 0
      %2552 = vmatmul.mubr.bf16.gmra.mrb[0].mxu0 %v585
      %v2553 = vpop.f32.mrb[0].mxu0
      %v2554 = vadd.f32 0.0, %v2553
      %v2555 = vpop.f32.mrb[0].mxu0
      %v2556 = vpop.f32.mrb[0].mxu0
      %v2557 = vadd.f32 0.0, %v2556
      %v2558 = vpop.f32.mrb[0].mxu0
      %2559 = vmatprep.mubr.bf16.mxu0 0
      %2560 = vmatmul.mubr.bf16.gmra.mrb[0].mxu0 %v586
      %v2561 = vpop.f32.mrb[0].mxu0
      %v2562 = vadd.f32 0.0, %v2561
      %v2563 = vpop.f32.mrb[0].mxu0
      %v2564 = vpop.f32.mrb[0].mxu0
      %v2565 = vadd.f32 0.0, %v2564
      %v2566 = vpop.f32.mrb[0].mxu0
      %2567 = vmatprep.mubr.bf16.mxu0 0
      %2568 = vmatmul.mubr.bf16.gmra.mrb[0].mxu0 %v587
      %v2569 = vpop.f32.mrb[0].mxu0
      %v2570 = vadd.f32 0.0, %v2569
      %v2571 = vpop.f32.mrb[0].mxu0
      %v2572 = vpop.f32.mrb[0].mxu0
      %v2573 = vadd.f32 0.0, %v2572
      %v2574 = vpop.f32.mrb[0].mxu0
      %2575 = vmatprep.mubr.bf16.mxu0 0
      %2576 = vmatmul.mubr.bf16.gmra.mrb[0].mxu0 %v588
      %v2577 = vpop.f32.mrb[0].mxu0
      %v2578 = vadd.f32 0.0, %v2577
      %v2579 = vpop.f32.mrb[0].mxu0
      %v2580 = vpop.f32.mrb[0].mxu0
      %v2581 = vadd.f32 0.0, %v2580
      %v2582 = vpop.f32.mrb[0].mxu0
      %2583 = vmatprep.mubr.bf16.mxu0 0
      %2584 = vmatmul.mubr.bf16.gmra.mrb[0].mxu0 %v589
      %v2585 = vpop.f32.mrb[0].mxu0
      %v2586 = vadd.f32 0.0, %v2585
      %v2587 = vpop.f32.mrb[0].mxu0
      %v2588 = vpop.f32.mrb[0].mxu0
      %v2589 = vadd.f32 0.0, %v2588
      %v2590 = vpop.f32.mrb[0].mxu0
      %2591 = vmatprep.mubr.bf16.mxu0 0
      %2592 = vmatmul.mubr.bf16.gmra.mrb[0].mxu0 %v590
      %v2593 = vpop.f32.mrb[0].mxu0
      %v2594 = vadd.f32 0.0, %v2593
      %v2595 = vpop.f32.mrb[0].mxu0
      %v2596 = vpop.f32.mrb[0].mxu0
      %v2597 = vadd.f32 0.0, %v2596
      %v2598 = vpop.f32.mrb[0].mxu0
      %2599 = vmatprep.mubr.bf16.mxu0 0
      %2600 = vmatmul.mubr.bf16.gmra.mrb[0].mxu0 %v591
      %v2601 = vpop.f32.mrb[0].mxu0
      %v2602 = vadd.f32 0.0, %v2601
      %v2603 = vpop.f32.mrb[0].mxu0
      %v2604 = vpop.f32.mrb[0].mxu0
      %v2605 = vadd.f32 0.0, %v2604
      %v2606 = vpop.f32.mrb[0].mxu0
      %2607 = vmatprep.mubr.bf16.mxu0 0
      %2608 = vmatmul.mubr.bf16.gmra.mrb[0].mxu0 %v592
      %v2609 = vpop.f32.mrb[0].mxu0
      %v2610 = vadd.f32 0.0, %v2609
      %v2611 = vpop.f32.mrb[0].mxu0
      %v2612 = vpop.f32.mrb[0].mxu0
      %v2613 = vadd.f32 0.0, %v2612
      %v2614 = vpop.f32.mrb[0].mxu0
      %2615 = vmatprep.mubr.bf16.mxu0 0
      %2616 = vmatmul.mubr.bf16.gmra.mrb[0].mxu0 %v593
      %v2617 = vpop.f32.mrb[0].mxu0
      %v2618 = vadd.f32 0.0, %v2617
      %v2619 = vpop.f32.mrb[0].mxu0
      %v2620 = vpop.f32.mrb[0].mxu0
      %v2621 = vadd.f32 0.0, %v2620
      %v2622 = vpop.f32.mrb[0].mxu0
      %2623 = vmatprep.mubr.bf16.mxu0 0
      %2624 = vmatmul.mubr.bf16.gmra.mrb[0].mxu0 %v594
      %v2625 = vpop.f32.mrb[0].mxu0
      %v2626 = vadd.f32 0.0, %v2625
      %v2627 = vpop.f32.mrb[0].mxu0
      %v2628 = vpop.f32.mrb[0].mxu0
      %v2629 = vadd.f32 0.0, %v2628
      %v2630 = vpop.f32.mrb[0].mxu0
      %2631 = vmatprep.mubr.bf16.mxu0 0
      %2632 = vmatmul.mubr.bf16.gmra.mrb[0].mxu0 %v595
      %v2633 = vpop.f32.mrb[0].mxu0
      %v2634 = vadd.f32 0.0, %v2633
      %v2635 = vpop.f32.mrb[0].mxu0
      %v2636 = vpop.f32.mrb[0].mxu0
      %v2637 = vadd.f32 0.0, %v2636
      %v2638 = vpop.f32.mrb[0].mxu0
      %2639 = vmatprep.mubr.bf16.mxu0 0
      %2640 = vmatmul.mubr.bf16.gmra.mrb[0].mxu0 %v596
      %v2641 = vpop.f32.mrb[0].mxu0
      %v2642 = vadd.f32 0.0, %v2641
      %v2643 = vpop.f32.mrb[0].mxu0
      %v2644 = vpop.f32.mrb[0].mxu0
      %v2645 = vadd.f32 0.0, %v2644
      %v2646 = vpop.f32.mrb[0].mxu0
      %2647 = vmatprep.mubr.bf16.mxu0 0
      %2648 = vmatmul.mubr.bf16.gmra.mrb[0].mxu0 %v597
      %v2649 = vpop.f32.mrb[0].mxu0
      %v2650 = vadd.f32 0.0, %v2649
      %v2651 = vpop.f32.mrb[0].mxu0
      %v2652 = vpop.f32.mrb[0].mxu0
      %v2653 = vadd.f32 0.0, %v2652
      %v2654 = vpop.f32.mrb[0].mxu0
      %2655 = vmatprep.mubr.bf16.mxu0 0
      %2656 = vmatmul.mubr.bf16.gmra.mrb[0].mxu0 %v598
      %v2657 = vpop.f32.mrb[0].mxu0
      %v2658 = vadd.f32 0.0, %v2657
      %v2659 = vpop.f32.mrb[0].mxu0
      %v2660 = vpop.f32.mrb[0].mxu0
      %v2661 = vadd.f32 0.0, %v2660
      %v2662 = vpop.f32.mrb[0].mxu0
      %2663 = vmatprep.mubr.bf16.mxu0 0
      %2664 = vmatmul.mubr.bf16.gmra.mrb[0].mxu0 %v1667
      %v2665 = vpop.f32.mrb[0].mxu0
      %v2666 = vadd.f32 0.0, %v2665
      %v2667 = vpop.f32.mrb[0].mxu0
      %v2668 = vpop.f32.mrb[0].mxu0
      %v2669 = vadd.f32 0.0, %v2668
      %v2670 = vpop.f32.mrb[0].mxu0
      %2671 = vmatprep.mubr.bf16.mxu0 0
      %2672 = vmatmul.mubr.bf16.gmra.mrb[0].mxu0 %v583
      %v2673 = vpop.f32.mrb[0].mxu0
      %v2674 = vadd.f32 0.0, %v2673
      %v2675 = vpop.f32.mrb[0].mxu0
      %v2676 = vpop.f32.mrb[0].mxu0
      %v2677 = vadd.f32 0.0, %v2676
      %v2678 = vpop.f32.mrb[0].mxu0
      %2679 = vdwg.mxu0
      %v2680 = vadd.f32 %v2423, %v2554
      %v2681 = vadd.f32 %v2424, %v2557
      %v2682 = vadd.f32 %v2425, %v2562
      %v2683 = vadd.f32 %v2426, %v2565
      %v2684 = vadd.f32 %v2427, %v2570
      %v2685 = vadd.f32 %v2428, %v2573
      %v2686 = vadd.f32 %v2429, %v2578
      %v2687 = vadd.f32 %v2430, %v2581
      %v2688 = vadd.f32 %v2431, %v2586
      %v2689 = vadd.f32 %v2432, %v2589
      %v2690 = vadd.f32 %v2433, %v2594
      %v2691 = vadd.f32 %v2434, %v2597
      %v2692 = vadd.f32 %v2435, %v2602
      %v2693 = vadd.f32 %v2436, %v2605
      %v2694 = vadd.f32 %v2437, %v2610
      %v2695 = vadd.f32 %v2438, %v2613
      %v2696 = vadd.f32 %v2439, %v2618
      %v2697 = vadd.f32 %v2440, %v2621
      %v2698 = vadd.f32 %v2441, %v2626
      %v2699 = vadd.f32 %v2442, %v2629
      %v2700 = vadd.f32 %v2443, %v2634
      %v2701 = vadd.f32 %v2444, %v2637
      %v2702 = vadd.f32 %v2445, %v2642
      %v2703 = vadd.f32 %v2446, %v2645
      %v2704 = vadd.f32 %v2447, %v2650
      %v2705 = vadd.f32 %v2448, %v2653
      %v2706 = vadd.f32 %v2449, %v2658
      %v2707 = vadd.f32 %v2450, %v2661
      %v2708 = vadd.f32 %v2451, %v2666
      %v2709 = vadd.f32 %v2452, %v2669
      %v2710 = vadd.f32 %v2453, %v2674
      %v2711 = vadd.f32 %v2454, %v2677
      %v2712 = vsel %vm1063, %v1926, 0.0
      %v2713 = vsel %vm1063, 0.0, %v1035
      %v2714 = vsel %vm456, %v2712, 0.0
      %v2715 = vsel %vm456, %v2713, 0.0
      %v2716 = vpack.c.bf16 %v2714, %v1931
      %v2717 = vpack.c.bf16 %v2715, %v1095
      %v2718 = vld [vmem:[%s4 + $0x200] sm:$0xf]
      %v2719 = vld [vmem:[%s4 + $0x204] sm:$0xf]
      %v2720 = vld [vmem:[%s4 + $0x208] sm:$0xf]
      %v2721 = vld [vmem:[%s4 + $0x20c] sm:$0xf]
      %v2722 = vld [vmem:[%s4 + $0x210] sm:$0xf]
      %v2723 = vld [vmem:[%s4 + $0x214] sm:$0xf]
      %v2724 = vld [vmem:[%s4 + $0x218] sm:$0xf]
      %v2725 = vld [vmem:[%s4 + $0x21c] sm:$0xf]
      %v2726 = vld [vmem:[%s4 + $0x220] sm:$0xf]
      %v2727 = vld [vmem:[%s4 + $0x224] sm:$0xf]
      %v2728 = vld [vmem:[%s4 + $0x228] sm:$0xf]
      %v2729 = vld [vmem:[%s4 + $0x22c] sm:$0xf]
      %v2730 = vld [vmem:[%s4 + $0x230] sm:$0xf]
      %v2731 = vld [vmem:[%s4 + $0x234] sm:$0xf]
      %v2732 = vld [vmem:[%s4 + $0x238] sm:$0xf]
      %v2733 = vld [vmem:[%s4 + $0x23c] sm:$0xf]
      %v2750 = vunpack.c.l.b16 %v2718
      %v2751 = vunpack.c.l.b16 %v2719
      %v2752 = vunpack.c.l.b16 %v2720
      %v2753 = vunpack.c.l.b16 %v2721
      %v2754 = vunpack.c.l.b16 %v2722
      %v2755 = vunpack.c.l.b16 %v2723
      %v2756 = vunpack.c.l.b16 %v2724
      %v2757 = vunpack.c.l.b16 %v2725
      %v2758 = vunpack.c.l.b16 %v2726
      %v2759 = vunpack.c.l.b16 %v2727
      %v2760 = vunpack.c.l.b16 %v2728
      %v2761 = vunpack.c.l.b16 %v2729
      %v2762 = vunpack.c.l.b16 %v2730
      %v2763 = vunpack.c.l.b16 %v2731
      %v2764 = vunpack.c.l.b16 %v2732
      %v2765 = vunpack.c.l.b16 %v2733
      %v2766 = vpack.c.b16 %v2751, %v2750
      %v2767 = vpack.c.b16 %v2753, %v2752
      %v2768 = vpack.c.b16 %v2755, %v2754
      %v2769 = vpack.c.b16 %v2757, %v2756
      %v2770 = vpack.c.b16 %v2759, %v2758
      %v2771 = vpack.c.b16 %v2761, %v2760
      %v2772 = vpack.c.b16 %v2763, %v2762
      %v2773 = vpack.c.b16 %v2765, %v2764
      %2782 = vmatprep.subr.bf16.mxu0 0
      %2783 = vmatpush1.bf16.msra.mxu0 %v2766
      %2784 = vmatprep.subr.bf16.mxu0 0
      %2785 = vmatpush1.bf16.msra.mxu0 %v2767
      %2786 = vmatprep.subr.bf16.mxu0 0
      %2787 = vmatpush1.bf16.msra.mxu0 %v2768
      %2788 = vmatprep.subr.bf16.mxu0 0
      %2789 = vmatpush1.bf16.msra.mxu0 %v2769
      %2790 = vmatprep.subr.bf16.mxu0 0
      %2791 = vmatpush1.bf16.msra.mxu0 %v2770
      %2792 = vmatprep.subr.bf16.mxu0 0
      %2793 = vmatpush1.bf16.msra.mxu0 %v2771
      %2794 = vmatprep.subr.bf16.mxu0 0
      %2795 = vmatpush1.bf16.msra.mxu0 %v2772
      %2796 = vmatprep.subr.bf16.mxu0 0
      %2797 = vmatpush1.bf16.msra.mxu0 %v2773
      %2798 = vmatprep.subr.bf16.mxu0 0
      %2799 = vmatpush1.bf16.msra.mxu0 0
      %2800 = vmatprep.subr.bf16.mxu0 0
      %2801 = vmatpush1.bf16.msra.mxu0 0
      %2802 = vmatprep.subr.bf16.mxu0 0
      %2803 = vmatpush1.bf16.msra.mxu0 0
      %2804 = vmatprep.subr.bf16.mxu0 0
      %2805 = vmatpush1.bf16.msra.mxu0 0
      %2806 = vmatprep.subr.bf16.mxu0 0
      %2807 = vmatpush1.bf16.msra.mxu0 0
      %2808 = vmatprep.subr.bf16.mxu0 0
      %2809 = vmatpush1.bf16.msra.mxu0 0
      %2810 = vmatprep.subr.bf16.mxu0 0
      %2811 = vmatpush1.bf16.msra.mxu0 0
      %2812 = vmatprep.subr.bf16.mxu0 0
      %2813 = vmatpush1.bf16.msra.mxu0 0
      %2814 = vmatprep.mubr.bf16.mxu0 0
      %2815 = vmatmul.mubr.bf16.gmra.mrb[0].mxu0 %v1129
      %v2816 = vpop.f32.mrb[0].mxu0
      %v2817 = vadd.f32 0.0, %v2816
      %v2818 = vpop.f32.mrb[0].mxu0
      %v2819 = vpop.f32.mrb[0].mxu0
      %v2820 = vadd.f32 0.0, %v2819
      %v2821 = vpop.f32.mrb[0].mxu0
      %2822 = vmatprep.mubr.bf16.mxu0 0
      %2823 = vmatmul.mubr.bf16.gmra.mrb[0].mxu0 %v1130
      %v2824 = vpop.f32.mrb[0].mxu0
      %v2825 = vadd.f32 0.0, %v2824
      %v2826 = vpop.f32.mrb[0].mxu0
      %v2827 = vpop.f32.mrb[0].mxu0
      %v2828 = vadd.f32 0.0, %v2827
      %v2829 = vpop.f32.mrb[0].mxu0
      %2830 = vmatprep.mubr.bf16.mxu0 0
      %2831 = vmatmul.mubr.bf16.gmra.mrb[0].mxu0 %v1131
      %v2832 = vpop.f32.mrb[0].mxu0
      %v2833 = vadd.f32 0.0, %v2832
      %v2834 = vpop.f32.mrb[0].mxu0
      %v2835 = vpop.f32.mrb[0].mxu0
      %v2836 = vadd.f32 0.0, %v2835
      %v2837 = vpop.f32.mrb[0].mxu0
      %2838 = vmatprep.mubr.bf16.mxu0 0
      %2839 = vmatmul.mubr.bf16.gmra.mrb[0].mxu0 %v1132
      %v2840 = vpop.f32.mrb[0].mxu0
      %v2841 = vadd.f32 0.0, %v2840
      %v2842 = vpop.f32.mrb[0].mxu0
      %v2843 = vpop.f32.mrb[0].mxu0
      %v2844 = vadd.f32 0.0, %v2843
      %v2845 = vpop.f32.mrb[0].mxu0
      %2846 = vmatprep.mubr.bf16.mxu0 0
      %2847 = vmatmul.mubr.bf16.gmra.mrb[0].mxu0 %v1133
      %v2848 = vpop.f32.mrb[0].mxu0
      %v2849 = vadd.f32 0.0, %v2848
      %v2850 = vpop.f32.mrb[0].mxu0
      %v2851 = vpop.f32.mrb[0].mxu0
      %v2852 = vadd.f32 0.0, %v2851
      %v2853 = vpop.f32.mrb[0].mxu0
      %2854 = vmatprep.mubr.bf16.mxu0 0
      %2855 = vmatmul.mubr.bf16.gmra.mrb[0].mxu0 %v1134
      %v2856 = vpop.f32.mrb[0].mxu0
      %v2857 = vadd.f32 0.0, %v2856
      %v2858 = vpop.f32.mrb[0].mxu0
      %v2859 = vpop.f32.mrb[0].mxu0
      %v2860 = vadd.f32 0.0, %v2859
      %v2861 = vpop.f32.mrb[0].mxu0
      %2862 = vmatprep.mubr.bf16.mxu0 0
      %2863 = vmatmul.mubr.bf16.gmra.mrb[0].mxu0 %v1135
      %v2864 = vpop.f32.mrb[0].mxu0
      %v2865 = vadd.f32 0.0, %v2864
      %v2866 = vpop.f32.mrb[0].mxu0
      %v2867 = vpop.f32.mrb[0].mxu0
      %v2868 = vadd.f32 0.0, %v2867
      %v2869 = vpop.f32.mrb[0].mxu0
      %2870 = vmatprep.mubr.bf16.mxu0 0
      %2871 = vmatmul.mubr.bf16.gmra.mrb[0].mxu0 %v1136
      %v2872 = vpop.f32.mrb[0].mxu0
      %v2873 = vadd.f32 0.0, %v2872
      %v2874 = vpop.f32.mrb[0].mxu0
      %v2875 = vpop.f32.mrb[0].mxu0
      %v2876 = vadd.f32 0.0, %v2875
      %v2877 = vpop.f32.mrb[0].mxu0
      %2878 = vmatprep.mubr.bf16.mxu0 0
      %2879 = vmatmul.mubr.bf16.gmra.mrb[0].mxu0 %v1137
      %v2880 = vpop.f32.mrb[0].mxu0
      %v2881 = vadd.f32 0.0, %v2880
      %v2882 = vpop.f32.mrb[0].mxu0
      %v2883 = vpop.f32.mrb[0].mxu0
      %v2884 = vadd.f32 0.0, %v2883
      %v2885 = vpop.f32.mrb[0].mxu0
      %2886 = vmatprep.mubr.bf16.mxu0 0
      %2887 = vmatmul.mubr.bf16.gmra.mrb[0].mxu0 %v1138
      %v2888 = vpop.f32.mrb[0].mxu0
      %v2889 = vadd.f32 0.0, %v2888
      %v2890 = vpop.f32.mrb[0].mxu0
      %v2891 = vpop.f32.mrb[0].mxu0
      %v2892 = vadd.f32 0.0, %v2891
      %v2893 = vpop.f32.mrb[0].mxu0
      %2894 = vmatprep.mubr.bf16.mxu0 0
      %2895 = vmatmul.mubr.bf16.gmra.mrb[0].mxu0 %v1139
      %v2896 = vpop.f32.mrb[0].mxu0
      %v2897 = vadd.f32 0.0, %v2896
      %v2898 = vpop.f32.mrb[0].mxu0
      %v2899 = vpop.f32.mrb[0].mxu0
      %v2900 = vadd.f32 0.0, %v2899
      %v2901 = vpop.f32.mrb[0].mxu0
      %2902 = vmatprep.mubr.bf16.mxu0 0
      %2903 = vmatmul.mubr.bf16.gmra.mrb[0].mxu0 %v1140
      %v2904 = vpop.f32.mrb[0].mxu0
      %v2905 = vadd.f32 0.0, %v2904
      %v2906 = vpop.f32.mrb[0].mxu0
      %v2907 = vpop.f32.mrb[0].mxu0
      %v2908 = vadd.f32 0.0, %v2907
      %v2909 = vpop.f32.mrb[0].mxu0
      %2910 = vmatprep.mubr.bf16.mxu0 0
      %2911 = vmatmul.mubr.bf16.gmra.mrb[0].mxu0 %v1141
      %v2912 = vpop.f32.mrb[0].mxu0
      %v2913 = vadd.f32 0.0, %v2912
      %v2914 = vpop.f32.mrb[0].mxu0
      %v2915 = vpop.f32.mrb[0].mxu0
      %v2916 = vadd.f32 0.0, %v2915
      %v2917 = vpop.f32.mrb[0].mxu0
      %2918 = vmatprep.mubr.bf16.mxu0 0
      %2919 = vmatmul.mubr.bf16.gmra.mrb[0].mxu0 %v1933
      %v2920 = vpop.f32.mrb[0].mxu0
      %v2921 = vadd.f32 0.0, %v2920
      %v2922 = vpop.f32.mrb[0].mxu0
      %v2923 = vpop.f32.mrb[0].mxu0
      %v2924 = vadd.f32 0.0, %v2923
      %v2925 = vpop.f32.mrb[0].mxu0
      %2926 = vmatprep.mubr.bf16.mxu0 0
      %2927 = vmatmul.mubr.bf16.gmra.mrb[0].mxu0 %v2716
      %v2928 = vpop.f32.mrb[0].mxu0
      %v2929 = vadd.f32 0.0, %v2928
      %v2930 = vpop.f32.mrb[0].mxu0
      %v2931 = vpop.f32.mrb[0].mxu0
      %v2932 = vadd.f32 0.0, %v2931
      %v2933 = vpop.f32.mrb[0].mxu0
      %2934 = vmatprep.mubr.bf16.mxu0 0
      %2935 = vmatmul.mubr.bf16.gmra.mrb[0].mxu0 %v2717
      %v2936 = vpop.f32.mrb[0].mxu0
      %v2937 = vadd.f32 0.0, %v2936
      %v2938 = vpop.f32.mrb[0].mxu0
      %v2939 = vpop.f32.mrb[0].mxu0
      %v2940 = vadd.f32 0.0, %v2939
      %v2941 = vpop.f32.mrb[0].mxu0
      %2942 = vdwg.mxu0
      %v2943 = vadd.f32 %v2680, %v2817
      %v2944 = vadd.f32 %v2681, %v2820
      %v2945 = vadd.f32 %v2682, %v2825
      %v2946 = vadd.f32 %v2683, %v2828
      %v2947 = vadd.f32 %v2684, %v2833
      %v2948 = vadd.f32 %v2685, %v2836
      %v2949 = vadd.f32 %v2686, %v2841
      %v2950 = vadd.f32 %v2687, %v2844
      %v2951 = vadd.f32 %v2688, %v2849
      %v2952 = vadd.f32 %v2689, %v2852
      %v2953 = vadd.f32 %v2690, %v2857
      %v2954 = vadd.f32 %v2691, %v2860
      %v2955 = vadd.f32 %v2692, %v2865
      %v2956 = vadd.f32 %v2693, %v2868
      %v2957 = vadd.f32 %v2694, %v2873
      %v2958 = vadd.f32 %v2695, %v2876
      %v2959 = vadd.f32 %v2696, %v2881
      %v2960 = vadd.f32 %v2697, %v2884
      %v2961 = vadd.f32 %v2698, %v2889
      %v2962 = vadd.f32 %v2699, %v2892
      %v2963 = vadd.f32 %v2700, %v2897
      %v2964 = vadd.f32 %v2701, %v2900
      %v2965 = vadd.f32 %v2702, %v2905
      %v2966 = vadd.f32 %v2703, %v2908
      %v2967 = vadd.f32 %v2704, %v2913
      %v2968 = vadd.f32 %v2705, %v2916
      %v2969 = vadd.f32 %v2706, %v2921
      %v2970 = vadd.f32 %v2707, %v2924
      %v2971 = vadd.f32 %v2708, %v2929
      %v2972 = vadd.f32 %v2709, %v2932
      %v2973 = vadd.f32 %v2710, %v2937
      %v2974 = vadd.f32 %v2711, %v2940
      %v2975 = vpack.c.bf16 %v2944, %v2943
      %v2976 = vpack.c.bf16 %v2946, %v2945
      %v2977 = vpack.c.bf16 %v2948, %v2947
      %v2978 = vpack.c.bf16 %v2950, %v2949
      %v2979 = vpack.c.bf16 %v2952, %v2951
      %v2980 = vpack.c.bf16 %v2954, %v2953
      %v2981 = vpack.c.bf16 %v2956, %v2955
      %v2982 = vpack.c.bf16 %v2958, %v2957
      %v2983 = vpack.c.bf16 %v2960, %v2959
      %v2984 = vpack.c.bf16 %v2962, %v2961
      %v2985 = vpack.c.bf16 %v2964, %v2963
      %v2986 = vpack.c.bf16 %v2966, %v2965
      %v2987 = vpack.c.bf16 %v2968, %v2967
      %v2988 = vpack.c.bf16 %v2970, %v2969
      %v2989 = vpack.c.bf16 %v2972, %v2971
      %v2990 = vpack.c.bf16 %v2974, %v2973
      %v3007 = vunpack.c.l.b16 %v2975
      %v3008 = vunpack.c.h.b16 %v2975
      %v3009 = vunpack.c.l.b16 %v2976
      %v3010 = vunpack.c.h.b16 %v2976
      %v3011 = vunpack.c.l.b16 %v2977
      %v3012 = vunpack.c.h.b16 %v2977
      %v3013 = vunpack.c.l.b16 %v2978
      %v3014 = vunpack.c.h.b16 %v2978
      %v3015 = vunpack.c.l.b16 %v2979
      %v3016 = vunpack.c.h.b16 %v2979
      %v3017 = vunpack.c.l.b16 %v2980
      %v3018 = vunpack.c.h.b16 %v2980
      %v3019 = vunpack.c.l.b16 %v2981
      %v3020 = vunpack.c.h.b16 %v2981
      %v3021 = vunpack.c.l.b16 %v2982
      %v3022 = vunpack.c.h.b16 %v2982
      %v3023 = vunpack.c.l.b16 %v2983
      %v3024 = vunpack.c.h.b16 %v2983
      %v3025 = vunpack.c.l.b16 %v2984
      %v3026 = vunpack.c.h.b16 %v2984
      %v3027 = vunpack.c.l.b16 %v2985
      %v3028 = vunpack.c.h.b16 %v2985
      %v3029 = vunpack.c.l.b16 %v2986
      %v3030 = vunpack.c.h.b16 %v2986
      %v3031 = vunpack.c.l.b16 %v2987
      %v3032 = vunpack.c.h.b16 %v2987
      %v3033 = vunpack.c.l.b16 %v2988
      %v3034 = vunpack.c.h.b16 %v2988
      %v3035 = vunpack.c.l.b16 %v2989
      %v3036 = vunpack.c.h.b16 %v2989
      %v3037 = vunpack.c.l.b16 %v2990
      %v3038 = vunpack.c.h.b16 %v2990
      %v3039 = vpack.c.b16 %v3007, %v3007
      %v3040 = vpack.c.b16 %v3008, %v3008
      %v3041 = vpack.c.b16 %v3009, %v3009
      %v3042 = vpack.c.b16 %v3010, %v3010
      %v3043 = vpack.c.b16 %v3011, %v3011
      %v3044 = vpack.c.b16 %v3012, %v3012
      %v3045 = vpack.c.b16 %v3013, %v3013
      %v3046 = vpack.c.b16 %v3014, %v3014
      %v3047 = vpack.c.b16 %v3015, %v3015
      %v3048 = vpack.c.b16 %v3016, %v3016
      %v3049 = vpack.c.b16 %v3017, %v3017
      %v3050 = vpack.c.b16 %v3018, %v3018
      %v3051 = vpack.c.b16 %v3019, %v3019
      %v3052 = vpack.c.b16 %v3020, %v3020
      %v3053 = vpack.c.b16 %v3021, %v3021
      %v3054 = vpack.c.b16 %v3022, %v3022
      %v3055 = vpack.c.b16 %v3023, %v3023
      %v3056 = vpack.c.b16 %v3024, %v3024
      %v3057 = vpack.c.b16 %v3025, %v3025
      %v3058 = vpack.c.b16 %v3026, %v3026
      %v3059 = vpack.c.b16 %v3027, %v3027
      %v3060 = vpack.c.b16 %v3028, %v3028
      %v3061 = vpack.c.b16 %v3029, %v3029
      %v3062 = vpack.c.b16 %v3030, %v3030
      %v3063 = vpack.c.b16 %v3031, %v3031
      %v3064 = vpack.c.b16 %v3032, %v3032
      %v3065 = vpack.c.b16 %v3033, %v3033
      %v3066 = vpack.c.b16 %v3034, %v3034
      %v3067 = vpack.c.b16 %v3035, %v3035
      %v3068 = vpack.c.b16 %v3036, %v3036
      %v3069 = vpack.c.b16 %v3037, %v3037
      %v3070 = vpack.c.b16 %v3038, %v3038
      %3103 = vst [vmem:[%s258] sm:$0xf] %v3039
      %3104 = vst [vmem:[%s258 + $0x4] sm:$0xf] %v3040
      %3105 = vst [vmem:[%s258 + $0x8] sm:$0xf] %v3041
      %3106 = vst [vmem:[%s258 + $0xc] sm:$0xf] %v3042
      %3107 = vst [vmem:[%s258 + $0x10] sm:$0xf] %v3043
      %3108 = vst [vmem:[%s258 + $0x14] sm:$0xf] %v3044
      %3109 = vst [vmem:[%s258 + $0x18] sm:$0xf] %v3045
      %3110 = vst [vmem:[%s258 + $0x1c] sm:$0xf] %v3046
      %3111 = vst [vmem:[%s258 + $0x20] sm:$0xf] %v3047
      %3112 = vst [vmem:[%s258 + $0x24] sm:$0xf] %v3048
      %3113 = vst [vmem:[%s258 + $0x28] sm:$0xf] %v3049
      %3114 = vst [vmem:[%s258 + $0x2c] sm:$0xf] %v3050
      %3115 = vst [vmem:[%s258 + $0x30] sm:$0xf] %v3051
      %3116 = vst [vmem:[%s258 + $0x34] sm:$0xf] %v3052
      %3117 = vst [vmem:[%s258 + $0x38] sm:$0xf] %v3053
      %3118 = vst [vmem:[%s258 + $0x3c] sm:$0xf] %v3054
      %3119 = vst [vmem:[%s258 + $0x40] sm:$0xf] %v3055
      %3120 = vst [vmem:[%s258 + $0x44] sm:$0xf] %v3056
      %3121 = vst [vmem:[%s258 + $0x48] sm:$0xf] %v3057
      %3122 = vst [vmem:[%s258 + $0x4c] sm:$0xf] %v3058
      %3123 = vst [vmem:[%s258 + $0x50] sm:$0xf] %v3059
      %3124 = vst [vmem:[%s258 + $0x54] sm:$0xf] %v3060
      %3125 = vst [vmem:[%s258 + $0x58] sm:$0xf] %v3061
      %3126 = vst [vmem:[%s258 + $0x5c] sm:$0xf] %v3062
      %3127 = vst [vmem:[%s258 + $0x60] sm:$0xf] %v3063
      %3128 = vst [vmem:[%s258 + $0x64] sm:$0xf] %v3064
      %3129 = vst [vmem:[%s258 + $0x68] sm:$0xf] %v3065
      %3130 = vst [vmem:[%s258 + $0x6c] sm:$0xf] %v3066
      %3131 = vst [vmem:[%s258 + $0x70] sm:$0xf] %v3067
      %3132 = vst [vmem:[%s258 + $0x74] sm:$0xf] %v3068
      %3133 = vst [vmem:[%s258 + $0x78] sm:$0xf] %v3069
      %3134 = vst [vmem:[%s258 + $0x7c] sm:$0xf] %v3070
      %v3135 = vadd.f32 %v2943, %v2944
      %v3136 = vadd.f32 %v3135, %v2945
      %v3137 = vadd.f32 %v3136, %v2946
      %v3138 = vadd.f32 %v3137, %v2947
      %v3139 = vadd.f32 %v3138, %v2948
      %v3140 = vadd.f32 %v3139, %v2949
      %v3141 = vadd.f32 %v3140, %v2950
      %v3142 = vadd.f32 %v3141, %v2951
      %v3143 = vadd.f32 %v3142, %v2952
      %v3144 = vadd.f32 %v3143, %v2953
      %v3145 = vadd.f32 %v3144, %v2954
      %v3146 = vadd.f32 %v3145, %v2955
      %v3147 = vadd.f32 %v3146, %v2956
      %v3148 = vadd.f32 %v3147, %v2957
      %v3149 = vadd.f32 %v3148, %v2958
      %v3150 = vadd.f32 %v3149, %v2959
      %v3151 = vadd.f32 %v3150, %v2960
      %v3152 = vadd.f32 %v3151, %v2961
      %v3153 = vadd.f32 %v3152, %v2962
      %v3154 = vadd.f32 %v3153, %v2963
      %v3155 = vadd.f32 %v3154, %v2964
      %v3156 = vadd.f32 %v3155, %v2965
      %v3157 = vadd.f32 %v3156, %v2966
      %v3158 = vadd.f32 %v3157, %v2967
      %v3159 = vadd.f32 %v3158, %v2968
      %v3160 = vadd.f32 %v3159, %v2969
      %v3161 = vadd.f32 %v3160, %v2970
      %v3162 = vadd.f32 %v3161, %v2971
      %v3163 = vadd.f32 %v3162, %v2972
      %v3164 = vadd.f32 %v3163, %v2973
      %v3165 = vadd.f32 %v3164, %v2974
      %v3166 = vrot.slane %v3165, 4
      %v3167 = vadd.f32 %v3165, %v3166
      %v3168 = vrot.slane %v3167, 2
      %v3169 = vadd.f32 %v3167, %v3168
      %v3170 = vrot.slane %v3169, 1
      %v3171 = vadd.f32 %v3169, %v3170
      %3172 = vst [vmem:[%s262] sm:$0x1] %v3171
      %v3173 = vmul.f32 %v2943, %v2943
      %v3174 = vmul.f32 %v2944, %v2944
      %v3175 = vmul.f32 %v2945, %v2945
      %v3176 = vmul.f32 %v2946, %v2946
      %v3177 = vmul.f32 %v2947, %v2947
      %v3178 = vmul.f32 %v2948, %v2948
      %v3179 = vmul.f32 %v2949, %v2949
      %v3180 = vmul.f32 %v2950, %v2950
      %v3181 = vmul.f32 %v2951, %v2951
      %v3182 = vmul.f32 %v2952, %v2952
      %v3183 = vmul.f32 %v2953, %v2953
      %v3184 = vmul.f32 %v2954, %v2954
      %v3185 = vmul.f32 %v2955, %v2955
      %v3186 = vmul.f32 %v2956, %v2956
      %v3187 = vmul.f32 %v2957, %v2957
      %v3188 = vmul.f32 %v2958, %v2958
      %v3189 = vmul.f32 %v2959, %v2959
      %v3190 = vmul.f32 %v2960, %v2960
      %v3191 = vmul.f32 %v2961, %v2961
      %v3192 = vmul.f32 %v2962, %v2962
      %v3193 = vmul.f32 %v2963, %v2963
      %v3194 = vmul.f32 %v2964, %v2964
      %v3195 = vmul.f32 %v2965, %v2965
      %v3196 = vmul.f32 %v2966, %v2966
      %v3197 = vmul.f32 %v2967, %v2967
      %v3198 = vmul.f32 %v2968, %v2968
      %v3199 = vmul.f32 %v2969, %v2969
      %v3200 = vmul.f32 %v2970, %v2970
      %v3201 = vmul.f32 %v2971, %v2971
      %v3202 = vmul.f32 %v2972, %v2972
      %v3203 = vmul.f32 %v2973, %v2973
      %v3204 = vmul.f32 %v2974, %v2974
      %v3205 = vadd.f32 %v3173, %v3174
      %v3206 = vadd.f32 %v3205, %v3175
      %v3207 = vadd.f32 %v3206, %v3176
      %v3208 = vadd.f32 %v3207, %v3177
      %v3209 = vadd.f32 %v3208, %v3178
      %v3210 = vadd.f32 %v3209, %v3179
      %v3211 = vadd.f32 %v3210, %v3180
      %v3212 = vadd.f32 %v3211, %v3181
      %v3213 = vadd.f32 %v3212, %v3182
      %v3214 = vadd.f32 %v3213, %v3183
      %v3215 = vadd.f32 %v3214, %v3184
      %v3216 = vadd.f32 %v3215, %v3185
      %v3217 = vadd.f32 %v3216, %v3186
      %v3218 = vadd.f32 %v3217, %v3187
      %v3219 = vadd.f32 %v3218, %v3188
      %v3220 = vadd.f32 %v3219, %v3189
      %v3221 = vadd.f32 %v3220, %v3190
      %v3222 = vadd.f32 %v3221, %v3191
      %v3223 = vadd.f32 %v3222, %v3192
      %v3224 = vadd.f32 %v3223, %v3193
      %v3225 = vadd.f32 %v3224, %v3194
      %v3226 = vadd.f32 %v3225, %v3195
      %v3227 = vadd.f32 %v3226, %v3196
      %v3228 = vadd.f32 %v3227, %v3197
      %v3229 = vadd.f32 %v3228, %v3198
      %v3230 = vadd.f32 %v3229, %v3199
      %v3231 = vadd.f32 %v3230, %v3200
      %v3232 = vadd.f32 %v3231, %v3201
      %v3233 = vadd.f32 %v3232, %v3202
      %v3234 = vadd.f32 %v3233, %v3203
      %v3235 = vadd.f32 %v3234, %v3204
      %v3236 = vrot.slane %v3235, 4
      %v3237 = vadd.f32 %v3235, %v3236
      %v3238 = vrot.slane %v3237, 2
      %v3239 = vadd.f32 %v3237, %v3238
      %v3240 = vrot.slane %v3239, 1
      %v3241 = vadd.f32 %v3239, %v3240
      %3242 = vst [vmem:[%s262 + $0x1] sm:$0x1] %v3241
      %p3243 = scmp.lt.s32.totalorder %s18, 1
      %s3244 = scalar_select %p3243, %s18, 1
      %s3245 = smul.addr %s3244, 32
      %s3246 = smul.addr %s3245, 4
      %s3247 = scalar_lea.vmem %s5, %s3246
      %p3248 = scmp.lt.s32.totalorder %s18, 1
      %s3249 = scalar_select %p3248, %s18, 1
      %s3250 = smul.addr %s3249, 2
      %s3251 = scalar_lea.vmem %s6, %s3250
      // Predicated region
      $region41: #{bottleneck_forward.5} parent=39 // pred_check
        %p3252 = pneg %p146
      $region42: #{bottleneck_forward.5} parent=39 // pred_check_branch
        %3254 = sbr.rel (%p3252) target = $region44
      $region43: #{bottleneck_forward.5} parent=39 // pred_region
        _
      $region44: #{bottleneck_forward.5} parent=39 // pred_fallthru
        _
      // Predicated region
      $region45: #{bottleneck_forward.5} parent=39 // pred_check
        %p3255 = pneg %p172
      $region46: #{bottleneck_forward.5} parent=39 // pred_check_branch
        %3257 = sbr.rel (%p3255) target = $region48
      $region47: #{bottleneck_forward.5} parent=39 // pred_region
        _
      $region48: #{bottleneck_forward.5} parent=39 // pred_fallthru
        _
    $region40: #{bottleneck_forward.5} parent=5 // pred_fallthru
      _
    %p3258 = scmp.le.s32.totalorder 2, %s13
    // Predicated region
    $region49: #{bottleneck_forward.5} parent=5 // pred_check
      %p3259 = pneg %p3258
    $region50: #{bottleneck_forward.5} parent=5 // pred_check_branch
      %3261 = sbr.rel (%p3259) target = $region52
    $region51: #{bottleneck_forward.5} parent=5 // pred_region
      %s3262 = ssub.s32 %s13, 2
      // Predicated region
      $region53: #{bottleneck_forward.5} parent=51 // pred_check
        %p3263 = pneg %p152
      $region54: #{bottleneck_forward.5} parent=51 // pred_check_branch
        %3265 = sbr.rel (%p3263) target = $region56
      $region55: #{bottleneck_forward.5} parent=51 // pred_region
        %p3266 = scmp.lt.s32.totalorder %s19, 1
        %s3267 = scalar_select %p3266, %s19, 1
        %s3268 = smul.addr %s3267, 32
        %s3269 = smul.addr %s3268, 4
        %s3270 = scalar_lea.vmem %s5, %s3269
      $region56: #{bottleneck_forward.5} parent=51 // pred_fallthru
        _
      // Predicated region
      $region57: #{bottleneck_forward.5} parent=51 // pred_check
        %p3271 = pneg %p178
      $region58: #{bottleneck_forward.5} parent=51 // pred_check_branch
        %3273 = sbr.rel (%p3271) target = $region60
      $region59: #{bottleneck_forward.5} parent=51 // pred_region
        %p3274 = scmp.lt.s32.totalorder %s19, 1
        %s3275 = scalar_select %p3274, %s19, 1
        %s3276 = smul.addr %s3275, 2
        %s3277 = scalar_lea.vmem %s6, %s3276
      $region60: #{bottleneck_forward.5} parent=51 // pred_fallthru
        _
    $region52: #{bottleneck_forward.5} parent=5 // pred_fallthru
      _
  $region6: #{bottleneck_forward.5} parent=0 // loop_footer
    %s17 = sadd.s32 1, %s13
  $region7: #{bottleneck_forward.5} parent=0 // loop_footer_branch
    %12 = sbr.rel target = $region3
  $region8: #{bottleneck_forward.5} parent=0 // loop_exit
    _

</llo_original>
